<compile_context>
chip_gen: v7x
topology: tpu7x:2x2x1
jax: 0.10.0
libtpu: 0.0.40
codegen_flags: <defaults>
</compile_context>

<pallas_src>
import functools
import math

import jax
import jax.numpy as jnp
from jax.experimental import pallas as pl
from jax.experimental.pallas import tpu as pltpu

# ---------------- config (mirrors the TMSC_m7G config object) ----------------
N_LAYERS = 2          # config.num_layer
N_HEAD = 2            # config.num_head
D_MODEL = 32          # config.dim_embedding
D_FF = 64             # config.dim_feedforward
D_K = 16              # config.dim_k
D_V = 16              # config.dim_v
VOCAB_SIZE = 16       # config.vocab_size
SEQ_LEN = 8           # config.seq_len  (encoder runs on SEQ_LEN + 2 tokens)
L = SEQ_LEN + 2
NUM_EMBEDDING = 3     # config.num_embedding
ATTN_SIZE = 8         # config.embed_atten_size
K_MER = 2             # config.k_mer
KMER_NUM = (1 + K_MER) * K_MER // 2   # = 3
BATCH = 2
QKV_COLS = N_HEAD * (2 * D_K + D_V)   # fused [Q | K | V] projection width = 96


# =============================== Pallas kernel ================================

def fused_forward_kernel(ids_ref, origin_ref, pos_ref, tok_ref,
                         sense_w_ref, sense_b_ref, scaled_w_ref, scaled_b_ref,
                         wqkv_ref, bqkv_ref, wo_ref, bo_ref, gamma_ref, beta_ref,
                         cw_ref, cb_ref, w1_ref, b1_ref, w2_ref, b2_ref,
                         fcw1_ref, fcb1_ref, fcw2_ref, fcb2_ref,
                         clsf_ref, repr_ref, base_ref,
                         *, n_layers, n_head, d_k, d_v, n_emb, kmer,
                         vocab, seq_l, batch):
    f32 = jnp.float32
    scale = 1.0 / math.sqrt(float(d_k))

    # ---- multi-sense preparation (batch independent, computed once): merge
    #      the n_emb token tables with the "sense" soft attention.
    #      One (n_emb*V, D) @ (D, 1) matmul for all sense scores. ----
    tok = tok_ref[...]                                               # (n_emb*V, D)
    s_all = jnp.exp(jnp.dot(tok, sense_w_ref[...],
                            preferred_element_type=f32) + sense_b_ref[...])
    num = tok[0:vocab, :] * s_all[0:vocab, :]
    den = s_all[0:vocab, :]
    for e in range(1, n_emb):
        off = e * vocab
        num = num + tok[off:off + vocab, :] * s_all[off:off + vocab, :]
        den = den + s_all[off:off + vocab, :]
    merged = num * pl.reciprocal(den, approx=True)                   # (V, D)

    # ---- k-mer embedding gather for ALL (batch, kmer, position) rows at once
    #      (one-hot matmul) + the scaled-attention scores in one matmul. ----
    rows = batch * kmer * seq_l
    lane_ids = jax.lax.broadcasted_iota(jnp.int32, (rows, vocab), 1)  # (rows, V)
    onehot = (ids_ref[...] == lane_ids).astype(f32)                   # (rows, V)
    emb_all = jnp.dot(onehot, merged, preferred_element_type=f32)     # (rows, D)
    sc_all = jnp.exp(jnp.dot(emb_all, scaled_w_ref[...],
                             preferred_element_type=f32) + scaled_b_ref[...])

    fcw1 = fcw1_ref[...]
    fcb1 = fcb1_ref[...]
    fcw2 = fcw2_ref[...]
    fcb2 = fcb2_ref[...]

    for b in range(batch):
        # ---- multi-scale soft attention across the kmer axis:
        #      x = (sum_k emb_k * exp_k) / (sum_k exp_k) ----
        base = b * kmer * seq_l
        e_num = emb_all[base:base + seq_l, :] * sc_all[base:base + seq_l, :]
        e_den = sc_all[base:base + seq_l, :]
        for k in range(1, kmer):
            off = base + k * seq_l
            e_num = e_num + emb_all[off:off + seq_l, :] * sc_all[off:off + seq_l, :]
            e_den = e_den + sc_all[off:off + seq_l, :]
        x = e_num * pl.reciprocal(e_den, approx=True) + pos_ref[b]    # (L, D)

        # pad mask (broadcast over query rows): key id == 0
        key_pad = origin_ref[b] == 0                                  # (1, L) bool

        # ---- encoder stack ----
        for l in range(n_layers):
            # fused Q|K|V projection: one (L, D) @ (D, 3*H*dk) matmul
            qkv = jnp.dot(x, wqkv_ref[l], preferred_element_type=f32) + bqkv_ref[l]
            y = bo_ref[l] + x                      # output-proj bias + residual
            for h in range(n_head):
                q_off = h * d_k
                k_off = n_head * d_k + h * d_k
                v_off = 2 * n_head * d_k + h * d_v
                qh = qkv[:, q_off:q_off + d_k]
                kh = qkv[:, k_off:k_off + d_k]
                vh = qkv[:, v_off:v_off + d_v]
                scores = jax.lax.dot_general(
                    qh, kh, (((1,), (1,)), ((), ())),
                    preferred_element_type=f32) * scale               # (L, L)
                scores = jnp.where(key_pad, f32(-1e9), scores)        # masked_fill_
                scores = scores - jnp.max(scores, axis=-1, keepdims=True)
                p = jnp.exp(scores)
                attn = p * pl.reciprocal(jnp.sum(p, axis=-1, keepdims=True),
                                         approx=True)
                ctx = jnp.dot(attn, vh, preferred_element_type=f32)   # (L, dv)
                y = y + jnp.dot(ctx, wo_ref[l, h], preferred_element_type=f32)

            # residual + LayerNorm (eps = 1e-5, PyTorch default)
            mu = jnp.mean(y, axis=-1, keepdims=True)
            var = jnp.mean(jnp.square(y - mu), axis=-1, keepdims=True)
            y = (y - mu) * jax.lax.rsqrt(var + 1e-5) * gamma_ref[l] + beta_ref[l]

            # Conv1d(kernel_size=1) over sequence-position "channels"
            #   + (eval) Dropout + ReLU
            c = jnp.maximum(
                jnp.dot(cw_ref[l], y, preferred_element_type=f32) + cb_ref[l], 0.0)

            # position-wise FFN: fc2(relu(fc1(x)))   (no residual / norm)
            h1 = jnp.maximum(
                jnp.dot(c, w1_ref[l], preferred_element_type=f32) + b1_ref[l], 0.0)
            x = jnp.dot(h1, w2_ref[l], preferred_element_type=f32) + b2_ref[l]

        # ---- heads: a single fc_task pass over all L positions ----
        hf = jnp.maximum(jnp.dot(x, fcw1, preferred_element_type=f32) + fcb1, 0.0)
        logits = jnp.dot(hf, fcw2, preferred_element_type=f32) + fcb2  # (L, 2)

        # max-of-softmax over the 2 classes, for every position (the wrapper
        # slices positions 1..L-2 for logits_base)
        m = jnp.max(logits, axis=-1, keepdims=True)
        pz = jnp.exp(logits - m)
        probs = pz * pl.reciprocal(jnp.sum(pz, axis=-1, keepdims=True), approx=True)

        clsf_ref[b] = logits[0:1, :]                          # CLS logits  (1, 2)
        repr_ref[b] = x[0:1, :]                               # repr        (1, D)
        base_ref[b] = jnp.max(probs, axis=-1, keepdims=True)  # base probs  (L, 1)


# =============================== Pallas wrapper ===============================

def _full_spec(shape):
    nd = len(shape)
    return pl.BlockSpec(shape, lambda *_args, _nd=nd: (0,) * _nd)


def _fold_soft_attention(p):
    """Fold atten(Linear D->A) followed by merge(Linear A->1) into one rank-1
    affine map (there is no nonlinearity between the two linears)."""
    w = jnp.dot(p["wa"], p["wm"].T)                    # (D, 1)
    b = jnp.dot(p["ba"], p["wm"].T) + p["bm"]          # (1, 1)
    return w, b


def tmsc_m7g_forward(params, input_ids, input_ids_origin, pos_embed):
    b, lx, kx = input_ids.shape

    sense_w, sense_b = _fold_soft_attention(params["sense"])
    scaled_w, scaled_b = _fold_soft_attention(params["scaled"])

    # flatten (B, L, K) -> (B*K*L, 1) so the kernel gathers everything at once
    ids_flat = jnp.transpose(input_ids, (0, 2, 1)).reshape(b * kx * lx, 1)
    origin = input_ids_origin[:, None, :]                        # (B, 1, L) int32
    tok_flat = params["tok_tables"].reshape(NUM_EMBEDDING * VOCAB_SIZE, D_MODEL)

    lp, fc = params["layers"], params["fc"]
    args = (ids_flat, origin, pos_embed, tok_flat,
            sense_w, sense_b, scaled_w, scaled_b,
            lp["wqkv"], lp["bqkv"], lp["wo"], lp["bo"], lp["gamma"], lp["beta"],
            lp["cw"], lp["cb"], lp["w1"], lp["b1"], lp["w2"], lp["b2"],
            fc["w1"], fc["b1"], fc["w2"], fc["b2"])

    kernel = functools.partial(
        fused_forward_kernel, n_layers=N_LAYERS, n_head=N_HEAD, d_k=D_K, d_v=D_V,
        n_emb=NUM_EMBEDDING, kmer=kx, vocab=VOCAB_SIZE, seq_l=lx, batch=b)

    out_shape = (jax.ShapeDtypeStruct((b, 1, 2), jnp.float32),
                 jax.ShapeDtypeStruct((b, 1, D_MODEL), jnp.float32),
                 jax.ShapeDtypeStruct((b, lx, 1), jnp.float32))

    clsf, rep, base_all = pl.pallas_call(
        kernel,
        out_shape=out_shape,
        grid=(1,),
        in_specs=[_full_spec(a.shape) for a in args],
        out_specs=tuple(_full_spec(s.shape) for s in out_shape),
        compiler_params=pltpu.CompilerParams(dimension_semantics=("arbitrary",)),
    )(*args)

    logits_clsf = clsf[:, 0, :]
    representation = rep[:, 0, :]
    logits_base = base_all[:, 1:lx - 1, 0]
    # TODO(synk): original returns a detached numpy array for logits_base; we return a jnp array.
    return logits_clsf, representation, logits_base


# ============================ parameters & inputs =============================

def init_params(key):
    keys = iter(jax.random.split(key, 64))

    def nrm(shape, scale=0.1):
        return scale * jax.random.normal(next(keys), shape, jnp.float32)

    return {
        # num_embedding per-sense token embedding tables
        "tok_tables": nrm((NUM_EMBEDDING, VOCAB_SIZE, D_MODEL), 1.0),
        "sense": dict(wa=nrm((D_MODEL, ATTN_SIZE)), ba=nrm((1, ATTN_SIZE)),
                      wm=nrm((1, ATTN_SIZE)), bm=nrm((1, 1))),
        "scaled": dict(wa=nrm((D_MODEL, ATTN_SIZE)), ba=nrm((1, ATTN_SIZE)),
                       wm=nrm((1, ATTN_SIZE)), bm=nrm((1, 1))),
        "fc": dict(w1=nrm((D_MODEL, 16)), b1=nrm((1, 16)),
                   w2=nrm((16, 2)), b2=nrm((1, 2))),
        # all encoder layers stacked on a leading axis; Q|K|V fused per layer
        "layers": dict(
            wqkv=nrm((N_LAYERS, D_MODEL, QKV_COLS)),
            bqkv=nrm((N_LAYERS, 1, QKV_COLS)),
            wo=nrm((N_LAYERS, N_HEAD, D_V, D_MODEL)),
            bo=nrm((N_LAYERS, 1, D_MODEL)),
            gamma=jnp.ones((N_LAYERS, 1, D_MODEL), jnp.float32),
            beta=jnp.zeros((N_LAYERS, 1, D_MODEL), jnp.float32),
            cw=nrm((N_LAYERS, L, L)), cb=nrm((N_LAYERS, L, 1)),
            w1=nrm((N_LAYERS, D_MODEL, D_FF)), b1=nrm((N_LAYERS, 1, D_FF)),
            w2=nrm((N_LAYERS, D_FF, D_MODEL)), b2=nrm((N_LAYERS, 1, D_MODEL)),
        ),
    }


# ===================================== main ===================================

if __name__ == "__main__":
    key = jax.random.PRNGKey(0)
    pkey, ikey, okey, pekey = jax.random.split(key, 4)

    params = init_params(pkey)
    input_ids = jax.random.randint(ikey, (BATCH, L, KMER_NUM), 1, VOCAB_SIZE,
                                   dtype=jnp.int32)
    input_ids_origin = jax.random.randint(okey, (BATCH, L), 1, VOCAB_SIZE,
                                          dtype=jnp.int32)
    input_ids_origin = input_ids_origin.at[:, -2:].set(0)   # simulate padding tokens
    pos_embed = 0.1 * jax.random.normal(pekey, (BATCH, L, D_MODEL), jnp.float32)

    fwd = jax.jit(tmsc_m7g_forward)
    logits_clsf, representation, logits_base = fwd(params, input_ids,
                                                   input_ids_origin, pos_embed)
    jax.block_until_ready((logits_clsf, representation, logits_base))

    assert logits_clsf.shape == (BATCH, 2)
    assert representation.shape == (BATCH, D_MODEL)
    assert logits_base.shape == (BATCH, L - 2)
    assert bool(jnp.all(jnp.isfinite(logits_clsf)))
    assert bool(jnp.all(jnp.isfinite(representation)))
    assert bool(jnp.all(jnp.isfinite(logits_base)))
    print("KERNEL_OK")
</pallas_src>

<mosaic_0001>
module attributes {stable_mosaic.version = 11 : i64} {
  func.func @fused_forward_kernel(%arg0: i32, %arg1: memref<60x1xi32, #tpu.memory_space<vmem>>, %arg2: memref<2x1x10xi32, #tpu.memory_space<vmem>>, %arg3: memref<2x10x32xf32, #tpu.memory_space<vmem>>, %arg4: memref<48x32xf32, #tpu.memory_space<vmem>>, %arg5: memref<32x1xf32, #tpu.memory_space<vmem>>, %arg6: memref<1x1xf32, #tpu.memory_space<vmem>>, %arg7: memref<32x1xf32, #tpu.memory_space<vmem>>, %arg8: memref<1x1xf32, #tpu.memory_space<vmem>>, %arg9: memref<2x32x96xf32, #tpu.memory_space<vmem>>, %arg10: memref<2x1x96xf32, #tpu.memory_space<vmem>>, %arg11: memref<2x2x16x32xf32, #tpu.memory_space<vmem>>, %arg12: memref<2x1x32xf32, #tpu.memory_space<vmem>>, %arg13: memref<2x1x32xf32, #tpu.memory_space<vmem>>, %arg14: memref<2x1x32xf32, #tpu.memory_space<vmem>>, %arg15: memref<2x10x10xf32, #tpu.memory_space<vmem>>, %arg16: memref<2x10x1xf32, #tpu.memory_space<vmem>>, %arg17: memref<2x32x64xf32, #tpu.memory_space<vmem>>, %arg18: memref<2x1x64xf32, #tpu.memory_space<vmem>>, %arg19: memref<2x64x32xf32, #tpu.memory_space<vmem>>, %arg20: memref<2x1x32xf32, #tpu.memory_space<vmem>>, %arg21: memref<32x16xf32, #tpu.memory_space<vmem>>, %arg22: memref<1x16xf32, #tpu.memory_space<vmem>>, %arg23: memref<16x2xf32, #tpu.memory_space<vmem>>, %arg24: memref<1x2xf32, #tpu.memory_space<vmem>>, %arg25: memref<2x1x2xf32, #tpu.memory_space<vmem>>, %arg26: memref<2x1x32xf32, #tpu.memory_space<vmem>>, %arg27: memref<2x10x1xf32, #tpu.memory_space<vmem>>) attributes {dimension_semantics = [#tpu.dimension_semantics<arbitrary>], iteration_bounds = array<i64: 1>, scalar_prefetch = 0 : i64, scratch_operands = 0 : i64, tpu.core_type = #tpu.core_type<tc>, window_params = [{pipeline_mode = #tpu.pipeline_mode<synchronous>, transform_indices = @transform_0, window_bounds = array<i64: 60, 1>}, {pipeline_mode = #tpu.pipeline_mode<synchronous>, transform_indices = @transform_1, window_bounds = array<i64: 2, 1, 10>}, {pipeline_mode = #tpu.pipeline_mode<synchronous>, transform_indices = @transform_2, window_bounds = array<i64: 2, 10, 32>}, {pipeline_mode = #tpu.pipeline_mode<synchronous>, transform_indices = @transform_3, window_bounds = array<i64: 48, 32>}, {pipeline_mode = #tpu.pipeline_mode<synchronous>, transform_indices = @transform_4, window_bounds = array<i64: 32, 1>}, {pipeline_mode = #tpu.pipeline_mode<synchronous>, transform_indices = @transform_5, window_bounds = array<i64: 1, 1>}, {pipeline_mode = #tpu.pipeline_mode<synchronous>, transform_indices = @transform_6, window_bounds = array<i64: 32, 1>}, {pipeline_mode = #tpu.pipeline_mode<synchronous>, transform_indices = @transform_7, window_bounds = array<i64: 1, 1>}, {pipeline_mode = #tpu.pipeline_mode<synchronous>, transform_indices = @transform_8, window_bounds = array<i64: 2, 32, 96>}, {pipeline_mode = #tpu.pipeline_mode<synchronous>, transform_indices = @transform_9, window_bounds = array<i64: 2, 1, 96>}, {pipeline_mode = #tpu.pipeline_mode<synchronous>, transform_indices = @transform_10, window_bounds = array<i64: 2, 2, 16, 32>}, {pipeline_mode = #tpu.pipeline_mode<synchronous>, transform_indices = @transform_11, window_bounds = array<i64: 2, 1, 32>}, {pipeline_mode = #tpu.pipeline_mode<synchronous>, transform_indices = @transform_12, window_bounds = array<i64: 2, 1, 32>}, {pipeline_mode = #tpu.pipeline_mode<synchronous>, transform_indices = @transform_13, window_bounds = array<i64: 2, 1, 32>}, {pipeline_mode = #tpu.pipeline_mode<synchronous>, transform_indices = @transform_14, window_bounds = array<i64: 2, 10, 10>}, {pipeline_mode = #tpu.pipeline_mode<synchronous>, transform_indices = @transform_15, window_bounds = array<i64: 2, 10, 1>}, {pipeline_mode = #tpu.pipeline_mode<synchronous>, transform_indices = @transform_16, window_bounds = array<i64: 2, 32, 64>}, {pipeline_mode = #tpu.pipeline_mode<synchronous>, transform_indices = @transform_17, window_bounds = array<i64: 2, 1, 64>}, {pipeline_mode = #tpu.pipeline_mode<synchronous>, transform_indices = @transform_18, window_bounds = array<i64: 2, 64, 32>}, {pipeline_mode = #tpu.pipeline_mode<synchronous>, transform_indices = @transform_19, window_bounds = array<i64: 2, 1, 32>}, {pipeline_mode = #tpu.pipeline_mode<synchronous>, transform_indices = @transform_20, window_bounds = array<i64: 32, 16>}, {pipeline_mode = #tpu.pipeline_mode<synchronous>, transform_indices = @transform_21, window_bounds = array<i64: 1, 16>}, {pipeline_mode = #tpu.pipeline_mode<synchronous>, transform_indices = @transform_22, window_bounds = array<i64: 16, 2>}, {pipeline_mode = #tpu.pipeline_mode<synchronous>, transform_indices = @transform_23, window_bounds = array<i64: 1, 2>}, {pipeline_mode = #tpu.pipeline_mode<synchronous>, transform_indices = @transform_24, window_bounds = array<i64: 2, 1, 2>}, {pipeline_mode = #tpu.pipeline_mode<synchronous>, transform_indices = @transform_25, window_bounds = array<i64: 2, 1, 32>}, {pipeline_mode = #tpu.pipeline_mode<synchronous>, transform_indices = @transform_26, window_bounds = array<i64: 2, 10, 1>}]} {
    %c0 = arith.constant 0 : index
    %c0_0 = arith.constant 0 : index
    %0 = vector.load %arg4[%c0, %c0_0] : memref<48x32xf32, #tpu.memory_space<vmem>>, vector<48x32xf32>
    %c0_1 = arith.constant 0 : index
    %c0_2 = arith.constant 0 : index
    %1 = vector.load %arg5[%c0_1, %c0_2] : memref<32x1xf32, #tpu.memory_space<vmem>>, vector<32x1xf32>
    %cst = arith.constant dense<0.000000e+00> : vector<48x1xf32>
    %2 = tpu.matmul %0, %1, %cst {dimension_numbers = #tpu.dot_dimension_numbers<[1], [0], [0], [1], [0, 0, 1, 1], [], []>} : vector<48x32xf32>, vector<32x1xf32>, vector<48x1xf32> -> vector<48x1xf32>
    %c0_3 = arith.constant 0 : index
    %c0_4 = arith.constant 0 : index
    %3 = vector.load %arg6[%c0_3, %c0_4] : memref<1x1xf32, #tpu.memory_space<vmem>>, vector<1x1xf32>
    %4 = vector.broadcast %3 : vector<1x1xf32> to vector<48x1xf32>
    %5 = arith.addf %2, %4 : vector<48x1xf32>
    %6 = math.exp %5 : vector<48x1xf32>
    %7 = vector.extract_strided_slice %0 {offsets = [0, 0], sizes = [16, 32], strides = [1, 1]} : vector<48x32xf32> to vector<16x32xf32>
    %8 = vector.extract_strided_slice %6 {offsets = [0, 0], sizes = [16, 1], strides = [1, 1]} : vector<48x1xf32> to vector<16x1xf32>
    %9 = vector.broadcast %8 : vector<16x1xf32> to vector<16x32xf32>
    %10 = arith.mulf %7, %9 : vector<16x32xf32>
    %11 = vector.extract_strided_slice %6 {offsets = [0, 0], sizes = [16, 1], strides = [1, 1]} : vector<48x1xf32> to vector<16x1xf32>
    %12 = vector.extract_strided_slice %0 {offsets = [16, 0], sizes = [16, 32], strides = [1, 1]} : vector<48x32xf32> to vector<16x32xf32>
    %13 = vector.extract_strided_slice %6 {offsets = [16, 0], sizes = [16, 1], strides = [1, 1]} : vector<48x1xf32> to vector<16x1xf32>
    %14 = vector.broadcast %13 : vector<16x1xf32> to vector<16x32xf32>
    %15 = arith.mulf %12, %14 : vector<16x32xf32>
    %16 = arith.addf %10, %15 : vector<16x32xf32>
    %17 = vector.extract_strided_slice %6 {offsets = [16, 0], sizes = [16, 1], strides = [1, 1]} : vector<48x1xf32> to vector<16x1xf32>
    %18 = arith.addf %11, %17 : vector<16x1xf32>
    %19 = vector.extract_strided_slice %0 {offsets = [32, 0], sizes = [16, 32], strides = [1, 1]} : vector<48x32xf32> to vector<16x32xf32>
    %20 = vector.extract_strided_slice %6 {offsets = [32, 0], sizes = [16, 1], strides = [1, 1]} : vector<48x1xf32> to vector<16x1xf32>
    %21 = vector.broadcast %20 : vector<16x1xf32> to vector<16x32xf32>
    %22 = arith.mulf %19, %21 : vector<16x32xf32>
    %23 = arith.addf %16, %22 : vector<16x32xf32>
    %24 = vector.extract_strided_slice %6 {offsets = [32, 0], sizes = [16, 1], strides = [1, 1]} : vector<48x1xf32> to vector<16x1xf32>
    %25 = arith.addf %18, %24 : vector<16x1xf32>
    %26 = tpu.reciprocal %25 {approx = true} : vector<16x1xf32> -> vector<16x1xf32>
    %27 = vector.broadcast %26 : vector<16x1xf32> to vector<16x32xf32>
    %28 = arith.mulf %23, %27 : vector<16x32xf32>
    %29 = tpu.iota {dimensions = array<i32: 1>} : vector<60x16xi32>
    %c0_5 = arith.constant 0 : index
    %c0_6 = arith.constant 0 : index
    %30 = vector.load %arg1[%c0_5, %c0_6] : memref<60x1xi32, #tpu.memory_space<vmem>>, vector<60x1xi32>
    %31 = vector.broadcast %30 : vector<60x1xi32> to vector<60x16xi32>
    %32 = arith.cmpi eq, %31, %29 : vector<60x16xi32>
    %33 = arith.extui %32 : vector<60x16xi1> to vector<60x16xi32>
    %34 = arith.sitofp %33 : vector<60x16xi32> to vector<60x16xf32>
    %cst_7 = arith.constant dense<0.000000e+00> : vector<60x32xf32>
    %35 = tpu.matmul %34, %28, %cst_7 {dimension_numbers = #tpu.dot_dimension_numbers<[1], [0], [0], [1], [0, 0, 1, 1], [], []>} : vector<60x16xf32>, vector<16x32xf32>, vector<60x32xf32> -> vector<60x32xf32>
    %c0_8 = arith.constant 0 : index
    %c0_9 = arith.constant 0 : index
    %36 = vector.load %arg7[%c0_8, %c0_9] : memref<32x1xf32, #tpu.memory_space<vmem>>, vector<32x1xf32>
    %cst_10 = arith.constant dense<0.000000e+00> : vector<60x1xf32>
    %37 = tpu.matmul %35, %36, %cst_10 {dimension_numbers = #tpu.dot_dimension_numbers<[1], [0], [0], [1], [0, 0, 1, 1], [], []>} : vector<60x32xf32>, vector<32x1xf32>, vector<60x1xf32> -> vector<60x1xf32>
    %c0_11 = arith.constant 0 : index
    %c0_12 = arith.constant 0 : index
    %38 = vector.load %arg8[%c0_11, %c0_12] : memref<1x1xf32, #tpu.memory_space<vmem>>, vector<1x1xf32>
    %39 = vector.broadcast %38 : vector<1x1xf32> to vector<60x1xf32>
    %40 = arith.addf %37, %39 : vector<60x1xf32>
    %41 = math.exp %40 : vector<60x1xf32>
    %c0_13 = arith.constant 0 : index
    %c0_14 = arith.constant 0 : index
    %42 = vector.load %arg21[%c0_13, %c0_14] : memref<32x16xf32, #tpu.memory_space<vmem>>, vector<32x16xf32>
    %c0_15 = arith.constant 0 : index
    %c0_16 = arith.constant 0 : index
    %43 = vector.load %arg22[%c0_15, %c0_16] : memref<1x16xf32, #tpu.memory_space<vmem>>, vector<1x16xf32>
    %c0_17 = arith.constant 0 : index
    %c0_18 = arith.constant 0 : index
    %44 = vector.load %arg23[%c0_17, %c0_18] : memref<16x2xf32, #tpu.memory_space<vmem>>, vector<16x2xf32>
    %c0_19 = arith.constant 0 : index
    %c0_20 = arith.constant 0 : index
    %45 = vector.load %arg24[%c0_19, %c0_20] : memref<1x2xf32, #tpu.memory_space<vmem>>, vector<1x2xf32>
    %46 = vector.extract_strided_slice %35 {offsets = [0, 0], sizes = [10, 32], strides = [1, 1]} : vector<60x32xf32> to vector<10x32xf32>
    %47 = vector.extract_strided_slice %41 {offsets = [0, 0], sizes = [10, 1], strides = [1, 1]} : vector<60x1xf32> to vector<10x1xf32>
    %48 = vector.broadcast %47 : vector<10x1xf32> to vector<10x32xf32>
    %49 = arith.mulf %46, %48 : vector<10x32xf32>
    %50 = vector.extract_strided_slice %41 {offsets = [0, 0], sizes = [10, 1], strides = [1, 1]} : vector<60x1xf32> to vector<10x1xf32>
    %51 = vector.extract_strided_slice %35 {offsets = [10, 0], sizes = [10, 32], strides = [1, 1]} : vector<60x32xf32> to vector<10x32xf32>
    %52 = vector.extract_strided_slice %41 {offsets = [10, 0], sizes = [10, 1], strides = [1, 1]} : vector<60x1xf32> to vector<10x1xf32>
    %53 = vector.broadcast %52 : vector<10x1xf32> to vector<10x32xf32>
    %54 = arith.mulf %51, %53 : vector<10x32xf32>
    %55 = arith.addf %49, %54 : vector<10x32xf32>
    %56 = vector.extract_strided_slice %41 {offsets = [10, 0], sizes = [10, 1], strides = [1, 1]} : vector<60x1xf32> to vector<10x1xf32>
    %57 = arith.addf %50, %56 : vector<10x1xf32>
    %58 = vector.extract_strided_slice %35 {offsets = [20, 0], sizes = [10, 32], strides = [1, 1]} : vector<60x32xf32> to vector<10x32xf32>
    %59 = vector.extract_strided_slice %41 {offsets = [20, 0], sizes = [10, 1], strides = [1, 1]} : vector<60x1xf32> to vector<10x1xf32>
    %60 = vector.broadcast %59 : vector<10x1xf32> to vector<10x32xf32>
    %61 = arith.mulf %58, %60 : vector<10x32xf32>
    %62 = arith.addf %55, %61 : vector<10x32xf32>
    %63 = vector.extract_strided_slice %41 {offsets = [20, 0], sizes = [10, 1], strides = [1, 1]} : vector<60x1xf32> to vector<10x1xf32>
    %64 = arith.addf %57, %63 : vector<10x1xf32>
    %65 = tpu.reciprocal %64 {approx = true} : vector<10x1xf32> -> vector<10x1xf32>
    %66 = vector.broadcast %65 : vector<10x1xf32> to vector<10x32xf32>
    %67 = arith.mulf %62, %66 : vector<10x32xf32>
    %c0_21 = arith.constant 0 : index
    %c0_22 = arith.constant 0 : index
    %c0_23 = arith.constant 0 : index
    %68 = vector.load %arg3[%c0_21, %c0_22, %c0_23] : memref<2x10x32xf32, #tpu.memory_space<vmem>>, vector<1x10x32xf32>
    %69 = vector.shape_cast %68 : vector<1x10x32xf32> to vector<10x32xf32>
    %70 = arith.addf %67, %69 : vector<10x32xf32>
    %c0_24 = arith.constant 0 : index
    %c0_25 = arith.constant 0 : index
    %c0_26 = arith.constant 0 : index
    %71 = vector.load %arg2[%c0_24, %c0_25, %c0_26] : memref<2x1x10xi32, #tpu.memory_space<vmem>>, vector<1x1x10xi32>
    %72 = vector.shape_cast %71 : vector<1x1x10xi32> to vector<1x10xi32>
    %c0_i32 = arith.constant 0 : i32
    %73 = vector.broadcast %c0_i32 : i32 to vector<1x10xi32>
    %74 = arith.cmpi eq, %72, %73 : vector<1x10xi32>
    %c0_27 = arith.constant 0 : index
    %c0_28 = arith.constant 0 : index
    %c0_29 = arith.constant 0 : index
    %75 = vector.load %arg9[%c0_27, %c0_28, %c0_29] : memref<2x32x96xf32, #tpu.memory_space<vmem>>, vector<1x32x96xf32>
    %76 = vector.shape_cast %75 : vector<1x32x96xf32> to vector<32x96xf32>
    %cst_30 = arith.constant dense<0.000000e+00> : vector<10x96xf32>
    %77 = tpu.matmul %70, %76, %cst_30 {dimension_numbers = #tpu.dot_dimension_numbers<[1], [0], [0], [1], [0, 0, 1, 1], [], []>} : vector<10x32xf32>, vector<32x96xf32>, vector<10x96xf32> -> vector<10x96xf32>
    %c0_31 = arith.constant 0 : index
    %c0_32 = arith.constant 0 : index
    %c0_33 = arith.constant 0 : index
    %78 = vector.load %arg10[%c0_31, %c0_32, %c0_33] : memref<2x1x96xf32, #tpu.memory_space<vmem>>, vector<1x1x96xf32>
    %79 = vector.shape_cast %78 : vector<1x1x96xf32> to vector<1x96xf32>
    %80 = vector.broadcast %79 : vector<1x96xf32> to vector<10x96xf32>
    %81 = arith.addf %77, %80 : vector<10x96xf32>
    %c0_34 = arith.constant 0 : index
    %c0_35 = arith.constant 0 : index
    %c0_36 = arith.constant 0 : index
    %82 = vector.load %arg12[%c0_34, %c0_35, %c0_36] : memref<2x1x32xf32, #tpu.memory_space<vmem>>, vector<1x1x32xf32>
    %83 = vector.shape_cast %82 : vector<1x1x32xf32> to vector<1x32xf32>
    %84 = vector.broadcast %83 : vector<1x32xf32> to vector<10x32xf32>
    %85 = arith.addf %84, %70 : vector<10x32xf32>
    %86 = vector.extract_strided_slice %81 {offsets = [0, 0], sizes = [10, 16], strides = [1, 1]} : vector<10x96xf32> to vector<10x16xf32>
    %87 = vector.extract_strided_slice %81 {offsets = [0, 32], sizes = [10, 16], strides = [1, 1]} : vector<10x96xf32> to vector<10x16xf32>
    %88 = vector.extract_strided_slice %81 {offsets = [0, 64], sizes = [10, 16], strides = [1, 1]} : vector<10x96xf32> to vector<10x16xf32>
    %cst_37 = arith.constant dense<0.000000e+00> : vector<10x10xf32>
    %89 = tpu.matmul %86, %87, %cst_37 {dimension_numbers = #tpu.dot_dimension_numbers<[1], [1], [0], [0], [0, 0, 1, 0], [], []>} : vector<10x16xf32>, vector<10x16xf32>, vector<10x10xf32> -> vector<10x10xf32>
    %cst_38 = arith.constant 2.500000e-01 : f32
    %90 = vector.broadcast %cst_38 : f32 to vector<10x10xf32>
    %91 = arith.mulf %89, %90 : vector<10x10xf32>
    %cst_39 = arith.constant -1.000000e+09 : f32
    %92 = vector.shape_cast %74 : vector<1x10xi1> to vector<1x10xi1>
    %93 = vector.broadcast %92 : vector<1x10xi1> to vector<10x10xi1>
    %94 = vector.broadcast %cst_39 : f32 to vector<10x10xf32>
    %95 = arith.select %93, %94, %91 : vector<10x10xi1>, vector<10x10xf32>
    %cst_40 = arith.constant dense<0xFF800000> : vector<10xf32>
    %96 = vector.multi_reduction <maximumf>, %95, %cst_40 [1] : vector<10x10xf32> to vector<10xf32>
    %97 = vector.shape_cast %96 : vector<10xf32> to vector<10x1xf32>
    %98 = vector.broadcast %97 : vector<10x1xf32> to vector<10x10xf32>
    %99 = arith.subf %95, %98 : vector<10x10xf32>
    %100 = math.exp %99 : vector<10x10xf32>
    %cst_41 = arith.constant dense<0.000000e+00> : vector<10xf32>
    %101 = vector.multi_reduction <add>, %100, %cst_41 [1] : vector<10x10xf32> to vector<10xf32>
    %102 = vector.shape_cast %101 : vector<10xf32> to vector<10x1xf32>
    %103 = tpu.reciprocal %102 {approx = true} : vector<10x1xf32> -> vector<10x1xf32>
    %104 = vector.broadcast %103 : vector<10x1xf32> to vector<10x10xf32>
    %105 = arith.mulf %100, %104 : vector<10x10xf32>
    %cst_42 = arith.constant dense<0.000000e+00> : vector<10x16xf32>
    %106 = tpu.matmul %105, %88, %cst_42 {dimension_numbers = #tpu.dot_dimension_numbers<[1], [0], [0], [1], [0, 0, 1, 1], [], []>} : vector<10x10xf32>, vector<10x16xf32>, vector<10x16xf32> -> vector<10x16xf32>
    %c0_43 = arith.constant 0 : index
    %c0_44 = arith.constant 0 : index
    %c0_45 = arith.constant 0 : index
    %c0_46 = arith.constant 0 : index
    %107 = vector.load %arg11[%c0_43, %c0_44, %c0_45, %c0_46] : memref<2x2x16x32xf32, #tpu.memory_space<vmem>>, vector<1x1x16x32xf32>
    %108 = vector.shape_cast %107 : vector<1x1x16x32xf32> to vector<16x32xf32>
    %cst_47 = arith.constant dense<0.000000e+00> : vector<10x32xf32>
    %109 = tpu.matmul %106, %108, %cst_47 {dimension_numbers = #tpu.dot_dimension_numbers<[1], [0], [0], [1], [0, 0, 1, 1], [], []>} : vector<10x16xf32>, vector<16x32xf32>, vector<10x32xf32> -> vector<10x32xf32>
    %110 = arith.addf %85, %109 : vector<10x32xf32>
    %111 = vector.extract_strided_slice %81 {offsets = [0, 16], sizes = [10, 16], strides = [1, 1]} : vector<10x96xf32> to vector<10x16xf32>
    %112 = vector.extract_strided_slice %81 {offsets = [0, 48], sizes = [10, 16], strides = [1, 1]} : vector<10x96xf32> to vector<10x16xf32>
    %113 = vector.extract_strided_slice %81 {offsets = [0, 80], sizes = [10, 16], strides = [1, 1]} : vector<10x96xf32> to vector<10x16xf32>
    %cst_48 = arith.constant dense<0.000000e+00> : vector<10x10xf32>
    %114 = tpu.matmul %111, %112, %cst_48 {dimension_numbers = #tpu.dot_dimension_numbers<[1], [1], [0], [0], [0, 0, 1, 0], [], []>} : vector<10x16xf32>, vector<10x16xf32>, vector<10x10xf32> -> vector<10x10xf32>
    %cst_49 = arith.constant 2.500000e-01 : f32
    %115 = vector.broadcast %cst_49 : f32 to vector<10x10xf32>
    %116 = arith.mulf %114, %115 : vector<10x10xf32>
    %cst_50 = arith.constant -1.000000e+09 : f32
    %117 = vector.shape_cast %74 : vector<1x10xi1> to vector<1x10xi1>
    %118 = vector.broadcast %117 : vector<1x10xi1> to vector<10x10xi1>
    %119 = vector.broadcast %cst_50 : f32 to vector<10x10xf32>
    %120 = arith.select %118, %119, %116 : vector<10x10xi1>, vector<10x10xf32>
    %cst_51 = arith.constant dense<0xFF800000> : vector<10xf32>
    %121 = vector.multi_reduction <maximumf>, %120, %cst_51 [1] : vector<10x10xf32> to vector<10xf32>
    %122 = vector.shape_cast %121 : vector<10xf32> to vector<10x1xf32>
    %123 = vector.broadcast %122 : vector<10x1xf32> to vector<10x10xf32>
    %124 = arith.subf %120, %123 : vector<10x10xf32>
    %125 = math.exp %124 : vector<10x10xf32>
    %cst_52 = arith.constant dense<0.000000e+00> : vector<10xf32>
    %126 = vector.multi_reduction <add>, %125, %cst_52 [1] : vector<10x10xf32> to vector<10xf32>
    %127 = vector.shape_cast %126 : vector<10xf32> to vector<10x1xf32>
    %128 = tpu.reciprocal %127 {approx = true} : vector<10x1xf32> -> vector<10x1xf32>
    %129 = vector.broadcast %128 : vector<10x1xf32> to vector<10x10xf32>
    %130 = arith.mulf %125, %129 : vector<10x10xf32>
    %cst_53 = arith.constant dense<0.000000e+00> : vector<10x16xf32>
    %131 = tpu.matmul %130, %113, %cst_53 {dimension_numbers = #tpu.dot_dimension_numbers<[1], [0], [0], [1], [0, 0, 1, 1], [], []>} : vector<10x10xf32>, vector<10x16xf32>, vector<10x16xf32> -> vector<10x16xf32>
    %c0_54 = arith.constant 0 : index
    %c1 = arith.constant 1 : index
    %c0_55 = arith.constant 0 : index
    %c0_56 = arith.constant 0 : index
    %132 = vector.load %arg11[%c0_54, %c1, %c0_55, %c0_56] : memref<2x2x16x32xf32, #tpu.memory_space<vmem>>, vector<1x1x16x32xf32>
    %133 = vector.shape_cast %132 : vector<1x1x16x32xf32> to vector<16x32xf32>
    %cst_57 = arith.constant dense<0.000000e+00> : vector<10x32xf32>
    %134 = tpu.matmul %131, %133, %cst_57 {dimension_numbers = #tpu.dot_dimension_numbers<[1], [0], [0], [1], [0, 0, 1, 1], [], []>} : vector<10x16xf32>, vector<16x32xf32>, vector<10x32xf32> -> vector<10x32xf32>
    %135 = arith.addf %110, %134 : vector<10x32xf32>
    %cst_58 = arith.constant dense<0.000000e+00> : vector<10xf32>
    %136 = vector.multi_reduction <add>, %135, %cst_58 [1] : vector<10x32xf32> to vector<10xf32>
    %137 = vector.shape_cast %136 : vector<10xf32> to vector<10x1xf32>
    %cst_59 = arith.constant 3.200000e+01 : f32
    %138 = vector.broadcast %cst_59 : f32 to vector<10x1xf32>
    %139 = arith.divf %137, %138 : vector<10x1xf32>
    %140 = vector.broadcast %139 : vector<10x1xf32> to vector<10x32xf32>
    %141 = arith.subf %135, %140 : vector<10x32xf32>
    %142 = arith.mulf %141, %141 : vector<10x32xf32>
    %cst_60 = arith.constant dense<0.000000e+00> : vector<10xf32>
    %143 = vector.multi_reduction <add>, %142, %cst_60 [1] : vector<10x32xf32> to vector<10xf32>
    %144 = vector.shape_cast %143 : vector<10xf32> to vector<10x1xf32>
    %cst_61 = arith.constant 3.200000e+01 : f32
    %145 = vector.broadcast %cst_61 : f32 to vector<10x1xf32>
    %146 = arith.divf %144, %145 : vector<10x1xf32>
    %147 = vector.broadcast %139 : vector<10x1xf32> to vector<10x32xf32>
    %148 = arith.subf %135, %147 : vector<10x32xf32>
    %cst_62 = arith.constant 9.99999974E-6 : f32
    %149 = vector.broadcast %cst_62 : f32 to vector<10x1xf32>
    %150 = arith.addf %146, %149 : vector<10x1xf32>
    %151 = math.rsqrt %150 : vector<10x1xf32>
    %152 = vector.broadcast %151 : vector<10x1xf32> to vector<10x32xf32>
    %153 = arith.mulf %148, %152 : vector<10x32xf32>
    %c0_63 = arith.constant 0 : index
    %c0_64 = arith.constant 0 : index
    %c0_65 = arith.constant 0 : index
    %154 = vector.load %arg13[%c0_63, %c0_64, %c0_65] : memref<2x1x32xf32, #tpu.memory_space<vmem>>, vector<1x1x32xf32>
    %155 = vector.shape_cast %154 : vector<1x1x32xf32> to vector<1x32xf32>
    %156 = vector.broadcast %155 : vector<1x32xf32> to vector<10x32xf32>
    %157 = arith.mulf %153, %156 : vector<10x32xf32>
    %c0_66 = arith.constant 0 : index
    %c0_67 = arith.constant 0 : index
    %c0_68 = arith.constant 0 : index
    %158 = vector.load %arg14[%c0_66, %c0_67, %c0_68] : memref<2x1x32xf32, #tpu.memory_space<vmem>>, vector<1x1x32xf32>
    %159 = vector.shape_cast %158 : vector<1x1x32xf32> to vector<1x32xf32>
    %160 = vector.broadcast %159 : vector<1x32xf32> to vector<10x32xf32>
    %161 = arith.addf %157, %160 : vector<10x32xf32>
    %c0_69 = arith.constant 0 : index
    %c0_70 = arith.constant 0 : index
    %c0_71 = arith.constant 0 : index
    %162 = vector.load %arg15[%c0_69, %c0_70, %c0_71] : memref<2x10x10xf32, #tpu.memory_space<vmem>>, vector<1x10x10xf32>
    %163 = vector.shape_cast %162 : vector<1x10x10xf32> to vector<10x10xf32>
    %cst_72 = arith.constant dense<0.000000e+00> : vector<10x32xf32>
    %164 = tpu.matmul %163, %161, %cst_72 {dimension_numbers = #tpu.dot_dimension_numbers<[1], [0], [0], [1], [0, 0, 1, 1], [], []>} : vector<10x10xf32>, vector<10x32xf32>, vector<10x32xf32> -> vector<10x32xf32>
    %c0_73 = arith.constant 0 : index
    %c0_74 = arith.constant 0 : index
    %c0_75 = arith.constant 0 : index
    %165 = vector.load %arg16[%c0_73, %c0_74, %c0_75] : memref<2x10x1xf32, #tpu.memory_space<vmem>>, vector<1x10x1xf32>
    %166 = vector.shape_cast %165 : vector<1x10x1xf32> to vector<10x1xf32>
    %167 = vector.broadcast %166 : vector<10x1xf32> to vector<10x32xf32>
    %168 = arith.addf %164, %167 : vector<10x32xf32>
    %cst_76 = arith.constant 0.000000e+00 : f32
    %169 = vector.broadcast %cst_76 : f32 to vector<10x32xf32>
    %170 = arith.maximumf %168, %169 : vector<10x32xf32>
    %c0_77 = arith.constant 0 : index
    %c0_78 = arith.constant 0 : index
    %c0_79 = arith.constant 0 : index
    %171 = vector.load %arg17[%c0_77, %c0_78, %c0_79] : memref<2x32x64xf32, #tpu.memory_space<vmem>>, vector<1x32x64xf32>
    %172 = vector.shape_cast %171 : vector<1x32x64xf32> to vector<32x64xf32>
    %cst_80 = arith.constant dense<0.000000e+00> : vector<10x64xf32>
    %173 = tpu.matmul %170, %172, %cst_80 {dimension_numbers = #tpu.dot_dimension_numbers<[1], [0], [0], [1], [0, 0, 1, 1], [], []>} : vector<10x32xf32>, vector<32x64xf32>, vector<10x64xf32> -> vector<10x64xf32>
    %c0_81 = arith.constant 0 : index
    %c0_82 = arith.constant 0 : index
    %c0_83 = arith.constant 0 : index
    %174 = vector.load %arg18[%c0_81, %c0_82, %c0_83] : memref<2x1x64xf32, #tpu.memory_space<vmem>>, vector<1x1x64xf32>
    %175 = vector.shape_cast %174 : vector<1x1x64xf32> to vector<1x64xf32>
    %176 = vector.broadcast %175 : vector<1x64xf32> to vector<10x64xf32>
    %177 = arith.addf %173, %176 : vector<10x64xf32>
    %cst_84 = arith.constant 0.000000e+00 : f32
    %178 = vector.broadcast %cst_84 : f32 to vector<10x64xf32>
    %179 = arith.maximumf %177, %178 : vector<10x64xf32>
    %c0_85 = arith.constant 0 : index
    %c0_86 = arith.constant 0 : index
    %c0_87 = arith.constant 0 : index
    %180 = vector.load %arg19[%c0_85, %c0_86, %c0_87] : memref<2x64x32xf32, #tpu.memory_space<vmem>>, vector<1x64x32xf32>
    %181 = vector.shape_cast %180 : vector<1x64x32xf32> to vector<64x32xf32>
    %cst_88 = arith.constant dense<0.000000e+00> : vector<10x32xf32>
    %182 = tpu.matmul %179, %181, %cst_88 {dimension_numbers = #tpu.dot_dimension_numbers<[1], [0], [0], [1], [0, 0, 1, 1], [], []>} : vector<10x64xf32>, vector<64x32xf32>, vector<10x32xf32> -> vector<10x32xf32>
    %c0_89 = arith.constant 0 : index
    %c0_90 = arith.constant 0 : index
    %c0_91 = arith.constant 0 : index
    %183 = vector.load %arg20[%c0_89, %c0_90, %c0_91] : memref<2x1x32xf32, #tpu.memory_space<vmem>>, vector<1x1x32xf32>
    %184 = vector.shape_cast %183 : vector<1x1x32xf32> to vector<1x32xf32>
    %185 = vector.broadcast %184 : vector<1x32xf32> to vector<10x32xf32>
    %186 = arith.addf %182, %185 : vector<10x32xf32>
    %c1_92 = arith.constant 1 : index
    %c0_93 = arith.constant 0 : index
    %c0_94 = arith.constant 0 : index
    %187 = vector.load %arg9[%c1_92, %c0_93, %c0_94] : memref<2x32x96xf32, #tpu.memory_space<vmem>>, vector<1x32x96xf32>
    %188 = vector.shape_cast %187 : vector<1x32x96xf32> to vector<32x96xf32>
    %cst_95 = arith.constant dense<0.000000e+00> : vector<10x96xf32>
    %189 = tpu.matmul %186, %188, %cst_95 {dimension_numbers = #tpu.dot_dimension_numbers<[1], [0], [0], [1], [0, 0, 1, 1], [], []>} : vector<10x32xf32>, vector<32x96xf32>, vector<10x96xf32> -> vector<10x96xf32>
    %c1_96 = arith.constant 1 : index
    %c0_97 = arith.constant 0 : index
    %c0_98 = arith.constant 0 : index
    %190 = vector.load %arg10[%c1_96, %c0_97, %c0_98] : memref<2x1x96xf32, #tpu.memory_space<vmem>>, vector<1x1x96xf32>
    %191 = vector.shape_cast %190 : vector<1x1x96xf32> to vector<1x96xf32>
    %192 = vector.broadcast %191 : vector<1x96xf32> to vector<10x96xf32>
    %193 = arith.addf %189, %192 : vector<10x96xf32>
    %c1_99 = arith.constant 1 : index
    %c0_100 = arith.constant 0 : index
    %c0_101 = arith.constant 0 : index
    %194 = vector.load %arg12[%c1_99, %c0_100, %c0_101] : memref<2x1x32xf32, #tpu.memory_space<vmem>>, vector<1x1x32xf32>
    %195 = vector.shape_cast %194 : vector<1x1x32xf32> to vector<1x32xf32>
    %196 = vector.broadcast %195 : vector<1x32xf32> to vector<10x32xf32>
    %197 = arith.addf %196, %186 : vector<10x32xf32>
    %198 = vector.extract_strided_slice %193 {offsets = [0, 0], sizes = [10, 16], strides = [1, 1]} : vector<10x96xf32> to vector<10x16xf32>
    %199 = vector.extract_strided_slice %193 {offsets = [0, 32], sizes = [10, 16], strides = [1, 1]} : vector<10x96xf32> to vector<10x16xf32>
    %200 = vector.extract_strided_slice %193 {offsets = [0, 64], sizes = [10, 16], strides = [1, 1]} : vector<10x96xf32> to vector<10x16xf32>
    %cst_102 = arith.constant dense<0.000000e+00> : vector<10x10xf32>
    %201 = tpu.matmul %198, %199, %cst_102 {dimension_numbers = #tpu.dot_dimension_numbers<[1], [1], [0], [0], [0, 0, 1, 0], [], []>} : vector<10x16xf32>, vector<10x16xf32>, vector<10x10xf32> -> vector<10x10xf32>
    %cst_103 = arith.constant 2.500000e-01 : f32
    %202 = vector.broadcast %cst_103 : f32 to vector<10x10xf32>
    %203 = arith.mulf %201, %202 : vector<10x10xf32>
    %cst_104 = arith.constant -1.000000e+09 : f32
    %204 = vector.shape_cast %74 : vector<1x10xi1> to vector<1x10xi1>
    %205 = vector.broadcast %204 : vector<1x10xi1> to vector<10x10xi1>
    %206 = vector.broadcast %cst_104 : f32 to vector<10x10xf32>
    %207 = arith.select %205, %206, %203 : vector<10x10xi1>, vector<10x10xf32>
    %cst_105 = arith.constant dense<0xFF800000> : vector<10xf32>
    %208 = vector.multi_reduction <maximumf>, %207, %cst_105 [1] : vector<10x10xf32> to vector<10xf32>
    %209 = vector.shape_cast %208 : vector<10xf32> to vector<10x1xf32>
    %210 = vector.broadcast %209 : vector<10x1xf32> to vector<10x10xf32>
    %211 = arith.subf %207, %210 : vector<10x10xf32>
    %212 = math.exp %211 : vector<10x10xf32>
    %cst_106 = arith.constant dense<0.000000e+00> : vector<10xf32>
    %213 = vector.multi_reduction <add>, %212, %cst_106 [1] : vector<10x10xf32> to vector<10xf32>
    %214 = vector.shape_cast %213 : vector<10xf32> to vector<10x1xf32>
    %215 = tpu.reciprocal %214 {approx = true} : vector<10x1xf32> -> vector<10x1xf32>
    %216 = vector.broadcast %215 : vector<10x1xf32> to vector<10x10xf32>
    %217 = arith.mulf %212, %216 : vector<10x10xf32>
    %cst_107 = arith.constant dense<0.000000e+00> : vector<10x16xf32>
    %218 = tpu.matmul %217, %200, %cst_107 {dimension_numbers = #tpu.dot_dimension_numbers<[1], [0], [0], [1], [0, 0, 1, 1], [], []>} : vector<10x10xf32>, vector<10x16xf32>, vector<10x16xf32> -> vector<10x16xf32>
    %c1_108 = arith.constant 1 : index
    %c0_109 = arith.constant 0 : index
    %c0_110 = arith.constant 0 : index
    %c0_111 = arith.constant 0 : index
    %219 = vector.load %arg11[%c1_108, %c0_109, %c0_110, %c0_111] : memref<2x2x16x32xf32, #tpu.memory_space<vmem>>, vector<1x1x16x32xf32>
    %220 = vector.shape_cast %219 : vector<1x1x16x32xf32> to vector<16x32xf32>
    %cst_112 = arith.constant dense<0.000000e+00> : vector<10x32xf32>
    %221 = tpu.matmul %218, %220, %cst_112 {dimension_numbers = #tpu.dot_dimension_numbers<[1], [0], [0], [1], [0, 0, 1, 1], [], []>} : vector<10x16xf32>, vector<16x32xf32>, vector<10x32xf32> -> vector<10x32xf32>
    %222 = arith.addf %197, %221 : vector<10x32xf32>
    %223 = vector.extract_strided_slice %193 {offsets = [0, 16], sizes = [10, 16], strides = [1, 1]} : vector<10x96xf32> to vector<10x16xf32>
    %224 = vector.extract_strided_slice %193 {offsets = [0, 48], sizes = [10, 16], strides = [1, 1]} : vector<10x96xf32> to vector<10x16xf32>
    %225 = vector.extract_strided_slice %193 {offsets = [0, 80], sizes = [10, 16], strides = [1, 1]} : vector<10x96xf32> to vector<10x16xf32>
    %cst_113 = arith.constant dense<0.000000e+00> : vector<10x10xf32>
    %226 = tpu.matmul %223, %224, %cst_113 {dimension_numbers = #tpu.dot_dimension_numbers<[1], [1], [0], [0], [0, 0, 1, 0], [], []>} : vector<10x16xf32>, vector<10x16xf32>, vector<10x10xf32> -> vector<10x10xf32>
    %cst_114 = arith.constant 2.500000e-01 : f32
    %227 = vector.broadcast %cst_114 : f32 to vector<10x10xf32>
    %228 = arith.mulf %226, %227 : vector<10x10xf32>
    %cst_115 = arith.constant -1.000000e+09 : f32
    %229 = vector.shape_cast %74 : vector<1x10xi1> to vector<1x10xi1>
    %230 = vector.broadcast %229 : vector<1x10xi1> to vector<10x10xi1>
    %231 = vector.broadcast %cst_115 : f32 to vector<10x10xf32>
    %232 = arith.select %230, %231, %228 : vector<10x10xi1>, vector<10x10xf32>
    %cst_116 = arith.constant dense<0xFF800000> : vector<10xf32>
    %233 = vector.multi_reduction <maximumf>, %232, %cst_116 [1] : vector<10x10xf32> to vector<10xf32>
    %234 = vector.shape_cast %233 : vector<10xf32> to vector<10x1xf32>
    %235 = vector.broadcast %234 : vector<10x1xf32> to vector<10x10xf32>
    %236 = arith.subf %232, %235 : vector<10x10xf32>
    %237 = math.exp %236 : vector<10x10xf32>
    %cst_117 = arith.constant dense<0.000000e+00> : vector<10xf32>
    %238 = vector.multi_reduction <add>, %237, %cst_117 [1] : vector<10x10xf32> to vector<10xf32>
    %239 = vector.shape_cast %238 : vector<10xf32> to vector<10x1xf32>
    %240 = tpu.reciprocal %239 {approx = true} : vector<10x1xf32> -> vector<10x1xf32>
    %241 = vector.broadcast %240 : vector<10x1xf32> to vector<10x10xf32>
    %242 = arith.mulf %237, %241 : vector<10x10xf32>
    %cst_118 = arith.constant dense<0.000000e+00> : vector<10x16xf32>
    %243 = tpu.matmul %242, %225, %cst_118 {dimension_numbers = #tpu.dot_dimension_numbers<[1], [0], [0], [1], [0, 0, 1, 1], [], []>} : vector<10x10xf32>, vector<10x16xf32>, vector<10x16xf32> -> vector<10x16xf32>
    %c1_119 = arith.constant 1 : index
    %c1_120 = arith.constant 1 : index
    %c0_121 = arith.constant 0 : index
    %c0_122 = arith.constant 0 : index
    %244 = vector.load %arg11[%c1_119, %c1_120, %c0_121, %c0_122] : memref<2x2x16x32xf32, #tpu.memory_space<vmem>>, vector<1x1x16x32xf32>
    %245 = vector.shape_cast %244 : vector<1x1x16x32xf32> to vector<16x32xf32>
    %cst_123 = arith.constant dense<0.000000e+00> : vector<10x32xf32>
    %246 = tpu.matmul %243, %245, %cst_123 {dimension_numbers = #tpu.dot_dimension_numbers<[1], [0], [0], [1], [0, 0, 1, 1], [], []>} : vector<10x16xf32>, vector<16x32xf32>, vector<10x32xf32> -> vector<10x32xf32>
    %247 = arith.addf %222, %246 : vector<10x32xf32>
    %cst_124 = arith.constant dense<0.000000e+00> : vector<10xf32>
    %248 = vector.multi_reduction <add>, %247, %cst_124 [1] : vector<10x32xf32> to vector<10xf32>
    %249 = vector.shape_cast %248 : vector<10xf32> to vector<10x1xf32>
    %cst_125 = arith.constant 3.200000e+01 : f32
    %250 = vector.broadcast %cst_125 : f32 to vector<10x1xf32>
    %251 = arith.divf %249, %250 : vector<10x1xf32>
    %252 = vector.broadcast %251 : vector<10x1xf32> to vector<10x32xf32>
    %253 = arith.subf %247, %252 : vector<10x32xf32>
    %254 = arith.mulf %253, %253 : vector<10x32xf32>
    %cst_126 = arith.constant dense<0.000000e+00> : vector<10xf32>
    %255 = vector.multi_reduction <add>, %254, %cst_126 [1] : vector<10x32xf32> to vector<10xf32>
    %256 = vector.shape_cast %255 : vector<10xf32> to vector<10x1xf32>
    %cst_127 = arith.constant 3.200000e+01 : f32
    %257 = vector.broadcast %cst_127 : f32 to vector<10x1xf32>
    %258 = arith.divf %256, %257 : vector<10x1xf32>
    %259 = vector.broadcast %251 : vector<10x1xf32> to vector<10x32xf32>
    %260 = arith.subf %247, %259 : vector<10x32xf32>
    %cst_128 = arith.constant 9.99999974E-6 : f32
    %261 = vector.broadcast %cst_128 : f32 to vector<10x1xf32>
    %262 = arith.addf %258, %261 : vector<10x1xf32>
    %263 = math.rsqrt %262 : vector<10x1xf32>
    %264 = vector.broadcast %263 : vector<10x1xf32> to vector<10x32xf32>
    %265 = arith.mulf %260, %264 : vector<10x32xf32>
    %c1_129 = arith.constant 1 : index
    %c0_130 = arith.constant 0 : index
    %c0_131 = arith.constant 0 : index
    %266 = vector.load %arg13[%c1_129, %c0_130, %c0_131] : memref<2x1x32xf32, #tpu.memory_space<vmem>>, vector<1x1x32xf32>
    %267 = vector.shape_cast %266 : vector<1x1x32xf32> to vector<1x32xf32>
    %268 = vector.broadcast %267 : vector<1x32xf32> to vector<10x32xf32>
    %269 = arith.mulf %265, %268 : vector<10x32xf32>
    %c1_132 = arith.constant 1 : index
    %c0_133 = arith.constant 0 : index
    %c0_134 = arith.constant 0 : index
    %270 = vector.load %arg14[%c1_132, %c0_133, %c0_134] : memref<2x1x32xf32, #tpu.memory_space<vmem>>, vector<1x1x32xf32>
    %271 = vector.shape_cast %270 : vector<1x1x32xf32> to vector<1x32xf32>
    %272 = vector.broadcast %271 : vector<1x32xf32> to vector<10x32xf32>
    %273 = arith.addf %269, %272 : vector<10x32xf32>
    %c1_135 = arith.constant 1 : index
    %c0_136 = arith.constant 0 : index
    %c0_137 = arith.constant 0 : index
    %274 = vector.load %arg15[%c1_135, %c0_136, %c0_137] : memref<2x10x10xf32, #tpu.memory_space<vmem>>, vector<1x10x10xf32>
    %275 = vector.shape_cast %274 : vector<1x10x10xf32> to vector<10x10xf32>
    %cst_138 = arith.constant dense<0.000000e+00> : vector<10x32xf32>
    %276 = tpu.matmul %275, %273, %cst_138 {dimension_numbers = #tpu.dot_dimension_numbers<[1], [0], [0], [1], [0, 0, 1, 1], [], []>} : vector<10x10xf32>, vector<10x32xf32>, vector<10x32xf32> -> vector<10x32xf32>
    %c1_139 = arith.constant 1 : index
    %c0_140 = arith.constant 0 : index
    %c0_141 = arith.constant 0 : index
    %277 = vector.load %arg16[%c1_139, %c0_140, %c0_141] : memref<2x10x1xf32, #tpu.memory_space<vmem>>, vector<1x10x1xf32>
    %278 = vector.shape_cast %277 : vector<1x10x1xf32> to vector<10x1xf32>
    %279 = vector.broadcast %278 : vector<10x1xf32> to vector<10x32xf32>
    %280 = arith.addf %276, %279 : vector<10x32xf32>
    %cst_142 = arith.constant 0.000000e+00 : f32
    %281 = vector.broadcast %cst_142 : f32 to vector<10x32xf32>
    %282 = arith.maximumf %280, %281 : vector<10x32xf32>
    %c1_143 = arith.constant 1 : index
    %c0_144 = arith.constant 0 : index
    %c0_145 = arith.constant 0 : index
    %283 = vector.load %arg17[%c1_143, %c0_144, %c0_145] : memref<2x32x64xf32, #tpu.memory_space<vmem>>, vector<1x32x64xf32>
    %284 = vector.shape_cast %283 : vector<1x32x64xf32> to vector<32x64xf32>
    %cst_146 = arith.constant dense<0.000000e+00> : vector<10x64xf32>
    %285 = tpu.matmul %282, %284, %cst_146 {dimension_numbers = #tpu.dot_dimension_numbers<[1], [0], [0], [1], [0, 0, 1, 1], [], []>} : vector<10x32xf32>, vector<32x64xf32>, vector<10x64xf32> -> vector<10x64xf32>
    %c1_147 = arith.constant 1 : index
    %c0_148 = arith.constant 0 : index
    %c0_149 = arith.constant 0 : index
    %286 = vector.load %arg18[%c1_147, %c0_148, %c0_149] : memref<2x1x64xf32, #tpu.memory_space<vmem>>, vector<1x1x64xf32>
    %287 = vector.shape_cast %286 : vector<1x1x64xf32> to vector<1x64xf32>
    %288 = vector.broadcast %287 : vector<1x64xf32> to vector<10x64xf32>
    %289 = arith.addf %285, %288 : vector<10x64xf32>
    %cst_150 = arith.constant 0.000000e+00 : f32
    %290 = vector.broadcast %cst_150 : f32 to vector<10x64xf32>
    %291 = arith.maximumf %289, %290 : vector<10x64xf32>
    %c1_151 = arith.constant 1 : index
    %c0_152 = arith.constant 0 : index
    %c0_153 = arith.constant 0 : index
    %292 = vector.load %arg19[%c1_151, %c0_152, %c0_153] : memref<2x64x32xf32, #tpu.memory_space<vmem>>, vector<1x64x32xf32>
    %293 = vector.shape_cast %292 : vector<1x64x32xf32> to vector<64x32xf32>
    %cst_154 = arith.constant dense<0.000000e+00> : vector<10x32xf32>
    %294 = tpu.matmul %291, %293, %cst_154 {dimension_numbers = #tpu.dot_dimension_numbers<[1], [0], [0], [1], [0, 0, 1, 1], [], []>} : vector<10x64xf32>, vector<64x32xf32>, vector<10x32xf32> -> vector<10x32xf32>
    %c1_155 = arith.constant 1 : index
    %c0_156 = arith.constant 0 : index
    %c0_157 = arith.constant 0 : index
    %295 = vector.load %arg20[%c1_155, %c0_156, %c0_157] : memref<2x1x32xf32, #tpu.memory_space<vmem>>, vector<1x1x32xf32>
    %296 = vector.shape_cast %295 : vector<1x1x32xf32> to vector<1x32xf32>
    %297 = vector.broadcast %296 : vector<1x32xf32> to vector<10x32xf32>
    %298 = arith.addf %294, %297 : vector<10x32xf32>
    %cst_158 = arith.constant dense<0.000000e+00> : vector<10x16xf32>
    %299 = tpu.matmul %298, %42, %cst_158 {dimension_numbers = #tpu.dot_dimension_numbers<[1], [0], [0], [1], [0, 0, 1, 1], [], []>} : vector<10x32xf32>, vector<32x16xf32>, vector<10x16xf32> -> vector<10x16xf32>
    %300 = vector.broadcast %43 : vector<1x16xf32> to vector<10x16xf32>
    %301 = arith.addf %299, %300 : vector<10x16xf32>
    %cst_159 = arith.constant 0.000000e+00 : f32
    %302 = vector.broadcast %cst_159 : f32 to vector<10x16xf32>
    %303 = arith.maximumf %301, %302 : vector<10x16xf32>
    %cst_160 = arith.constant dense<0.000000e+00> : vector<10x2xf32>
    %304 = tpu.matmul %303, %44, %cst_160 {dimension_numbers = #tpu.dot_dimension_numbers<[1], [0], [0], [1], [0, 0, 1, 1], [], []>} : vector<10x16xf32>, vector<16x2xf32>, vector<10x2xf32> -> vector<10x2xf32>
    %305 = vector.broadcast %45 : vector<1x2xf32> to vector<10x2xf32>
    %306 = arith.addf %304, %305 : vector<10x2xf32>
    %cst_161 = arith.constant dense<0xFF800000> : vector<10xf32>
    %307 = vector.multi_reduction <maximumf>, %306, %cst_161 [1] : vector<10x2xf32> to vector<10xf32>
    %308 = vector.shape_cast %307 : vector<10xf32> to vector<10x1xf32>
    %309 = vector.broadcast %308 : vector<10x1xf32> to vector<10x2xf32>
    %310 = arith.subf %306, %309 : vector<10x2xf32>
    %311 = math.exp %310 : vector<10x2xf32>
    %cst_162 = arith.constant dense<0.000000e+00> : vector<10xf32>
    %312 = vector.multi_reduction <add>, %311, %cst_162 [1] : vector<10x2xf32> to vector<10xf32>
    %313 = vector.shape_cast %312 : vector<10xf32> to vector<10x1xf32>
    %314 = tpu.reciprocal %313 {approx = true} : vector<10x1xf32> -> vector<10x1xf32>
    %315 = vector.broadcast %314 : vector<10x1xf32> to vector<10x2xf32>
    %316 = arith.mulf %311, %315 : vector<10x2xf32>
    %317 = vector.extract_strided_slice %306 {offsets = [0, 0], sizes = [1, 2], strides = [1, 1]} : vector<10x2xf32> to vector<1x2xf32>
    %c0_163 = arith.constant 0 : index
    %c0_164 = arith.constant 0 : index
    %c0_165 = arith.constant 0 : index
    %318 = vector.load %arg25[%c0_163, %c0_164, %c0_165] : memref<2x1x2xf32, #tpu.memory_space<vmem>>, vector<1x1x2xf32>
    %319 = vector.shape_cast %318 : vector<1x1x2xf32> to vector<1x2xf32>
    %320 = vector.shape_cast %317 : vector<1x2xf32> to vector<1x1x2xf32>
    tpu.vector_store %arg25[%c0_163, %c0_164, %c0_165], %320 {strides = array<i32>} : memref<2x1x2xf32, #tpu.memory_space<vmem>>, vector<1x1x2xf32>,
    %321 = vector.extract_strided_slice %298 {offsets = [0, 0], sizes = [1, 32], strides = [1, 1]} : vector<10x32xf32> to vector<1x32xf32>
    %c0_166 = arith.constant 0 : index
    %c0_167 = arith.constant 0 : index
    %c0_168 = arith.constant 0 : index
    %322 = vector.load %arg26[%c0_166, %c0_167, %c0_168] : memref<2x1x32xf32, #tpu.memory_space<vmem>>, vector<1x1x32xf32>
    %323 = vector.shape_cast %322 : vector<1x1x32xf32> to vector<1x32xf32>
    %324 = vector.shape_cast %321 : vector<1x32xf32> to vector<1x1x32xf32>
    tpu.vector_store %arg26[%c0_166, %c0_167, %c0_168], %324 {strides = array<i32>} : memref<2x1x32xf32, #tpu.memory_space<vmem>>, vector<1x1x32xf32>,
    %cst_169 = arith.constant dense<0xFF800000> : vector<10xf32>
    %325 = vector.multi_reduction <maximumf>, %316, %cst_169 [1] : vector<10x2xf32> to vector<10xf32>
    %326 = vector.shape_cast %325 : vector<10xf32> to vector<10x1xf32>
    %c0_170 = arith.constant 0 : index
    %c0_171 = arith.constant 0 : index
    %c0_172 = arith.constant 0 : index
    %327 = vector.load %arg27[%c0_170, %c0_171, %c0_172] : memref<2x10x1xf32, #tpu.memory_space<vmem>>, vector<1x10x1xf32>
    %328 = vector.shape_cast %327 : vector<1x10x1xf32> to vector<10x1xf32>
    %329 = vector.shape_cast %326 : vector<10x1xf32> to vector<1x10x1xf32>
    tpu.vector_store %arg27[%c0_170, %c0_171, %c0_172], %329 {strides = array<i32>} : memref<2x10x1xf32, #tpu.memory_space<vmem>>, vector<1x10x1xf32>,
    %330 = vector.extract_strided_slice %35 {offsets = [30, 0], sizes = [10, 32], strides = [1, 1]} : vector<60x32xf32> to vector<10x32xf32>
    %331 = vector.extract_strided_slice %41 {offsets = [30, 0], sizes = [10, 1], strides = [1, 1]} : vector<60x1xf32> to vector<10x1xf32>
    %332 = vector.broadcast %331 : vector<10x1xf32> to vector<10x32xf32>
    %333 = arith.mulf %330, %332 : vector<10x32xf32>
    %334 = vector.extract_strided_slice %41 {offsets = [30, 0], sizes = [10, 1], strides = [1, 1]} : vector<60x1xf32> to vector<10x1xf32>
    %335 = vector.extract_strided_slice %35 {offsets = [40, 0], sizes = [10, 32], strides = [1, 1]} : vector<60x32xf32> to vector<10x32xf32>
    %336 = vector.extract_strided_slice %41 {offsets = [40, 0], sizes = [10, 1], strides = [1, 1]} : vector<60x1xf32> to vector<10x1xf32>
    %337 = vector.broadcast %336 : vector<10x1xf32> to vector<10x32xf32>
    %338 = arith.mulf %335, %337 : vector<10x32xf32>
    %339 = arith.addf %333, %338 : vector<10x32xf32>
    %340 = vector.extract_strided_slice %41 {offsets = [40, 0], sizes = [10, 1], strides = [1, 1]} : vector<60x1xf32> to vector<10x1xf32>
    %341 = arith.addf %334, %340 : vector<10x1xf32>
    %342 = vector.extract_strided_slice %35 {offsets = [50, 0], sizes = [10, 32], strides = [1, 1]} : vector<60x32xf32> to vector<10x32xf32>
    %343 = vector.extract_strided_slice %41 {offsets = [50, 0], sizes = [10, 1], strides = [1, 1]} : vector<60x1xf32> to vector<10x1xf32>
    %344 = vector.broadcast %343 : vector<10x1xf32> to vector<10x32xf32>
    %345 = arith.mulf %342, %344 : vector<10x32xf32>
    %346 = arith.addf %339, %345 : vector<10x32xf32>
    %347 = vector.extract_strided_slice %41 {offsets = [50, 0], sizes = [10, 1], strides = [1, 1]} : vector<60x1xf32> to vector<10x1xf32>
    %348 = arith.addf %341, %347 : vector<10x1xf32>
    %349 = tpu.reciprocal %348 {approx = true} : vector<10x1xf32> -> vector<10x1xf32>
    %350 = vector.broadcast %349 : vector<10x1xf32> to vector<10x32xf32>
    %351 = arith.mulf %346, %350 : vector<10x32xf32>
    %c1_173 = arith.constant 1 : index
    %c0_174 = arith.constant 0 : index
    %c0_175 = arith.constant 0 : index
    %352 = vector.load %arg3[%c1_173, %c0_174, %c0_175] : memref<2x10x32xf32, #tpu.memory_space<vmem>>, vector<1x10x32xf32>
    %353 = vector.shape_cast %352 : vector<1x10x32xf32> to vector<10x32xf32>
    %354 = arith.addf %351, %353 : vector<10x32xf32>
    %c1_176 = arith.constant 1 : index
    %c0_177 = arith.constant 0 : index
    %c0_178 = arith.constant 0 : index
    %355 = vector.load %arg2[%c1_176, %c0_177, %c0_178] : memref<2x1x10xi32, #tpu.memory_space<vmem>>, vector<1x1x10xi32>
    %356 = vector.shape_cast %355 : vector<1x1x10xi32> to vector<1x10xi32>
    %c0_i32_179 = arith.constant 0 : i32
    %357 = vector.broadcast %c0_i32_179 : i32 to vector<1x10xi32>
    %358 = arith.cmpi eq, %356, %357 : vector<1x10xi32>
    %c0_180 = arith.constant 0 : index
    %c0_181 = arith.constant 0 : index
    %c0_182 = arith.constant 0 : index
    %359 = vector.load %arg9[%c0_180, %c0_181, %c0_182] : memref<2x32x96xf32, #tpu.memory_space<vmem>>, vector<1x32x96xf32>
    %360 = vector.shape_cast %359 : vector<1x32x96xf32> to vector<32x96xf32>
    %cst_183 = arith.constant dense<0.000000e+00> : vector<10x96xf32>
    %361 = tpu.matmul %354, %360, %cst_183 {dimension_numbers = #tpu.dot_dimension_numbers<[1], [0], [0], [1], [0, 0, 1, 1], [], []>} : vector<10x32xf32>, vector<32x96xf32>, vector<10x96xf32> -> vector<10x96xf32>
    %c0_184 = arith.constant 0 : index
    %c0_185 = arith.constant 0 : index
    %c0_186 = arith.constant 0 : index
    %362 = vector.load %arg10[%c0_184, %c0_185, %c0_186] : memref<2x1x96xf32, #tpu.memory_space<vmem>>, vector<1x1x96xf32>
    %363 = vector.shape_cast %362 : vector<1x1x96xf32> to vector<1x96xf32>
    %364 = vector.broadcast %363 : vector<1x96xf32> to vector<10x96xf32>
    %365 = arith.addf %361, %364 : vector<10x96xf32>
    %c0_187 = arith.constant 0 : index
    %c0_188 = arith.constant 0 : index
    %c0_189 = arith.constant 0 : index
    %366 = vector.load %arg12[%c0_187, %c0_188, %c0_189] : memref<2x1x32xf32, #tpu.memory_space<vmem>>, vector<1x1x32xf32>
    %367 = vector.shape_cast %366 : vector<1x1x32xf32> to vector<1x32xf32>
    %368 = vector.broadcast %367 : vector<1x32xf32> to vector<10x32xf32>
    %369 = arith.addf %368, %354 : vector<10x32xf32>
    %370 = vector.extract_strided_slice %365 {offsets = [0, 0], sizes = [10, 16], strides = [1, 1]} : vector<10x96xf32> to vector<10x16xf32>
    %371 = vector.extract_strided_slice %365 {offsets = [0, 32], sizes = [10, 16], strides = [1, 1]} : vector<10x96xf32> to vector<10x16xf32>
    %372 = vector.extract_strided_slice %365 {offsets = [0, 64], sizes = [10, 16], strides = [1, 1]} : vector<10x96xf32> to vector<10x16xf32>
    %cst_190 = arith.constant dense<0.000000e+00> : vector<10x10xf32>
    %373 = tpu.matmul %370, %371, %cst_190 {dimension_numbers = #tpu.dot_dimension_numbers<[1], [1], [0], [0], [0, 0, 1, 0], [], []>} : vector<10x16xf32>, vector<10x16xf32>, vector<10x10xf32> -> vector<10x10xf32>
    %cst_191 = arith.constant 2.500000e-01 : f32
    %374 = vector.broadcast %cst_191 : f32 to vector<10x10xf32>
    %375 = arith.mulf %373, %374 : vector<10x10xf32>
    %cst_192 = arith.constant -1.000000e+09 : f32
    %376 = vector.shape_cast %358 : vector<1x10xi1> to vector<1x10xi1>
    %377 = vector.broadcast %376 : vector<1x10xi1> to vector<10x10xi1>
    %378 = vector.broadcast %cst_192 : f32 to vector<10x10xf32>
    %379 = arith.select %377, %378, %375 : vector<10x10xi1>, vector<10x10xf32>
    %cst_193 = arith.constant dense<0xFF800000> : vector<10xf32>
    %380 = vector.multi_reduction <maximumf>, %379, %cst_193 [1] : vector<10x10xf32> to vector<10xf32>
    %381 = vector.shape_cast %380 : vector<10xf32> to vector<10x1xf32>
    %382 = vector.broadcast %381 : vector<10x1xf32> to vector<10x10xf32>
    %383 = arith.subf %379, %382 : vector<10x10xf32>
    %384 = math.exp %383 : vector<10x10xf32>
    %cst_194 = arith.constant dense<0.000000e+00> : vector<10xf32>
    %385 = vector.multi_reduction <add>, %384, %cst_194 [1] : vector<10x10xf32> to vector<10xf32>
    %386 = vector.shape_cast %385 : vector<10xf32> to vector<10x1xf32>
    %387 = tpu.reciprocal %386 {approx = true} : vector<10x1xf32> -> vector<10x1xf32>
    %388 = vector.broadcast %387 : vector<10x1xf32> to vector<10x10xf32>
    %389 = arith.mulf %384, %388 : vector<10x10xf32>
    %cst_195 = arith.constant dense<0.000000e+00> : vector<10x16xf32>
    %390 = tpu.matmul %389, %372, %cst_195 {dimension_numbers = #tpu.dot_dimension_numbers<[1], [0], [0], [1], [0, 0, 1, 1], [], []>} : vector<10x10xf32>, vector<10x16xf32>, vector<10x16xf32> -> vector<10x16xf32>
    %c0_196 = arith.constant 0 : index
    %c0_197 = arith.constant 0 : index
    %c0_198 = arith.constant 0 : index
    %c0_199 = arith.constant 0 : index
    %391 = vector.load %arg11[%c0_196, %c0_197, %c0_198, %c0_199] : memref<2x2x16x32xf32, #tpu.memory_space<vmem>>, vector<1x1x16x32xf32>
    %392 = vector.shape_cast %391 : vector<1x1x16x32xf32> to vector<16x32xf32>
    %cst_200 = arith.constant dense<0.000000e+00> : vector<10x32xf32>
    %393 = tpu.matmul %390, %392, %cst_200 {dimension_numbers = #tpu.dot_dimension_numbers<[1], [0], [0], [1], [0, 0, 1, 1], [], []>} : vector<10x16xf32>, vector<16x32xf32>, vector<10x32xf32> -> vector<10x32xf32>
    %394 = arith.addf %369, %393 : vector<10x32xf32>
    %395 = vector.extract_strided_slice %365 {offsets = [0, 16], sizes = [10, 16], strides = [1, 1]} : vector<10x96xf32> to vector<10x16xf32>
    %396 = vector.extract_strided_slice %365 {offsets = [0, 48], sizes = [10, 16], strides = [1, 1]} : vector<10x96xf32> to vector<10x16xf32>
    %397 = vector.extract_strided_slice %365 {offsets = [0, 80], sizes = [10, 16], strides = [1, 1]} : vector<10x96xf32> to vector<10x16xf32>
    %cst_201 = arith.constant dense<0.000000e+00> : vector<10x10xf32>
    %398 = tpu.matmul %395, %396, %cst_201 {dimension_numbers = #tpu.dot_dimension_numbers<[1], [1], [0], [0], [0, 0, 1, 0], [], []>} : vector<10x16xf32>, vector<10x16xf32>, vector<10x10xf32> -> vector<10x10xf32>
    %cst_202 = arith.constant 2.500000e-01 : f32
    %399 = vector.broadcast %cst_202 : f32 to vector<10x10xf32>
    %400 = arith.mulf %398, %399 : vector<10x10xf32>
    %cst_203 = arith.constant -1.000000e+09 : f32
    %401 = vector.shape_cast %358 : vector<1x10xi1> to vector<1x10xi1>
    %402 = vector.broadcast %401 : vector<1x10xi1> to vector<10x10xi1>
    %403 = vector.broadcast %cst_203 : f32 to vector<10x10xf32>
    %404 = arith.select %402, %403, %400 : vector<10x10xi1>, vector<10x10xf32>
    %cst_204 = arith.constant dense<0xFF800000> : vector<10xf32>
    %405 = vector.multi_reduction <maximumf>, %404, %cst_204 [1] : vector<10x10xf32> to vector<10xf32>
    %406 = vector.shape_cast %405 : vector<10xf32> to vector<10x1xf32>
    %407 = vector.broadcast %406 : vector<10x1xf32> to vector<10x10xf32>
    %408 = arith.subf %404, %407 : vector<10x10xf32>
    %409 = math.exp %408 : vector<10x10xf32>
    %cst_205 = arith.constant dense<0.000000e+00> : vector<10xf32>
    %410 = vector.multi_reduction <add>, %409, %cst_205 [1] : vector<10x10xf32> to vector<10xf32>
    %411 = vector.shape_cast %410 : vector<10xf32> to vector<10x1xf32>
    %412 = tpu.reciprocal %411 {approx = true} : vector<10x1xf32> -> vector<10x1xf32>
    %413 = vector.broadcast %412 : vector<10x1xf32> to vector<10x10xf32>
    %414 = arith.mulf %409, %413 : vector<10x10xf32>
    %cst_206 = arith.constant dense<0.000000e+00> : vector<10x16xf32>
    %415 = tpu.matmul %414, %397, %cst_206 {dimension_numbers = #tpu.dot_dimension_numbers<[1], [0], [0], [1], [0, 0, 1, 1], [], []>} : vector<10x10xf32>, vector<10x16xf32>, vector<10x16xf32> -> vector<10x16xf32>
    %c0_207 = arith.constant 0 : index
    %c1_208 = arith.constant 1 : index
    %c0_209 = arith.constant 0 : index
    %c0_210 = arith.constant 0 : index
    %416 = vector.load %arg11[%c0_207, %c1_208, %c0_209, %c0_210] : memref<2x2x16x32xf32, #tpu.memory_space<vmem>>, vector<1x1x16x32xf32>
    %417 = vector.shape_cast %416 : vector<1x1x16x32xf32> to vector<16x32xf32>
    %cst_211 = arith.constant dense<0.000000e+00> : vector<10x32xf32>
    %418 = tpu.matmul %415, %417, %cst_211 {dimension_numbers = #tpu.dot_dimension_numbers<[1], [0], [0], [1], [0, 0, 1, 1], [], []>} : vector<10x16xf32>, vector<16x32xf32>, vector<10x32xf32> -> vector<10x32xf32>
    %419 = arith.addf %394, %418 : vector<10x32xf32>
    %cst_212 = arith.constant dense<0.000000e+00> : vector<10xf32>
    %420 = vector.multi_reduction <add>, %419, %cst_212 [1] : vector<10x32xf32> to vector<10xf32>
    %421 = vector.shape_cast %420 : vector<10xf32> to vector<10x1xf32>
    %cst_213 = arith.constant 3.200000e+01 : f32
    %422 = vector.broadcast %cst_213 : f32 to vector<10x1xf32>
    %423 = arith.divf %421, %422 : vector<10x1xf32>
    %424 = vector.broadcast %423 : vector<10x1xf32> to vector<10x32xf32>
    %425 = arith.subf %419, %424 : vector<10x32xf32>
    %426 = arith.mulf %425, %425 : vector<10x32xf32>
    %cst_214 = arith.constant dense<0.000000e+00> : vector<10xf32>
    %427 = vector.multi_reduction <add>, %426, %cst_214 [1] : vector<10x32xf32> to vector<10xf32>
    %428 = vector.shape_cast %427 : vector<10xf32> to vector<10x1xf32>
    %cst_215 = arith.constant 3.200000e+01 : f32
    %429 = vector.broadcast %cst_215 : f32 to vector<10x1xf32>
    %430 = arith.divf %428, %429 : vector<10x1xf32>
    %431 = vector.broadcast %423 : vector<10x1xf32> to vector<10x32xf32>
    %432 = arith.subf %419, %431 : vector<10x32xf32>
    %cst_216 = arith.constant 9.99999974E-6 : f32
    %433 = vector.broadcast %cst_216 : f32 to vector<10x1xf32>
    %434 = arith.addf %430, %433 : vector<10x1xf32>
    %435 = math.rsqrt %434 : vector<10x1xf32>
    %436 = vector.broadcast %435 : vector<10x1xf32> to vector<10x32xf32>
    %437 = arith.mulf %432, %436 : vector<10x32xf32>
    %c0_217 = arith.constant 0 : index
    %c0_218 = arith.constant 0 : index
    %c0_219 = arith.constant 0 : index
    %438 = vector.load %arg13[%c0_217, %c0_218, %c0_219] : memref<2x1x32xf32, #tpu.memory_space<vmem>>, vector<1x1x32xf32>
    %439 = vector.shape_cast %438 : vector<1x1x32xf32> to vector<1x32xf32>
    %440 = vector.broadcast %439 : vector<1x32xf32> to vector<10x32xf32>
    %441 = arith.mulf %437, %440 : vector<10x32xf32>
    %c0_220 = arith.constant 0 : index
    %c0_221 = arith.constant 0 : index
    %c0_222 = arith.constant 0 : index
    %442 = vector.load %arg14[%c0_220, %c0_221, %c0_222] : memref<2x1x32xf32, #tpu.memory_space<vmem>>, vector<1x1x32xf32>
    %443 = vector.shape_cast %442 : vector<1x1x32xf32> to vector<1x32xf32>
    %444 = vector.broadcast %443 : vector<1x32xf32> to vector<10x32xf32>
    %445 = arith.addf %441, %444 : vector<10x32xf32>
    %c0_223 = arith.constant 0 : index
    %c0_224 = arith.constant 0 : index
    %c0_225 = arith.constant 0 : index
    %446 = vector.load %arg15[%c0_223, %c0_224, %c0_225] : memref<2x10x10xf32, #tpu.memory_space<vmem>>, vector<1x10x10xf32>
    %447 = vector.shape_cast %446 : vector<1x10x10xf32> to vector<10x10xf32>
    %cst_226 = arith.constant dense<0.000000e+00> : vector<10x32xf32>
    %448 = tpu.matmul %447, %445, %cst_226 {dimension_numbers = #tpu.dot_dimension_numbers<[1], [0], [0], [1], [0, 0, 1, 1], [], []>} : vector<10x10xf32>, vector<10x32xf32>, vector<10x32xf32> -> vector<10x32xf32>
    %c0_227 = arith.constant 0 : index
    %c0_228 = arith.constant 0 : index
    %c0_229 = arith.constant 0 : index
    %449 = vector.load %arg16[%c0_227, %c0_228, %c0_229] : memref<2x10x1xf32, #tpu.memory_space<vmem>>, vector<1x10x1xf32>
    %450 = vector.shape_cast %449 : vector<1x10x1xf32> to vector<10x1xf32>
    %451 = vector.broadcast %450 : vector<10x1xf32> to vector<10x32xf32>
    %452 = arith.addf %448, %451 : vector<10x32xf32>
    %cst_230 = arith.constant 0.000000e+00 : f32
    %453 = vector.broadcast %cst_230 : f32 to vector<10x32xf32>
    %454 = arith.maximumf %452, %453 : vector<10x32xf32>
    %c0_231 = arith.constant 0 : index
    %c0_232 = arith.constant 0 : index
    %c0_233 = arith.constant 0 : index
    %455 = vector.load %arg17[%c0_231, %c0_232, %c0_233] : memref<2x32x64xf32, #tpu.memory_space<vmem>>, vector<1x32x64xf32>
    %456 = vector.shape_cast %455 : vector<1x32x64xf32> to vector<32x64xf32>
    %cst_234 = arith.constant dense<0.000000e+00> : vector<10x64xf32>
    %457 = tpu.matmul %454, %456, %cst_234 {dimension_numbers = #tpu.dot_dimension_numbers<[1], [0], [0], [1], [0, 0, 1, 1], [], []>} : vector<10x32xf32>, vector<32x64xf32>, vector<10x64xf32> -> vector<10x64xf32>
    %c0_235 = arith.constant 0 : index
    %c0_236 = arith.constant 0 : index
    %c0_237 = arith.constant 0 : index
    %458 = vector.load %arg18[%c0_235, %c0_236, %c0_237] : memref<2x1x64xf32, #tpu.memory_space<vmem>>, vector<1x1x64xf32>
    %459 = vector.shape_cast %458 : vector<1x1x64xf32> to vector<1x64xf32>
    %460 = vector.broadcast %459 : vector<1x64xf32> to vector<10x64xf32>
    %461 = arith.addf %457, %460 : vector<10x64xf32>
    %cst_238 = arith.constant 0.000000e+00 : f32
    %462 = vector.broadcast %cst_238 : f32 to vector<10x64xf32>
    %463 = arith.maximumf %461, %462 : vector<10x64xf32>
    %c0_239 = arith.constant 0 : index
    %c0_240 = arith.constant 0 : index
    %c0_241 = arith.constant 0 : index
    %464 = vector.load %arg19[%c0_239, %c0_240, %c0_241] : memref<2x64x32xf32, #tpu.memory_space<vmem>>, vector<1x64x32xf32>
    %465 = vector.shape_cast %464 : vector<1x64x32xf32> to vector<64x32xf32>
    %cst_242 = arith.constant dense<0.000000e+00> : vector<10x32xf32>
    %466 = tpu.matmul %463, %465, %cst_242 {dimension_numbers = #tpu.dot_dimension_numbers<[1], [0], [0], [1], [0, 0, 1, 1], [], []>} : vector<10x64xf32>, vector<64x32xf32>, vector<10x32xf32> -> vector<10x32xf32>
    %c0_243 = arith.constant 0 : index
    %c0_244 = arith.constant 0 : index
    %c0_245 = arith.constant 0 : index
    %467 = vector.load %arg20[%c0_243, %c0_244, %c0_245] : memref<2x1x32xf32, #tpu.memory_space<vmem>>, vector<1x1x32xf32>
    %468 = vector.shape_cast %467 : vector<1x1x32xf32> to vector<1x32xf32>
    %469 = vector.broadcast %468 : vector<1x32xf32> to vector<10x32xf32>
    %470 = arith.addf %466, %469 : vector<10x32xf32>
    %c1_246 = arith.constant 1 : index
    %c0_247 = arith.constant 0 : index
    %c0_248 = arith.constant 0 : index
    %471 = vector.load %arg9[%c1_246, %c0_247, %c0_248] : memref<2x32x96xf32, #tpu.memory_space<vmem>>, vector<1x32x96xf32>
    %472 = vector.shape_cast %471 : vector<1x32x96xf32> to vector<32x96xf32>
    %cst_249 = arith.constant dense<0.000000e+00> : vector<10x96xf32>
    %473 = tpu.matmul %470, %472, %cst_249 {dimension_numbers = #tpu.dot_dimension_numbers<[1], [0], [0], [1], [0, 0, 1, 1], [], []>} : vector<10x32xf32>, vector<32x96xf32>, vector<10x96xf32> -> vector<10x96xf32>
    %c1_250 = arith.constant 1 : index
    %c0_251 = arith.constant 0 : index
    %c0_252 = arith.constant 0 : index
    %474 = vector.load %arg10[%c1_250, %c0_251, %c0_252] : memref<2x1x96xf32, #tpu.memory_space<vmem>>, vector<1x1x96xf32>
    %475 = vector.shape_cast %474 : vector<1x1x96xf32> to vector<1x96xf32>
    %476 = vector.broadcast %475 : vector<1x96xf32> to vector<10x96xf32>
    %477 = arith.addf %473, %476 : vector<10x96xf32>
    %c1_253 = arith.constant 1 : index
    %c0_254 = arith.constant 0 : index
    %c0_255 = arith.constant 0 : index
    %478 = vector.load %arg12[%c1_253, %c0_254, %c0_255] : memref<2x1x32xf32, #tpu.memory_space<vmem>>, vector<1x1x32xf32>
    %479 = vector.shape_cast %478 : vector<1x1x32xf32> to vector<1x32xf32>
    %480 = vector.broadcast %479 : vector<1x32xf32> to vector<10x32xf32>
    %481 = arith.addf %480, %470 : vector<10x32xf32>
    %482 = vector.extract_strided_slice %477 {offsets = [0, 0], sizes = [10, 16], strides = [1, 1]} : vector<10x96xf32> to vector<10x16xf32>
    %483 = vector.extract_strided_slice %477 {offsets = [0, 32], sizes = [10, 16], strides = [1, 1]} : vector<10x96xf32> to vector<10x16xf32>
    %484 = vector.extract_strided_slice %477 {offsets = [0, 64], sizes = [10, 16], strides = [1, 1]} : vector<10x96xf32> to vector<10x16xf32>
    %cst_256 = arith.constant dense<0.000000e+00> : vector<10x10xf32>
    %485 = tpu.matmul %482, %483, %cst_256 {dimension_numbers = #tpu.dot_dimension_numbers<[1], [1], [0], [0], [0, 0, 1, 0], [], []>} : vector<10x16xf32>, vector<10x16xf32>, vector<10x10xf32> -> vector<10x10xf32>
    %cst_257 = arith.constant 2.500000e-01 : f32
    %486 = vector.broadcast %cst_257 : f32 to vector<10x10xf32>
    %487 = arith.mulf %485, %486 : vector<10x10xf32>
    %cst_258 = arith.constant -1.000000e+09 : f32
    %488 = vector.shape_cast %358 : vector<1x10xi1> to vector<1x10xi1>
    %489 = vector.broadcast %488 : vector<1x10xi1> to vector<10x10xi1>
    %490 = vector.broadcast %cst_258 : f32 to vector<10x10xf32>
    %491 = arith.select %489, %490, %487 : vector<10x10xi1>, vector<10x10xf32>
    %cst_259 = arith.constant dense<0xFF800000> : vector<10xf32>
    %492 = vector.multi_reduction <maximumf>, %491, %cst_259 [1] : vector<10x10xf32> to vector<10xf32>
    %493 = vector.shape_cast %492 : vector<10xf32> to vector<10x1xf32>
    %494 = vector.broadcast %493 : vector<10x1xf32> to vector<10x10xf32>
    %495 = arith.subf %491, %494 : vector<10x10xf32>
    %496 = math.exp %495 : vector<10x10xf32>
    %cst_260 = arith.constant dense<0.000000e+00> : vector<10xf32>
    %497 = vector.multi_reduction <add>, %496, %cst_260 [1] : vector<10x10xf32> to vector<10xf32>
    %498 = vector.shape_cast %497 : vector<10xf32> to vector<10x1xf32>
    %499 = tpu.reciprocal %498 {approx = true} : vector<10x1xf32> -> vector<10x1xf32>
    %500 = vector.broadcast %499 : vector<10x1xf32> to vector<10x10xf32>
    %501 = arith.mulf %496, %500 : vector<10x10xf32>
    %cst_261 = arith.constant dense<0.000000e+00> : vector<10x16xf32>
    %502 = tpu.matmul %501, %484, %cst_261 {dimension_numbers = #tpu.dot_dimension_numbers<[1], [0], [0], [1], [0, 0, 1, 1], [], []>} : vector<10x10xf32>, vector<10x16xf32>, vector<10x16xf32> -> vector<10x16xf32>
    %c1_262 = arith.constant 1 : index
    %c0_263 = arith.constant 0 : index
    %c0_264 = arith.constant 0 : index
    %c0_265 = arith.constant 0 : index
    %503 = vector.load %arg11[%c1_262, %c0_263, %c0_264, %c0_265] : memref<2x2x16x32xf32, #tpu.memory_space<vmem>>, vector<1x1x16x32xf32>
    %504 = vector.shape_cast %503 : vector<1x1x16x32xf32> to vector<16x32xf32>
    %cst_266 = arith.constant dense<0.000000e+00> : vector<10x32xf32>
    %505 = tpu.matmul %502, %504, %cst_266 {dimension_numbers = #tpu.dot_dimension_numbers<[1], [0], [0], [1], [0, 0, 1, 1], [], []>} : vector<10x16xf32>, vector<16x32xf32>, vector<10x32xf32> -> vector<10x32xf32>
    %506 = arith.addf %481, %505 : vector<10x32xf32>
    %507 = vector.extract_strided_slice %477 {offsets = [0, 16], sizes = [10, 16], strides = [1, 1]} : vector<10x96xf32> to vector<10x16xf32>
    %508 = vector.extract_strided_slice %477 {offsets = [0, 48], sizes = [10, 16], strides = [1, 1]} : vector<10x96xf32> to vector<10x16xf32>
    %509 = vector.extract_strided_slice %477 {offsets = [0, 80], sizes = [10, 16], strides = [1, 1]} : vector<10x96xf32> to vector<10x16xf32>
    %cst_267 = arith.constant dense<0.000000e+00> : vector<10x10xf32>
    %510 = tpu.matmul %507, %508, %cst_267 {dimension_numbers = #tpu.dot_dimension_numbers<[1], [1], [0], [0], [0, 0, 1, 0], [], []>} : vector<10x16xf32>, vector<10x16xf32>, vector<10x10xf32> -> vector<10x10xf32>
    %cst_268 = arith.constant 2.500000e-01 : f32
    %511 = vector.broadcast %cst_268 : f32 to vector<10x10xf32>
    %512 = arith.mulf %510, %511 : vector<10x10xf32>
    %cst_269 = arith.constant -1.000000e+09 : f32
    %513 = vector.shape_cast %358 : vector<1x10xi1> to vector<1x10xi1>
    %514 = vector.broadcast %513 : vector<1x10xi1> to vector<10x10xi1>
    %515 = vector.broadcast %cst_269 : f32 to vector<10x10xf32>
    %516 = arith.select %514, %515, %512 : vector<10x10xi1>, vector<10x10xf32>
    %cst_270 = arith.constant dense<0xFF800000> : vector<10xf32>
    %517 = vector.multi_reduction <maximumf>, %516, %cst_270 [1] : vector<10x10xf32> to vector<10xf32>
    %518 = vector.shape_cast %517 : vector<10xf32> to vector<10x1xf32>
    %519 = vector.broadcast %518 : vector<10x1xf32> to vector<10x10xf32>
    %520 = arith.subf %516, %519 : vector<10x10xf32>
    %521 = math.exp %520 : vector<10x10xf32>
    %cst_271 = arith.constant dense<0.000000e+00> : vector<10xf32>
    %522 = vector.multi_reduction <add>, %521, %cst_271 [1] : vector<10x10xf32> to vector<10xf32>
    %523 = vector.shape_cast %522 : vector<10xf32> to vector<10x1xf32>
    %524 = tpu.reciprocal %523 {approx = true} : vector<10x1xf32> -> vector<10x1xf32>
    %525 = vector.broadcast %524 : vector<10x1xf32> to vector<10x10xf32>
    %526 = arith.mulf %521, %525 : vector<10x10xf32>
    %cst_272 = arith.constant dense<0.000000e+00> : vector<10x16xf32>
    %527 = tpu.matmul %526, %509, %cst_272 {dimension_numbers = #tpu.dot_dimension_numbers<[1], [0], [0], [1], [0, 0, 1, 1], [], []>} : vector<10x10xf32>, vector<10x16xf32>, vector<10x16xf32> -> vector<10x16xf32>
    %c1_273 = arith.constant 1 : index
    %c1_274 = arith.constant 1 : index
    %c0_275 = arith.constant 0 : index
    %c0_276 = arith.constant 0 : index
    %528 = vector.load %arg11[%c1_273, %c1_274, %c0_275, %c0_276] : memref<2x2x16x32xf32, #tpu.memory_space<vmem>>, vector<1x1x16x32xf32>
    %529 = vector.shape_cast %528 : vector<1x1x16x32xf32> to vector<16x32xf32>
    %cst_277 = arith.constant dense<0.000000e+00> : vector<10x32xf32>
    %530 = tpu.matmul %527, %529, %cst_277 {dimension_numbers = #tpu.dot_dimension_numbers<[1], [0], [0], [1], [0, 0, 1, 1], [], []>} : vector<10x16xf32>, vector<16x32xf32>, vector<10x32xf32> -> vector<10x32xf32>
    %531 = arith.addf %506, %530 : vector<10x32xf32>
    %cst_278 = arith.constant dense<0.000000e+00> : vector<10xf32>
    %532 = vector.multi_reduction <add>, %531, %cst_278 [1] : vector<10x32xf32> to vector<10xf32>
    %533 = vector.shape_cast %532 : vector<10xf32> to vector<10x1xf32>
    %cst_279 = arith.constant 3.200000e+01 : f32
    %534 = vector.broadcast %cst_279 : f32 to vector<10x1xf32>
    %535 = arith.divf %533, %534 : vector<10x1xf32>
    %536 = vector.broadcast %535 : vector<10x1xf32> to vector<10x32xf32>
    %537 = arith.subf %531, %536 : vector<10x32xf32>
    %538 = arith.mulf %537, %537 : vector<10x32xf32>
    %cst_280 = arith.constant dense<0.000000e+00> : vector<10xf32>
    %539 = vector.multi_reduction <add>, %538, %cst_280 [1] : vector<10x32xf32> to vector<10xf32>
    %540 = vector.shape_cast %539 : vector<10xf32> to vector<10x1xf32>
    %cst_281 = arith.constant 3.200000e+01 : f32
    %541 = vector.broadcast %cst_281 : f32 to vector<10x1xf32>
    %542 = arith.divf %540, %541 : vector<10x1xf32>
    %543 = vector.broadcast %535 : vector<10x1xf32> to vector<10x32xf32>
    %544 = arith.subf %531, %543 : vector<10x32xf32>
    %cst_282 = arith.constant 9.99999974E-6 : f32
    %545 = vector.broadcast %cst_282 : f32 to vector<10x1xf32>
    %546 = arith.addf %542, %545 : vector<10x1xf32>
    %547 = math.rsqrt %546 : vector<10x1xf32>
    %548 = vector.broadcast %547 : vector<10x1xf32> to vector<10x32xf32>
    %549 = arith.mulf %544, %548 : vector<10x32xf32>
    %c1_283 = arith.constant 1 : index
    %c0_284 = arith.constant 0 : index
    %c0_285 = arith.constant 0 : index
    %550 = vector.load %arg13[%c1_283, %c0_284, %c0_285] : memref<2x1x32xf32, #tpu.memory_space<vmem>>, vector<1x1x32xf32>
    %551 = vector.shape_cast %550 : vector<1x1x32xf32> to vector<1x32xf32>
    %552 = vector.broadcast %551 : vector<1x32xf32> to vector<10x32xf32>
    %553 = arith.mulf %549, %552 : vector<10x32xf32>
    %c1_286 = arith.constant 1 : index
    %c0_287 = arith.constant 0 : index
    %c0_288 = arith.constant 0 : index
    %554 = vector.load %arg14[%c1_286, %c0_287, %c0_288] : memref<2x1x32xf32, #tpu.memory_space<vmem>>, vector<1x1x32xf32>
    %555 = vector.shape_cast %554 : vector<1x1x32xf32> to vector<1x32xf32>
    %556 = vector.broadcast %555 : vector<1x32xf32> to vector<10x32xf32>
    %557 = arith.addf %553, %556 : vector<10x32xf32>
    %c1_289 = arith.constant 1 : index
    %c0_290 = arith.constant 0 : index
    %c0_291 = arith.constant 0 : index
    %558 = vector.load %arg15[%c1_289, %c0_290, %c0_291] : memref<2x10x10xf32, #tpu.memory_space<vmem>>, vector<1x10x10xf32>
    %559 = vector.shape_cast %558 : vector<1x10x10xf32> to vector<10x10xf32>
    %cst_292 = arith.constant dense<0.000000e+00> : vector<10x32xf32>
    %560 = tpu.matmul %559, %557, %cst_292 {dimension_numbers = #tpu.dot_dimension_numbers<[1], [0], [0], [1], [0, 0, 1, 1], [], []>} : vector<10x10xf32>, vector<10x32xf32>, vector<10x32xf32> -> vector<10x32xf32>
    %c1_293 = arith.constant 1 : index
    %c0_294 = arith.constant 0 : index
    %c0_295 = arith.constant 0 : index
    %561 = vector.load %arg16[%c1_293, %c0_294, %c0_295] : memref<2x10x1xf32, #tpu.memory_space<vmem>>, vector<1x10x1xf32>
    %562 = vector.shape_cast %561 : vector<1x10x1xf32> to vector<10x1xf32>
    %563 = vector.broadcast %562 : vector<10x1xf32> to vector<10x32xf32>
    %564 = arith.addf %560, %563 : vector<10x32xf32>
    %cst_296 = arith.constant 0.000000e+00 : f32
    %565 = vector.broadcast %cst_296 : f32 to vector<10x32xf32>
    %566 = arith.maximumf %564, %565 : vector<10x32xf32>
    %c1_297 = arith.constant 1 : index
    %c0_298 = arith.constant 0 : index
    %c0_299 = arith.constant 0 : index
    %567 = vector.load %arg17[%c1_297, %c0_298, %c0_299] : memref<2x32x64xf32, #tpu.memory_space<vmem>>, vector<1x32x64xf32>
    %568 = vector.shape_cast %567 : vector<1x32x64xf32> to vector<32x64xf32>
    %cst_300 = arith.constant dense<0.000000e+00> : vector<10x64xf32>
    %569 = tpu.matmul %566, %568, %cst_300 {dimension_numbers = #tpu.dot_dimension_numbers<[1], [0], [0], [1], [0, 0, 1, 1], [], []>} : vector<10x32xf32>, vector<32x64xf32>, vector<10x64xf32> -> vector<10x64xf32>
    %c1_301 = arith.constant 1 : index
    %c0_302 = arith.constant 0 : index
    %c0_303 = arith.constant 0 : index
    %570 = vector.load %arg18[%c1_301, %c0_302, %c0_303] : memref<2x1x64xf32, #tpu.memory_space<vmem>>, vector<1x1x64xf32>
    %571 = vector.shape_cast %570 : vector<1x1x64xf32> to vector<1x64xf32>
    %572 = vector.broadcast %571 : vector<1x64xf32> to vector<10x64xf32>
    %573 = arith.addf %569, %572 : vector<10x64xf32>
    %cst_304 = arith.constant 0.000000e+00 : f32
    %574 = vector.broadcast %cst_304 : f32 to vector<10x64xf32>
    %575 = arith.maximumf %573, %574 : vector<10x64xf32>
    %c1_305 = arith.constant 1 : index
    %c0_306 = arith.constant 0 : index
    %c0_307 = arith.constant 0 : index
    %576 = vector.load %arg19[%c1_305, %c0_306, %c0_307] : memref<2x64x32xf32, #tpu.memory_space<vmem>>, vector<1x64x32xf32>
    %577 = vector.shape_cast %576 : vector<1x64x32xf32> to vector<64x32xf32>
    %cst_308 = arith.constant dense<0.000000e+00> : vector<10x32xf32>
    %578 = tpu.matmul %575, %577, %cst_308 {dimension_numbers = #tpu.dot_dimension_numbers<[1], [0], [0], [1], [0, 0, 1, 1], [], []>} : vector<10x64xf32>, vector<64x32xf32>, vector<10x32xf32> -> vector<10x32xf32>
    %c1_309 = arith.constant 1 : index
    %c0_310 = arith.constant 0 : index
    %c0_311 = arith.constant 0 : index
    %579 = vector.load %arg20[%c1_309, %c0_310, %c0_311] : memref<2x1x32xf32, #tpu.memory_space<vmem>>, vector<1x1x32xf32>
    %580 = vector.shape_cast %579 : vector<1x1x32xf32> to vector<1x32xf32>
    %581 = vector.broadcast %580 : vector<1x32xf32> to vector<10x32xf32>
    %582 = arith.addf %578, %581 : vector<10x32xf32>
    %cst_312 = arith.constant dense<0.000000e+00> : vector<10x16xf32>
    %583 = tpu.matmul %582, %42, %cst_312 {dimension_numbers = #tpu.dot_dimension_numbers<[1], [0], [0], [1], [0, 0, 1, 1], [], []>} : vector<10x32xf32>, vector<32x16xf32>, vector<10x16xf32> -> vector<10x16xf32>
    %584 = vector.broadcast %43 : vector<1x16xf32> to vector<10x16xf32>
    %585 = arith.addf %583, %584 : vector<10x16xf32>
    %cst_313 = arith.constant 0.000000e+00 : f32
    %586 = vector.broadcast %cst_313 : f32 to vector<10x16xf32>
    %587 = arith.maximumf %585, %586 : vector<10x16xf32>
    %cst_314 = arith.constant dense<0.000000e+00> : vector<10x2xf32>
    %588 = tpu.matmul %587, %44, %cst_314 {dimension_numbers = #tpu.dot_dimension_numbers<[1], [0], [0], [1], [0, 0, 1, 1], [], []>} : vector<10x16xf32>, vector<16x2xf32>, vector<10x2xf32> -> vector<10x2xf32>
    %589 = vector.broadcast %45 : vector<1x2xf32> to vector<10x2xf32>
    %590 = arith.addf %588, %589 : vector<10x2xf32>
    %cst_315 = arith.constant dense<0xFF800000> : vector<10xf32>
    %591 = vector.multi_reduction <maximumf>, %590, %cst_315 [1] : vector<10x2xf32> to vector<10xf32>
    %592 = vector.shape_cast %591 : vector<10xf32> to vector<10x1xf32>
    %593 = vector.broadcast %592 : vector<10x1xf32> to vector<10x2xf32>
    %594 = arith.subf %590, %593 : vector<10x2xf32>
    %595 = math.exp %594 : vector<10x2xf32>
    %cst_316 = arith.constant dense<0.000000e+00> : vector<10xf32>
    %596 = vector.multi_reduction <add>, %595, %cst_316 [1] : vector<10x2xf32> to vector<10xf32>
    %597 = vector.shape_cast %596 : vector<10xf32> to vector<10x1xf32>
    %598 = tpu.reciprocal %597 {approx = true} : vector<10x1xf32> -> vector<10x1xf32>
    %599 = vector.broadcast %598 : vector<10x1xf32> to vector<10x2xf32>
    %600 = arith.mulf %595, %599 : vector<10x2xf32>
    %601 = vector.extract_strided_slice %590 {offsets = [0, 0], sizes = [1, 2], strides = [1, 1]} : vector<10x2xf32> to vector<1x2xf32>
    %c1_317 = arith.constant 1 : index
    %c0_318 = arith.constant 0 : index
    %c0_319 = arith.constant 0 : index
    %602 = vector.load %arg25[%c1_317, %c0_318, %c0_319] : memref<2x1x2xf32, #tpu.memory_space<vmem>>, vector<1x1x2xf32>
    %603 = vector.shape_cast %602 : vector<1x1x2xf32> to vector<1x2xf32>
    %604 = vector.shape_cast %601 : vector<1x2xf32> to vector<1x1x2xf32>
    tpu.vector_store %arg25[%c1_317, %c0_318, %c0_319], %604 {strides = array<i32>} : memref<2x1x2xf32, #tpu.memory_space<vmem>>, vector<1x1x2xf32>,
    %605 = vector.extract_strided_slice %582 {offsets = [0, 0], sizes = [1, 32], strides = [1, 1]} : vector<10x32xf32> to vector<1x32xf32>
    %c1_320 = arith.constant 1 : index
    %c0_321 = arith.constant 0 : index
    %c0_322 = arith.constant 0 : index
    %606 = vector.load %arg26[%c1_320, %c0_321, %c0_322] : memref<2x1x32xf32, #tpu.memory_space<vmem>>, vector<1x1x32xf32>
    %607 = vector.shape_cast %606 : vector<1x1x32xf32> to vector<1x32xf32>
    %608 = vector.shape_cast %605 : vector<1x32xf32> to vector<1x1x32xf32>
    tpu.vector_store %arg26[%c1_320, %c0_321, %c0_322], %608 {strides = array<i32>} : memref<2x1x32xf32, #tpu.memory_space<vmem>>, vector<1x1x32xf32>,
    %cst_323 = arith.constant dense<0xFF800000> : vector<10xf32>
    %609 = vector.multi_reduction <maximumf>, %600, %cst_323 [1] : vector<10x2xf32> to vector<10xf32>
    %610 = vector.shape_cast %609 : vector<10xf32> to vector<10x1xf32>
    %c1_324 = arith.constant 1 : index
    %c0_325 = arith.constant 0 : index
    %c0_326 = arith.constant 0 : index
    %611 = vector.load %arg27[%c1_324, %c0_325, %c0_326] : memref<2x10x1xf32, #tpu.memory_space<vmem>>, vector<1x10x1xf32>
    %612 = vector.shape_cast %611 : vector<1x10x1xf32> to vector<10x1xf32>
    %613 = vector.shape_cast %610 : vector<10x1xf32> to vector<1x10x1xf32>
    tpu.vector_store %arg27[%c1_324, %c0_325, %c0_326], %613 {strides = array<i32>} : memref<2x10x1xf32, #tpu.memory_space<vmem>>, vector<1x10x1xf32>,
    return
  }
  func.func @transform_0(%arg0: i32) -> (i32, i32) {
    %c0_i32 = arith.constant 0 : i32
    %c0_i32_0 = arith.constant 0 : i32
    %c0_i32_1 = arith.constant 0 : i32
    return %c0_i32, %c0_i32_0 : i32, i32
  }
  func.func @transform_1(%arg0: i32) -> (i32, i32, i32) {
    %c0_i32 = arith.constant 0 : i32
    %c0_i32_0 = arith.constant 0 : i32
    %c0_i32_1 = arith.constant 0 : i32
    %c0_i32_2 = arith.constant 0 : i32
    return %c0_i32, %c0_i32_0, %c0_i32_1 : i32, i32, i32
  }
  func.func @transform_2(%arg0: i32) -> (i32, i32, i32) {
    %c0_i32 = arith.constant 0 : i32
    %c0_i32_0 = arith.constant 0 : i32
    %c0_i32_1 = arith.constant 0 : i32
    %c0_i32_2 = arith.constant 0 : i32
    return %c0_i32, %c0_i32_0, %c0_i32_1 : i32, i32, i32
  }
  func.func @transform_3(%arg0: i32) -> (i32, i32) {
    %c0_i32 = arith.constant 0 : i32
    %c0_i32_0 = arith.constant 0 : i32
    %c0_i32_1 = arith.constant 0 : i32
    return %c0_i32, %c0_i32_0 : i32, i32
  }
  func.func @transform_4(%arg0: i32) -> (i32, i32) {
    %c0_i32 = arith.constant 0 : i32
    %c0_i32_0 = arith.constant 0 : i32
    %c0_i32_1 = arith.constant 0 : i32
    return %c0_i32, %c0_i32_0 : i32, i32
  }
  func.func @transform_5(%arg0: i32) -> (i32, i32) {
    %c0_i32 = arith.constant 0 : i32
    %c0_i32_0 = arith.constant 0 : i32
    %c0_i32_1 = arith.constant 0 : i32
    return %c0_i32, %c0_i32_0 : i32, i32
  }
  func.func @transform_6(%arg0: i32) -> (i32, i32) {
    %c0_i32 = arith.constant 0 : i32
    %c0_i32_0 = arith.constant 0 : i32
    %c0_i32_1 = arith.constant 0 : i32
    return %c0_i32, %c0_i32_0 : i32, i32
  }
  func.func @transform_7(%arg0: i32) -> (i32, i32) {
    %c0_i32 = arith.constant 0 : i32
    %c0_i32_0 = arith.constant 0 : i32
    %c0_i32_1 = arith.constant 0 : i32
    return %c0_i32, %c0_i32_0 : i32, i32
  }
  func.func @transform_8(%arg0: i32) -> (i32, i32, i32) {
    %c0_i32 = arith.constant 0 : i32
    %c0_i32_0 = arith.constant 0 : i32
    %c0_i32_1 = arith.constant 0 : i32
    %c0_i32_2 = arith.constant 0 : i32
    return %c0_i32, %c0_i32_0, %c0_i32_1 : i32, i32, i32
  }
  func.func @transform_9(%arg0: i32) -> (i32, i32, i32) {
    %c0_i32 = arith.constant 0 : i32
    %c0_i32_0 = arith.constant 0 : i32
    %c0_i32_1 = arith.constant 0 : i32
    %c0_i32_2 = arith.constant 0 : i32
    return %c0_i32, %c0_i32_0, %c0_i32_1 : i32, i32, i32
  }
  func.func @transform_10(%arg0: i32) -> (i32, i32, i32, i32) {
    %c0_i32 = arith.constant 0 : i32
    %c0_i32_0 = arith.constant 0 : i32
    %c0_i32_1 = arith.constant 0 : i32
    %c0_i32_2 = arith.constant 0 : i32
    %c0_i32_3 = arith.constant 0 : i32
    return %c0_i32, %c0_i32_0, %c0_i32_1, %c0_i32_2 : i32, i32, i32, i32
  }
  func.func @transform_11(%arg0: i32) -> (i32, i32, i32) {
    %c0_i32 = arith.constant 0 : i32
    %c0_i32_0 = arith.constant 0 : i32
    %c0_i32_1 = arith.constant 0 : i32
    %c0_i32_2 = arith.constant 0 : i32
    return %c0_i32, %c0_i32_0, %c0_i32_1 : i32, i32, i32
  }
  func.func @transform_12(%arg0: i32) -> (i32, i32, i32) {
    %c0_i32 = arith.constant 0 : i32
    %c0_i32_0 = arith.constant 0 : i32
    %c0_i32_1 = arith.constant 0 : i32
    %c0_i32_2 = arith.constant 0 : i32
    return %c0_i32, %c0_i32_0, %c0_i32_1 : i32, i32, i32
  }
  func.func @transform_13(%arg0: i32) -> (i32, i32, i32) {
    %c0_i32 = arith.constant 0 : i32
    %c0_i32_0 = arith.constant 0 : i32
    %c0_i32_1 = arith.constant 0 : i32
    %c0_i32_2 = arith.constant 0 : i32
    return %c0_i32, %c0_i32_0, %c0_i32_1 : i32, i32, i32
  }
  func.func @transform_14(%arg0: i32) -> (i32, i32, i32) {
    %c0_i32 = arith.constant 0 : i32
    %c0_i32_0 = arith.constant 0 : i32
    %c0_i32_1 = arith.constant 0 : i32
    %c0_i32_2 = arith.constant 0 : i32
    return %c0_i32, %c0_i32_0, %c0_i32_1 : i32, i32, i32
  }
  func.func @transform_15(%arg0: i32) -> (i32, i32, i32) {
    %c0_i32 = arith.constant 0 : i32
    %c0_i32_0 = arith.constant 0 : i32
    %c0_i32_1 = arith.constant 0 : i32
    %c0_i32_2 = arith.constant 0 : i32
    return %c0_i32, %c0_i32_0, %c0_i32_1 : i32, i32, i32
  }
  func.func @transform_16(%arg0: i32) -> (i32, i32, i32) {
    %c0_i32 = arith.constant 0 : i32
    %c0_i32_0 = arith.constant 0 : i32
    %c0_i32_1 = arith.constant 0 : i32
    %c0_i32_2 = arith.constant 0 : i32
    return %c0_i32, %c0_i32_0, %c0_i32_1 : i32, i32, i32
  }
  func.func @transform_17(%arg0: i32) -> (i32, i32, i32) {
    %c0_i32 = arith.constant 0 : i32
    %c0_i32_0 = arith.constant 0 : i32
    %c0_i32_1 = arith.constant 0 : i32
    %c0_i32_2 = arith.constant 0 : i32
    return %c0_i32, %c0_i32_0, %c0_i32_1 : i32, i32, i32
  }
  func.func @transform_18(%arg0: i32) -> (i32, i32, i32) {
    %c0_i32 = arith.constant 0 : i32
    %c0_i32_0 = arith.constant 0 : i32
    %c0_i32_1 = arith.constant 0 : i32
    %c0_i32_2 = arith.constant 0 : i32
    return %c0_i32, %c0_i32_0, %c0_i32_1 : i32, i32, i32
  }
  func.func @transform_19(%arg0: i32) -> (i32, i32, i32) {
    %c0_i32 = arith.constant 0 : i32
    %c0_i32_0 = arith.constant 0 : i32
    %c0_i32_1 = arith.constant 0 : i32
    %c0_i32_2 = arith.constant 0 : i32
    return %c0_i32, %c0_i32_0, %c0_i32_1 : i32, i32, i32
  }
  func.func @transform_20(%arg0: i32) -> (i32, i32) {
    %c0_i32 = arith.constant 0 : i32
    %c0_i32_0 = arith.constant 0 : i32
    %c0_i32_1 = arith.constant 0 : i32
    return %c0_i32, %c0_i32_0 : i32, i32
  }
  func.func @transform_21(%arg0: i32) -> (i32, i32) {
    %c0_i32 = arith.constant 0 : i32
    %c0_i32_0 = arith.constant 0 : i32
    %c0_i32_1 = arith.constant 0 : i32
    return %c0_i32, %c0_i32_0 : i32, i32
  }
  func.func @transform_22(%arg0: i32) -> (i32, i32) {
    %c0_i32 = arith.constant 0 : i32
    %c0_i32_0 = arith.constant 0 : i32
    %c0_i32_1 = arith.constant 0 : i32
    return %c0_i32, %c0_i32_0 : i32, i32
  }
  func.func @transform_23(%arg0: i32) -> (i32, i32) {
    %c0_i32 = arith.constant 0 : i32
    %c0_i32_0 = arith.constant 0 : i32
    %c0_i32_1 = arith.constant 0 : i32
    return %c0_i32, %c0_i32_0 : i32, i32
  }
  func.func @transform_24(%arg0: i32) -> (i32, i32, i32) {
    %c0_i32 = arith.constant 0 : i32
    %c0_i32_0 = arith.constant 0 : i32
    %c0_i32_1 = arith.constant 0 : i32
    %c0_i32_2 = arith.constant 0 : i32
    return %c0_i32, %c0_i32_0, %c0_i32_1 : i32, i32, i32
  }
  func.func @transform_25(%arg0: i32) -> (i32, i32, i32) {
    %c0_i32 = arith.constant 0 : i32
    %c0_i32_0 = arith.constant 0 : i32
    %c0_i32_1 = arith.constant 0 : i32
    %c0_i32_2 = arith.constant 0 : i32
    return %c0_i32, %c0_i32_0, %c0_i32_1 : i32, i32, i32
  }
  func.func @transform_26(%arg0: i32) -> (i32, i32, i32) {
    %c0_i32 = arith.constant 0 : i32
    %c0_i32_0 = arith.constant 0 : i32
    %c0_i32_1 = arith.constant 0 : i32
    %c0_i32_2 = arith.constant 0 : i32
    return %c0_i32, %c0_i32_0, %c0_i32_1 : i32, i32, i32
  }
}

</mosaic_0001>

<llo_original>
// kernel: tmsc_m7g_forward.1
$region0: #{tmsc_m7g_forward.1}
  #allocation0 [shape = 'u32[]', space=smem, size = 0x4, offset = 0x4, fixed_abs, tag = 'smem constant byte address 0x4 - core index']
  #allocation1 [shape = 'u32[144,128]{1,0:T(1,128)}', space=vmem, size = 0x12000, scoped, tag = 'internal scratch']
  #allocation2 [shape = 'f32[1,1]{1,0:T(1,128)S(1)}', space=vmem, size = 0x200, scoped, tag = 'scoped memory for tmsc_m7g_forward.1']
  #allocation3 [shape = 'f32[1,1]{1,0:T(1,128)S(1)}', space=vmem, size = 0x200, scoped, tag = 'scoped memory for tmsc_m7g_forward.1']
  %s0 = inlined_call_operand.vmem [shape: s32[60,1], index: 0, kind: input, shape index: {}]
  %s1 = inlined_call_operand.vmem [shape: s32[2,1,10], index: 1, kind: input, shape index: {}]
  %s2 = inlined_call_operand.vmem [shape: f32[2,10,32], index: 2, kind: input, shape index: {}]
  %s3 = inlined_call_operand.vmem [shape: f32[48,32], index: 3, kind: input, shape index: {}]
  %s4 = inlined_call_operand.vmem [shape: f32[32,1], index: 4, kind: input, shape index: {}]
  %s5 = inlined_call_operand.<no memory space> [shape: f32[1,1], index: 5, kind: input, shape index: {}]
  %s6 = inlined_call_operand.vmem [shape: f32[32,1], index: 6, kind: input, shape index: {}]
  %s7 = inlined_call_operand.<no memory space> [shape: f32[1,1], index: 7, kind: input, shape index: {}]
  %s8 = inlined_call_operand.vmem [shape: f32[2,32,96], index: 8, kind: input, shape index: {}]
  %s9 = inlined_call_operand.vmem [shape: f32[2,1,96], index: 9, kind: input, shape index: {}]
  %s10 = inlined_call_operand.vmem [shape: f32[2,2,16,32], index: 10, kind: input, shape index: {}]
  %s11 = inlined_call_operand.vmem [shape: f32[2,1,32], index: 11, kind: input, shape index: {}]
  %s12 = inlined_call_operand.vmem [shape: f32[2,1,32], index: 12, kind: input, shape index: {}]
  %s13 = inlined_call_operand.vmem [shape: f32[2,1,32], index: 13, kind: input, shape index: {}]
  %s14 = inlined_call_operand.vmem [shape: f32[2,10,10], index: 14, kind: input, shape index: {}]
  %s15 = inlined_call_operand.vmem [shape: f32[2,10,1], index: 15, kind: input, shape index: {}]
  %s16 = inlined_call_operand.vmem [shape: f32[2,32,64], index: 16, kind: input, shape index: {}]
  %s17 = inlined_call_operand.vmem [shape: f32[2,1,64], index: 17, kind: input, shape index: {}]
  %s18 = inlined_call_operand.vmem [shape: f32[2,64,32], index: 18, kind: input, shape index: {}]
  %s19 = inlined_call_operand.vmem [shape: f32[2,1,32], index: 19, kind: input, shape index: {}]
  %s20 = inlined_call_operand.vmem [shape: f32[32,16], index: 20, kind: input, shape index: {}]
  %s21 = inlined_call_operand.vmem [shape: f32[1,16], index: 21, kind: input, shape index: {}]
  %s22 = inlined_call_operand.vmem [shape: f32[16,2], index: 22, kind: input, shape index: {}]
  %s23 = inlined_call_operand.vmem [shape: f32[1,2], index: 23, kind: input, shape index: {}]
  %s24 = inlined_call_operand.hbm [shape: f32[2,1,2], index: 24, kind: output, shape index: {0}]
  %s25 = inlined_call_operand.hbm [shape: f32[2,1,32], index: 25, kind: output, shape index: {1}]
  %s26 = inlined_call_operand.vmem [shape: f32[2,10,1], index: 26, kind: output, shape index: {2}]
  %27 = xla_tuple %s24, %s25, %s26
  %s28 = sld [smem:[#allocation0]]
  $region122: #{tmsc_m7g_forward.1} parent=0
    _
  %s30 = ssub.s32 1, %s28
  %s31 = scalar_select 0, %s30, %s28
  %v32 = vstv %s5
  %33 = vst [vmem:[#allocation2] sm:$0x1] %v32
  %v34 = vstv %s7
  %35 = vst [vmem:[#allocation3] sm:$0x1] %v34
  $region1: #{tmsc_m7g_forward.1} parent=0
    #allocation4 [shape = 'u8[1024]{0}', space=vmem, size = 0x400, scoped, tag = 'output window, operand 0, single buffered']
    #allocation5 [shape = 's32[1]{0}', space=sflag, size = 0x4, scoped, tag = 'scoped memory for tmsc_m7g_forward.1']
    #allocation6 [shape = 'u8[1024]{0}', space=vmem, size = 0x400, scoped, tag = 'output window, operand 1, single buffered']
    #allocation7 [shape = 's32[1]{0}', space=sflag, size = 0x4, scoped, tag = 'scoped memory for tmsc_m7g_forward.1']
    %36 = vsyncpa [#allocation5], 0
    %37 = vsyncpa [#allocation7], 0
    // Predicated region
    $region2: #{tmsc_m7g_forward.1} parent=1 // pred_check
      _
    $region3: #{tmsc_m7g_forward.1} parent=1 // pred_check_branch
      %39 = sbr.rel (0) target = $region5
    $region4: #{tmsc_m7g_forward.1} parent=1 // pred_region
      _
    $region5: #{tmsc_m7g_forward.1} parent=1 // pred_fallthru
      _
    // Predicated region
    $region6: #{tmsc_m7g_forward.1} parent=1 // pred_check
      _
    $region7: #{tmsc_m7g_forward.1} parent=1 // pred_check_branch
      %41 = sbr.rel (0) target = $region9
    $region8: #{tmsc_m7g_forward.1} parent=1 // pred_region
      _
    $region9: #{tmsc_m7g_forward.1} parent=1 // pred_fallthru
      _
    // Predicated region
    $region10: #{tmsc_m7g_forward.1} parent=1 // pred_check
      _
    $region11: #{tmsc_m7g_forward.1} parent=1 // pred_check_branch
      %43 = sbr.rel (0) target = $region13
    $region12: #{tmsc_m7g_forward.1} parent=1 // pred_region
      _
    $region13: #{tmsc_m7g_forward.1} parent=1 // pred_fallthru
      _
    // Predicated region
    $region14: #{tmsc_m7g_forward.1} parent=1 // pred_check
      _
    $region15: #{tmsc_m7g_forward.1} parent=1 // pred_check_branch
      %45 = sbr.rel (0) target = $region17
    $region16: #{tmsc_m7g_forward.1} parent=1 // pred_region
      _
    $region17: #{tmsc_m7g_forward.1} parent=1 // pred_fallthru
      _
    // Predicated region
    $region18: #{tmsc_m7g_forward.1} parent=1 // pred_check
      _
    $region19: #{tmsc_m7g_forward.1} parent=1 // pred_check_branch
      %47 = sbr.rel (0) target = $region21
    $region20: #{tmsc_m7g_forward.1} parent=1 // pred_region
      _
    $region21: #{tmsc_m7g_forward.1} parent=1 // pred_fallthru
      _
    // Predicated region
    $region22: #{tmsc_m7g_forward.1} parent=1 // pred_check
      _
    $region23: #{tmsc_m7g_forward.1} parent=1 // pred_check_branch
      %49 = sbr.rel (0) target = $region25
    $region24: #{tmsc_m7g_forward.1} parent=1 // pred_region
      _
    $region25: #{tmsc_m7g_forward.1} parent=1 // pred_fallthru
      _
    // Predicated region
    $region26: #{tmsc_m7g_forward.1} parent=1 // pred_check
      _
    $region27: #{tmsc_m7g_forward.1} parent=1 // pred_check_branch
      %51 = sbr.rel (0) target = $region29
    $region28: #{tmsc_m7g_forward.1} parent=1 // pred_region
      _
    $region29: #{tmsc_m7g_forward.1} parent=1 // pred_fallthru
      _
    // Predicated region
    $region30: #{tmsc_m7g_forward.1} parent=1 // pred_check
      _
    $region31: #{tmsc_m7g_forward.1} parent=1 // pred_check_branch
      %53 = sbr.rel (0) target = $region33
    $region32: #{tmsc_m7g_forward.1} parent=1 // pred_region
      _
    $region33: #{tmsc_m7g_forward.1} parent=1 // pred_fallthru
      _
    // Predicated region
    $region34: #{tmsc_m7g_forward.1} parent=1 // pred_check
      _
    $region35: #{tmsc_m7g_forward.1} parent=1 // pred_check_branch
      %55 = sbr.rel (0) target = $region37
    $region36: #{tmsc_m7g_forward.1} parent=1 // pred_region
      _
    $region37: #{tmsc_m7g_forward.1} parent=1 // pred_fallthru
      _
    // Predicated region
    $region38: #{tmsc_m7g_forward.1} parent=1 // pred_check
      _
    $region39: #{tmsc_m7g_forward.1} parent=1 // pred_check_branch
      %57 = sbr.rel (0) target = $region41
    $region40: #{tmsc_m7g_forward.1} parent=1 // pred_region
      _
    $region41: #{tmsc_m7g_forward.1} parent=1 // pred_fallthru
      _
    // Predicated region
    $region42: #{tmsc_m7g_forward.1} parent=1 // pred_check
      _
    $region43: #{tmsc_m7g_forward.1} parent=1 // pred_check_branch
      %59 = sbr.rel (0) target = $region45
    $region44: #{tmsc_m7g_forward.1} parent=1 // pred_region
      _
    $region45: #{tmsc_m7g_forward.1} parent=1 // pred_fallthru
      _
    // Predicated region
    $region46: #{tmsc_m7g_forward.1} parent=1 // pred_check
      _
    $region47: #{tmsc_m7g_forward.1} parent=1 // pred_check_branch
      %61 = sbr.rel (0) target = $region49
    $region48: #{tmsc_m7g_forward.1} parent=1 // pred_region
      _
    $region49: #{tmsc_m7g_forward.1} parent=1 // pred_fallthru
      _
    // Predicated region
    $region50: #{tmsc_m7g_forward.1} parent=1 // pred_check
      _
    $region51: #{tmsc_m7g_forward.1} parent=1 // pred_check_branch
      %63 = sbr.rel (0) target = $region53
    $region52: #{tmsc_m7g_forward.1} parent=1 // pred_region
      _
    $region53: #{tmsc_m7g_forward.1} parent=1 // pred_fallthru
      _
    // Predicated region
    $region54: #{tmsc_m7g_forward.1} parent=1 // pred_check
      _
    $region55: #{tmsc_m7g_forward.1} parent=1 // pred_check_branch
      %65 = sbr.rel (0) target = $region57
    $region56: #{tmsc_m7g_forward.1} parent=1 // pred_region
      _
    $region57: #{tmsc_m7g_forward.1} parent=1 // pred_fallthru
      _
    // Predicated region
    $region58: #{tmsc_m7g_forward.1} parent=1 // pred_check
      _
    $region59: #{tmsc_m7g_forward.1} parent=1 // pred_check_branch
      %67 = sbr.rel (0) target = $region61
    $region60: #{tmsc_m7g_forward.1} parent=1 // pred_region
      _
    $region61: #{tmsc_m7g_forward.1} parent=1 // pred_fallthru
      _
    // Predicated region
    $region62: #{tmsc_m7g_forward.1} parent=1 // pred_check
      _
    $region63: #{tmsc_m7g_forward.1} parent=1 // pred_check_branch
      %69 = sbr.rel (0) target = $region65
    $region64: #{tmsc_m7g_forward.1} parent=1 // pred_region
      _
    $region65: #{tmsc_m7g_forward.1} parent=1 // pred_fallthru
      _
    // Predicated region
    $region66: #{tmsc_m7g_forward.1} parent=1 // pred_check
      _
    $region67: #{tmsc_m7g_forward.1} parent=1 // pred_check_branch
      %71 = sbr.rel (0) target = $region69
    $region68: #{tmsc_m7g_forward.1} parent=1 // pred_region
      _
    $region69: #{tmsc_m7g_forward.1} parent=1 // pred_fallthru
      _
    // Predicated region
    $region70: #{tmsc_m7g_forward.1} parent=1 // pred_check
      _
    $region71: #{tmsc_m7g_forward.1} parent=1 // pred_check_branch
      %73 = sbr.rel (0) target = $region73
    $region72: #{tmsc_m7g_forward.1} parent=1 // pred_region
      _
    $region73: #{tmsc_m7g_forward.1} parent=1 // pred_fallthru
      _
    // Predicated region
    $region74: #{tmsc_m7g_forward.1} parent=1 // pred_check
      _
    $region75: #{tmsc_m7g_forward.1} parent=1 // pred_check_branch
      %75 = sbr.rel (0) target = $region77
    $region76: #{tmsc_m7g_forward.1} parent=1 // pred_region
      _
    $region77: #{tmsc_m7g_forward.1} parent=1 // pred_fallthru
      _
    // Predicated region
    $region78: #{tmsc_m7g_forward.1} parent=1 // pred_check
      _
    $region79: #{tmsc_m7g_forward.1} parent=1 // pred_check_branch
      %77 = sbr.rel (0) target = $region81
    $region80: #{tmsc_m7g_forward.1} parent=1 // pred_region
      _
    $region81: #{tmsc_m7g_forward.1} parent=1 // pred_fallthru
      _
    // Predicated region
    $region82: #{tmsc_m7g_forward.1} parent=1 // pred_check
      _
    $region83: #{tmsc_m7g_forward.1} parent=1 // pred_check_branch
      %79 = sbr.rel (0) target = $region85
    $region84: #{tmsc_m7g_forward.1} parent=1 // pred_region
      _
    $region85: #{tmsc_m7g_forward.1} parent=1 // pred_fallthru
      _
    // Predicated region
    $region86: #{tmsc_m7g_forward.1} parent=1 // pred_check
      _
    $region87: #{tmsc_m7g_forward.1} parent=1 // pred_check_branch
      %81 = sbr.rel (0) target = $region89
    $region88: #{tmsc_m7g_forward.1} parent=1 // pred_region
      _
    $region89: #{tmsc_m7g_forward.1} parent=1 // pred_fallthru
      _
    // Predicated region
    $region90: #{tmsc_m7g_forward.1} parent=1 // pred_check
      _
    $region91: #{tmsc_m7g_forward.1} parent=1 // pred_check_branch
      %83 = sbr.rel (0) target = $region93
    $region92: #{tmsc_m7g_forward.1} parent=1 // pred_region
      _
    $region93: #{tmsc_m7g_forward.1} parent=1 // pred_fallthru
      _
    // Predicated region
    $region94: #{tmsc_m7g_forward.1} parent=1 // pred_check
      _
    $region95: #{tmsc_m7g_forward.1} parent=1 // pred_check_branch
      %85 = sbr.rel (0) target = $region97
    $region96: #{tmsc_m7g_forward.1} parent=1 // pred_region
      _
    $region97: #{tmsc_m7g_forward.1} parent=1 // pred_fallthru
      _
    %v86 = vld [vmem:[%s3] sm:$0xff]
    %v87 = vld [vmem:[%s3 + $0x8] sm:$0xff]
    %v88 = vld [vmem:[%s3 + $0x10] sm:$0xff]
    %v89 = vld [vmem:[%s3 + $0x18] sm:$0xff]
    %v90 = vld [vmem:[%s3 + $0x20] sm:$0xff]
    %v91 = vld [vmem:[%s3 + $0x28] sm:$0xff]
    %v92 = vld [vmem:[%s4] sm:$0xff]
    %v93 = vld [vmem:[%s4 + $0x8] sm:$0xff]
    %v94 = vld [vmem:[%s4 + $0x10] sm:$0xff]
    %v95 = vld [vmem:[%s4 + $0x18] sm:$0xff]
    %v96 = vld [vmem:[#allocation2] sm:$0x1]
    %v98 = vlaneseq
    %v99 = vshrl.u32 %v98, 7
    %v100 = vsub.s32 0, %v99
    %v101 = vrot.slane %v96, %v100
    %vm103 = vcmask 261120
    %v105 = vsel %vm103, %v86, 0
    %v108 = vsel %vm103, %v87, 0
    %v111 = vsel %vm103, %v88, 0
    %v114 = vsel %vm103, %v89, 0
    %v117 = vsel %vm103, %v90, 0
    %v120 = vsel %vm103, %v91, 0
    %122 = vmatprep.subr.mxu0 0.0
    %123 = vmatpush1.msra.mxu0 %v92
    %124 = vmatprep.subr.mxu0 0.0
    %125 = vmatpush1.msra.mxu0 %v93
    %126 = vmatprep.subr.mxu0 0.0
    %127 = vmatpush1.msra.mxu0 %v94
    %128 = vmatprep.subr.mxu0 0.0
    %129 = vmatpush1.msra.mxu0 %v95
    %130 = vmatprep.subr.mxu0 0.0
    %131 = vmatpush1.msra.mxu0 0.0
    %132 = vmatprep.subr.mxu0 0.0
    %133 = vmatpush1.msra.mxu0 0.0
    %134 = vmatprep.subr.mxu0 0.0
    %135 = vmatpush1.msra.mxu0 0.0
    %136 = vmatprep.subr.mxu0 0.0
    %137 = vmatpush1.msra.mxu0 0.0
    %138 = vmatprep.subr.mxu0 0.0
    %139 = vmatpush1.msra.mxu0 0.0
    %140 = vmatprep.subr.mxu0 0.0
    %141 = vmatpush1.msra.mxu0 0.0
    %142 = vmatprep.subr.mxu0 0.0
    %143 = vmatpush1.msra.mxu0 0.0
    %144 = vmatprep.subr.mxu0 0.0
    %145 = vmatpush1.msra.mxu0 0.0
    %146 = vmatprep.subr.mxu0 0.0
    %147 = vmatpush1.msra.mxu0 0.0
    %148 = vmatprep.subr.mxu0 0.0
    %149 = vmatpush1.msra.mxu0 0.0
    %150 = vmatprep.subr.mxu0 0.0
    %151 = vmatpush1.msra.mxu0 0.0
    %152 = vmatprep.subr.mxu0 0.0
    %153 = vmatpush1.msra.mxu0 0.0
    %154 = vmatprep.subr.mxu0 0.0
    %155 = vmatpush1.msra.mxu0 0.0
    %156 = vmatprep.subr.mxu0 0.0
    %157 = vmatpush1.msra.mxu0 0.0
    %158 = vmatprep.subr.mxu0 0.0
    %159 = vmatpush1.msra.mxu0 0.0
    %160 = vmatprep.subr.mxu0 0.0
    %161 = vmatpush1.msra.mxu0 0.0
    %162 = vmatprep.subr.mxu0 0.0
    %163 = vmatpush1.msra.mxu0 0.0
    %164 = vmatprep.subr.mxu0 0.0
    %165 = vmatpush1.msra.mxu0 0.0
    %166 = vmatprep.subr.mxu0 0.0
    %167 = vmatpush1.msra.mxu0 0.0
    %168 = vmatprep.subr.mxu0 0.0
    %169 = vmatpush1.msra.mxu0 0.0
    %170 = vmatprep.subr.mxu0 0.0
    %171 = vmatpush1.msra.mxu0 0.0
    %172 = vmatprep.subr.mxu0 0.0
    %173 = vmatpush1.msra.mxu0 0.0
    %174 = vmatprep.subr.mxu0 0.0
    %175 = vmatpush1.msra.mxu0 0.0
    %176 = vmatprep.subr.mxu0 0.0
    %177 = vmatpush1.msra.mxu0 0.0
    %178 = vmatprep.subr.mxu0 0.0
    %179 = vmatpush1.msra.mxu0 0.0
    %180 = vmatprep.subr.mxu0 0.0
    %181 = vmatpush1.msra.mxu0 0.0
    %182 = vmatprep.subr.mxu0 0.0
    %183 = vmatpush1.msra.mxu0 0.0
    %184 = vmatprep.subr.mxu0 0.0
    %185 = vmatpush1.msra.mxu0 0.0
    %186 = vmatprep.mubr.f32.mxu0 0.0
    %187 = vmatmul.mubr.f32.gmra.mrb[0].mxu0 %v105
    %v188 = vpop.f32.mrb[0].mxu0
    %v189 = vadd.f32 %v101, %v188
    %v190 = vpop.f32.mrb[0].mxu0
    %191 = vmatprep.mubr.f32.mxu0 0.0
    %192 = vmatmul.mubr.f32.gmra.mrb[0].mxu0 %v108
    %v193 = vpop.f32.mrb[0].mxu0
    %v194 = vadd.f32 %v101, %v193
    %v195 = vpop.f32.mrb[0].mxu0
    %196 = vmatprep.mubr.f32.mxu0 0.0
    %197 = vmatmul.mubr.f32.gmra.mrb[0].mxu0 %v111
    %v198 = vpop.f32.mrb[0].mxu0
    %v199 = vadd.f32 %v101, %v198
    %v200 = vpop.f32.mrb[0].mxu0
    %201 = vmatprep.mubr.f32.mxu0 0.0
    %202 = vmatmul.mubr.f32.gmra.mrb[0].mxu0 %v114
    %v203 = vpop.f32.mrb[0].mxu0
    %v204 = vadd.f32 %v101, %v203
    %v205 = vpop.f32.mrb[0].mxu0
    %206 = vmatprep.mubr.f32.mxu0 0.0
    %207 = vmatmul.mubr.f32.gmra.mrb[0].mxu0 %v117
    %v208 = vpop.f32.mrb[0].mxu0
    %v209 = vadd.f32 %v101, %v208
    %v210 = vpop.f32.mrb[0].mxu0
    %211 = vmatprep.mubr.f32.mxu0 0.0
    %212 = vmatmul.mubr.f32.gmra.mrb[0].mxu0 %v120
    %v213 = vpop.f32.mrb[0].mxu0
    %v214 = vadd.f32 %v101, %v213
    %v215 = vpop.f32.mrb[0].mxu0
    %216 = vdwg.mxu0
    %v217 = vmul.f32 %v189, 1.442695
    %v218 = vpow.pop %v217
    %v219 = vmul.f32 %v194, 1.442695
    %v220 = vpow.pop %v219
    %v221 = vmul.f32 %v199, 1.442695
    %v222 = vpow.pop %v221
    %v223 = vmul.f32 %v204, 1.442695
    %v224 = vpow.pop %v223
    %v225 = vmul.f32 %v209, 1.442695
    %v226 = vpow.pop %v225
    %v227 = vmul.f32 %v214, 1.442695
    %v228 = vpow.pop %v227
    %230 = vset.pattern.permute.xlu0 0
    %231 = vperm.xlu0 %230, %v218
    %v232 = vpop.permute.xlu0 %231
    %235 = vset.pattern.permute.xlu0 0
    %236 = vperm.xlu0 %235, %v220
    %v237 = vpop.permute.xlu0 %236
    %v239 = vmul.f32 %v86, %v232
    %v240 = vmul.f32 %v87, %v237
    %242 = vset.pattern.permute.xlu0 0
    %243 = vperm.xlu0 %242, %v222
    %v244 = vpop.permute.xlu0 %243
    %247 = vset.pattern.permute.xlu0 0
    %248 = vperm.xlu0 %247, %v224
    %v249 = vpop.permute.xlu0 %248
    %v251 = vmul.f32 %v88, %v244
    %v252 = vmul.f32 %v89, %v249
    %v253 = vadd.f32 %v239, %v251
    %v254 = vadd.f32 %v240, %v252
    %v255 = vadd.f32 %v218, %v222
    %v256 = vadd.f32 %v220, %v224
    %258 = vset.pattern.permute.xlu0 0
    %259 = vperm.xlu0 %258, %v226
    %v260 = vpop.permute.xlu0 %259
    %263 = vset.pattern.permute.xlu0 0
    %264 = vperm.xlu0 %263, %v228
    %v265 = vpop.permute.xlu0 %264
    %v267 = vmul.f32 %v90, %v260
    %v268 = vmul.f32 %v91, %v265
    %v269 = vadd.f32 %v253, %v267
    %v270 = vadd.f32 %v254, %v268
    %v271 = vadd.f32 %v255, %v226
    %v272 = vadd.f32 %v256, %v228
    %v273 = vrcp.pop %v271
    %v274 = vrcp.pop %v272
    %276 = vset.pattern.permute.xlu0 0
    %277 = vperm.xlu0 %276, %v273
    %v278 = vpop.permute.xlu0 %277
    %281 = vset.pattern.permute.xlu0 0
    %282 = vperm.xlu0 %281, %v274
    %v283 = vpop.permute.xlu0 %282
    %v285 = vmul.f32 %v269, %v278
    %v286 = vmul.f32 %v270, %v283
    %v287 = vlaneseq
    %v288 = vand.u32 %v287, 127
    %v289 = vld [vmem:[%s0] sm:$0xff]
    %v290 = vld [vmem:[%s0 + $0x8] sm:$0xff]
    %v291 = vld [vmem:[%s0 + $0x10] sm:$0xff]
    %v292 = vld [vmem:[%s0 + $0x18] sm:$0xff]
    %v293 = vld [vmem:[%s0 + $0x20] sm:$0xff]
    %v294 = vld [vmem:[%s0 + $0x28] sm:$0xff]
    %v295 = vld [vmem:[%s0 + $0x30] sm:$0xff]
    %v296 = vld [vmem:[%s0 + $0x38] sm:$0xf]
    %297 = vset.pattern.permute.xlu0 0
    %298 = vperm.xlu0 %297, %v289
    %v299 = vpop.permute.xlu0 %298
    %300 = vset.pattern.permute.xlu0 0
    %301 = vperm.xlu0 %300, %v290
    %v302 = vpop.permute.xlu0 %301
    %303 = vset.pattern.permute.xlu0 0
    %304 = vperm.xlu0 %303, %v291
    %v305 = vpop.permute.xlu0 %304
    %306 = vset.pattern.permute.xlu0 0
    %307 = vperm.xlu0 %306, %v292
    %v308 = vpop.permute.xlu0 %307
    %309 = vset.pattern.permute.xlu0 0
    %310 = vperm.xlu0 %309, %v293
    %v311 = vpop.permute.xlu0 %310
    %312 = vset.pattern.permute.xlu0 0
    %313 = vperm.xlu0 %312, %v294
    %v314 = vpop.permute.xlu0 %313
    %315 = vset.pattern.permute.xlu0 0
    %316 = vperm.xlu0 %315, %v295
    %v317 = vpop.permute.xlu0 %316
    %318 = vset.pattern.permute.xlu0 0
    %319 = vperm.xlu0 %318, %v296
    %v320 = vpop.permute.xlu0 %319
    %vm321 = vcmp.eq.s32.totalorder %v299, %v288
    %vm322 = vcmp.eq.s32.totalorder %v302, %v288
    %vm323 = vcmp.eq.s32.totalorder %v305, %v288
    %vm324 = vcmp.eq.s32.totalorder %v308, %v288
    %vm325 = vcmp.eq.s32.totalorder %v311, %v288
    %vm326 = vcmp.eq.s32.totalorder %v314, %v288
    %vm327 = vcmp.eq.s32.totalorder %v317, %v288
    %vm328 = vcmp.eq.s32.totalorder %v320, %v288
    %v329 = vsel %vm321, 1, 0
    %v330 = vsel %vm322, 1, 0
    %v331 = vsel %vm323, 1, 0
    %v332 = vsel %vm324, 1, 0
    %v333 = vsel %vm325, 1, 0
    %v334 = vsel %vm326, 1, 0
    %v335 = vsel %vm327, 1, 0
    %v336 = vsel %vm328, 1, 0
    %v337 = vcvt.s32.f32 %v329
    %v338 = vcvt.s32.f32 %v330
    %v339 = vcvt.s32.f32 %v331
    %v340 = vcvt.s32.f32 %v332
    %v341 = vcvt.s32.f32 %v333
    %v342 = vcvt.s32.f32 %v334
    %v343 = vcvt.s32.f32 %v335
    %v344 = vcvt.s32.f32 %v336
    %vm345 = vcmask 130048
    %v347 = vsel %vm345, %v337, 0
    %v350 = vsel %vm345, %v338, 0
    %v353 = vsel %vm345, %v339, 0
    %v356 = vsel %vm345, %v340, 0
    %v359 = vsel %vm345, %v341, 0
    %v362 = vsel %vm345, %v342, 0
    %v365 = vsel %vm345, %v343, 0
    %v368 = vsel %vm345, %v344, 0
    %370 = vmatprep.subr.mxu0 0.0
    %371 = vmatpush1.msra.mxu0 %v285
    %372 = vmatprep.subr.mxu0 0.0
    %373 = vmatpush1.msra.mxu0 %v286
    %374 = vmatprep.subr.mxu0 0.0
    %375 = vmatpush1.msra.mxu0 0.0
    %376 = vmatprep.subr.mxu0 0.0
    %377 = vmatpush1.msra.mxu0 0.0
    %378 = vmatprep.subr.mxu0 0.0
    %379 = vmatpush1.msra.mxu0 0.0
    %380 = vmatprep.subr.mxu0 0.0
    %381 = vmatpush1.msra.mxu0 0.0
    %382 = vmatprep.subr.mxu0 0.0
    %383 = vmatpush1.msra.mxu0 0.0
    %384 = vmatprep.subr.mxu0 0.0
    %385 = vmatpush1.msra.mxu0 0.0
    %386 = vmatprep.subr.mxu0 0.0
    %387 = vmatpush1.msra.mxu0 0.0
    %388 = vmatprep.subr.mxu0 0.0
    %389 = vmatpush1.msra.mxu0 0.0
    %390 = vmatprep.subr.mxu0 0.0
    %391 = vmatpush1.msra.mxu0 0.0
    %392 = vmatprep.subr.mxu0 0.0
    %393 = vmatpush1.msra.mxu0 0.0
    %394 = vmatprep.subr.mxu0 0.0
    %395 = vmatpush1.msra.mxu0 0.0
    %396 = vmatprep.subr.mxu0 0.0
    %397 = vmatpush1.msra.mxu0 0.0
    %398 = vmatprep.subr.mxu0 0.0
    %399 = vmatpush1.msra.mxu0 0.0
    %400 = vmatprep.subr.mxu0 0.0
    %401 = vmatpush1.msra.mxu0 0.0
    %402 = vmatprep.subr.mxu0 0.0
    %403 = vmatpush1.msra.mxu0 0.0
    %404 = vmatprep.subr.mxu0 0.0
    %405 = vmatpush1.msra.mxu0 0.0
    %406 = vmatprep.subr.mxu0 0.0
    %407 = vmatpush1.msra.mxu0 0.0
    %408 = vmatprep.subr.mxu0 0.0
    %409 = vmatpush1.msra.mxu0 0.0
    %410 = vmatprep.subr.mxu0 0.0
    %411 = vmatpush1.msra.mxu0 0.0
    %412 = vmatprep.subr.mxu0 0.0
    %413 = vmatpush1.msra.mxu0 0.0
    %414 = vmatprep.subr.mxu0 0.0
    %415 = vmatpush1.msra.mxu0 0.0
    %416 = vmatprep.subr.mxu0 0.0
    %417 = vmatpush1.msra.mxu0 0.0
    %418 = vmatprep.subr.mxu0 0.0
    %419 = vmatpush1.msra.mxu0 0.0
    %420 = vmatprep.subr.mxu0 0.0
    %421 = vmatpush1.msra.mxu0 0.0
    %422 = vmatprep.subr.mxu0 0.0
    %423 = vmatpush1.msra.mxu0 0.0
    %424 = vmatprep.subr.mxu0 0.0
    %425 = vmatpush1.msra.mxu0 0.0
    %426 = vmatprep.subr.mxu0 0.0
    %427 = vmatpush1.msra.mxu0 0.0
    %428 = vmatprep.subr.mxu0 0.0
    %429 = vmatpush1.msra.mxu0 0.0
    %430 = vmatprep.subr.mxu0 0.0
    %431 = vmatpush1.msra.mxu0 0.0
    %432 = vmatprep.subr.mxu0 0.0
    %433 = vmatpush1.msra.mxu0 0.0
    %434 = vmatprep.mubr.f32.mxu0 0.0
    %435 = vmatmul.mubr.f32.gmra.mrb[0].mxu0 %v347
    %v436 = vpop.f32.mrb[0].mxu0
    %v437 = vadd.f32 0.0, %v436
    %v438 = vpop.f32.mrb[0].mxu0
    %439 = vmatprep.mubr.f32.mxu0 0.0
    %440 = vmatmul.mubr.f32.gmra.mrb[0].mxu0 %v350
    %v441 = vpop.f32.mrb[0].mxu0
    %v442 = vadd.f32 0.0, %v441
    %v443 = vpop.f32.mrb[0].mxu0
    %444 = vmatprep.mubr.f32.mxu0 0.0
    %445 = vmatmul.mubr.f32.gmra.mrb[0].mxu0 %v353
    %v446 = vpop.f32.mrb[0].mxu0
    %v447 = vadd.f32 0.0, %v446
    %v448 = vpop.f32.mrb[0].mxu0
    %449 = vmatprep.mubr.f32.mxu0 0.0
    %450 = vmatmul.mubr.f32.gmra.mrb[0].mxu0 %v356
    %v451 = vpop.f32.mrb[0].mxu0
    %v452 = vadd.f32 0.0, %v451
    %v453 = vpop.f32.mrb[0].mxu0
    %454 = vmatprep.mubr.f32.mxu0 0.0
    %455 = vmatmul.mubr.f32.gmra.mrb[0].mxu0 %v359
    %v456 = vpop.f32.mrb[0].mxu0
    %v457 = vadd.f32 0.0, %v456
    %v458 = vpop.f32.mrb[0].mxu0
    %459 = vmatprep.mubr.f32.mxu0 0.0
    %460 = vmatmul.mubr.f32.gmra.mrb[0].mxu0 %v362
    %v461 = vpop.f32.mrb[0].mxu0
    %v462 = vadd.f32 0.0, %v461
    %v463 = vpop.f32.mrb[0].mxu0
    %464 = vmatprep.mubr.f32.mxu0 0.0
    %465 = vmatmul.mubr.f32.gmra.mrb[0].mxu0 %v365
    %v466 = vpop.f32.mrb[0].mxu0
    %v467 = vadd.f32 0.0, %v466
    %v468 = vpop.f32.mrb[0].mxu0
    %469 = vmatprep.mubr.f32.mxu0 0.0
    %470 = vmatmul.mubr.f32.gmra.mrb[0].mxu0 %v368
    %v471 = vpop.f32.mrb[0].mxu0
    %v472 = vadd.f32 0.0, %v471
    %v473 = vpop.f32.mrb[0].mxu0
    %474 = vdwg.mxu0
    %v475 = vld [vmem:[%s6] sm:$0xff]
    %v476 = vld [vmem:[%s6 + $0x8] sm:$0xff]
    %v477 = vld [vmem:[%s6 + $0x10] sm:$0xff]
    %v478 = vld [vmem:[%s6 + $0x18] sm:$0xff]
    %v479 = vld [vmem:[#allocation3] sm:$0x1]
    %v481 = vlaneseq
    %v482 = vshrl.u32 %v481, 7
    %v483 = vsub.s32 0, %v482
    %v484 = vrot.slane %v479, %v483
    %v487 = vsel %vm103, %v437, 0
    %v490 = vsel %vm103, %v442, 0
    %v493 = vsel %vm103, %v447, 0
    %v496 = vsel %vm103, %v452, 0
    %v499 = vsel %vm103, %v457, 0
    %v502 = vsel %vm103, %v462, 0
    %v505 = vsel %vm103, %v467, 0
    %v508 = vsel %vm103, %v472, 0
    %510 = vmatprep.subr.mxu0 0.0
    %511 = vmatpush1.msra.mxu0 %v475
    %512 = vmatprep.subr.mxu0 0.0
    %513 = vmatpush1.msra.mxu0 %v476
    %514 = vmatprep.subr.mxu0 0.0
    %515 = vmatpush1.msra.mxu0 %v477
    %516 = vmatprep.subr.mxu0 0.0
    %517 = vmatpush1.msra.mxu0 %v478
    %518 = vmatprep.subr.mxu0 0.0
    %519 = vmatpush1.msra.mxu0 0.0
    %520 = vmatprep.subr.mxu0 0.0
    %521 = vmatpush1.msra.mxu0 0.0
    %522 = vmatprep.subr.mxu0 0.0
    %523 = vmatpush1.msra.mxu0 0.0
    %524 = vmatprep.subr.mxu0 0.0
    %525 = vmatpush1.msra.mxu0 0.0
    %526 = vmatprep.subr.mxu0 0.0
    %527 = vmatpush1.msra.mxu0 0.0
    %528 = vmatprep.subr.mxu0 0.0
    %529 = vmatpush1.msra.mxu0 0.0
    %530 = vmatprep.subr.mxu0 0.0
    %531 = vmatpush1.msra.mxu0 0.0
    %532 = vmatprep.subr.mxu0 0.0
    %533 = vmatpush1.msra.mxu0 0.0
    %534 = vmatprep.subr.mxu0 0.0
    %535 = vmatpush1.msra.mxu0 0.0
    %536 = vmatprep.subr.mxu0 0.0
    %537 = vmatpush1.msra.mxu0 0.0
    %538 = vmatprep.subr.mxu0 0.0
    %539 = vmatpush1.msra.mxu0 0.0
    %540 = vmatprep.subr.mxu0 0.0
    %541 = vmatpush1.msra.mxu0 0.0
    %542 = vmatprep.subr.mxu0 0.0
    %543 = vmatpush1.msra.mxu0 0.0
    %544 = vmatprep.subr.mxu0 0.0
    %545 = vmatpush1.msra.mxu0 0.0
    %546 = vmatprep.subr.mxu0 0.0
    %547 = vmatpush1.msra.mxu0 0.0
    %548 = vmatprep.subr.mxu0 0.0
    %549 = vmatpush1.msra.mxu0 0.0
    %550 = vmatprep.subr.mxu0 0.0
    %551 = vmatpush1.msra.mxu0 0.0
    %552 = vmatprep.subr.mxu0 0.0
    %553 = vmatpush1.msra.mxu0 0.0
    %554 = vmatprep.subr.mxu0 0.0
    %555 = vmatpush1.msra.mxu0 0.0
    %556 = vmatprep.subr.mxu0 0.0
    %557 = vmatpush1.msra.mxu0 0.0
    %558 = vmatprep.subr.mxu0 0.0
    %559 = vmatpush1.msra.mxu0 0.0
    %560 = vmatprep.subr.mxu0 0.0
    %561 = vmatpush1.msra.mxu0 0.0
    %562 = vmatprep.subr.mxu0 0.0
    %563 = vmatpush1.msra.mxu0 0.0
    %564 = vmatprep.subr.mxu0 0.0
    %565 = vmatpush1.msra.mxu0 0.0
    %566 = vmatprep.subr.mxu0 0.0
    %567 = vmatpush1.msra.mxu0 0.0
    %568 = vmatprep.subr.mxu0 0.0
    %569 = vmatpush1.msra.mxu0 0.0
    %570 = vmatprep.subr.mxu0 0.0
    %571 = vmatpush1.msra.mxu0 0.0
    %572 = vmatprep.subr.mxu0 0.0
    %573 = vmatpush1.msra.mxu0 0.0
    %574 = vmatprep.mubr.f32.mxu0 0.0
    %575 = vmatmul.mubr.f32.gmra.mrb[0].mxu0 %v487
    %v576 = vpop.f32.mrb[0].mxu0
    %v577 = vadd.f32 %v484, %v576
    %v578 = vpop.f32.mrb[0].mxu0
    %579 = vmatprep.mubr.f32.mxu0 0.0
    %580 = vmatmul.mubr.f32.gmra.mrb[0].mxu0 %v490
    %v581 = vpop.f32.mrb[0].mxu0
    %v582 = vadd.f32 %v484, %v581
    %v583 = vpop.f32.mrb[0].mxu0
    %584 = vmatprep.mubr.f32.mxu0 0.0
    %585 = vmatmul.mubr.f32.gmra.mrb[0].mxu0 %v493
    %v586 = vpop.f32.mrb[0].mxu0
    %v587 = vadd.f32 %v484, %v586
    %v588 = vpop.f32.mrb[0].mxu0
    %589 = vmatprep.mubr.f32.mxu0 0.0
    %590 = vmatmul.mubr.f32.gmra.mrb[0].mxu0 %v496
    %v591 = vpop.f32.mrb[0].mxu0
    %v592 = vadd.f32 %v484, %v591
    %v593 = vpop.f32.mrb[0].mxu0
    %594 = vmatprep.mubr.f32.mxu0 0.0
    %595 = vmatmul.mubr.f32.gmra.mrb[0].mxu0 %v499
    %v596 = vpop.f32.mrb[0].mxu0
    %v597 = vadd.f32 %v484, %v596
    %v598 = vpop.f32.mrb[0].mxu0
    %599 = vmatprep.mubr.f32.mxu0 0.0
    %600 = vmatmul.mubr.f32.gmra.mrb[0].mxu0 %v502
    %v601 = vpop.f32.mrb[0].mxu0
    %v602 = vadd.f32 %v484, %v601
    %v603 = vpop.f32.mrb[0].mxu0
    %604 = vmatprep.mubr.f32.mxu0 0.0
    %605 = vmatmul.mubr.f32.gmra.mrb[0].mxu0 %v505
    %v606 = vpop.f32.mrb[0].mxu0
    %v607 = vadd.f32 %v484, %v606
    %v608 = vpop.f32.mrb[0].mxu0
    %609 = vmatprep.mubr.f32.mxu0 0.0
    %610 = vmatmul.mubr.f32.gmra.mrb[0].mxu0 %v508
    %v611 = vpop.f32.mrb[0].mxu0
    %v612 = vadd.f32 %v484, %v611
    %v613 = vpop.f32.mrb[0].mxu0
    %614 = vdwg.mxu0
    %v615 = vmul.f32 %v577, 1.442695
    %v616 = vpow.pop %v615
    %v617 = vmul.f32 %v582, 1.442695
    %v618 = vpow.pop %v617
    %v619 = vmul.f32 %v587, 1.442695
    %v620 = vpow.pop %v619
    %v621 = vmul.f32 %v592, 1.442695
    %v622 = vpow.pop %v621
    %v623 = vmul.f32 %v597, 1.442695
    %v624 = vpow.pop %v623
    %v625 = vmul.f32 %v602, 1.442695
    %v626 = vpow.pop %v625
    %v627 = vmul.f32 %v607, 1.442695
    %v628 = vpow.pop %v627
    %v629 = vmul.f32 %v612, 1.442695
    %v630 = vpow.pop %v629
    %v631 = vld [vmem:[%s20] sm:$0xff]
    %v632 = vld [vmem:[%s20 + $0x8] sm:$0xff]
    %v633 = vld [vmem:[%s20 + $0x10] sm:$0xff]
    %v634 = vld [vmem:[%s20 + $0x18] sm:$0xff]
    %v635 = vld [vmem:[%s21] sm:$0x1]
    %v636 = vld [vmem:[%s22] sm:$0xff]
    %v637 = vld [vmem:[%s22 + $0x8] sm:$0xff]
    %v638 = vld [vmem:[%s23] sm:$0x1]
    %640 = vset.pattern.permute.xlu0 0
    %641 = vperm.xlu0 %640, %v616
    %v642 = vpop.permute.xlu0 %641
    %645 = vset.pattern.permute.xlu0 0
    %646 = vperm.xlu0 %645, %v618
    %v647 = vpop.permute.xlu0 %646
    %v649 = vmul.f32 %v437, %v642
    %v650 = vmul.f32 %v442, %v647
    %652 = vset.pattern.permute.xlu0 0
    %653 = vperm.xlu0 %652, %v620
    %v654 = vpop.permute.xlu0 %653
    %v656 = vmul.f32 %v447, %v654
    %vm659 = vcmask 1045504
    %v660 = vrot.slane %v650, 2
    %v661 = vrot.slane %v656, 2
    %v662 = vsel %vm659, %v660, %v661
    %v665 = vadd.f32 %v649, %v662
    %v666 = vadd.f32 %v650, %v661
    %v667 = vrot.slane %v618, 2
    %v668 = vrot.slane %v620, 2
    %v669 = vsel %vm659, %v667, %v668
    %v672 = vadd.f32 %v616, %v669
    %v673 = vadd.f32 %v618, %v668
    %675 = vset.pattern.permute.xlu0 0
    %676 = vperm.xlu0 %675, %v622
    %v677 = vpop.permute.xlu0 %676
    %v679 = vmul.f32 %v452, %v677
    %vm681 = vcmask 1043456
    %v682 = vrot.slane %v656, 4
    %v683 = vrot.slane %v679, 4
    %v684 = vsel %vm681, %v682, %v683
    %v687 = vadd.f32 %v665, %v684
    %v688 = vadd.f32 %v666, %v683
    %v689 = vrot.slane %v620, 4
    %v690 = vrot.slane %v622, 4
    %v691 = vsel %vm681, %v689, %v690
    %v694 = vadd.f32 %v672, %v691
    %v695 = vadd.f32 %v673, %v690
    %v696 = vrcp.pop %v694
    %v697 = vrcp.pop %v695
    %699 = vset.pattern.permute.xlu0 0
    %700 = vperm.xlu0 %699, %v696
    %v701 = vpop.permute.xlu0 %700
    %704 = vset.pattern.permute.xlu0 0
    %705 = vperm.xlu0 %704, %v697
    %v706 = vpop.permute.xlu0 %705
    %v708 = vmul.f32 %v687, %v701
    %v709 = vmul.f32 %v688, %v706
    %v710 = vld [vmem:[%s2] sm:$0xff]
    %v711 = vld [vmem:[%s2 + $0x8] sm:$0x3]
    %v712 = vadd.f32 %v708, %v710
    %v713 = vadd.f32 %v709, %v711
    %v714 = vld [vmem:[%s1] sm:$0x1]
    %vm715 = vcmp.eq.s32.totalorder %v714, 0
    %v716 = vld [vmem:[%s8] sm:$0xff]
    %v717 = vld [vmem:[%s8 + $0x8] sm:$0xff]
    %v718 = vld [vmem:[%s8 + $0x10] sm:$0xff]
    %v719 = vld [vmem:[%s8 + $0x18] sm:$0xff]
    %v720 = vld [vmem:[%s9] sm:$0x1]
    %v722 = vlaneseq
    %v723 = vshrl.u32 %v722, 7
    %v724 = vsub.s32 0, %v723
    %v725 = vrot.slane %v720, %v724
    %v728 = vsel %vm103, %v712, 0
    %v731 = vsel %vm103, %v713, 0
    %733 = vmatprep.subr.mxu0 0.0
    %734 = vmatpush1.msra.mxu0 %v716
    %735 = vmatprep.subr.mxu0 0.0
    %736 = vmatpush1.msra.mxu0 %v717
    %737 = vmatprep.subr.mxu0 0.0
    %738 = vmatpush1.msra.mxu0 %v718
    %739 = vmatprep.subr.mxu0 0.0
    %740 = vmatpush1.msra.mxu0 %v719
    %741 = vmatprep.subr.mxu0 0.0
    %742 = vmatpush1.msra.mxu0 0.0
    %743 = vmatprep.subr.mxu0 0.0
    %744 = vmatpush1.msra.mxu0 0.0
    %745 = vmatprep.subr.mxu0 0.0
    %746 = vmatpush1.msra.mxu0 0.0
    %747 = vmatprep.subr.mxu0 0.0
    %748 = vmatpush1.msra.mxu0 0.0
    %749 = vmatprep.subr.mxu0 0.0
    %750 = vmatpush1.msra.mxu0 0.0
    %751 = vmatprep.subr.mxu0 0.0
    %752 = vmatpush1.msra.mxu0 0.0
    %753 = vmatprep.subr.mxu0 0.0
    %754 = vmatpush1.msra.mxu0 0.0
    %755 = vmatprep.subr.mxu0 0.0
    %756 = vmatpush1.msra.mxu0 0.0
    %757 = vmatprep.subr.mxu0 0.0
    %758 = vmatpush1.msra.mxu0 0.0
    %759 = vmatprep.subr.mxu0 0.0
    %760 = vmatpush1.msra.mxu0 0.0
    %761 = vmatprep.subr.mxu0 0.0
    %762 = vmatpush1.msra.mxu0 0.0
    %763 = vmatprep.subr.mxu0 0.0
    %764 = vmatpush1.msra.mxu0 0.0
    %765 = vmatprep.subr.mxu0 0.0
    %766 = vmatpush1.msra.mxu0 0.0
    %767 = vmatprep.subr.mxu0 0.0
    %768 = vmatpush1.msra.mxu0 0.0
    %769 = vmatprep.subr.mxu0 0.0
    %770 = vmatpush1.msra.mxu0 0.0
    %771 = vmatprep.subr.mxu0 0.0
    %772 = vmatpush1.msra.mxu0 0.0
    %773 = vmatprep.subr.mxu0 0.0
    %774 = vmatpush1.msra.mxu0 0.0
    %775 = vmatprep.subr.mxu0 0.0
    %776 = vmatpush1.msra.mxu0 0.0
    %777 = vmatprep.subr.mxu0 0.0
    %778 = vmatpush1.msra.mxu0 0.0
    %779 = vmatprep.subr.mxu0 0.0
    %780 = vmatpush1.msra.mxu0 0.0
    %781 = vmatprep.subr.mxu0 0.0
    %782 = vmatpush1.msra.mxu0 0.0
    %783 = vmatprep.subr.mxu0 0.0
    %784 = vmatpush1.msra.mxu0 0.0
    %785 = vmatprep.subr.mxu0 0.0
    %786 = vmatpush1.msra.mxu0 0.0
    %787 = vmatprep.subr.mxu0 0.0
    %788 = vmatpush1.msra.mxu0 0.0
    %789 = vmatprep.subr.mxu0 0.0
    %790 = vmatpush1.msra.mxu0 0.0
    %791 = vmatprep.subr.mxu0 0.0
    %792 = vmatpush1.msra.mxu0 0.0
    %793 = vmatprep.subr.mxu0 0.0
    %794 = vmatpush1.msra.mxu0 0.0
    %795 = vmatprep.subr.mxu0 0.0
    %796 = vmatpush1.msra.mxu0 0.0
    %797 = vmatprep.mubr.f32.mxu0 0.0
    %798 = vmatmul.mubr.f32.gmra.mrb[0].mxu0 %v728
    %v799 = vpop.f32.mrb[0].mxu0
    %v800 = vadd.f32 %v725, %v799
    %v801 = vpop.f32.mrb[0].mxu0
    %802 = vmatprep.mubr.f32.mxu0 0.0
    %803 = vmatmul.mubr.f32.gmra.mrb[0].mxu0 %v731
    %v804 = vpop.f32.mrb[0].mxu0
    %v805 = vadd.f32 %v725, %v804
    %v806 = vpop.f32.mrb[0].mxu0
    %807 = vdwg.mxu0
    %v808 = vld [vmem:[%s11] sm:$0x1]
    %v810 = vlaneseq
    %v811 = vshrl.u32 %v810, 7
    %v812 = vsub.s32 0, %v811
    %v813 = vrot.slane %v808, %v812
    %v815 = vadd.f32 %v813, %v712
    %v816 = vadd.f32 %v813, %v713
    %819 = vrot.lane.b32.xlu0 %v800, 96
    %v820 = vpop.permute.xlu0 %819
    %821 = vrot.lane.b32.xlu0 %v805, 96
    %v822 = vpop.permute.xlu0 %821
    %v823 = vsel %vm345, %v800, 0
    %v825 = vsel %vm345, %v805, 0
    %v827 = vsel %vm345, %v820, 0
    %v829 = vsel %vm345, %v822, 0
    %831 = vmatprep.subr.mxu0 0.0
    %832 = vmatpush1.xpose.msra.mxu0 %v827
    %833 = vmatprep.subr.mxu0 0.0
    %834 = vmatpush1.xpose.msra.mxu0 %v829
    %835 = vmatprep.subr.mxu0 0.0
    %836 = vmatpush1.xpose.msra.mxu0 0.0
    %837 = vmatprep.subr.mxu0 0.0
    %838 = vmatpush1.xpose.msra.mxu0 0.0
    %839 = vmatprep.subr.mxu0 0.0
    %840 = vmatpush1.xpose.msra.mxu0 0.0
    %841 = vmatprep.subr.mxu0 0.0
    %842 = vmatpush1.xpose.msra.mxu0 0.0
    %843 = vmatprep.subr.mxu0 0.0
    %844 = vmatpush1.xpose.msra.mxu0 0.0
    %845 = vmatprep.subr.mxu0 0.0
    %846 = vmatpush1.xpose.msra.mxu0 0.0
    %847 = vmatprep.subr.mxu0 0.0
    %848 = vmatpush1.xpose.msra.mxu0 0.0
    %849 = vmatprep.subr.mxu0 0.0
    %850 = vmatpush1.xpose.msra.mxu0 0.0
    %851 = vmatprep.subr.mxu0 0.0
    %852 = vmatpush1.xpose.msra.mxu0 0.0
    %853 = vmatprep.subr.mxu0 0.0
    %854 = vmatpush1.xpose.msra.mxu0 0.0
    %855 = vmatprep.subr.mxu0 0.0
    %856 = vmatpush1.xpose.msra.mxu0 0.0
    %857 = vmatprep.subr.mxu0 0.0
    %858 = vmatpush1.xpose.msra.mxu0 0.0
    %859 = vmatprep.subr.mxu0 0.0
    %860 = vmatpush1.xpose.msra.mxu0 0.0
    %861 = vmatprep.subr.mxu0 0.0
    %862 = vmatpush1.xpose.msra.mxu0 0.0
    %863 = vmatprep.subr.mxu0 0.0
    %864 = vmatpush1.xpose.msra.mxu0 0.0
    %865 = vmatprep.subr.mxu0 0.0
    %866 = vmatpush1.xpose.msra.mxu0 0.0
    %867 = vmatprep.subr.mxu0 0.0
    %868 = vmatpush1.xpose.msra.mxu0 0.0
    %869 = vmatprep.subr.mxu0 0.0
    %870 = vmatpush1.xpose.msra.mxu0 0.0
    %871 = vmatprep.subr.mxu0 0.0
    %872 = vmatpush1.xpose.msra.mxu0 0.0
    %873 = vmatprep.subr.mxu0 0.0
    %874 = vmatpush1.xpose.msra.mxu0 0.0
    %875 = vmatprep.subr.mxu0 0.0
    %876 = vmatpush1.xpose.msra.mxu0 0.0
    %877 = vmatprep.subr.mxu0 0.0
    %878 = vmatpush1.xpose.msra.mxu0 0.0
    %879 = vmatprep.subr.mxu0 0.0
    %880 = vmatpush1.xpose.msra.mxu0 0.0
    %881 = vmatprep.subr.mxu0 0.0
    %882 = vmatpush1.xpose.msra.mxu0 0.0
    %883 = vmatprep.subr.mxu0 0.0
    %884 = vmatpush1.xpose.msra.mxu0 0.0
    %885 = vmatprep.subr.mxu0 0.0
    %886 = vmatpush1.xpose.msra.mxu0 0.0
    %887 = vmatprep.subr.mxu0 0.0
    %888 = vmatpush1.xpose.msra.mxu0 0.0
    %889 = vmatprep.subr.mxu0 0.0
    %890 = vmatpush1.xpose.msra.mxu0 0.0
    %891 = vmatprep.subr.mxu0 0.0
    %892 = vmatpush1.xpose.msra.mxu0 0.0
    %893 = vmatprep.subr.mxu0 0.0
    %894 = vmatpush1.xpose.msra.mxu0 0.0
    %895 = vmatprep.mubr.f32.mxu0 0.0
    %896 = vmatmul.mubr.f32.gmra.mrb[0].mxu0 %v823
    %v897 = vpop.f32.mrb[0].mxu0
    %v898 = vadd.f32 0.0, %v897
    %v899 = vpop.f32.mrb[0].mxu0
    %900 = vmatprep.mubr.f32.mxu0 0.0
    %901 = vmatmul.mubr.f32.gmra.mrb[0].mxu0 %v825
    %v902 = vpop.f32.mrb[0].mxu0
    %v903 = vadd.f32 0.0, %v902
    %v904 = vpop.f32.mrb[0].mxu0
    %905 = vdwg.mxu0
    %v906 = vmul.f32 %v898, 0.25
    %v907 = vmul.f32 %v903, 0.25
    %v908 = vsel %vm715, 1, 0
    %v909 = vlaneseq
    %v910 = vshrl.u32 %v909, 7
    %v911 = vsub.s32 0, %v910
    %v912 = vrot.slane %v908, %v911
    %vm913 = vcmp.eq.s32.totalorder %v912, 1
    %v914 = vsel %vm913, -1e+09, %v906
    %v915 = vsel %vm913, -1e+09, %v907
    %vm916 = vcmask 80896
    %v917 = vsel %vm916, %v914, -inf
    %918 = vmax.xlane.f32.xlu0 %v917
    %v919 = vpop.xlane.xlu0 %918
    %vm920 = vcmask 74752
    %v921 = vsel %vm920, %v915, -inf
    %922 = vmax.xlane.f32.xlu0 %v921
    %v923 = vpop.xlane.xlu0 %922
    %v924 = vsub.f32 %v914, %v919
    %v925 = vsub.f32 %v915, %v923
    %v926 = vmul.f32 %v924, 1.442695
    %v927 = vpow.pop %v926
    %v928 = vmul.f32 %v925, 1.442695
    %v929 = vpow.pop %v928
    %v930 = vsel %vm916, %v927, 0.0
    %931 = vadd.xlane.f32.xlu0 %v930
    %v932 = vpop.xlane.xlu0 %931
    %v933 = vsel %vm920, %v929, 0.0
    %934 = vadd.xlane.f32.xlu0 %v933
    %v935 = vpop.xlane.xlu0 %934
    %v936 = vrcp.pop %v932
    %v937 = vrcp.pop %v935
    %v938 = vmul.f32 %v927, %v936
    %v939 = vmul.f32 %v929, %v937
    %940 = vrot.lane.b32.xlu0 %v800, 64
    %v941 = vpop.permute.xlu0 %940
    %942 = vrot.lane.b32.xlu0 %v805, 64
    %v943 = vpop.permute.xlu0 %942
    %v946 = vsel %vm916, %v938, 0
    %v949 = vsel %vm916, %v939, 0
    %vm951 = vcmask 1041408
    %v952 = vsel %vm951, %v943, 0
    %954 = vmatprep.subr.mxu0 0.0
    %955 = vmatpush1.msra.mxu0 %v941
    %956 = vmatprep.subr.mxu0 0.0
    %957 = vmatpush1.msra.mxu0 %v952
    %958 = vmatprep.subr.mxu0 0.0
    %959 = vmatpush1.msra.mxu0 0.0
    %960 = vmatprep.subr.mxu0 0.0
    %961 = vmatpush1.msra.mxu0 0.0
    %962 = vmatprep.subr.mxu0 0.0
    %963 = vmatpush1.msra.mxu0 0.0
    %964 = vmatprep.subr.mxu0 0.0
    %965 = vmatpush1.msra.mxu0 0.0
    %966 = vmatprep.subr.mxu0 0.0
    %967 = vmatpush1.msra.mxu0 0.0
    %968 = vmatprep.subr.mxu0 0.0
    %969 = vmatpush1.msra.mxu0 0.0
    %970 = vmatprep.subr.mxu0 0.0
    %971 = vmatpush1.msra.mxu0 0.0
    %972 = vmatprep.subr.mxu0 0.0
    %973 = vmatpush1.msra.mxu0 0.0
    %974 = vmatprep.subr.mxu0 0.0
    %975 = vmatpush1.msra.mxu0 0.0
    %976 = vmatprep.subr.mxu0 0.0
    %977 = vmatpush1.msra.mxu0 0.0
    %978 = vmatprep.subr.mxu0 0.0
    %979 = vmatpush1.msra.mxu0 0.0
    %980 = vmatprep.subr.mxu0 0.0
    %981 = vmatpush1.msra.mxu0 0.0
    %982 = vmatprep.subr.mxu0 0.0
    %983 = vmatpush1.msra.mxu0 0.0
    %984 = vmatprep.subr.mxu0 0.0
    %985 = vmatpush1.msra.mxu0 0.0
    %986 = vmatprep.subr.mxu0 0.0
    %987 = vmatpush1.msra.mxu0 0.0
    %988 = vmatprep.subr.mxu0 0.0
    %989 = vmatpush1.msra.mxu0 0.0
    %990 = vmatprep.subr.mxu0 0.0
    %991 = vmatpush1.msra.mxu0 0.0
    %992 = vmatprep.subr.mxu0 0.0
    %993 = vmatpush1.msra.mxu0 0.0
    %994 = vmatprep.subr.mxu0 0.0
    %995 = vmatpush1.msra.mxu0 0.0
    %996 = vmatprep.subr.mxu0 0.0
    %997 = vmatpush1.msra.mxu0 0.0
    %998 = vmatprep.subr.mxu0 0.0
    %999 = vmatpush1.msra.mxu0 0.0
    %1000 = vmatprep.subr.mxu0 0.0
    %1001 = vmatpush1.msra.mxu0 0.0
    %1002 = vmatprep.subr.mxu0 0.0
    %1003 = vmatpush1.msra.mxu0 0.0
    %1004 = vmatprep.subr.mxu0 0.0
    %1005 = vmatpush1.msra.mxu0 0.0
    %1006 = vmatprep.subr.mxu0 0.0
    %1007 = vmatpush1.msra.mxu0 0.0
    %1008 = vmatprep.subr.mxu0 0.0
    %1009 = vmatpush1.msra.mxu0 0.0
    %1010 = vmatprep.subr.mxu0 0.0
    %1011 = vmatpush1.msra.mxu0 0.0
    %1012 = vmatprep.subr.mxu0 0.0
    %1013 = vmatpush1.msra.mxu0 0.0
    %1014 = vmatprep.subr.mxu0 0.0
    %1015 = vmatpush1.msra.mxu0 0.0
    %1016 = vmatprep.subr.mxu0 0.0
    %1017 = vmatpush1.msra.mxu0 0.0
    %1018 = vmatprep.mubr.f32.mxu0 0.0
    %1019 = vmatmul.mubr.f32.gmra.mrb[0].mxu0 %v946
    %v1020 = vpop.f32.mrb[0].mxu0
    %v1021 = vadd.f32 0.0, %v1020
    %v1022 = vpop.f32.mrb[0].mxu0
    %1023 = vmatprep.mubr.f32.mxu0 0.0
    %1024 = vmatmul.mubr.f32.gmra.mrb[0].mxu0 %v949
    %v1025 = vpop.f32.mrb[0].mxu0
    %v1026 = vadd.f32 0.0, %v1025
    %v1027 = vpop.f32.mrb[0].mxu0
    %1028 = vdwg.mxu0
    %v1029 = vld [vmem:[%s10] sm:$0xff]
    %v1030 = vld [vmem:[%s10 + $0x8] sm:$0xff]
    %v1032 = vsel %vm345, %v1021, 0
    %v1035 = vsel %vm345, %v1026, 0
    %1037 = vmatprep.subr.mxu0 0.0
    %1038 = vmatpush1.msra.mxu0 %v1029
    %1039 = vmatprep.subr.mxu0 0.0
    %1040 = vmatpush1.msra.mxu0 %v1030
    %1041 = vmatprep.subr.mxu0 0.0
    %1042 = vmatpush1.msra.mxu0 0.0
    %1043 = vmatprep.subr.mxu0 0.0
    %1044 = vmatpush1.msra.mxu0 0.0
    %1045 = vmatprep.subr.mxu0 0.0
    %1046 = vmatpush1.msra.mxu0 0.0
    %1047 = vmatprep.subr.mxu0 0.0
    %1048 = vmatpush1.msra.mxu0 0.0
    %1049 = vmatprep.subr.mxu0 0.0
    %1050 = vmatpush1.msra.mxu0 0.0
    %1051 = vmatprep.subr.mxu0 0.0
    %1052 = vmatpush1.msra.mxu0 0.0
    %1053 = vmatprep.subr.mxu0 0.0
    %1054 = vmatpush1.msra.mxu0 0.0
    %1055 = vmatprep.subr.mxu0 0.0
    %1056 = vmatpush1.msra.mxu0 0.0
    %1057 = vmatprep.subr.mxu0 0.0
    %1058 = vmatpush1.msra.mxu0 0.0
    %1059 = vmatprep.subr.mxu0 0.0
    %1060 = vmatpush1.msra.mxu0 0.0
    %1061 = vmatprep.subr.mxu0 0.0
    %1062 = vmatpush1.msra.mxu0 0.0
    %1063 = vmatprep.subr.mxu0 0.0
    %1064 = vmatpush1.msra.mxu0 0.0
    %1065 = vmatprep.subr.mxu0 0.0
    %1066 = vmatpush1.msra.mxu0 0.0
    %1067 = vmatprep.subr.mxu0 0.0
    %1068 = vmatpush1.msra.mxu0 0.0
    %1069 = vmatprep.subr.mxu0 0.0
    %1070 = vmatpush1.msra.mxu0 0.0
    %1071 = vmatprep.subr.mxu0 0.0
    %1072 = vmatpush1.msra.mxu0 0.0
    %1073 = vmatprep.subr.mxu0 0.0
    %1074 = vmatpush1.msra.mxu0 0.0
    %1075 = vmatprep.subr.mxu0 0.0
    %1076 = vmatpush1.msra.mxu0 0.0
    %1077 = vmatprep.subr.mxu0 0.0
    %1078 = vmatpush1.msra.mxu0 0.0
    %1079 = vmatprep.subr.mxu0 0.0
    %1080 = vmatpush1.msra.mxu0 0.0
    %1081 = vmatprep.subr.mxu0 0.0
    %1082 = vmatpush1.msra.mxu0 0.0
    %1083 = vmatprep.subr.mxu0 0.0
    %1084 = vmatpush1.msra.mxu0 0.0
    %1085 = vmatprep.subr.mxu0 0.0
    %1086 = vmatpush1.msra.mxu0 0.0
    %1087 = vmatprep.subr.mxu0 0.0
    %1088 = vmatpush1.msra.mxu0 0.0
    %1089 = vmatprep.subr.mxu0 0.0
    %1090 = vmatpush1.msra.mxu0 0.0
    %1091 = vmatprep.subr.mxu0 0.0
    %1092 = vmatpush1.msra.mxu0 0.0
    %1093 = vmatprep.subr.mxu0 0.0
    %1094 = vmatpush1.msra.mxu0 0.0
    %1095 = vmatprep.subr.mxu0 0.0
    %1096 = vmatpush1.msra.mxu0 0.0
    %1097 = vmatprep.subr.mxu0 0.0
    %1098 = vmatpush1.msra.mxu0 0.0
    %1099 = vmatprep.subr.mxu0 0.0
    %1100 = vmatpush1.msra.mxu0 0.0
    %1101 = vmatprep.mubr.f32.mxu0 0.0
    %1102 = vmatmul.mubr.f32.gmra.mrb[0].mxu0 %v1032
    %v1103 = vpop.f32.mrb[0].mxu0
    %v1104 = vadd.f32 0.0, %v1103
    %v1105 = vpop.f32.mrb[0].mxu0
    %1106 = vmatprep.mubr.f32.mxu0 0.0
    %1107 = vmatmul.mubr.f32.gmra.mrb[0].mxu0 %v1035
    %v1108 = vpop.f32.mrb[0].mxu0
    %v1109 = vadd.f32 0.0, %v1108
    %v1110 = vpop.f32.mrb[0].mxu0
    %1111 = vdwg.mxu0
    %v1112 = vadd.f32 %v815, %v1104
    %v1113 = vadd.f32 %v816, %v1109
    %1114 = vrot.lane.b32.xlu0 %v800, 112
    %v1115 = vpop.permute.xlu0 %1114
    %1116 = vrot.lane.b32.xlu0 %v805, 112
    %v1117 = vpop.permute.xlu0 %1116
    %1118 = vrot.lane.b32.xlu0 %v800, 80
    %v1119 = vpop.permute.xlu0 %1118
    %1120 = vrot.lane.b32.xlu0 %v805, 80
    %v1121 = vpop.permute.xlu0 %1120
    %v1122 = vsel %vm345, %v1115, 0
    %v1124 = vsel %vm345, %v1117, 0
    %v1126 = vsel %vm345, %v1119, 0
    %v1128 = vsel %vm345, %v1121, 0
    %1130 = vmatprep.subr.mxu0 0.0
    %1131 = vmatpush1.xpose.msra.mxu0 %v1126
    %1132 = vmatprep.subr.mxu0 0.0
    %1133 = vmatpush1.xpose.msra.mxu0 %v1128
    %1134 = vmatprep.subr.mxu0 0.0
    %1135 = vmatpush1.xpose.msra.mxu0 0.0
    %1136 = vmatprep.subr.mxu0 0.0
    %1137 = vmatpush1.xpose.msra.mxu0 0.0
    %1138 = vmatprep.subr.mxu0 0.0
    %1139 = vmatpush1.xpose.msra.mxu0 0.0
    %1140 = vmatprep.subr.mxu0 0.0
    %1141 = vmatpush1.xpose.msra.mxu0 0.0
    %1142 = vmatprep.subr.mxu0 0.0
    %1143 = vmatpush1.xpose.msra.mxu0 0.0
    %1144 = vmatprep.subr.mxu0 0.0
    %1145 = vmatpush1.xpose.msra.mxu0 0.0
    %1146 = vmatprep.subr.mxu0 0.0
    %1147 = vmatpush1.xpose.msra.mxu0 0.0
    %1148 = vmatprep.subr.mxu0 0.0
    %1149 = vmatpush1.xpose.msra.mxu0 0.0
    %1150 = vmatprep.subr.mxu0 0.0
    %1151 = vmatpush1.xpose.msra.mxu0 0.0
    %1152 = vmatprep.subr.mxu0 0.0
    %1153 = vmatpush1.xpose.msra.mxu0 0.0
    %1154 = vmatprep.subr.mxu0 0.0
    %1155 = vmatpush1.xpose.msra.mxu0 0.0
    %1156 = vmatprep.subr.mxu0 0.0
    %1157 = vmatpush1.xpose.msra.mxu0 0.0
    %1158 = vmatprep.subr.mxu0 0.0
    %1159 = vmatpush1.xpose.msra.mxu0 0.0
    %1160 = vmatprep.subr.mxu0 0.0
    %1161 = vmatpush1.xpose.msra.mxu0 0.0
    %1162 = vmatprep.subr.mxu0 0.0
    %1163 = vmatpush1.xpose.msra.mxu0 0.0
    %1164 = vmatprep.subr.mxu0 0.0
    %1165 = vmatpush1.xpose.msra.mxu0 0.0
    %1166 = vmatprep.subr.mxu0 0.0
    %1167 = vmatpush1.xpose.msra.mxu0 0.0
    %1168 = vmatprep.subr.mxu0 0.0
    %1169 = vmatpush1.xpose.msra.mxu0 0.0
    %1170 = vmatprep.subr.mxu0 0.0
    %1171 = vmatpush1.xpose.msra.mxu0 0.0
    %1172 = vmatprep.subr.mxu0 0.0
    %1173 = vmatpush1.xpose.msra.mxu0 0.0
    %1174 = vmatprep.subr.mxu0 0.0
    %1175 = vmatpush1.xpose.msra.mxu0 0.0
    %1176 = vmatprep.subr.mxu0 0.0
    %1177 = vmatpush1.xpose.msra.mxu0 0.0
    %1178 = vmatprep.subr.mxu0 0.0
    %1179 = vmatpush1.xpose.msra.mxu0 0.0
    %1180 = vmatprep.subr.mxu0 0.0
    %1181 = vmatpush1.xpose.msra.mxu0 0.0
    %1182 = vmatprep.subr.mxu0 0.0
    %1183 = vmatpush1.xpose.msra.mxu0 0.0
    %1184 = vmatprep.subr.mxu0 0.0
    %1185 = vmatpush1.xpose.msra.mxu0 0.0
    %1186 = vmatprep.subr.mxu0 0.0
    %1187 = vmatpush1.xpose.msra.mxu0 0.0
    %1188 = vmatprep.subr.mxu0 0.0
    %1189 = vmatpush1.xpose.msra.mxu0 0.0
    %1190 = vmatprep.subr.mxu0 0.0
    %1191 = vmatpush1.xpose.msra.mxu0 0.0
    %1192 = vmatprep.subr.mxu0 0.0
    %1193 = vmatpush1.xpose.msra.mxu0 0.0
    %1194 = vmatprep.mubr.f32.mxu0 0.0
    %1195 = vmatmul.mubr.f32.gmra.mrb[0].mxu0 %v1122
    %v1196 = vpop.f32.mrb[0].mxu0
    %v1197 = vadd.f32 0.0, %v1196
    %v1198 = vpop.f32.mrb[0].mxu0
    %1199 = vmatprep.mubr.f32.mxu0 0.0
    %1200 = vmatmul.mubr.f32.gmra.mrb[0].mxu0 %v1124
    %v1201 = vpop.f32.mrb[0].mxu0
    %v1202 = vadd.f32 0.0, %v1201
    %v1203 = vpop.f32.mrb[0].mxu0
    %1204 = vdwg.mxu0
    %v1205 = vmul.f32 %v1197, 0.25
    %v1206 = vmul.f32 %v1202, 0.25
    %v1207 = vsel %vm913, -1e+09, %v1205
    %v1208 = vsel %vm913, -1e+09, %v1206
    %v1209 = vsel %vm916, %v1207, -inf
    %1210 = vmax.xlane.f32.xlu0 %v1209
    %v1211 = vpop.xlane.xlu0 %1210
    %v1212 = vsel %vm920, %v1208, -inf
    %1213 = vmax.xlane.f32.xlu0 %v1212
    %v1214 = vpop.xlane.xlu0 %1213
    %v1215 = vsub.f32 %v1207, %v1211
    %v1216 = vsub.f32 %v1208, %v1214
    %v1217 = vmul.f32 %v1215, 1.442695
    %v1218 = vpow.pop %v1217
    %v1219 = vmul.f32 %v1216, 1.442695
    %v1220 = vpow.pop %v1219
    %v1221 = vsel %vm916, %v1218, 0.0
    %1222 = vadd.xlane.f32.xlu0 %v1221
    %v1223 = vpop.xlane.xlu0 %1222
    %v1224 = vsel %vm920, %v1220, 0.0
    %1225 = vadd.xlane.f32.xlu0 %v1224
    %v1226 = vpop.xlane.xlu0 %1225
    %v1227 = vrcp.pop %v1223
    %v1228 = vrcp.pop %v1226
    %v1229 = vmul.f32 %v1218, %v1227
    %v1230 = vmul.f32 %v1220, %v1228
    %1231 = vrot.lane.b32.xlu0 %v800, 48
    %v1232 = vpop.permute.xlu0 %1231
    %1233 = vrot.lane.b32.xlu0 %v805, 48
    %v1234 = vpop.permute.xlu0 %1233
    %v1237 = vsel %vm916, %v1229, 0
    %v1240 = vsel %vm916, %v1230, 0
    %v1242 = vsel %vm951, %v1234, 0
    %1244 = vmatprep.subr.mxu0 0.0
    %1245 = vmatpush1.msra.mxu0 %v1232
    %1246 = vmatprep.subr.mxu0 0.0
    %1247 = vmatpush1.msra.mxu0 %v1242
    %1248 = vmatprep.subr.mxu0 0.0
    %1249 = vmatpush1.msra.mxu0 0.0
    %1250 = vmatprep.subr.mxu0 0.0
    %1251 = vmatpush1.msra.mxu0 0.0
    %1252 = vmatprep.subr.mxu0 0.0
    %1253 = vmatpush1.msra.mxu0 0.0
    %1254 = vmatprep.subr.mxu0 0.0
    %1255 = vmatpush1.msra.mxu0 0.0
    %1256 = vmatprep.subr.mxu0 0.0
    %1257 = vmatpush1.msra.mxu0 0.0
    %1258 = vmatprep.subr.mxu0 0.0
    %1259 = vmatpush1.msra.mxu0 0.0
    %1260 = vmatprep.subr.mxu0 0.0
    %1261 = vmatpush1.msra.mxu0 0.0
    %1262 = vmatprep.subr.mxu0 0.0
    %1263 = vmatpush1.msra.mxu0 0.0
    %1264 = vmatprep.subr.mxu0 0.0
    %1265 = vmatpush1.msra.mxu0 0.0
    %1266 = vmatprep.subr.mxu0 0.0
    %1267 = vmatpush1.msra.mxu0 0.0
    %1268 = vmatprep.subr.mxu0 0.0
    %1269 = vmatpush1.msra.mxu0 0.0
    %1270 = vmatprep.subr.mxu0 0.0
    %1271 = vmatpush1.msra.mxu0 0.0
    %1272 = vmatprep.subr.mxu0 0.0
    %1273 = vmatpush1.msra.mxu0 0.0
    %1274 = vmatprep.subr.mxu0 0.0
    %1275 = vmatpush1.msra.mxu0 0.0
    %1276 = vmatprep.subr.mxu0 0.0
    %1277 = vmatpush1.msra.mxu0 0.0
    %1278 = vmatprep.subr.mxu0 0.0
    %1279 = vmatpush1.msra.mxu0 0.0
    %1280 = vmatprep.subr.mxu0 0.0
    %1281 = vmatpush1.msra.mxu0 0.0
    %1282 = vmatprep.subr.mxu0 0.0
    %1283 = vmatpush1.msra.mxu0 0.0
    %1284 = vmatprep.subr.mxu0 0.0
    %1285 = vmatpush1.msra.mxu0 0.0
    %1286 = vmatprep.subr.mxu0 0.0
    %1287 = vmatpush1.msra.mxu0 0.0
    %1288 = vmatprep.subr.mxu0 0.0
    %1289 = vmatpush1.msra.mxu0 0.0
    %1290 = vmatprep.subr.mxu0 0.0
    %1291 = vmatpush1.msra.mxu0 0.0
    %1292 = vmatprep.subr.mxu0 0.0
    %1293 = vmatpush1.msra.mxu0 0.0
    %1294 = vmatprep.subr.mxu0 0.0
    %1295 = vmatpush1.msra.mxu0 0.0
    %1296 = vmatprep.subr.mxu0 0.0
    %1297 = vmatpush1.msra.mxu0 0.0
    %1298 = vmatprep.subr.mxu0 0.0
    %1299 = vmatpush1.msra.mxu0 0.0
    %1300 = vmatprep.subr.mxu0 0.0
    %1301 = vmatpush1.msra.mxu0 0.0
    %1302 = vmatprep.subr.mxu0 0.0
    %1303 = vmatpush1.msra.mxu0 0.0
    %1304 = vmatprep.subr.mxu0 0.0
    %1305 = vmatpush1.msra.mxu0 0.0
    %1306 = vmatprep.subr.mxu0 0.0
    %1307 = vmatpush1.msra.mxu0 0.0
    %1308 = vmatprep.mubr.f32.mxu0 0.0
    %1309 = vmatmul.mubr.f32.gmra.mrb[0].mxu0 %v1237
    %v1310 = vpop.f32.mrb[0].mxu0
    %v1311 = vadd.f32 0.0, %v1310
    %v1312 = vpop.f32.mrb[0].mxu0
    %1313 = vmatprep.mubr.f32.mxu0 0.0
    %1314 = vmatmul.mubr.f32.gmra.mrb[0].mxu0 %v1240
    %v1315 = vpop.f32.mrb[0].mxu0
    %v1316 = vadd.f32 0.0, %v1315
    %v1317 = vpop.f32.mrb[0].mxu0
    %1318 = vdwg.mxu0
    %s1319 = scalar_lea.vmem %s10, 16
    %v1320 = vld [vmem:[%s1319] sm:$0xff]
    %v1321 = vld [vmem:[%s1319 + $0x8] sm:$0xff]
    %v1323 = vsel %vm345, %v1311, 0
    %v1326 = vsel %vm345, %v1316, 0
    %1328 = vmatprep.subr.mxu0 0.0
    %1329 = vmatpush1.msra.mxu0 %v1320
    %1330 = vmatprep.subr.mxu0 0.0
    %1331 = vmatpush1.msra.mxu0 %v1321
    %1332 = vmatprep.subr.mxu0 0.0
    %1333 = vmatpush1.msra.mxu0 0.0
    %1334 = vmatprep.subr.mxu0 0.0
    %1335 = vmatpush1.msra.mxu0 0.0
    %1336 = vmatprep.subr.mxu0 0.0
    %1337 = vmatpush1.msra.mxu0 0.0
    %1338 = vmatprep.subr.mxu0 0.0
    %1339 = vmatpush1.msra.mxu0 0.0
    %1340 = vmatprep.subr.mxu0 0.0
    %1341 = vmatpush1.msra.mxu0 0.0
    %1342 = vmatprep.subr.mxu0 0.0
    %1343 = vmatpush1.msra.mxu0 0.0
    %1344 = vmatprep.subr.mxu0 0.0
    %1345 = vmatpush1.msra.mxu0 0.0
    %1346 = vmatprep.subr.mxu0 0.0
    %1347 = vmatpush1.msra.mxu0 0.0
    %1348 = vmatprep.subr.mxu0 0.0
    %1349 = vmatpush1.msra.mxu0 0.0
    %1350 = vmatprep.subr.mxu0 0.0
    %1351 = vmatpush1.msra.mxu0 0.0
    %1352 = vmatprep.subr.mxu0 0.0
    %1353 = vmatpush1.msra.mxu0 0.0
    %1354 = vmatprep.subr.mxu0 0.0
    %1355 = vmatpush1.msra.mxu0 0.0
    %1356 = vmatprep.subr.mxu0 0.0
    %1357 = vmatpush1.msra.mxu0 0.0
    %1358 = vmatprep.subr.mxu0 0.0
    %1359 = vmatpush1.msra.mxu0 0.0
    %1360 = vmatprep.subr.mxu0 0.0
    %1361 = vmatpush1.msra.mxu0 0.0
    %1362 = vmatprep.subr.mxu0 0.0
    %1363 = vmatpush1.msra.mxu0 0.0
    %1364 = vmatprep.subr.mxu0 0.0
    %1365 = vmatpush1.msra.mxu0 0.0
    %1366 = vmatprep.subr.mxu0 0.0
    %1367 = vmatpush1.msra.mxu0 0.0
    %1368 = vmatprep.subr.mxu0 0.0
    %1369 = vmatpush1.msra.mxu0 0.0
    %1370 = vmatprep.subr.mxu0 0.0
    %1371 = vmatpush1.msra.mxu0 0.0
    %1372 = vmatprep.subr.mxu0 0.0
    %1373 = vmatpush1.msra.mxu0 0.0
    %1374 = vmatprep.subr.mxu0 0.0
    %1375 = vmatpush1.msra.mxu0 0.0
    %1376 = vmatprep.subr.mxu0 0.0
    %1377 = vmatpush1.msra.mxu0 0.0
    %1378 = vmatprep.subr.mxu0 0.0
    %1379 = vmatpush1.msra.mxu0 0.0
    %1380 = vmatprep.subr.mxu0 0.0
    %1381 = vmatpush1.msra.mxu0 0.0
    %1382 = vmatprep.subr.mxu0 0.0
    %1383 = vmatpush1.msra.mxu0 0.0
    %1384 = vmatprep.subr.mxu0 0.0
    %1385 = vmatpush1.msra.mxu0 0.0
    %1386 = vmatprep.subr.mxu0 0.0
    %1387 = vmatpush1.msra.mxu0 0.0
    %1388 = vmatprep.subr.mxu0 0.0
    %1389 = vmatpush1.msra.mxu0 0.0
    %1390 = vmatprep.subr.mxu0 0.0
    %1391 = vmatpush1.msra.mxu0 0.0
    %1392 = vmatprep.mubr.f32.mxu0 0.0
    %1393 = vmatmul.mubr.f32.gmra.mrb[0].mxu0 %v1323
    %v1394 = vpop.f32.mrb[0].mxu0
    %v1395 = vadd.f32 0.0, %v1394
    %v1396 = vpop.f32.mrb[0].mxu0
    %1397 = vmatprep.mubr.f32.mxu0 0.0
    %1398 = vmatmul.mubr.f32.gmra.mrb[0].mxu0 %v1326
    %v1399 = vpop.f32.mrb[0].mxu0
    %v1400 = vadd.f32 0.0, %v1399
    %v1401 = vpop.f32.mrb[0].mxu0
    %1402 = vdwg.mxu0
    %v1403 = vadd.f32 %v1112, %v1395
    %v1404 = vadd.f32 %v1113, %v1400
    %v1405 = vsel %vm103, %v1403, 0.0
    %1406 = vadd.xlane.f32.xlu0 %v1405
    %v1407 = vpop.xlane.xlu0 %1406
    %vm1408 = vcmask 254976
    %v1409 = vsel %vm1408, %v1404, 0.0
    %1410 = vadd.xlane.f32.xlu0 %v1409
    %v1411 = vpop.xlane.xlu0 %1410
    %v1412 = vrcp.pop 32.0
    %v1413 = vmul.f32 %v1407, %v1412
    %v1414 = vmul.f32 %v1411, %v1412
    %v1415 = vsub.f32 %v1403, %v1413
    %v1416 = vsub.f32 %v1404, %v1414
    %v1417 = vmul.f32 %v1415, %v1415
    %v1418 = vmul.f32 %v1416, %v1416
    %v1419 = vsel %vm103, %v1417, 0.0
    %1420 = vadd.xlane.f32.xlu0 %v1419
    %v1421 = vpop.xlane.xlu0 %1420
    %v1422 = vsel %vm1408, %v1418, 0.0
    %1423 = vadd.xlane.f32.xlu0 %v1422
    %v1424 = vpop.xlane.xlu0 %1423
    %v1425 = vmul.f32 %v1421, %v1412
    %v1426 = vmul.f32 %v1424, %v1412
    %v1427 = vadd.f32 %v1425, 1e-05
    %v1428 = vadd.f32 %v1426, 1e-05
    %v1429 = vrsqrt.pop %v1427
    %v1430 = vrsqrt.pop %v1428
    %v1431 = vmul.f32 %v1415, %v1429
    %v1432 = vmul.f32 %v1416, %v1430
    %v1433 = vld [vmem:[%s12] sm:$0x1]
    %v1435 = vlaneseq
    %v1436 = vshrl.u32 %v1435, 7
    %v1437 = vsub.s32 0, %v1436
    %v1438 = vrot.slane %v1433, %v1437
    %v1440 = vmul.f32 %v1431, %v1438
    %v1441 = vmul.f32 %v1432, %v1438
    %v1442 = vld [vmem:[%s13] sm:$0x1]
    %v1444 = vlaneseq
    %v1445 = vshrl.u32 %v1444, 7
    %v1446 = vsub.s32 0, %v1445
    %v1447 = vrot.slane %v1442, %v1446
    %v1449 = vadd.f32 %v1440, %v1447
    %v1450 = vadd.f32 %v1441, %v1447
    %v1451 = vld [vmem:[%s14] sm:$0xff]
    %v1452 = vld [vmem:[%s14 + $0x8] sm:$0x3]
    %v1453 = vld [vmem:[%s15] sm:$0xff]
    %v1454 = vld [vmem:[%s15 + $0x8] sm:$0x3]
    %1456 = vset.pattern.permute.xlu0 0
    %1457 = vperm.xlu0 %1456, %v1453
    %v1458 = vpop.permute.xlu0 %1457
    %1461 = vset.pattern.permute.xlu0 0
    %1462 = vperm.xlu0 %1461, %v1454
    %v1463 = vpop.permute.xlu0 %1462
    %v1466 = vsel %vm916, %v1451, 0
    %v1469 = vsel %vm916, %v1452, 0
    %v1472 = vsel %vm951, %v1450, 0
    %1474 = vmatprep.subr.mxu0 0.0
    %1475 = vmatpush1.msra.mxu0 %v1449
    %1476 = vmatprep.subr.mxu0 0.0
    %1477 = vmatpush1.msra.mxu0 %v1472
    %1478 = vmatprep.subr.mxu0 0.0
    %1479 = vmatpush1.msra.mxu0 0.0
    %1480 = vmatprep.subr.mxu0 0.0
    %1481 = vmatpush1.msra.mxu0 0.0
    %1482 = vmatprep.subr.mxu0 0.0
    %1483 = vmatpush1.msra.mxu0 0.0
    %1484 = vmatprep.subr.mxu0 0.0
    %1485 = vmatpush1.msra.mxu0 0.0
    %1486 = vmatprep.subr.mxu0 0.0
    %1487 = vmatpush1.msra.mxu0 0.0
    %1488 = vmatprep.subr.mxu0 0.0
    %1489 = vmatpush1.msra.mxu0 0.0
    %1490 = vmatprep.subr.mxu0 0.0
    %1491 = vmatpush1.msra.mxu0 0.0
    %1492 = vmatprep.subr.mxu0 0.0
    %1493 = vmatpush1.msra.mxu0 0.0
    %1494 = vmatprep.subr.mxu0 0.0
    %1495 = vmatpush1.msra.mxu0 0.0
    %1496 = vmatprep.subr.mxu0 0.0
    %1497 = vmatpush1.msra.mxu0 0.0
    %1498 = vmatprep.subr.mxu0 0.0
    %1499 = vmatpush1.msra.mxu0 0.0
    %1500 = vmatprep.subr.mxu0 0.0
    %1501 = vmatpush1.msra.mxu0 0.0
    %1502 = vmatprep.subr.mxu0 0.0
    %1503 = vmatpush1.msra.mxu0 0.0
    %1504 = vmatprep.subr.mxu0 0.0
    %1505 = vmatpush1.msra.mxu0 0.0
    %1506 = vmatprep.subr.mxu0 0.0
    %1507 = vmatpush1.msra.mxu0 0.0
    %1508 = vmatprep.subr.mxu0 0.0
    %1509 = vmatpush1.msra.mxu0 0.0
    %1510 = vmatprep.subr.mxu0 0.0
    %1511 = vmatpush1.msra.mxu0 0.0
    %1512 = vmatprep.subr.mxu0 0.0
    %1513 = vmatpush1.msra.mxu0 0.0
    %1514 = vmatprep.subr.mxu0 0.0
    %1515 = vmatpush1.msra.mxu0 0.0
    %1516 = vmatprep.subr.mxu0 0.0
    %1517 = vmatpush1.msra.mxu0 0.0
    %1518 = vmatprep.subr.mxu0 0.0
    %1519 = vmatpush1.msra.mxu0 0.0
    %1520 = vmatprep.subr.mxu0 0.0
    %1521 = vmatpush1.msra.mxu0 0.0
    %1522 = vmatprep.subr.mxu0 0.0
    %1523 = vmatpush1.msra.mxu0 0.0
    %1524 = vmatprep.subr.mxu0 0.0
    %1525 = vmatpush1.msra.mxu0 0.0
    %1526 = vmatprep.subr.mxu0 0.0
    %1527 = vmatpush1.msra.mxu0 0.0
    %1528 = vmatprep.subr.mxu0 0.0
    %1529 = vmatpush1.msra.mxu0 0.0
    %1530 = vmatprep.subr.mxu0 0.0
    %1531 = vmatpush1.msra.mxu0 0.0
    %1532 = vmatprep.subr.mxu0 0.0
    %1533 = vmatpush1.msra.mxu0 0.0
    %1534 = vmatprep.subr.mxu0 0.0
    %1535 = vmatpush1.msra.mxu0 0.0
    %1536 = vmatprep.subr.mxu0 0.0
    %1537 = vmatpush1.msra.mxu0 0.0
    %1538 = vmatprep.mubr.f32.mxu0 0.0
    %1539 = vmatmul.mubr.f32.gmra.mrb[0].mxu0 %v1466
    %v1540 = vpop.f32.mrb[0].mxu0
    %v1541 = vadd.f32 %v1458, %v1540
    %v1542 = vpop.f32.mrb[0].mxu0
    %1543 = vmatprep.mubr.f32.mxu0 0.0
    %1544 = vmatmul.mubr.f32.gmra.mrb[0].mxu0 %v1469
    %v1545 = vpop.f32.mrb[0].mxu0
    %v1546 = vadd.f32 %v1463, %v1545
    %v1547 = vpop.f32.mrb[0].mxu0
    %1548 = vdwg.mxu0
    %v1549 = vmax.f32 %v1541, 0.0
    %v1550 = vmax.f32 %v1546, 0.0
    %v1551 = vld [vmem:[%s16] sm:$0xff]
    %v1552 = vld [vmem:[%s16 + $0x8] sm:$0xff]
    %v1553 = vld [vmem:[%s16 + $0x10] sm:$0xff]
    %v1554 = vld [vmem:[%s16 + $0x18] sm:$0xff]
    %v1555 = vld [vmem:[%s17] sm:$0x1]
    %v1557 = vlaneseq
    %v1558 = vshrl.u32 %v1557, 7
    %v1559 = vsub.s32 0, %v1558
    %v1560 = vrot.slane %v1555, %v1559
    %v1563 = vsel %vm103, %v1549, 0
    %v1566 = vsel %vm103, %v1550, 0
    %1568 = vmatprep.subr.mxu0 0.0
    %1569 = vmatpush1.msra.mxu0 %v1551
    %1570 = vmatprep.subr.mxu0 0.0
    %1571 = vmatpush1.msra.mxu0 %v1552
    %1572 = vmatprep.subr.mxu0 0.0
    %1573 = vmatpush1.msra.mxu0 %v1553
    %1574 = vmatprep.subr.mxu0 0.0
    %1575 = vmatpush1.msra.mxu0 %v1554
    %1576 = vmatprep.subr.mxu0 0.0
    %1577 = vmatpush1.msra.mxu0 0.0
    %1578 = vmatprep.subr.mxu0 0.0
    %1579 = vmatpush1.msra.mxu0 0.0
    %1580 = vmatprep.subr.mxu0 0.0
    %1581 = vmatpush1.msra.mxu0 0.0
    %1582 = vmatprep.subr.mxu0 0.0
    %1583 = vmatpush1.msra.mxu0 0.0
    %1584 = vmatprep.subr.mxu0 0.0
    %1585 = vmatpush1.msra.mxu0 0.0
    %1586 = vmatprep.subr.mxu0 0.0
    %1587 = vmatpush1.msra.mxu0 0.0
    %1588 = vmatprep.subr.mxu0 0.0
    %1589 = vmatpush1.msra.mxu0 0.0
    %1590 = vmatprep.subr.mxu0 0.0
    %1591 = vmatpush1.msra.mxu0 0.0
    %1592 = vmatprep.subr.mxu0 0.0
    %1593 = vmatpush1.msra.mxu0 0.0
    %1594 = vmatprep.subr.mxu0 0.0
    %1595 = vmatpush1.msra.mxu0 0.0
    %1596 = vmatprep.subr.mxu0 0.0
    %1597 = vmatpush1.msra.mxu0 0.0
    %1598 = vmatprep.subr.mxu0 0.0
    %1599 = vmatpush1.msra.mxu0 0.0
    %1600 = vmatprep.subr.mxu0 0.0
    %1601 = vmatpush1.msra.mxu0 0.0
    %1602 = vmatprep.subr.mxu0 0.0
    %1603 = vmatpush1.msra.mxu0 0.0
    %1604 = vmatprep.subr.mxu0 0.0
    %1605 = vmatpush1.msra.mxu0 0.0
    %1606 = vmatprep.subr.mxu0 0.0
    %1607 = vmatpush1.msra.mxu0 0.0
    %1608 = vmatprep.subr.mxu0 0.0
    %1609 = vmatpush1.msra.mxu0 0.0
    %1610 = vmatprep.subr.mxu0 0.0
    %1611 = vmatpush1.msra.mxu0 0.0
    %1612 = vmatprep.subr.mxu0 0.0
    %1613 = vmatpush1.msra.mxu0 0.0
    %1614 = vmatprep.subr.mxu0 0.0
    %1615 = vmatpush1.msra.mxu0 0.0
    %1616 = vmatprep.subr.mxu0 0.0
    %1617 = vmatpush1.msra.mxu0 0.0
    %1618 = vmatprep.subr.mxu0 0.0
    %1619 = vmatpush1.msra.mxu0 0.0
    %1620 = vmatprep.subr.mxu0 0.0
    %1621 = vmatpush1.msra.mxu0 0.0
    %1622 = vmatprep.subr.mxu0 0.0
    %1623 = vmatpush1.msra.mxu0 0.0
    %1624 = vmatprep.subr.mxu0 0.0
    %1625 = vmatpush1.msra.mxu0 0.0
    %1626 = vmatprep.subr.mxu0 0.0
    %1627 = vmatpush1.msra.mxu0 0.0
    %1628 = vmatprep.subr.mxu0 0.0
    %1629 = vmatpush1.msra.mxu0 0.0
    %1630 = vmatprep.subr.mxu0 0.0
    %1631 = vmatpush1.msra.mxu0 0.0
    %1632 = vmatprep.mubr.f32.mxu0 0.0
    %1633 = vmatmul.mubr.f32.gmra.mrb[0].mxu0 %v1563
    %v1634 = vpop.f32.mrb[0].mxu0
    %v1635 = vadd.f32 %v1560, %v1634
    %v1636 = vpop.f32.mrb[0].mxu0
    %1637 = vmatprep.mubr.f32.mxu0 0.0
    %1638 = vmatmul.mubr.f32.gmra.mrb[0].mxu0 %v1566
    %v1639 = vpop.f32.mrb[0].mxu0
    %v1640 = vadd.f32 %v1560, %v1639
    %v1641 = vpop.f32.mrb[0].mxu0
    %1642 = vdwg.mxu0
    %v1643 = vmax.f32 %v1635, 0.0
    %v1644 = vmax.f32 %v1640, 0.0
    %v1645 = vld [vmem:[%s18] sm:$0xff]
    %v1646 = vld [vmem:[%s18 + $0x8] sm:$0xff]
    %v1647 = vld [vmem:[%s18 + $0x10] sm:$0xff]
    %v1648 = vld [vmem:[%s18 + $0x18] sm:$0xff]
    %v1649 = vld [vmem:[%s18 + $0x20] sm:$0xff]
    %v1650 = vld [vmem:[%s18 + $0x28] sm:$0xff]
    %v1651 = vld [vmem:[%s18 + $0x30] sm:$0xff]
    %v1652 = vld [vmem:[%s18 + $0x38] sm:$0xff]
    %v1653 = vld [vmem:[%s19] sm:$0x1]
    %v1655 = vlaneseq
    %v1656 = vshrl.u32 %v1655, 7
    %v1657 = vsub.s32 0, %v1656
    %v1658 = vrot.slane %v1653, %v1657
    %vm1660 = vcmask 523264
    %v1662 = vsel %vm1660, %v1643, 0
    %v1665 = vsel %vm1660, %v1644, 0
    %1667 = vmatprep.subr.mxu0 0.0
    %1668 = vmatpush1.msra.mxu0 %v1645
    %1669 = vmatprep.subr.mxu0 0.0
    %1670 = vmatpush1.msra.mxu0 %v1646
    %1671 = vmatprep.subr.mxu0 0.0
    %1672 = vmatpush1.msra.mxu0 %v1647
    %1673 = vmatprep.subr.mxu0 0.0
    %1674 = vmatpush1.msra.mxu0 %v1648
    %1675 = vmatprep.subr.mxu0 0.0
    %1676 = vmatpush1.msra.mxu0 %v1649
    %1677 = vmatprep.subr.mxu0 0.0
    %1678 = vmatpush1.msra.mxu0 %v1650
    %1679 = vmatprep.subr.mxu0 0.0
    %1680 = vmatpush1.msra.mxu0 %v1651
    %1681 = vmatprep.subr.mxu0 0.0
    %1682 = vmatpush1.msra.mxu0 %v1652
    %1683 = vmatprep.subr.mxu0 0.0
    %1684 = vmatpush1.msra.mxu0 0.0
    %1685 = vmatprep.subr.mxu0 0.0
    %1686 = vmatpush1.msra.mxu0 0.0
    %1687 = vmatprep.subr.mxu0 0.0
    %1688 = vmatpush1.msra.mxu0 0.0
    %1689 = vmatprep.subr.mxu0 0.0
    %1690 = vmatpush1.msra.mxu0 0.0
    %1691 = vmatprep.subr.mxu0 0.0
    %1692 = vmatpush1.msra.mxu0 0.0
    %1693 = vmatprep.subr.mxu0 0.0
    %1694 = vmatpush1.msra.mxu0 0.0
    %1695 = vmatprep.subr.mxu0 0.0
    %1696 = vmatpush1.msra.mxu0 0.0
    %1697 = vmatprep.subr.mxu0 0.0
    %1698 = vmatpush1.msra.mxu0 0.0
    %1699 = vmatprep.subr.mxu0 0.0
    %1700 = vmatpush1.msra.mxu0 0.0
    %1701 = vmatprep.subr.mxu0 0.0
    %1702 = vmatpush1.msra.mxu0 0.0
    %1703 = vmatprep.subr.mxu0 0.0
    %1704 = vmatpush1.msra.mxu0 0.0
    %1705 = vmatprep.subr.mxu0 0.0
    %1706 = vmatpush1.msra.mxu0 0.0
    %1707 = vmatprep.subr.mxu0 0.0
    %1708 = vmatpush1.msra.mxu0 0.0
    %1709 = vmatprep.subr.mxu0 0.0
    %1710 = vmatpush1.msra.mxu0 0.0
    %1711 = vmatprep.subr.mxu0 0.0
    %1712 = vmatpush1.msra.mxu0 0.0
    %1713 = vmatprep.subr.mxu0 0.0
    %1714 = vmatpush1.msra.mxu0 0.0
    %1715 = vmatprep.subr.mxu0 0.0
    %1716 = vmatpush1.msra.mxu0 0.0
    %1717 = vmatprep.subr.mxu0 0.0
    %1718 = vmatpush1.msra.mxu0 0.0
    %1719 = vmatprep.subr.mxu0 0.0
    %1720 = vmatpush1.msra.mxu0 0.0
    %1721 = vmatprep.subr.mxu0 0.0
    %1722 = vmatpush1.msra.mxu0 0.0
    %1723 = vmatprep.subr.mxu0 0.0
    %1724 = vmatpush1.msra.mxu0 0.0
    %1725 = vmatprep.subr.mxu0 0.0
    %1726 = vmatpush1.msra.mxu0 0.0
    %1727 = vmatprep.subr.mxu0 0.0
    %1728 = vmatpush1.msra.mxu0 0.0
    %1729 = vmatprep.subr.mxu0 0.0
    %1730 = vmatpush1.msra.mxu0 0.0
    %1731 = vmatprep.mubr.f32.mxu0 0.0
    %1732 = vmatmul.mubr.f32.gmra.mrb[0].mxu0 %v1662
    %v1733 = vpop.f32.mrb[0].mxu0
    %v1734 = vadd.f32 %v1658, %v1733
    %v1735 = vpop.f32.mrb[0].mxu0
    %1736 = vmatprep.mubr.f32.mxu0 0.0
    %1737 = vmatmul.mubr.f32.gmra.mrb[0].mxu0 %v1665
    %v1738 = vpop.f32.mrb[0].mxu0
    %v1739 = vadd.f32 %v1658, %v1738
    %v1740 = vpop.f32.mrb[0].mxu0
    %1741 = vdwg.mxu0
    %s1742 = scalar_lea.vmem %s8, 32
    %v1743 = vld [vmem:[%s1742] sm:$0xff]
    %v1744 = vld [vmem:[%s1742 + $0x8] sm:$0xff]
    %v1745 = vld [vmem:[%s1742 + $0x10] sm:$0xff]
    %v1746 = vld [vmem:[%s1742 + $0x18] sm:$0xff]
    %s1747 = scalar_lea.vmem %s9, 1
    %v1748 = vld [vmem:[%s1747] sm:$0x1]
    %v1750 = vlaneseq
    %v1751 = vshrl.u32 %v1750, 7
    %v1752 = vsub.s32 0, %v1751
    %v1753 = vrot.slane %v1748, %v1752
    %v1756 = vsel %vm103, %v1734, 0
    %v1759 = vsel %vm103, %v1739, 0
    %1761 = vmatprep.subr.mxu0 0.0
    %1762 = vmatpush1.msra.mxu0 %v1743
    %1763 = vmatprep.subr.mxu0 0.0
    %1764 = vmatpush1.msra.mxu0 %v1744
    %1765 = vmatprep.subr.mxu0 0.0
    %1766 = vmatpush1.msra.mxu0 %v1745
    %1767 = vmatprep.subr.mxu0 0.0
    %1768 = vmatpush1.msra.mxu0 %v1746
    %1769 = vmatprep.subr.mxu0 0.0
    %1770 = vmatpush1.msra.mxu0 0.0
    %1771 = vmatprep.subr.mxu0 0.0
    %1772 = vmatpush1.msra.mxu0 0.0
    %1773 = vmatprep.subr.mxu0 0.0
    %1774 = vmatpush1.msra.mxu0 0.0
    %1775 = vmatprep.subr.mxu0 0.0
    %1776 = vmatpush1.msra.mxu0 0.0
    %1777 = vmatprep.subr.mxu0 0.0
    %1778 = vmatpush1.msra.mxu0 0.0
    %1779 = vmatprep.subr.mxu0 0.0
    %1780 = vmatpush1.msra.mxu0 0.0
    %1781 = vmatprep.subr.mxu0 0.0
    %1782 = vmatpush1.msra.mxu0 0.0
    %1783 = vmatprep.subr.mxu0 0.0
    %1784 = vmatpush1.msra.mxu0 0.0
    %1785 = vmatprep.subr.mxu0 0.0
    %1786 = vmatpush1.msra.mxu0 0.0
    %1787 = vmatprep.subr.mxu0 0.0
    %1788 = vmatpush1.msra.mxu0 0.0
    %1789 = vmatprep.subr.mxu0 0.0
    %1790 = vmatpush1.msra.mxu0 0.0
    %1791 = vmatprep.subr.mxu0 0.0
    %1792 = vmatpush1.msra.mxu0 0.0
    %1793 = vmatprep.subr.mxu0 0.0
    %1794 = vmatpush1.msra.mxu0 0.0
    %1795 = vmatprep.subr.mxu0 0.0
    %1796 = vmatpush1.msra.mxu0 0.0
    %1797 = vmatprep.subr.mxu0 0.0
    %1798 = vmatpush1.msra.mxu0 0.0
    %1799 = vmatprep.subr.mxu0 0.0
    %1800 = vmatpush1.msra.mxu0 0.0
    %1801 = vmatprep.subr.mxu0 0.0
    %1802 = vmatpush1.msra.mxu0 0.0
    %1803 = vmatprep.subr.mxu0 0.0
    %1804 = vmatpush1.msra.mxu0 0.0
    %1805 = vmatprep.subr.mxu0 0.0
    %1806 = vmatpush1.msra.mxu0 0.0
    %1807 = vmatprep.subr.mxu0 0.0
    %1808 = vmatpush1.msra.mxu0 0.0
    %1809 = vmatprep.subr.mxu0 0.0
    %1810 = vmatpush1.msra.mxu0 0.0
    %1811 = vmatprep.subr.mxu0 0.0
    %1812 = vmatpush1.msra.mxu0 0.0
    %1813 = vmatprep.subr.mxu0 0.0
    %1814 = vmatpush1.msra.mxu0 0.0
    %1815 = vmatprep.subr.mxu0 0.0
    %1816 = vmatpush1.msra.mxu0 0.0
    %1817 = vmatprep.subr.mxu0 0.0
    %1818 = vmatpush1.msra.mxu0 0.0
    %1819 = vmatprep.subr.mxu0 0.0
    %1820 = vmatpush1.msra.mxu0 0.0
    %1821 = vmatprep.subr.mxu0 0.0
    %1822 = vmatpush1.msra.mxu0 0.0
    %1823 = vmatprep.subr.mxu0 0.0
    %1824 = vmatpush1.msra.mxu0 0.0
    %1825 = vmatprep.mubr.f32.mxu0 0.0
    %1826 = vmatmul.mubr.f32.gmra.mrb[0].mxu0 %v1756
    %v1827 = vpop.f32.mrb[0].mxu0
    %v1828 = vadd.f32 %v1753, %v1827
    %v1829 = vpop.f32.mrb[0].mxu0
    %1830 = vmatprep.mubr.f32.mxu0 0.0
    %1831 = vmatmul.mubr.f32.gmra.mrb[0].mxu0 %v1759
    %v1832 = vpop.f32.mrb[0].mxu0
    %v1833 = vadd.f32 %v1753, %v1832
    %v1834 = vpop.f32.mrb[0].mxu0
    %1835 = vdwg.mxu0
    %s1836 = scalar_lea.vmem %s11, 1
    %v1837 = vld [vmem:[%s1836] sm:$0x1]
    %v1839 = vlaneseq
    %v1840 = vshrl.u32 %v1839, 7
    %v1841 = vsub.s32 0, %v1840
    %v1842 = vrot.slane %v1837, %v1841
    %v1844 = vadd.f32 %v1842, %v1734
    %v1845 = vadd.f32 %v1842, %v1739
    %1848 = vrot.lane.b32.xlu0 %v1828, 96
    %v1849 = vpop.permute.xlu0 %1848
    %1850 = vrot.lane.b32.xlu0 %v1833, 96
    %v1851 = vpop.permute.xlu0 %1850
    %v1852 = vsel %vm345, %v1828, 0
    %v1854 = vsel %vm345, %v1833, 0
    %v1856 = vsel %vm345, %v1849, 0
    %v1858 = vsel %vm345, %v1851, 0
    %1860 = vmatprep.subr.mxu0 0.0
    %1861 = vmatpush1.xpose.msra.mxu0 %v1856
    %1862 = vmatprep.subr.mxu0 0.0
    %1863 = vmatpush1.xpose.msra.mxu0 %v1858
    %1864 = vmatprep.subr.mxu0 0.0
    %1865 = vmatpush1.xpose.msra.mxu0 0.0
    %1866 = vmatprep.subr.mxu0 0.0
    %1867 = vmatpush1.xpose.msra.mxu0 0.0
    %1868 = vmatprep.subr.mxu0 0.0
    %1869 = vmatpush1.xpose.msra.mxu0 0.0
    %1870 = vmatprep.subr.mxu0 0.0
    %1871 = vmatpush1.xpose.msra.mxu0 0.0
    %1872 = vmatprep.subr.mxu0 0.0
    %1873 = vmatpush1.xpose.msra.mxu0 0.0
    %1874 = vmatprep.subr.mxu0 0.0
    %1875 = vmatpush1.xpose.msra.mxu0 0.0
    %1876 = vmatprep.subr.mxu0 0.0
    %1877 = vmatpush1.xpose.msra.mxu0 0.0
    %1878 = vmatprep.subr.mxu0 0.0
    %1879 = vmatpush1.xpose.msra.mxu0 0.0
    %1880 = vmatprep.subr.mxu0 0.0
    %1881 = vmatpush1.xpose.msra.mxu0 0.0
    %1882 = vmatprep.subr.mxu0 0.0
    %1883 = vmatpush1.xpose.msra.mxu0 0.0
    %1884 = vmatprep.subr.mxu0 0.0
    %1885 = vmatpush1.xpose.msra.mxu0 0.0
    %1886 = vmatprep.subr.mxu0 0.0
    %1887 = vmatpush1.xpose.msra.mxu0 0.0
    %1888 = vmatprep.subr.mxu0 0.0
    %1889 = vmatpush1.xpose.msra.mxu0 0.0
    %1890 = vmatprep.subr.mxu0 0.0
    %1891 = vmatpush1.xpose.msra.mxu0 0.0
    %1892 = vmatprep.subr.mxu0 0.0
    %1893 = vmatpush1.xpose.msra.mxu0 0.0
    %1894 = vmatprep.subr.mxu0 0.0
    %1895 = vmatpush1.xpose.msra.mxu0 0.0
    %1896 = vmatprep.subr.mxu0 0.0
    %1897 = vmatpush1.xpose.msra.mxu0 0.0
    %1898 = vmatprep.subr.mxu0 0.0
    %1899 = vmatpush1.xpose.msra.mxu0 0.0
    %1900 = vmatprep.subr.mxu0 0.0
    %1901 = vmatpush1.xpose.msra.mxu0 0.0
    %1902 = vmatprep.subr.mxu0 0.0
    %1903 = vmatpush1.xpose.msra.mxu0 0.0
    %1904 = vmatprep.subr.mxu0 0.0
    %1905 = vmatpush1.xpose.msra.mxu0 0.0
    %1906 = vmatprep.subr.mxu0 0.0
    %1907 = vmatpush1.xpose.msra.mxu0 0.0
    %1908 = vmatprep.subr.mxu0 0.0
    %1909 = vmatpush1.xpose.msra.mxu0 0.0
    %1910 = vmatprep.subr.mxu0 0.0
    %1911 = vmatpush1.xpose.msra.mxu0 0.0
    %1912 = vmatprep.subr.mxu0 0.0
    %1913 = vmatpush1.xpose.msra.mxu0 0.0
    %1914 = vmatprep.subr.mxu0 0.0
    %1915 = vmatpush1.xpose.msra.mxu0 0.0
    %1916 = vmatprep.subr.mxu0 0.0
    %1917 = vmatpush1.xpose.msra.mxu0 0.0
    %1918 = vmatprep.subr.mxu0 0.0
    %1919 = vmatpush1.xpose.msra.mxu0 0.0
    %1920 = vmatprep.subr.mxu0 0.0
    %1921 = vmatpush1.xpose.msra.mxu0 0.0
    %1922 = vmatprep.subr.mxu0 0.0
    %1923 = vmatpush1.xpose.msra.mxu0 0.0
    %1924 = vmatprep.mubr.f32.mxu0 0.0
    %1925 = vmatmul.mubr.f32.gmra.mrb[0].mxu0 %v1852
    %v1926 = vpop.f32.mrb[0].mxu0
    %v1927 = vadd.f32 0.0, %v1926
    %v1928 = vpop.f32.mrb[0].mxu0
    %1929 = vmatprep.mubr.f32.mxu0 0.0
    %1930 = vmatmul.mubr.f32.gmra.mrb[0].mxu0 %v1854
    %v1931 = vpop.f32.mrb[0].mxu0
    %v1932 = vadd.f32 0.0, %v1931
    %v1933 = vpop.f32.mrb[0].mxu0
    %1934 = vdwg.mxu0
    %v1935 = vmul.f32 %v1927, 0.25
    %v1936 = vmul.f32 %v1932, 0.25
    %v1937 = vsel %vm913, -1e+09, %v1935
    %v1938 = vsel %vm913, -1e+09, %v1936
    %v1939 = vsel %vm916, %v1937, -inf
    %1940 = vmax.xlane.f32.xlu0 %v1939
    %v1941 = vpop.xlane.xlu0 %1940
    %v1942 = vsel %vm920, %v1938, -inf
    %1943 = vmax.xlane.f32.xlu0 %v1942
    %v1944 = vpop.xlane.xlu0 %1943
    %v1945 = vsub.f32 %v1937, %v1941
    %v1946 = vsub.f32 %v1938, %v1944
    %v1947 = vmul.f32 %v1945, 1.442695
    %v1948 = vpow.pop %v1947
    %v1949 = vmul.f32 %v1946, 1.442695
    %v1950 = vpow.pop %v1949
    %v1951 = vsel %vm916, %v1948, 0.0
    %1952 = vadd.xlane.f32.xlu0 %v1951
    %v1953 = vpop.xlane.xlu0 %1952
    %v1954 = vsel %vm920, %v1950, 0.0
    %1955 = vadd.xlane.f32.xlu0 %v1954
    %v1956 = vpop.xlane.xlu0 %1955
    %v1957 = vrcp.pop %v1953
    %v1958 = vrcp.pop %v1956
    %v1959 = vmul.f32 %v1948, %v1957
    %v1960 = vmul.f32 %v1950, %v1958
    %1961 = vrot.lane.b32.xlu0 %v1828, 64
    %v1962 = vpop.permute.xlu0 %1961
    %1963 = vrot.lane.b32.xlu0 %v1833, 64
    %v1964 = vpop.permute.xlu0 %1963
    %v1967 = vsel %vm916, %v1959, 0
    %v1970 = vsel %vm916, %v1960, 0
    %v1972 = vsel %vm951, %v1964, 0
    %1974 = vmatprep.subr.mxu0 0.0
    %1975 = vmatpush1.msra.mxu0 %v1962
    %1976 = vmatprep.subr.mxu0 0.0
    %1977 = vmatpush1.msra.mxu0 %v1972
    %1978 = vmatprep.subr.mxu0 0.0
    %1979 = vmatpush1.msra.mxu0 0.0
    %1980 = vmatprep.subr.mxu0 0.0
    %1981 = vmatpush1.msra.mxu0 0.0
    %1982 = vmatprep.subr.mxu0 0.0
    %1983 = vmatpush1.msra.mxu0 0.0
    %1984 = vmatprep.subr.mxu0 0.0
    %1985 = vmatpush1.msra.mxu0 0.0
    %1986 = vmatprep.subr.mxu0 0.0
    %1987 = vmatpush1.msra.mxu0 0.0
    %1988 = vmatprep.subr.mxu0 0.0
    %1989 = vmatpush1.msra.mxu0 0.0
    %1990 = vmatprep.subr.mxu0 0.0
    %1991 = vmatpush1.msra.mxu0 0.0
    %1992 = vmatprep.subr.mxu0 0.0
    %1993 = vmatpush1.msra.mxu0 0.0
    %1994 = vmatprep.subr.mxu0 0.0
    %1995 = vmatpush1.msra.mxu0 0.0
    %1996 = vmatprep.subr.mxu0 0.0
    %1997 = vmatpush1.msra.mxu0 0.0
    %1998 = vmatprep.subr.mxu0 0.0
    %1999 = vmatpush1.msra.mxu0 0.0
    %2000 = vmatprep.subr.mxu0 0.0
    %2001 = vmatpush1.msra.mxu0 0.0
    %2002 = vmatprep.subr.mxu0 0.0
    %2003 = vmatpush1.msra.mxu0 0.0
    %2004 = vmatprep.subr.mxu0 0.0
    %2005 = vmatpush1.msra.mxu0 0.0
    %2006 = vmatprep.subr.mxu0 0.0
    %2007 = vmatpush1.msra.mxu0 0.0
    %2008 = vmatprep.subr.mxu0 0.0
    %2009 = vmatpush1.msra.mxu0 0.0
    %2010 = vmatprep.subr.mxu0 0.0
    %2011 = vmatpush1.msra.mxu0 0.0
    %2012 = vmatprep.subr.mxu0 0.0
    %2013 = vmatpush1.msra.mxu0 0.0
    %2014 = vmatprep.subr.mxu0 0.0
    %2015 = vmatpush1.msra.mxu0 0.0
    %2016 = vmatprep.subr.mxu0 0.0
    %2017 = vmatpush1.msra.mxu0 0.0
    %2018 = vmatprep.subr.mxu0 0.0
    %2019 = vmatpush1.msra.mxu0 0.0
    %2020 = vmatprep.subr.mxu0 0.0
    %2021 = vmatpush1.msra.mxu0 0.0
    %2022 = vmatprep.subr.mxu0 0.0
    %2023 = vmatpush1.msra.mxu0 0.0
    %2024 = vmatprep.subr.mxu0 0.0
    %2025 = vmatpush1.msra.mxu0 0.0
    %2026 = vmatprep.subr.mxu0 0.0
    %2027 = vmatpush1.msra.mxu0 0.0
    %2028 = vmatprep.subr.mxu0 0.0
    %2029 = vmatpush1.msra.mxu0 0.0
    %2030 = vmatprep.subr.mxu0 0.0
    %2031 = vmatpush1.msra.mxu0 0.0
    %2032 = vmatprep.subr.mxu0 0.0
    %2033 = vmatpush1.msra.mxu0 0.0
    %2034 = vmatprep.subr.mxu0 0.0
    %2035 = vmatpush1.msra.mxu0 0.0
    %2036 = vmatprep.subr.mxu0 0.0
    %2037 = vmatpush1.msra.mxu0 0.0
    %2038 = vmatprep.mubr.f32.mxu0 0.0
    %2039 = vmatmul.mubr.f32.gmra.mrb[0].mxu0 %v1967
    %v2040 = vpop.f32.mrb[0].mxu0
    %v2041 = vadd.f32 0.0, %v2040
    %v2042 = vpop.f32.mrb[0].mxu0
    %2043 = vmatprep.mubr.f32.mxu0 0.0
    %2044 = vmatmul.mubr.f32.gmra.mrb[0].mxu0 %v1970
    %v2045 = vpop.f32.mrb[0].mxu0
    %v2046 = vadd.f32 0.0, %v2045
    %v2047 = vpop.f32.mrb[0].mxu0
    %2048 = vdwg.mxu0
    %s2049 = scalar_lea.vmem %s10, 32
    %v2050 = vld [vmem:[%s2049] sm:$0xff]
    %v2051 = vld [vmem:[%s2049 + $0x8] sm:$0xff]
    %v2053 = vsel %vm345, %v2041, 0
    %v2056 = vsel %vm345, %v2046, 0
    %2058 = vmatprep.subr.mxu0 0.0
    %2059 = vmatpush1.msra.mxu0 %v2050
    %2060 = vmatprep.subr.mxu0 0.0
    %2061 = vmatpush1.msra.mxu0 %v2051
    %2062 = vmatprep.subr.mxu0 0.0
    %2063 = vmatpush1.msra.mxu0 0.0
    %2064 = vmatprep.subr.mxu0 0.0
    %2065 = vmatpush1.msra.mxu0 0.0
    %2066 = vmatprep.subr.mxu0 0.0
    %2067 = vmatpush1.msra.mxu0 0.0
    %2068 = vmatprep.subr.mxu0 0.0
    %2069 = vmatpush1.msra.mxu0 0.0
    %2070 = vmatprep.subr.mxu0 0.0
    %2071 = vmatpush1.msra.mxu0 0.0
    %2072 = vmatprep.subr.mxu0 0.0
    %2073 = vmatpush1.msra.mxu0 0.0
    %2074 = vmatprep.subr.mxu0 0.0
    %2075 = vmatpush1.msra.mxu0 0.0
    %2076 = vmatprep.subr.mxu0 0.0
    %2077 = vmatpush1.msra.mxu0 0.0
    %2078 = vmatprep.subr.mxu0 0.0
    %2079 = vmatpush1.msra.mxu0 0.0
    %2080 = vmatprep.subr.mxu0 0.0
    %2081 = vmatpush1.msra.mxu0 0.0
    %2082 = vmatprep.subr.mxu0 0.0
    %2083 = vmatpush1.msra.mxu0 0.0
    %2084 = vmatprep.subr.mxu0 0.0
    %2085 = vmatpush1.msra.mxu0 0.0
    %2086 = vmatprep.subr.mxu0 0.0
    %2087 = vmatpush1.msra.mxu0 0.0
    %2088 = vmatprep.subr.mxu0 0.0
    %2089 = vmatpush1.msra.mxu0 0.0
    %2090 = vmatprep.subr.mxu0 0.0
    %2091 = vmatpush1.msra.mxu0 0.0
    %2092 = vmatprep.subr.mxu0 0.0
    %2093 = vmatpush1.msra.mxu0 0.0
    %2094 = vmatprep.subr.mxu0 0.0
    %2095 = vmatpush1.msra.mxu0 0.0
    %2096 = vmatprep.subr.mxu0 0.0
    %2097 = vmatpush1.msra.mxu0 0.0
    %2098 = vmatprep.subr.mxu0 0.0
    %2099 = vmatpush1.msra.mxu0 0.0
    %2100 = vmatprep.subr.mxu0 0.0
    %2101 = vmatpush1.msra.mxu0 0.0
    %2102 = vmatprep.subr.mxu0 0.0
    %2103 = vmatpush1.msra.mxu0 0.0
    %2104 = vmatprep.subr.mxu0 0.0
    %2105 = vmatpush1.msra.mxu0 0.0
    %2106 = vmatprep.subr.mxu0 0.0
    %2107 = vmatpush1.msra.mxu0 0.0
    %2108 = vmatprep.subr.mxu0 0.0
    %2109 = vmatpush1.msra.mxu0 0.0
    %2110 = vmatprep.subr.mxu0 0.0
    %2111 = vmatpush1.msra.mxu0 0.0
    %2112 = vmatprep.subr.mxu0 0.0
    %2113 = vmatpush1.msra.mxu0 0.0
    %2114 = vmatprep.subr.mxu0 0.0
    %2115 = vmatpush1.msra.mxu0 0.0
    %2116 = vmatprep.subr.mxu0 0.0
    %2117 = vmatpush1.msra.mxu0 0.0
    %2118 = vmatprep.subr.mxu0 0.0
    %2119 = vmatpush1.msra.mxu0 0.0
    %2120 = vmatprep.subr.mxu0 0.0
    %2121 = vmatpush1.msra.mxu0 0.0
    %2122 = vmatprep.mubr.f32.mxu0 0.0
    %2123 = vmatmul.mubr.f32.gmra.mrb[0].mxu0 %v2053
    %v2124 = vpop.f32.mrb[0].mxu0
    %v2125 = vadd.f32 0.0, %v2124
    %v2126 = vpop.f32.mrb[0].mxu0
    %2127 = vmatprep.mubr.f32.mxu0 0.0
    %2128 = vmatmul.mubr.f32.gmra.mrb[0].mxu0 %v2056
    %v2129 = vpop.f32.mrb[0].mxu0
    %v2130 = vadd.f32 0.0, %v2129
    %v2131 = vpop.f32.mrb[0].mxu0
    %2132 = vdwg.mxu0
    %v2133 = vadd.f32 %v1844, %v2125
    %v2134 = vadd.f32 %v1845, %v2130
    %2135 = vrot.lane.b32.xlu0 %v1828, 112
    %v2136 = vpop.permute.xlu0 %2135
    %2137 = vrot.lane.b32.xlu0 %v1833, 112
    %v2138 = vpop.permute.xlu0 %2137
    %2139 = vrot.lane.b32.xlu0 %v1828, 80
    %v2140 = vpop.permute.xlu0 %2139
    %2141 = vrot.lane.b32.xlu0 %v1833, 80
    %v2142 = vpop.permute.xlu0 %2141
    %v2143 = vsel %vm345, %v2136, 0
    %v2145 = vsel %vm345, %v2138, 0
    %v2147 = vsel %vm345, %v2140, 0
    %v2149 = vsel %vm345, %v2142, 0
    %2151 = vmatprep.subr.mxu0 0.0
    %2152 = vmatpush1.xpose.msra.mxu0 %v2147
    %2153 = vmatprep.subr.mxu0 0.0
    %2154 = vmatpush1.xpose.msra.mxu0 %v2149
    %2155 = vmatprep.subr.mxu0 0.0
    %2156 = vmatpush1.xpose.msra.mxu0 0.0
    %2157 = vmatprep.subr.mxu0 0.0
    %2158 = vmatpush1.xpose.msra.mxu0 0.0
    %2159 = vmatprep.subr.mxu0 0.0
    %2160 = vmatpush1.xpose.msra.mxu0 0.0
    %2161 = vmatprep.subr.mxu0 0.0
    %2162 = vmatpush1.xpose.msra.mxu0 0.0
    %2163 = vmatprep.subr.mxu0 0.0
    %2164 = vmatpush1.xpose.msra.mxu0 0.0
    %2165 = vmatprep.subr.mxu0 0.0
    %2166 = vmatpush1.xpose.msra.mxu0 0.0
    %2167 = vmatprep.subr.mxu0 0.0
    %2168 = vmatpush1.xpose.msra.mxu0 0.0
    %2169 = vmatprep.subr.mxu0 0.0
    %2170 = vmatpush1.xpose.msra.mxu0 0.0
    %2171 = vmatprep.subr.mxu0 0.0
    %2172 = vmatpush1.xpose.msra.mxu0 0.0
    %2173 = vmatprep.subr.mxu0 0.0
    %2174 = vmatpush1.xpose.msra.mxu0 0.0
    %2175 = vmatprep.subr.mxu0 0.0
    %2176 = vmatpush1.xpose.msra.mxu0 0.0
    %2177 = vmatprep.subr.mxu0 0.0
    %2178 = vmatpush1.xpose.msra.mxu0 0.0
    %2179 = vmatprep.subr.mxu0 0.0
    %2180 = vmatpush1.xpose.msra.mxu0 0.0
    %2181 = vmatprep.subr.mxu0 0.0
    %2182 = vmatpush1.xpose.msra.mxu0 0.0
    %2183 = vmatprep.subr.mxu0 0.0
    %2184 = vmatpush1.xpose.msra.mxu0 0.0
    %2185 = vmatprep.subr.mxu0 0.0
    %2186 = vmatpush1.xpose.msra.mxu0 0.0
    %2187 = vmatprep.subr.mxu0 0.0
    %2188 = vmatpush1.xpose.msra.mxu0 0.0
    %2189 = vmatprep.subr.mxu0 0.0
    %2190 = vmatpush1.xpose.msra.mxu0 0.0
    %2191 = vmatprep.subr.mxu0 0.0
    %2192 = vmatpush1.xpose.msra.mxu0 0.0
    %2193 = vmatprep.subr.mxu0 0.0
    %2194 = vmatpush1.xpose.msra.mxu0 0.0
    %2195 = vmatprep.subr.mxu0 0.0
    %2196 = vmatpush1.xpose.msra.mxu0 0.0
    %2197 = vmatprep.subr.mxu0 0.0
    %2198 = vmatpush1.xpose.msra.mxu0 0.0
    %2199 = vmatprep.subr.mxu0 0.0
    %2200 = vmatpush1.xpose.msra.mxu0 0.0
    %2201 = vmatprep.subr.mxu0 0.0
    %2202 = vmatpush1.xpose.msra.mxu0 0.0
    %2203 = vmatprep.subr.mxu0 0.0
    %2204 = vmatpush1.xpose.msra.mxu0 0.0
    %2205 = vmatprep.subr.mxu0 0.0
    %2206 = vmatpush1.xpose.msra.mxu0 0.0
    %2207 = vmatprep.subr.mxu0 0.0
    %2208 = vmatpush1.xpose.msra.mxu0 0.0
    %2209 = vmatprep.subr.mxu0 0.0
    %2210 = vmatpush1.xpose.msra.mxu0 0.0
    %2211 = vmatprep.subr.mxu0 0.0
    %2212 = vmatpush1.xpose.msra.mxu0 0.0
    %2213 = vmatprep.subr.mxu0 0.0
    %2214 = vmatpush1.xpose.msra.mxu0 0.0
    %2215 = vmatprep.mubr.f32.mxu0 0.0
    %2216 = vmatmul.mubr.f32.gmra.mrb[0].mxu0 %v2143
    %v2217 = vpop.f32.mrb[0].mxu0
    %v2218 = vadd.f32 0.0, %v2217
    %v2219 = vpop.f32.mrb[0].mxu0
    %2220 = vmatprep.mubr.f32.mxu0 0.0
    %2221 = vmatmul.mubr.f32.gmra.mrb[0].mxu0 %v2145
    %v2222 = vpop.f32.mrb[0].mxu0
    %v2223 = vadd.f32 0.0, %v2222
    %v2224 = vpop.f32.mrb[0].mxu0
    %2225 = vdwg.mxu0
    %v2226 = vmul.f32 %v2218, 0.25
    %v2227 = vmul.f32 %v2223, 0.25
    %v2228 = vsel %vm913, -1e+09, %v2226
    %v2229 = vsel %vm913, -1e+09, %v2227
    %v2230 = vsel %vm916, %v2228, -inf
    %2231 = vmax.xlane.f32.xlu0 %v2230
    %v2232 = vpop.xlane.xlu0 %2231
    %v2233 = vsel %vm920, %v2229, -inf
    %2234 = vmax.xlane.f32.xlu0 %v2233
    %v2235 = vpop.xlane.xlu0 %2234
    %v2236 = vsub.f32 %v2228, %v2232
    %v2237 = vsub.f32 %v2229, %v2235
    %v2238 = vmul.f32 %v2236, 1.442695
    %v2239 = vpow.pop %v2238
    %v2240 = vmul.f32 %v2237, 1.442695
    %v2241 = vpow.pop %v2240
    %v2242 = vsel %vm916, %v2239, 0.0
    %2243 = vadd.xlane.f32.xlu0 %v2242
    %v2244 = vpop.xlane.xlu0 %2243
    %v2245 = vsel %vm920, %v2241, 0.0
    %2246 = vadd.xlane.f32.xlu0 %v2245
    %v2247 = vpop.xlane.xlu0 %2246
    %v2248 = vrcp.pop %v2244
    %v2249 = vrcp.pop %v2247
    %v2250 = vmul.f32 %v2239, %v2248
    %v2251 = vmul.f32 %v2241, %v2249
    %2252 = vrot.lane.b32.xlu0 %v1828, 48
    %v2253 = vpop.permute.xlu0 %2252
    %2254 = vrot.lane.b32.xlu0 %v1833, 48
    %v2255 = vpop.permute.xlu0 %2254
    %v2258 = vsel %vm916, %v2250, 0
    %v2261 = vsel %vm916, %v2251, 0
    %v2263 = vsel %vm951, %v2255, 0
    %2265 = vmatprep.subr.mxu0 0.0
    %2266 = vmatpush1.msra.mxu0 %v2253
    %2267 = vmatprep.subr.mxu0 0.0
    %2268 = vmatpush1.msra.mxu0 %v2263
    %2269 = vmatprep.subr.mxu0 0.0
    %2270 = vmatpush1.msra.mxu0 0.0
    %2271 = vmatprep.subr.mxu0 0.0
    %2272 = vmatpush1.msra.mxu0 0.0
    %2273 = vmatprep.subr.mxu0 0.0
    %2274 = vmatpush1.msra.mxu0 0.0
    %2275 = vmatprep.subr.mxu0 0.0
    %2276 = vmatpush1.msra.mxu0 0.0
    %2277 = vmatprep.subr.mxu0 0.0
    %2278 = vmatpush1.msra.mxu0 0.0
    %2279 = vmatprep.subr.mxu0 0.0
    %2280 = vmatpush1.msra.mxu0 0.0
    %2281 = vmatprep.subr.mxu0 0.0
    %2282 = vmatpush1.msra.mxu0 0.0
    %2283 = vmatprep.subr.mxu0 0.0
    %2284 = vmatpush1.msra.mxu0 0.0
    %2285 = vmatprep.subr.mxu0 0.0
    %2286 = vmatpush1.msra.mxu0 0.0
    %2287 = vmatprep.subr.mxu0 0.0
    %2288 = vmatpush1.msra.mxu0 0.0
    %2289 = vmatprep.subr.mxu0 0.0
    %2290 = vmatpush1.msra.mxu0 0.0
    %2291 = vmatprep.subr.mxu0 0.0
    %2292 = vmatpush1.msra.mxu0 0.0
    %2293 = vmatprep.subr.mxu0 0.0
    %2294 = vmatpush1.msra.mxu0 0.0
    %2295 = vmatprep.subr.mxu0 0.0
    %2296 = vmatpush1.msra.mxu0 0.0
    %2297 = vmatprep.subr.mxu0 0.0
    %2298 = vmatpush1.msra.mxu0 0.0
    %2299 = vmatprep.subr.mxu0 0.0
    %2300 = vmatpush1.msra.mxu0 0.0
    %2301 = vmatprep.subr.mxu0 0.0
    %2302 = vmatpush1.msra.mxu0 0.0
    %2303 = vmatprep.subr.mxu0 0.0
    %2304 = vmatpush1.msra.mxu0 0.0
    %2305 = vmatprep.subr.mxu0 0.0
    %2306 = vmatpush1.msra.mxu0 0.0
    %2307 = vmatprep.subr.mxu0 0.0
    %2308 = vmatpush1.msra.mxu0 0.0
    %2309 = vmatprep.subr.mxu0 0.0
    %2310 = vmatpush1.msra.mxu0 0.0
    %2311 = vmatprep.subr.mxu0 0.0
    %2312 = vmatpush1.msra.mxu0 0.0
    %2313 = vmatprep.subr.mxu0 0.0
    %2314 = vmatpush1.msra.mxu0 0.0
    %2315 = vmatprep.subr.mxu0 0.0
    %2316 = vmatpush1.msra.mxu0 0.0
    %2317 = vmatprep.subr.mxu0 0.0
    %2318 = vmatpush1.msra.mxu0 0.0
    %2319 = vmatprep.subr.mxu0 0.0
    %2320 = vmatpush1.msra.mxu0 0.0
    %2321 = vmatprep.subr.mxu0 0.0
    %2322 = vmatpush1.msra.mxu0 0.0
    %2323 = vmatprep.subr.mxu0 0.0
    %2324 = vmatpush1.msra.mxu0 0.0
    %2325 = vmatprep.subr.mxu0 0.0
    %2326 = vmatpush1.msra.mxu0 0.0
    %2327 = vmatprep.subr.mxu0 0.0
    %2328 = vmatpush1.msra.mxu0 0.0
    %2329 = vmatprep.mubr.f32.mxu0 0.0
    %2330 = vmatmul.mubr.f32.gmra.mrb[0].mxu0 %v2258
    %v2331 = vpop.f32.mrb[0].mxu0
    %v2332 = vadd.f32 0.0, %v2331
    %v2333 = vpop.f32.mrb[0].mxu0
    %2334 = vmatprep.mubr.f32.mxu0 0.0
    %2335 = vmatmul.mubr.f32.gmra.mrb[0].mxu0 %v2261
    %v2336 = vpop.f32.mrb[0].mxu0
    %v2337 = vadd.f32 0.0, %v2336
    %v2338 = vpop.f32.mrb[0].mxu0
    %2339 = vdwg.mxu0
    %s2340 = scalar_lea.vmem %s10, 48
    %v2341 = vld [vmem:[%s2340] sm:$0xff]
    %v2342 = vld [vmem:[%s2340 + $0x8] sm:$0xff]
    %v2344 = vsel %vm345, %v2332, 0
    %v2347 = vsel %vm345, %v2337, 0
    %2349 = vmatprep.subr.mxu0 0.0
    %2350 = vmatpush1.msra.mxu0 %v2341
    %2351 = vmatprep.subr.mxu0 0.0
    %2352 = vmatpush1.msra.mxu0 %v2342
    %2353 = vmatprep.subr.mxu0 0.0
    %2354 = vmatpush1.msra.mxu0 0.0
    %2355 = vmatprep.subr.mxu0 0.0
    %2356 = vmatpush1.msra.mxu0 0.0
    %2357 = vmatprep.subr.mxu0 0.0
    %2358 = vmatpush1.msra.mxu0 0.0
    %2359 = vmatprep.subr.mxu0 0.0
    %2360 = vmatpush1.msra.mxu0 0.0
    %2361 = vmatprep.subr.mxu0 0.0
    %2362 = vmatpush1.msra.mxu0 0.0
    %2363 = vmatprep.subr.mxu0 0.0
    %2364 = vmatpush1.msra.mxu0 0.0
    %2365 = vmatprep.subr.mxu0 0.0
    %2366 = vmatpush1.msra.mxu0 0.0
    %2367 = vmatprep.subr.mxu0 0.0
    %2368 = vmatpush1.msra.mxu0 0.0
    %2369 = vmatprep.subr.mxu0 0.0
    %2370 = vmatpush1.msra.mxu0 0.0
    %2371 = vmatprep.subr.mxu0 0.0
    %2372 = vmatpush1.msra.mxu0 0.0
    %2373 = vmatprep.subr.mxu0 0.0
    %2374 = vmatpush1.msra.mxu0 0.0
    %2375 = vmatprep.subr.mxu0 0.0
    %2376 = vmatpush1.msra.mxu0 0.0
    %2377 = vmatprep.subr.mxu0 0.0
    %2378 = vmatpush1.msra.mxu0 0.0
    %2379 = vmatprep.subr.mxu0 0.0
    %2380 = vmatpush1.msra.mxu0 0.0
    %2381 = vmatprep.subr.mxu0 0.0
    %2382 = vmatpush1.msra.mxu0 0.0
    %2383 = vmatprep.subr.mxu0 0.0
    %2384 = vmatpush1.msra.mxu0 0.0
    %2385 = vmatprep.subr.mxu0 0.0
    %2386 = vmatpush1.msra.mxu0 0.0
    %2387 = vmatprep.subr.mxu0 0.0
    %2388 = vmatpush1.msra.mxu0 0.0
    %2389 = vmatprep.subr.mxu0 0.0
    %2390 = vmatpush1.msra.mxu0 0.0
    %2391 = vmatprep.subr.mxu0 0.0
    %2392 = vmatpush1.msra.mxu0 0.0
    %2393 = vmatprep.subr.mxu0 0.0
    %2394 = vmatpush1.msra.mxu0 0.0
    %2395 = vmatprep.subr.mxu0 0.0
    %2396 = vmatpush1.msra.mxu0 0.0
    %2397 = vmatprep.subr.mxu0 0.0
    %2398 = vmatpush1.msra.mxu0 0.0
    %2399 = vmatprep.subr.mxu0 0.0
    %2400 = vmatpush1.msra.mxu0 0.0
    %2401 = vmatprep.subr.mxu0 0.0
    %2402 = vmatpush1.msra.mxu0 0.0
    %2403 = vmatprep.subr.mxu0 0.0
    %2404 = vmatpush1.msra.mxu0 0.0
    %2405 = vmatprep.subr.mxu0 0.0
    %2406 = vmatpush1.msra.mxu0 0.0
    %2407 = vmatprep.subr.mxu0 0.0
    %2408 = vmatpush1.msra.mxu0 0.0
    %2409 = vmatprep.subr.mxu0 0.0
    %2410 = vmatpush1.msra.mxu0 0.0
    %2411 = vmatprep.subr.mxu0 0.0
    %2412 = vmatpush1.msra.mxu0 0.0
    %2413 = vmatprep.mubr.f32.mxu0 0.0
    %2414 = vmatmul.mubr.f32.gmra.mrb[0].mxu0 %v2344
    %v2415 = vpop.f32.mrb[0].mxu0
    %v2416 = vadd.f32 0.0, %v2415
    %v2417 = vpop.f32.mrb[0].mxu0
    %2418 = vmatprep.mubr.f32.mxu0 0.0
    %2419 = vmatmul.mubr.f32.gmra.mrb[0].mxu0 %v2347
    %v2420 = vpop.f32.mrb[0].mxu0
    %v2421 = vadd.f32 0.0, %v2420
    %v2422 = vpop.f32.mrb[0].mxu0
    %2423 = vdwg.mxu0
    %v2424 = vadd.f32 %v2133, %v2416
    %v2425 = vadd.f32 %v2134, %v2421
    %v2426 = vsel %vm103, %v2424, 0.0
    %2427 = vadd.xlane.f32.xlu0 %v2426
    %v2428 = vpop.xlane.xlu0 %2427
    %v2429 = vsel %vm1408, %v2425, 0.0
    %2430 = vadd.xlane.f32.xlu0 %v2429
    %v2431 = vpop.xlane.xlu0 %2430
    %v2432 = vmul.f32 %v2428, %v1412
    %v2433 = vmul.f32 %v2431, %v1412
    %v2434 = vsub.f32 %v2424, %v2432
    %v2435 = vsub.f32 %v2425, %v2433
    %v2436 = vmul.f32 %v2434, %v2434
    %v2437 = vmul.f32 %v2435, %v2435
    %v2438 = vsel %vm103, %v2436, 0.0
    %2439 = vadd.xlane.f32.xlu0 %v2438
    %v2440 = vpop.xlane.xlu0 %2439
    %v2441 = vsel %vm1408, %v2437, 0.0
    %2442 = vadd.xlane.f32.xlu0 %v2441
    %v2443 = vpop.xlane.xlu0 %2442
    %v2444 = vmul.f32 %v2440, %v1412
    %v2445 = vmul.f32 %v2443, %v1412
    %v2446 = vadd.f32 %v2444, 1e-05
    %v2447 = vadd.f32 %v2445, 1e-05
    %v2448 = vrsqrt.pop %v2446
    %v2449 = vrsqrt.pop %v2447
    %v2450 = vmul.f32 %v2434, %v2448
    %v2451 = vmul.f32 %v2435, %v2449
    %s2452 = scalar_lea.vmem %s12, 1
    %v2453 = vld [vmem:[%s2452] sm:$0x1]
    %v2455 = vlaneseq
    %v2456 = vshrl.u32 %v2455, 7
    %v2457 = vsub.s32 0, %v2456
    %v2458 = vrot.slane %v2453, %v2457
    %v2460 = vmul.f32 %v2450, %v2458
    %v2461 = vmul.f32 %v2451, %v2458
    %s2462 = scalar_lea.vmem %s13, 1
    %v2463 = vld [vmem:[%s2462] sm:$0x1]
    %v2465 = vlaneseq
    %v2466 = vshrl.u32 %v2465, 7
    %v2467 = vsub.s32 0, %v2466
    %v2468 = vrot.slane %v2463, %v2467
    %v2470 = vadd.f32 %v2460, %v2468
    %v2471 = vadd.f32 %v2461, %v2468
    %s2472 = scalar_lea.vmem %s14, 16
    %v2473 = vld [vmem:[%s2472] sm:$0xff]
    %v2474 = vld [vmem:[%s2472 + $0x8] sm:$0x3]
    %s2475 = scalar_lea.vmem %s15, 16
    %v2476 = vld [vmem:[%s2475] sm:$0xff]
    %v2477 = vld [vmem:[%s2475 + $0x8] sm:$0x3]
    %2479 = vset.pattern.permute.xlu0 0
    %2480 = vperm.xlu0 %2479, %v2476
    %v2481 = vpop.permute.xlu0 %2480
    %2484 = vset.pattern.permute.xlu0 0
    %2485 = vperm.xlu0 %2484, %v2477
    %v2486 = vpop.permute.xlu0 %2485
    %v2489 = vsel %vm916, %v2473, 0
    %v2492 = vsel %vm916, %v2474, 0
    %v2495 = vsel %vm951, %v2471, 0
    %2497 = vmatprep.subr.mxu0 0.0
    %2498 = vmatpush1.msra.mxu0 %v2470
    %2499 = vmatprep.subr.mxu0 0.0
    %2500 = vmatpush1.msra.mxu0 %v2495
    %2501 = vmatprep.subr.mxu0 0.0
    %2502 = vmatpush1.msra.mxu0 0.0
    %2503 = vmatprep.subr.mxu0 0.0
    %2504 = vmatpush1.msra.mxu0 0.0
    %2505 = vmatprep.subr.mxu0 0.0
    %2506 = vmatpush1.msra.mxu0 0.0
    %2507 = vmatprep.subr.mxu0 0.0
    %2508 = vmatpush1.msra.mxu0 0.0
    %2509 = vmatprep.subr.mxu0 0.0
    %2510 = vmatpush1.msra.mxu0 0.0
    %2511 = vmatprep.subr.mxu0 0.0
    %2512 = vmatpush1.msra.mxu0 0.0
    %2513 = vmatprep.subr.mxu0 0.0
    %2514 = vmatpush1.msra.mxu0 0.0
    %2515 = vmatprep.subr.mxu0 0.0
    %2516 = vmatpush1.msra.mxu0 0.0
    %2517 = vmatprep.subr.mxu0 0.0
    %2518 = vmatpush1.msra.mxu0 0.0
    %2519 = vmatprep.subr.mxu0 0.0
    %2520 = vmatpush1.msra.mxu0 0.0
    %2521 = vmatprep.subr.mxu0 0.0
    %2522 = vmatpush1.msra.mxu0 0.0
    %2523 = vmatprep.subr.mxu0 0.0
    %2524 = vmatpush1.msra.mxu0 0.0
    %2525 = vmatprep.subr.mxu0 0.0
    %2526 = vmatpush1.msra.mxu0 0.0
    %2527 = vmatprep.subr.mxu0 0.0
    %2528 = vmatpush1.msra.mxu0 0.0
    %2529 = vmatprep.subr.mxu0 0.0
    %2530 = vmatpush1.msra.mxu0 0.0
    %2531 = vmatprep.subr.mxu0 0.0
    %2532 = vmatpush1.msra.mxu0 0.0
    %2533 = vmatprep.subr.mxu0 0.0
    %2534 = vmatpush1.msra.mxu0 0.0
    %2535 = vmatprep.subr.mxu0 0.0
    %2536 = vmatpush1.msra.mxu0 0.0
    %2537 = vmatprep.subr.mxu0 0.0
    %2538 = vmatpush1.msra.mxu0 0.0
    %2539 = vmatprep.subr.mxu0 0.0
    %2540 = vmatpush1.msra.mxu0 0.0
    %2541 = vmatprep.subr.mxu0 0.0
    %2542 = vmatpush1.msra.mxu0 0.0
    %2543 = vmatprep.subr.mxu0 0.0
    %2544 = vmatpush1.msra.mxu0 0.0
    %2545 = vmatprep.subr.mxu0 0.0
    %2546 = vmatpush1.msra.mxu0 0.0
    %2547 = vmatprep.subr.mxu0 0.0
    %2548 = vmatpush1.msra.mxu0 0.0
    %2549 = vmatprep.subr.mxu0 0.0
    %2550 = vmatpush1.msra.mxu0 0.0
    %2551 = vmatprep.subr.mxu0 0.0
    %2552 = vmatpush1.msra.mxu0 0.0
    %2553 = vmatprep.subr.mxu0 0.0
    %2554 = vmatpush1.msra.mxu0 0.0
    %2555 = vmatprep.subr.mxu0 0.0
    %2556 = vmatpush1.msra.mxu0 0.0
    %2557 = vmatprep.subr.mxu0 0.0
    %2558 = vmatpush1.msra.mxu0 0.0
    %2559 = vmatprep.subr.mxu0 0.0
    %2560 = vmatpush1.msra.mxu0 0.0
    %2561 = vmatprep.mubr.f32.mxu0 0.0
    %2562 = vmatmul.mubr.f32.gmra.mrb[0].mxu0 %v2489
    %v2563 = vpop.f32.mrb[0].mxu0
    %v2564 = vadd.f32 %v2481, %v2563
    %v2565 = vpop.f32.mrb[0].mxu0
    %2566 = vmatprep.mubr.f32.mxu0 0.0
    %2567 = vmatmul.mubr.f32.gmra.mrb[0].mxu0 %v2492
    %v2568 = vpop.f32.mrb[0].mxu0
    %v2569 = vadd.f32 %v2486, %v2568
    %v2570 = vpop.f32.mrb[0].mxu0
    %2571 = vdwg.mxu0
    %v2572 = vmax.f32 %v2564, 0.0
    %v2573 = vmax.f32 %v2569, 0.0
    %s2574 = scalar_lea.vmem %s16, 32
    %v2575 = vld [vmem:[%s2574] sm:$0xff]
    %v2576 = vld [vmem:[%s2574 + $0x8] sm:$0xff]
    %v2577 = vld [vmem:[%s2574 + $0x10] sm:$0xff]
    %v2578 = vld [vmem:[%s2574 + $0x18] sm:$0xff]
    %s2579 = scalar_lea.vmem %s17, 1
    %v2580 = vld [vmem:[%s2579] sm:$0x1]
    %v2582 = vlaneseq
    %v2583 = vshrl.u32 %v2582, 7
    %v2584 = vsub.s32 0, %v2583
    %v2585 = vrot.slane %v2580, %v2584
    %v2588 = vsel %vm103, %v2572, 0
    %v2591 = vsel %vm103, %v2573, 0
    %2593 = vmatprep.subr.mxu0 0.0
    %2594 = vmatpush1.msra.mxu0 %v2575
    %2595 = vmatprep.subr.mxu0 0.0
    %2596 = vmatpush1.msra.mxu0 %v2576
    %2597 = vmatprep.subr.mxu0 0.0
    %2598 = vmatpush1.msra.mxu0 %v2577
    %2599 = vmatprep.subr.mxu0 0.0
    %2600 = vmatpush1.msra.mxu0 %v2578
    %2601 = vmatprep.subr.mxu0 0.0
    %2602 = vmatpush1.msra.mxu0 0.0
    %2603 = vmatprep.subr.mxu0 0.0
    %2604 = vmatpush1.msra.mxu0 0.0
    %2605 = vmatprep.subr.mxu0 0.0
    %2606 = vmatpush1.msra.mxu0 0.0
    %2607 = vmatprep.subr.mxu0 0.0
    %2608 = vmatpush1.msra.mxu0 0.0
    %2609 = vmatprep.subr.mxu0 0.0
    %2610 = vmatpush1.msra.mxu0 0.0
    %2611 = vmatprep.subr.mxu0 0.0
    %2612 = vmatpush1.msra.mxu0 0.0
    %2613 = vmatprep.subr.mxu0 0.0
    %2614 = vmatpush1.msra.mxu0 0.0
    %2615 = vmatprep.subr.mxu0 0.0
    %2616 = vmatpush1.msra.mxu0 0.0
    %2617 = vmatprep.subr.mxu0 0.0
    %2618 = vmatpush1.msra.mxu0 0.0
    %2619 = vmatprep.subr.mxu0 0.0
    %2620 = vmatpush1.msra.mxu0 0.0
    %2621 = vmatprep.subr.mxu0 0.0
    %2622 = vmatpush1.msra.mxu0 0.0
    %2623 = vmatprep.subr.mxu0 0.0
    %2624 = vmatpush1.msra.mxu0 0.0
    %2625 = vmatprep.subr.mxu0 0.0
    %2626 = vmatpush1.msra.mxu0 0.0
    %2627 = vmatprep.subr.mxu0 0.0
    %2628 = vmatpush1.msra.mxu0 0.0
    %2629 = vmatprep.subr.mxu0 0.0
    %2630 = vmatpush1.msra.mxu0 0.0
    %2631 = vmatprep.subr.mxu0 0.0
    %2632 = vmatpush1.msra.mxu0 0.0
    %2633 = vmatprep.subr.mxu0 0.0
    %2634 = vmatpush1.msra.mxu0 0.0
    %2635 = vmatprep.subr.mxu0 0.0
    %2636 = vmatpush1.msra.mxu0 0.0
    %2637 = vmatprep.subr.mxu0 0.0
    %2638 = vmatpush1.msra.mxu0 0.0
    %2639 = vmatprep.subr.mxu0 0.0
    %2640 = vmatpush1.msra.mxu0 0.0
    %2641 = vmatprep.subr.mxu0 0.0
    %2642 = vmatpush1.msra.mxu0 0.0
    %2643 = vmatprep.subr.mxu0 0.0
    %2644 = vmatpush1.msra.mxu0 0.0
    %2645 = vmatprep.subr.mxu0 0.0
    %2646 = vmatpush1.msra.mxu0 0.0
    %2647 = vmatprep.subr.mxu0 0.0
    %2648 = vmatpush1.msra.mxu0 0.0
    %2649 = vmatprep.subr.mxu0 0.0
    %2650 = vmatpush1.msra.mxu0 0.0
    %2651 = vmatprep.subr.mxu0 0.0
    %2652 = vmatpush1.msra.mxu0 0.0
    %2653 = vmatprep.subr.mxu0 0.0
    %2654 = vmatpush1.msra.mxu0 0.0
    %2655 = vmatprep.subr.mxu0 0.0
    %2656 = vmatpush1.msra.mxu0 0.0
    %2657 = vmatprep.mubr.f32.mxu0 0.0
    %2658 = vmatmul.mubr.f32.gmra.mrb[0].mxu0 %v2588
    %v2659 = vpop.f32.mrb[0].mxu0
    %v2660 = vadd.f32 %v2585, %v2659
    %v2661 = vpop.f32.mrb[0].mxu0
    %2662 = vmatprep.mubr.f32.mxu0 0.0
    %2663 = vmatmul.mubr.f32.gmra.mrb[0].mxu0 %v2591
    %v2664 = vpop.f32.mrb[0].mxu0
    %v2665 = vadd.f32 %v2585, %v2664
    %v2666 = vpop.f32.mrb[0].mxu0
    %2667 = vdwg.mxu0
    %v2668 = vmax.f32 %v2660, 0.0
    %v2669 = vmax.f32 %v2665, 0.0
    %s2670 = scalar_lea.vmem %s18, 64
    %v2671 = vld [vmem:[%s2670] sm:$0xff]
    %v2672 = vld [vmem:[%s2670 + $0x8] sm:$0xff]
    %v2673 = vld [vmem:[%s2670 + $0x10] sm:$0xff]
    %v2674 = vld [vmem:[%s2670 + $0x18] sm:$0xff]
    %v2675 = vld [vmem:[%s2670 + $0x20] sm:$0xff]
    %v2676 = vld [vmem:[%s2670 + $0x28] sm:$0xff]
    %v2677 = vld [vmem:[%s2670 + $0x30] sm:$0xff]
    %v2678 = vld [vmem:[%s2670 + $0x38] sm:$0xff]
    %s2679 = scalar_lea.vmem %s19, 1
    %v2680 = vld [vmem:[%s2679] sm:$0x1]
    %v2682 = vlaneseq
    %v2683 = vshrl.u32 %v2682, 7
    %v2684 = vsub.s32 0, %v2683
    %v2685 = vrot.slane %v2680, %v2684
    %v2688 = vsel %vm1660, %v2668, 0
    %v2691 = vsel %vm1660, %v2669, 0
    %2693 = vmatprep.subr.mxu0 0.0
    %2694 = vmatpush1.msra.mxu0 %v2671
    %2695 = vmatprep.subr.mxu0 0.0
    %2696 = vmatpush1.msra.mxu0 %v2672
    %2697 = vmatprep.subr.mxu0 0.0
    %2698 = vmatpush1.msra.mxu0 %v2673
    %2699 = vmatprep.subr.mxu0 0.0
    %2700 = vmatpush1.msra.mxu0 %v2674
    %2701 = vmatprep.subr.mxu0 0.0
    %2702 = vmatpush1.msra.mxu0 %v2675
    %2703 = vmatprep.subr.mxu0 0.0
    %2704 = vmatpush1.msra.mxu0 %v2676
    %2705 = vmatprep.subr.mxu0 0.0
    %2706 = vmatpush1.msra.mxu0 %v2677
    %2707 = vmatprep.subr.mxu0 0.0
    %2708 = vmatpush1.msra.mxu0 %v2678
    %2709 = vmatprep.subr.mxu0 0.0
    %2710 = vmatpush1.msra.mxu0 0.0
    %2711 = vmatprep.subr.mxu0 0.0
    %2712 = vmatpush1.msra.mxu0 0.0
    %2713 = vmatprep.subr.mxu0 0.0
    %2714 = vmatpush1.msra.mxu0 0.0
    %2715 = vmatprep.subr.mxu0 0.0
    %2716 = vmatpush1.msra.mxu0 0.0
    %2717 = vmatprep.subr.mxu0 0.0
    %2718 = vmatpush1.msra.mxu0 0.0
    %2719 = vmatprep.subr.mxu0 0.0
    %2720 = vmatpush1.msra.mxu0 0.0
    %2721 = vmatprep.subr.mxu0 0.0
    %2722 = vmatpush1.msra.mxu0 0.0
    %2723 = vmatprep.subr.mxu0 0.0
    %2724 = vmatpush1.msra.mxu0 0.0
    %2725 = vmatprep.subr.mxu0 0.0
    %2726 = vmatpush1.msra.mxu0 0.0
    %2727 = vmatprep.subr.mxu0 0.0
    %2728 = vmatpush1.msra.mxu0 0.0
    %2729 = vmatprep.subr.mxu0 0.0
    %2730 = vmatpush1.msra.mxu0 0.0
    %2731 = vmatprep.subr.mxu0 0.0
    %2732 = vmatpush1.msra.mxu0 0.0
    %2733 = vmatprep.subr.mxu0 0.0
    %2734 = vmatpush1.msra.mxu0 0.0
    %2735 = vmatprep.subr.mxu0 0.0
    %2736 = vmatpush1.msra.mxu0 0.0
    %2737 = vmatprep.subr.mxu0 0.0
    %2738 = vmatpush1.msra.mxu0 0.0
    %2739 = vmatprep.subr.mxu0 0.0
    %2740 = vmatpush1.msra.mxu0 0.0
    %2741 = vmatprep.subr.mxu0 0.0
    %2742 = vmatpush1.msra.mxu0 0.0
    %2743 = vmatprep.subr.mxu0 0.0
    %2744 = vmatpush1.msra.mxu0 0.0
    %2745 = vmatprep.subr.mxu0 0.0
    %2746 = vmatpush1.msra.mxu0 0.0
    %2747 = vmatprep.subr.mxu0 0.0
    %2748 = vmatpush1.msra.mxu0 0.0
    %2749 = vmatprep.subr.mxu0 0.0
    %2750 = vmatpush1.msra.mxu0 0.0
    %2751 = vmatprep.subr.mxu0 0.0
    %2752 = vmatpush1.msra.mxu0 0.0
    %2753 = vmatprep.subr.mxu0 0.0
    %2754 = vmatpush1.msra.mxu0 0.0
    %2755 = vmatprep.subr.mxu0 0.0
    %2756 = vmatpush1.msra.mxu0 0.0
    %2757 = vmatprep.mubr.f32.mxu0 0.0
    %2758 = vmatmul.mubr.f32.gmra.mrb[0].mxu0 %v2688
    %v2759 = vpop.f32.mrb[0].mxu0
    %v2760 = vadd.f32 %v2685, %v2759
    %v2761 = vpop.f32.mrb[0].mxu0
    %2762 = vmatprep.mubr.f32.mxu0 0.0
    %2763 = vmatmul.mubr.f32.gmra.mrb[0].mxu0 %v2691
    %v2764 = vpop.f32.mrb[0].mxu0
    %v2765 = vadd.f32 %v2685, %v2764
    %v2766 = vpop.f32.mrb[0].mxu0
    %2767 = vdwg.mxu0
    %v2769 = vlaneseq
    %v2770 = vshrl.u32 %v2769, 7
    %v2771 = vsub.s32 0, %v2770
    %v2772 = vrot.slane %v635, %v2771
    %v2775 = vsel %vm103, %v2760, 0
    %v2778 = vsel %vm103, %v2765, 0
    %2780 = vmatprep.subr.mxu0 0.0
    %2781 = vmatpush1.msra.mxu0 %v631
    %2782 = vmatprep.subr.mxu0 0.0
    %2783 = vmatpush1.msra.mxu0 %v632
    %2784 = vmatprep.subr.mxu0 0.0
    %2785 = vmatpush1.msra.mxu0 %v633
    %2786 = vmatprep.subr.mxu0 0.0
    %2787 = vmatpush1.msra.mxu0 %v634
    %2788 = vmatprep.subr.mxu0 0.0
    %2789 = vmatpush1.msra.mxu0 0.0
    %2790 = vmatprep.subr.mxu0 0.0
    %2791 = vmatpush1.msra.mxu0 0.0
    %2792 = vmatprep.subr.mxu0 0.0
    %2793 = vmatpush1.msra.mxu0 0.0
    %2794 = vmatprep.subr.mxu0 0.0
    %2795 = vmatpush1.msra.mxu0 0.0
    %2796 = vmatprep.subr.mxu0 0.0
    %2797 = vmatpush1.msra.mxu0 0.0
    %2798 = vmatprep.subr.mxu0 0.0
    %2799 = vmatpush1.msra.mxu0 0.0
    %2800 = vmatprep.subr.mxu0 0.0
    %2801 = vmatpush1.msra.mxu0 0.0
    %2802 = vmatprep.subr.mxu0 0.0
    %2803 = vmatpush1.msra.mxu0 0.0
    %2804 = vmatprep.subr.mxu0 0.0
    %2805 = vmatpush1.msra.mxu0 0.0
    %2806 = vmatprep.subr.mxu0 0.0
    %2807 = vmatpush1.msra.mxu0 0.0
    %2808 = vmatprep.subr.mxu0 0.0
    %2809 = vmatpush1.msra.mxu0 0.0
    %2810 = vmatprep.subr.mxu0 0.0
    %2811 = vmatpush1.msra.mxu0 0.0
    %2812 = vmatprep.subr.mxu0 0.0
    %2813 = vmatpush1.msra.mxu0 0.0
    %2814 = vmatprep.subr.mxu0 0.0
    %2815 = vmatpush1.msra.mxu0 0.0
    %2816 = vmatprep.subr.mxu0 0.0
    %2817 = vmatpush1.msra.mxu0 0.0
    %2818 = vmatprep.subr.mxu0 0.0
    %2819 = vmatpush1.msra.mxu0 0.0
    %2820 = vmatprep.subr.mxu0 0.0
    %2821 = vmatpush1.msra.mxu0 0.0
    %2822 = vmatprep.subr.mxu0 0.0
    %2823 = vmatpush1.msra.mxu0 0.0
    %2824 = vmatprep.subr.mxu0 0.0
    %2825 = vmatpush1.msra.mxu0 0.0
    %2826 = vmatprep.subr.mxu0 0.0
    %2827 = vmatpush1.msra.mxu0 0.0
    %2828 = vmatprep.subr.mxu0 0.0
    %2829 = vmatpush1.msra.mxu0 0.0
    %2830 = vmatprep.subr.mxu0 0.0
    %2831 = vmatpush1.msra.mxu0 0.0
    %2832 = vmatprep.subr.mxu0 0.0
    %2833 = vmatpush1.msra.mxu0 0.0
    %2834 = vmatprep.subr.mxu0 0.0
    %2835 = vmatpush1.msra.mxu0 0.0
    %2836 = vmatprep.subr.mxu0 0.0
    %2837 = vmatpush1.msra.mxu0 0.0
    %2838 = vmatprep.subr.mxu0 0.0
    %2839 = vmatpush1.msra.mxu0 0.0
    %2840 = vmatprep.subr.mxu0 0.0
    %2841 = vmatpush1.msra.mxu0 0.0
    %2842 = vmatprep.subr.mxu0 0.0
    %2843 = vmatpush1.msra.mxu0 0.0
    %2844 = vmatprep.mubr.f32.mxu0 0.0
    %2845 = vmatmul.mubr.f32.gmra.mrb[0].mxu0 %v2775
    %v2846 = vpop.f32.mrb[0].mxu0
    %v2847 = vadd.f32 %v2772, %v2846
    %v2848 = vpop.f32.mrb[0].mxu0
    %2849 = vmatprep.mubr.f32.mxu0 0.0
    %2850 = vmatmul.mubr.f32.gmra.mrb[0].mxu0 %v2778
    %v2851 = vpop.f32.mrb[0].mxu0
    %v2852 = vadd.f32 %v2772, %v2851
    %v2853 = vpop.f32.mrb[0].mxu0
    %2854 = vdwg.mxu0
    %v2855 = vmax.f32 %v2847, 0.0
    %v2856 = vmax.f32 %v2852, 0.0
    %v2858 = vlaneseq
    %v2859 = vshrl.u32 %v2858, 7
    %v2860 = vsub.s32 0, %v2859
    %v2861 = vrot.slane %v638, %v2860
    %v2864 = vsel %vm345, %v2855, 0
    %v2867 = vsel %vm345, %v2856, 0
    %2869 = vmatprep.subr.mxu0 0.0
    %2870 = vmatpush1.msra.mxu0 %v636
    %2871 = vmatprep.subr.mxu0 0.0
    %2872 = vmatpush1.msra.mxu0 %v637
    %2873 = vmatprep.subr.mxu0 0.0
    %2874 = vmatpush1.msra.mxu0 0.0
    %2875 = vmatprep.subr.mxu0 0.0
    %2876 = vmatpush1.msra.mxu0 0.0
    %2877 = vmatprep.subr.mxu0 0.0
    %2878 = vmatpush1.msra.mxu0 0.0
    %2879 = vmatprep.subr.mxu0 0.0
    %2880 = vmatpush1.msra.mxu0 0.0
    %2881 = vmatprep.subr.mxu0 0.0
    %2882 = vmatpush1.msra.mxu0 0.0
    %2883 = vmatprep.subr.mxu0 0.0
    %2884 = vmatpush1.msra.mxu0 0.0
    %2885 = vmatprep.subr.mxu0 0.0
    %2886 = vmatpush1.msra.mxu0 0.0
    %2887 = vmatprep.subr.mxu0 0.0
    %2888 = vmatpush1.msra.mxu0 0.0
    %2889 = vmatprep.subr.mxu0 0.0
    %2890 = vmatpush1.msra.mxu0 0.0
    %2891 = vmatprep.subr.mxu0 0.0
    %2892 = vmatpush1.msra.mxu0 0.0
    %2893 = vmatprep.subr.mxu0 0.0
    %2894 = vmatpush1.msra.mxu0 0.0
    %2895 = vmatprep.subr.mxu0 0.0
    %2896 = vmatpush1.msra.mxu0 0.0
    %2897 = vmatprep.subr.mxu0 0.0
    %2898 = vmatpush1.msra.mxu0 0.0
    %2899 = vmatprep.subr.mxu0 0.0
    %2900 = vmatpush1.msra.mxu0 0.0
    %2901 = vmatprep.subr.mxu0 0.0
    %2902 = vmatpush1.msra.mxu0 0.0
    %2903 = vmatprep.subr.mxu0 0.0
    %2904 = vmatpush1.msra.mxu0 0.0
    %2905 = vmatprep.subr.mxu0 0.0
    %2906 = vmatpush1.msra.mxu0 0.0
    %2907 = vmatprep.subr.mxu0 0.0
    %2908 = vmatpush1.msra.mxu0 0.0
    %2909 = vmatprep.subr.mxu0 0.0
    %2910 = vmatpush1.msra.mxu0 0.0
    %2911 = vmatprep.subr.mxu0 0.0
    %2912 = vmatpush1.msra.mxu0 0.0
    %2913 = vmatprep.subr.mxu0 0.0
    %2914 = vmatpush1.msra.mxu0 0.0
    %2915 = vmatprep.subr.mxu0 0.0
    %2916 = vmatpush1.msra.mxu0 0.0
    %2917 = vmatprep.subr.mxu0 0.0
    %2918 = vmatpush1.msra.mxu0 0.0
    %2919 = vmatprep.subr.mxu0 0.0
    %2920 = vmatpush1.msra.mxu0 0.0
    %2921 = vmatprep.subr.mxu0 0.0
    %2922 = vmatpush1.msra.mxu0 0.0
    %2923 = vmatprep.subr.mxu0 0.0
    %2924 = vmatpush1.msra.mxu0 0.0
    %2925 = vmatprep.subr.mxu0 0.0
    %2926 = vmatpush1.msra.mxu0 0.0
    %2927 = vmatprep.subr.mxu0 0.0
    %2928 = vmatpush1.msra.mxu0 0.0
    %2929 = vmatprep.subr.mxu0 0.0
    %2930 = vmatpush1.msra.mxu0 0.0
    %2931 = vmatprep.subr.mxu0 0.0
    %2932 = vmatpush1.msra.mxu0 0.0
    %2933 = vmatprep.mubr.f32.mxu0 0.0
    %2934 = vmatmul.mubr.f32.gmra.mrb[0].mxu0 %v2864
    %v2935 = vpop.f32.mrb[0].mxu0
    %v2936 = vadd.f32 %v2861, %v2935
    %v2937 = vpop.f32.mrb[0].mxu0
    %2938 = vmatprep.mubr.f32.mxu0 0.0
    %2939 = vmatmul.mubr.f32.gmra.mrb[0].mxu0 %v2867
    %v2940 = vpop.f32.mrb[0].mxu0
    %v2941 = vadd.f32 %v2861, %v2940
    %v2942 = vpop.f32.mrb[0].mxu0
    %2943 = vdwg.mxu0
    %vm2944 = vcmask 15360
    %v2945 = vsel %vm2944, %v2936, -inf
    %2946 = vmax.xlane.f32.xlu0 %v2945
    %v2947 = vpop.xlane.xlu0 %2946
    %vm2948 = vcmask 9216
    %v2949 = vsel %vm2948, %v2941, -inf
    %2950 = vmax.xlane.f32.xlu0 %v2949
    %v2951 = vpop.xlane.xlu0 %2950
    %v2952 = vsub.f32 %v2936, %v2947
    %v2953 = vsub.f32 %v2941, %v2951
    %v2954 = vmul.f32 %v2952, 1.442695
    %v2955 = vpow.pop %v2954
    %v2956 = vmul.f32 %v2953, 1.442695
    %v2957 = vpow.pop %v2956
    %v2958 = vsel %vm2944, %v2955, 0.0
    %2959 = vadd.xlane.f32.xlu0 %v2958
    %v2960 = vpop.xlane.xlu0 %2959
    %v2961 = vsel %vm2948, %v2957, 0.0
    %2962 = vadd.xlane.f32.xlu0 %v2961
    %v2963 = vpop.xlane.xlu0 %2962
    %v2964 = vrcp.pop %v2960
    %v2965 = vrcp.pop %v2963
    %v2966 = vmul.f32 %v2955, %v2964
    %v2967 = vmul.f32 %v2957, %v2965
    %vm2968 = vcmask 8192
    %2969 = vst.msk [vmem:[#allocation4] sm:$0x1] %vm2968, %v2936
    %vm2970 = vcmask 253952
    %2971 = vst.msk [vmem:[#allocation6] sm:$0x1] %vm2970, %v2760
    %v2972 = vsel %vm2944, %v2966, -inf
    %2973 = vmax.xlane.f32.xlu0 %v2972
    %v2974 = vpop.xlane.xlu0 %2973
    %v2975 = vsel %vm2948, %v2967, -inf
    %2976 = vmax.xlane.f32.xlu0 %v2975
    %v2977 = vpop.xlane.xlu0 %2976
    %vm2978 = vcmask 7168
    %2979 = vst.msk [vmem:[%s26] sm:$0xff] %vm2978, %v2974
    %vm2980 = vcmask 1024
    %2981 = vst.msk [vmem:[%s26 + $0x8] sm:$0x3] %vm2980, %v2977
    %2983 = vset.pattern.permute.xlu0 0
    %2984 = vperm.xlu0 %2983, %v624
    %v2985 = vpop.permute.xlu0 %2984
    %v2987 = vmul.f32 %v457, %v2985
    %2989 = vset.pattern.permute.xlu0 0
    %2990 = vperm.xlu0 %2989, %v626
    %v2991 = vpop.permute.xlu0 %2990
    %2994 = vset.pattern.permute.xlu0 0
    %2995 = vperm.xlu0 %2994, %v628
    %v2996 = vpop.permute.xlu0 %2995
    %v2998 = vmul.f32 %v462, %v2991
    %v2999 = vmul.f32 %v467, %v2996
    %v3002 = vrot.slane %v2998, 2
    %v3003 = vrot.slane %v2999, 2
    %v3004 = vsel %vm659, %v3002, %v3003
    %v3007 = vadd.f32 %v679, %v3002
    %v3008 = vadd.f32 %v2987, %v3004
    %v3009 = vrot.slane %v626, 2
    %v3010 = vrot.slane %v628, 2
    %v3011 = vsel %vm659, %v3009, %v3010
    %v3014 = vadd.f32 %v622, %v3009
    %v3015 = vadd.f32 %v624, %v3011
    %3017 = vset.pattern.permute.xlu0 0
    %3018 = vperm.xlu0 %3017, %v630
    %v3019 = vpop.permute.xlu0 %3018
    %v3021 = vmul.f32 %v472, %v3019
    %v3023 = vrot.slane %v2999, 4
    %v3024 = vrot.slane %v3021, 4
    %v3025 = vsel %vm681, %v3023, %v3024
    %v3028 = vadd.f32 %v3007, %v3023
    %v3029 = vadd.f32 %v3008, %v3025
    %v3030 = vrot.slane %v628, 4
    %v3031 = vrot.slane %v630, 4
    %v3032 = vsel %vm681, %v3030, %v3031
    %v3035 = vadd.f32 %v3014, %v3030
    %v3036 = vadd.f32 %v3015, %v3032
    %v3037 = vrcp.pop %v3035
    %v3038 = vrcp.pop %v3036
    %3040 = vset.pattern.permute.xlu0 0
    %3041 = vperm.xlu0 %3040, %v3037
    %v3042 = vpop.permute.xlu0 %3041
    %3045 = vset.pattern.permute.xlu0 0
    %3046 = vperm.xlu0 %3045, %v3038
    %v3047 = vpop.permute.xlu0 %3046
    %v3049 = vmul.f32 %v3028, %v3042
    %v3050 = vmul.f32 %v3029, %v3047
    %s3051 = scalar_lea.vmem %s2, 16
    %v3052 = vld [vmem:[%s3051] sm:$0xff]
    %v3053 = vld [vmem:[%s3051 + $0x8] sm:$0x3]
    %v3056 = vrot.slane %v3052, 2
    %v3057 = vrot.slane %v3053, 2
    %v3058 = vsel %vm659, %v3056, %v3057
    %v3061 = vadd.f32 %v3049, %v3056
    %v3062 = vadd.f32 %v3050, %v3058
    %s3063 = scalar_lea.vmem %s1, 1
    %v3064 = vld [vmem:[%s3063] sm:$0x1]
    %vm3065 = vcmp.eq.s32.totalorder %v3064, 0
    %v3066 = vld [vmem:[%s8] sm:$0xff]
    %v3067 = vld [vmem:[%s8 + $0x8] sm:$0xff]
    %v3068 = vld [vmem:[%s8 + $0x10] sm:$0xff]
    %v3069 = vld [vmem:[%s8 + $0x18] sm:$0xff]
    %v3070 = vld [vmem:[%s9] sm:$0x1]
    %v3072 = vlaneseq
    %v3073 = vshrl.u32 %v3072, 7
    %v3074 = vsub.s32 0, %v3073
    %v3075 = vrot.slane %v3070, %v3074
    %v3079 = vrot.slane %v3061, 6
    %v3080 = vrot.slane %v3062, 6
    %v3081 = vsel %vm951, %v3079, %v3080
    %v3082 = vsel %vm103, %v3081, 0
    %v3084 = vsel %vm103, %v3080, 0
    %3086 = vmatprep.subr.mxu0 0.0
    %3087 = vmatpush1.msra.mxu0 %v3066
    %3088 = vmatprep.subr.mxu0 0.0
    %3089 = vmatpush1.msra.mxu0 %v3067
    %3090 = vmatprep.subr.mxu0 0.0
    %3091 = vmatpush1.msra.mxu0 %v3068
    %3092 = vmatprep.subr.mxu0 0.0
    %3093 = vmatpush1.msra.mxu0 %v3069
    %3094 = vmatprep.subr.mxu0 0.0
    %3095 = vmatpush1.msra.mxu0 0.0
    %3096 = vmatprep.subr.mxu0 0.0
    %3097 = vmatpush1.msra.mxu0 0.0
    %3098 = vmatprep.subr.mxu0 0.0
    %3099 = vmatpush1.msra.mxu0 0.0
    %3100 = vmatprep.subr.mxu0 0.0
    %3101 = vmatpush1.msra.mxu0 0.0
    %3102 = vmatprep.subr.mxu0 0.0
    %3103 = vmatpush1.msra.mxu0 0.0
    %3104 = vmatprep.subr.mxu0 0.0
    %3105 = vmatpush1.msra.mxu0 0.0
    %3106 = vmatprep.subr.mxu0 0.0
    %3107 = vmatpush1.msra.mxu0 0.0
    %3108 = vmatprep.subr.mxu0 0.0
    %3109 = vmatpush1.msra.mxu0 0.0
    %3110 = vmatprep.subr.mxu0 0.0
    %3111 = vmatpush1.msra.mxu0 0.0
    %3112 = vmatprep.subr.mxu0 0.0
    %3113 = vmatpush1.msra.mxu0 0.0
    %3114 = vmatprep.subr.mxu0 0.0
    %3115 = vmatpush1.msra.mxu0 0.0
    %3116 = vmatprep.subr.mxu0 0.0
    %3117 = vmatpush1.msra.mxu0 0.0
    %3118 = vmatprep.subr.mxu0 0.0
    %3119 = vmatpush1.msra.mxu0 0.0
    %3120 = vmatprep.subr.mxu0 0.0
    %3121 = vmatpush1.msra.mxu0 0.0
    %3122 = vmatprep.subr.mxu0 0.0
    %3123 = vmatpush1.msra.mxu0 0.0
    %3124 = vmatprep.subr.mxu0 0.0
    %3125 = vmatpush1.msra.mxu0 0.0
    %3126 = vmatprep.subr.mxu0 0.0
    %3127 = vmatpush1.msra.mxu0 0.0
    %3128 = vmatprep.subr.mxu0 0.0
    %3129 = vmatpush1.msra.mxu0 0.0
    %3130 = vmatprep.subr.mxu0 0.0
    %3131 = vmatpush1.msra.mxu0 0.0
    %3132 = vmatprep.subr.mxu0 0.0
    %3133 = vmatpush1.msra.mxu0 0.0
    %3134 = vmatprep.subr.mxu0 0.0
    %3135 = vmatpush1.msra.mxu0 0.0
    %3136 = vmatprep.subr.mxu0 0.0
    %3137 = vmatpush1.msra.mxu0 0.0
    %3138 = vmatprep.subr.mxu0 0.0
    %3139 = vmatpush1.msra.mxu0 0.0
    %3140 = vmatprep.subr.mxu0 0.0
    %3141 = vmatpush1.msra.mxu0 0.0
    %3142 = vmatprep.subr.mxu0 0.0
    %3143 = vmatpush1.msra.mxu0 0.0
    %3144 = vmatprep.subr.mxu0 0.0
    %3145 = vmatpush1.msra.mxu0 0.0
    %3146 = vmatprep.subr.mxu0 0.0
    %3147 = vmatpush1.msra.mxu0 0.0
    %3148 = vmatprep.subr.mxu0 0.0
    %3149 = vmatpush1.msra.mxu0 0.0
    %3150 = vmatprep.mubr.f32.mxu0 0.0
    %3151 = vmatmul.mubr.f32.gmra.mrb[0].mxu0 %v3082
    %v3152 = vpop.f32.mrb[0].mxu0
    %v3153 = vadd.f32 %v3075, %v3152
    %v3154 = vpop.f32.mrb[0].mxu0
    %3155 = vmatprep.mubr.f32.mxu0 0.0
    %3156 = vmatmul.mubr.f32.gmra.mrb[0].mxu0 %v3084
    %v3157 = vpop.f32.mrb[0].mxu0
    %v3158 = vadd.f32 %v3075, %v3157
    %v3159 = vpop.f32.mrb[0].mxu0
    %3160 = vdwg.mxu0
    %v3161 = vld [vmem:[%s11] sm:$0x1]
    %v3163 = vlaneseq
    %v3164 = vshrl.u32 %v3163, 7
    %v3165 = vsub.s32 0, %v3164
    %v3166 = vrot.slane %v3161, %v3165
    %v3168 = vadd.f32 %v3166, %v3061
    %v3169 = vadd.f32 %v3166, %v3062
    %3172 = vrot.lane.b32.xlu0 %v3153, 96
    %v3173 = vpop.permute.xlu0 %3172
    %3174 = vrot.lane.b32.xlu0 %v3158, 96
    %v3175 = vpop.permute.xlu0 %3174
    %v3176 = vsel %vm345, %v3153, 0
    %v3178 = vsel %vm345, %v3158, 0
    %v3180 = vsel %vm345, %v3173, 0
    %v3182 = vsel %vm345, %v3175, 0
    %3184 = vmatprep.subr.mxu0 0.0
    %3185 = vmatpush1.xpose.msra.mxu0 %v3180
    %3186 = vmatprep.subr.mxu0 0.0
    %3187 = vmatpush1.xpose.msra.mxu0 %v3182
    %3188 = vmatprep.subr.mxu0 0.0
    %3189 = vmatpush1.xpose.msra.mxu0 0.0
    %3190 = vmatprep.subr.mxu0 0.0
    %3191 = vmatpush1.xpose.msra.mxu0 0.0
    %3192 = vmatprep.subr.mxu0 0.0
    %3193 = vmatpush1.xpose.msra.mxu0 0.0
    %3194 = vmatprep.subr.mxu0 0.0
    %3195 = vmatpush1.xpose.msra.mxu0 0.0
    %3196 = vmatprep.subr.mxu0 0.0
    %3197 = vmatpush1.xpose.msra.mxu0 0.0
    %3198 = vmatprep.subr.mxu0 0.0
    %3199 = vmatpush1.xpose.msra.mxu0 0.0
    %3200 = vmatprep.subr.mxu0 0.0
    %3201 = vmatpush1.xpose.msra.mxu0 0.0
    %3202 = vmatprep.subr.mxu0 0.0
    %3203 = vmatpush1.xpose.msra.mxu0 0.0
    %3204 = vmatprep.subr.mxu0 0.0
    %3205 = vmatpush1.xpose.msra.mxu0 0.0
    %3206 = vmatprep.subr.mxu0 0.0
    %3207 = vmatpush1.xpose.msra.mxu0 0.0
    %3208 = vmatprep.subr.mxu0 0.0
    %3209 = vmatpush1.xpose.msra.mxu0 0.0
    %3210 = vmatprep.subr.mxu0 0.0
    %3211 = vmatpush1.xpose.msra.mxu0 0.0
    %3212 = vmatprep.subr.mxu0 0.0
    %3213 = vmatpush1.xpose.msra.mxu0 0.0
    %3214 = vmatprep.subr.mxu0 0.0
    %3215 = vmatpush1.xpose.msra.mxu0 0.0
    %3216 = vmatprep.subr.mxu0 0.0
    %3217 = vmatpush1.xpose.msra.mxu0 0.0
    %3218 = vmatprep.subr.mxu0 0.0
    %3219 = vmatpush1.xpose.msra.mxu0 0.0
    %3220 = vmatprep.subr.mxu0 0.0
    %3221 = vmatpush1.xpose.msra.mxu0 0.0
    %3222 = vmatprep.subr.mxu0 0.0
    %3223 = vmatpush1.xpose.msra.mxu0 0.0
    %3224 = vmatprep.subr.mxu0 0.0
    %3225 = vmatpush1.xpose.msra.mxu0 0.0
    %3226 = vmatprep.subr.mxu0 0.0
    %3227 = vmatpush1.xpose.msra.mxu0 0.0
    %3228 = vmatprep.subr.mxu0 0.0
    %3229 = vmatpush1.xpose.msra.mxu0 0.0
    %3230 = vmatprep.subr.mxu0 0.0
    %3231 = vmatpush1.xpose.msra.mxu0 0.0
    %3232 = vmatprep.subr.mxu0 0.0
    %3233 = vmatpush1.xpose.msra.mxu0 0.0
    %3234 = vmatprep.subr.mxu0 0.0
    %3235 = vmatpush1.xpose.msra.mxu0 0.0
    %3236 = vmatprep.subr.mxu0 0.0
    %3237 = vmatpush1.xpose.msra.mxu0 0.0
    %3238 = vmatprep.subr.mxu0 0.0
    %3239 = vmatpush1.xpose.msra.mxu0 0.0
    %3240 = vmatprep.subr.mxu0 0.0
    %3241 = vmatpush1.xpose.msra.mxu0 0.0
    %3242 = vmatprep.subr.mxu0 0.0
    %3243 = vmatpush1.xpose.msra.mxu0 0.0
    %3244 = vmatprep.subr.mxu0 0.0
    %3245 = vmatpush1.xpose.msra.mxu0 0.0
    %3246 = vmatprep.subr.mxu0 0.0
    %3247 = vmatpush1.xpose.msra.mxu0 0.0
    %3248 = vmatprep.mubr.f32.mxu0 0.0
    %3249 = vmatmul.mubr.f32.gmra.mrb[0].mxu0 %v3176
    %v3250 = vpop.f32.mrb[0].mxu0
    %v3251 = vadd.f32 0.0, %v3250
    %v3252 = vpop.f32.mrb[0].mxu0
    %3253 = vmatprep.mubr.f32.mxu0 0.0
    %3254 = vmatmul.mubr.f32.gmra.mrb[0].mxu0 %v3178
    %v3255 = vpop.f32.mrb[0].mxu0
    %v3256 = vadd.f32 0.0, %v3255
    %v3257 = vpop.f32.mrb[0].mxu0
    %3258 = vdwg.mxu0
    %v3259 = vmul.f32 %v3251, 0.25
    %v3260 = vmul.f32 %v3256, 0.25
    %v3261 = vsel %vm3065, 1, 0
    %v3262 = vlaneseq
    %v3263 = vshrl.u32 %v3262, 7
    %v3264 = vsub.s32 0, %v3263
    %v3265 = vrot.slane %v3261, %v3264
    %vm3266 = vcmp.eq.s32.totalorder %v3265, 1
    %v3267 = vsel %vm3266, -1e+09, %v3259
    %v3268 = vsel %vm3266, -1e+09, %v3260
    %v3269 = vsel %vm916, %v3267, -inf
    %3270 = vmax.xlane.f32.xlu0 %v3269
    %v3271 = vpop.xlane.xlu0 %3270
    %v3272 = vsel %vm920, %v3268, -inf
    %3273 = vmax.xlane.f32.xlu0 %v3272
    %v3274 = vpop.xlane.xlu0 %3273
    %v3275 = vsub.f32 %v3267, %v3271
    %v3276 = vsub.f32 %v3268, %v3274
    %v3277 = vmul.f32 %v3275, 1.442695
    %v3278 = vpow.pop %v3277
    %v3279 = vmul.f32 %v3276, 1.442695
    %v3280 = vpow.pop %v3279
    %v3281 = vsel %vm916, %v3278, 0.0
    %3282 = vadd.xlane.f32.xlu0 %v3281
    %v3283 = vpop.xlane.xlu0 %3282
    %v3284 = vsel %vm920, %v3280, 0.0
    %3285 = vadd.xlane.f32.xlu0 %v3284
    %v3286 = vpop.xlane.xlu0 %3285
    %v3287 = vrcp.pop %v3283
    %v3288 = vrcp.pop %v3286
    %v3289 = vmul.f32 %v3278, %v3287
    %v3290 = vmul.f32 %v3280, %v3288
    %3291 = vrot.lane.b32.xlu0 %v3153, 64
    %v3292 = vpop.permute.xlu0 %3291
    %3293 = vrot.lane.b32.xlu0 %v3158, 64
    %v3294 = vpop.permute.xlu0 %3293
    %v3297 = vsel %vm916, %v3289, 0
    %v3300 = vsel %vm916, %v3290, 0
    %v3302 = vsel %vm951, %v3294, 0
    %3304 = vmatprep.subr.mxu0 0.0
    %3305 = vmatpush1.msra.mxu0 %v3292
    %3306 = vmatprep.subr.mxu0 0.0
    %3307 = vmatpush1.msra.mxu0 %v3302
    %3308 = vmatprep.subr.mxu0 0.0
    %3309 = vmatpush1.msra.mxu0 0.0
    %3310 = vmatprep.subr.mxu0 0.0
    %3311 = vmatpush1.msra.mxu0 0.0
    %3312 = vmatprep.subr.mxu0 0.0
    %3313 = vmatpush1.msra.mxu0 0.0
    %3314 = vmatprep.subr.mxu0 0.0
    %3315 = vmatpush1.msra.mxu0 0.0
    %3316 = vmatprep.subr.mxu0 0.0
    %3317 = vmatpush1.msra.mxu0 0.0
    %3318 = vmatprep.subr.mxu0 0.0
    %3319 = vmatpush1.msra.mxu0 0.0
    %3320 = vmatprep.subr.mxu0 0.0
    %3321 = vmatpush1.msra.mxu0 0.0
    %3322 = vmatprep.subr.mxu0 0.0
    %3323 = vmatpush1.msra.mxu0 0.0
    %3324 = vmatprep.subr.mxu0 0.0
    %3325 = vmatpush1.msra.mxu0 0.0
    %3326 = vmatprep.subr.mxu0 0.0
    %3327 = vmatpush1.msra.mxu0 0.0
    %3328 = vmatprep.subr.mxu0 0.0
    %3329 = vmatpush1.msra.mxu0 0.0
    %3330 = vmatprep.subr.mxu0 0.0
    %3331 = vmatpush1.msra.mxu0 0.0
    %3332 = vmatprep.subr.mxu0 0.0
    %3333 = vmatpush1.msra.mxu0 0.0
    %3334 = vmatprep.subr.mxu0 0.0
    %3335 = vmatpush1.msra.mxu0 0.0
    %3336 = vmatprep.subr.mxu0 0.0
    %3337 = vmatpush1.msra.mxu0 0.0
    %3338 = vmatprep.subr.mxu0 0.0
    %3339 = vmatpush1.msra.mxu0 0.0
    %3340 = vmatprep.subr.mxu0 0.0
    %3341 = vmatpush1.msra.mxu0 0.0
    %3342 = vmatprep.subr.mxu0 0.0
    %3343 = vmatpush1.msra.mxu0 0.0
    %3344 = vmatprep.subr.mxu0 0.0
    %3345 = vmatpush1.msra.mxu0 0.0
    %3346 = vmatprep.subr.mxu0 0.0
    %3347 = vmatpush1.msra.mxu0 0.0
    %3348 = vmatprep.subr.mxu0 0.0
    %3349 = vmatpush1.msra.mxu0 0.0
    %3350 = vmatprep.subr.mxu0 0.0
    %3351 = vmatpush1.msra.mxu0 0.0
    %3352 = vmatprep.subr.mxu0 0.0
    %3353 = vmatpush1.msra.mxu0 0.0
    %3354 = vmatprep.subr.mxu0 0.0
    %3355 = vmatpush1.msra.mxu0 0.0
    %3356 = vmatprep.subr.mxu0 0.0
    %3357 = vmatpush1.msra.mxu0 0.0
    %3358 = vmatprep.subr.mxu0 0.0
    %3359 = vmatpush1.msra.mxu0 0.0
    %3360 = vmatprep.subr.mxu0 0.0
    %3361 = vmatpush1.msra.mxu0 0.0
    %3362 = vmatprep.subr.mxu0 0.0
    %3363 = vmatpush1.msra.mxu0 0.0
    %3364 = vmatprep.subr.mxu0 0.0
    %3365 = vmatpush1.msra.mxu0 0.0
    %3366 = vmatprep.subr.mxu0 0.0
    %3367 = vmatpush1.msra.mxu0 0.0
    %3368 = vmatprep.mubr.f32.mxu0 0.0
    %3369 = vmatmul.mubr.f32.gmra.mrb[0].mxu0 %v3297
    %v3370 = vpop.f32.mrb[0].mxu0
    %v3371 = vadd.f32 0.0, %v3370
    %v3372 = vpop.f32.mrb[0].mxu0
    %3373 = vmatprep.mubr.f32.mxu0 0.0
    %3374 = vmatmul.mubr.f32.gmra.mrb[0].mxu0 %v3300
    %v3375 = vpop.f32.mrb[0].mxu0
    %v3376 = vadd.f32 0.0, %v3375
    %v3377 = vpop.f32.mrb[0].mxu0
    %3378 = vdwg.mxu0
    %v3379 = vld [vmem:[%s10] sm:$0xff]
    %v3380 = vld [vmem:[%s10 + $0x8] sm:$0xff]
    %v3382 = vsel %vm345, %v3371, 0
    %v3385 = vsel %vm345, %v3376, 0
    %3387 = vmatprep.subr.mxu0 0.0
    %3388 = vmatpush1.msra.mxu0 %v3379
    %3389 = vmatprep.subr.mxu0 0.0
    %3390 = vmatpush1.msra.mxu0 %v3380
    %3391 = vmatprep.subr.mxu0 0.0
    %3392 = vmatpush1.msra.mxu0 0.0
    %3393 = vmatprep.subr.mxu0 0.0
    %3394 = vmatpush1.msra.mxu0 0.0
    %3395 = vmatprep.subr.mxu0 0.0
    %3396 = vmatpush1.msra.mxu0 0.0
    %3397 = vmatprep.subr.mxu0 0.0
    %3398 = vmatpush1.msra.mxu0 0.0
    %3399 = vmatprep.subr.mxu0 0.0
    %3400 = vmatpush1.msra.mxu0 0.0
    %3401 = vmatprep.subr.mxu0 0.0
    %3402 = vmatpush1.msra.mxu0 0.0
    %3403 = vmatprep.subr.mxu0 0.0
    %3404 = vmatpush1.msra.mxu0 0.0
    %3405 = vmatprep.subr.mxu0 0.0
    %3406 = vmatpush1.msra.mxu0 0.0
    %3407 = vmatprep.subr.mxu0 0.0
    %3408 = vmatpush1.msra.mxu0 0.0
    %3409 = vmatprep.subr.mxu0 0.0
    %3410 = vmatpush1.msra.mxu0 0.0
    %3411 = vmatprep.subr.mxu0 0.0
    %3412 = vmatpush1.msra.mxu0 0.0
    %3413 = vmatprep.subr.mxu0 0.0
    %3414 = vmatpush1.msra.mxu0 0.0
    %3415 = vmatprep.subr.mxu0 0.0
    %3416 = vmatpush1.msra.mxu0 0.0
    %3417 = vmatprep.subr.mxu0 0.0
    %3418 = vmatpush1.msra.mxu0 0.0
    %3419 = vmatprep.subr.mxu0 0.0
    %3420 = vmatpush1.msra.mxu0 0.0
    %3421 = vmatprep.subr.mxu0 0.0
    %3422 = vmatpush1.msra.mxu0 0.0
    %3423 = vmatprep.subr.mxu0 0.0
    %3424 = vmatpush1.msra.mxu0 0.0
    %3425 = vmatprep.subr.mxu0 0.0
    %3426 = vmatpush1.msra.mxu0 0.0
    %3427 = vmatprep.subr.mxu0 0.0
    %3428 = vmatpush1.msra.mxu0 0.0
    %3429 = vmatprep.subr.mxu0 0.0
    %3430 = vmatpush1.msra.mxu0 0.0
    %3431 = vmatprep.subr.mxu0 0.0
    %3432 = vmatpush1.msra.mxu0 0.0
    %3433 = vmatprep.subr.mxu0 0.0
    %3434 = vmatpush1.msra.mxu0 0.0
    %3435 = vmatprep.subr.mxu0 0.0
    %3436 = vmatpush1.msra.mxu0 0.0
    %3437 = vmatprep.subr.mxu0 0.0
    %3438 = vmatpush1.msra.mxu0 0.0
    %3439 = vmatprep.subr.mxu0 0.0
    %3440 = vmatpush1.msra.mxu0 0.0
    %3441 = vmatprep.subr.mxu0 0.0
    %3442 = vmatpush1.msra.mxu0 0.0
    %3443 = vmatprep.subr.mxu0 0.0
    %3444 = vmatpush1.msra.mxu0 0.0
    %3445 = vmatprep.subr.mxu0 0.0
    %3446 = vmatpush1.msra.mxu0 0.0
    %3447 = vmatprep.subr.mxu0 0.0
    %3448 = vmatpush1.msra.mxu0 0.0
    %3449 = vmatprep.subr.mxu0 0.0
    %3450 = vmatpush1.msra.mxu0 0.0
    %3451 = vmatprep.mubr.f32.mxu0 0.0
    %3452 = vmatmul.mubr.f32.gmra.mrb[0].mxu0 %v3382
    %v3453 = vpop.f32.mrb[0].mxu0
    %v3454 = vadd.f32 0.0, %v3453
    %v3455 = vpop.f32.mrb[0].mxu0
    %3456 = vmatprep.mubr.f32.mxu0 0.0
    %3457 = vmatmul.mubr.f32.gmra.mrb[0].mxu0 %v3385
    %v3458 = vpop.f32.mrb[0].mxu0
    %v3459 = vadd.f32 0.0, %v3458
    %v3460 = vpop.f32.mrb[0].mxu0
    %3461 = vdwg.mxu0
    %v3464 = vrot.slane %v3454, 2
    %v3465 = vrot.slane %v3459, 2
    %v3466 = vsel %vm659, %v3464, %v3465
    %v3469 = vadd.f32 %v3168, %v3464
    %v3470 = vadd.f32 %v3169, %v3466
    %3471 = vrot.lane.b32.xlu0 %v3153, 112
    %v3472 = vpop.permute.xlu0 %3471
    %3473 = vrot.lane.b32.xlu0 %v3158, 112
    %v3474 = vpop.permute.xlu0 %3473
    %3475 = vrot.lane.b32.xlu0 %v3153, 80
    %v3476 = vpop.permute.xlu0 %3475
    %3477 = vrot.lane.b32.xlu0 %v3158, 80
    %v3478 = vpop.permute.xlu0 %3477
    %v3479 = vsel %vm345, %v3472, 0
    %v3481 = vsel %vm345, %v3474, 0
    %v3483 = vsel %vm345, %v3476, 0
    %v3485 = vsel %vm345, %v3478, 0
    %3487 = vmatprep.subr.mxu0 0.0
    %3488 = vmatpush1.xpose.msra.mxu0 %v3483
    %3489 = vmatprep.subr.mxu0 0.0
    %3490 = vmatpush1.xpose.msra.mxu0 %v3485
    %3491 = vmatprep.subr.mxu0 0.0
    %3492 = vmatpush1.xpose.msra.mxu0 0.0
    %3493 = vmatprep.subr.mxu0 0.0
    %3494 = vmatpush1.xpose.msra.mxu0 0.0
    %3495 = vmatprep.subr.mxu0 0.0
    %3496 = vmatpush1.xpose.msra.mxu0 0.0
    %3497 = vmatprep.subr.mxu0 0.0
    %3498 = vmatpush1.xpose.msra.mxu0 0.0
    %3499 = vmatprep.subr.mxu0 0.0
    %3500 = vmatpush1.xpose.msra.mxu0 0.0
    %3501 = vmatprep.subr.mxu0 0.0
    %3502 = vmatpush1.xpose.msra.mxu0 0.0
    %3503 = vmatprep.subr.mxu0 0.0
    %3504 = vmatpush1.xpose.msra.mxu0 0.0
    %3505 = vmatprep.subr.mxu0 0.0
    %3506 = vmatpush1.xpose.msra.mxu0 0.0
    %3507 = vmatprep.subr.mxu0 0.0
    %3508 = vmatpush1.xpose.msra.mxu0 0.0
    %3509 = vmatprep.subr.mxu0 0.0
    %3510 = vmatpush1.xpose.msra.mxu0 0.0
    %3511 = vmatprep.subr.mxu0 0.0
    %3512 = vmatpush1.xpose.msra.mxu0 0.0
    %3513 = vmatprep.subr.mxu0 0.0
    %3514 = vmatpush1.xpose.msra.mxu0 0.0
    %3515 = vmatprep.subr.mxu0 0.0
    %3516 = vmatpush1.xpose.msra.mxu0 0.0
    %3517 = vmatprep.subr.mxu0 0.0
    %3518 = vmatpush1.xpose.msra.mxu0 0.0
    %3519 = vmatprep.subr.mxu0 0.0
    %3520 = vmatpush1.xpose.msra.mxu0 0.0
    %3521 = vmatprep.subr.mxu0 0.0
    %3522 = vmatpush1.xpose.msra.mxu0 0.0
    %3523 = vmatprep.subr.mxu0 0.0
    %3524 = vmatpush1.xpose.msra.mxu0 0.0
    %3525 = vmatprep.subr.mxu0 0.0
    %3526 = vmatpush1.xpose.msra.mxu0 0.0
    %3527 = vmatprep.subr.mxu0 0.0
    %3528 = vmatpush1.xpose.msra.mxu0 0.0
    %3529 = vmatprep.subr.mxu0 0.0
    %3530 = vmatpush1.xpose.msra.mxu0 0.0
    %3531 = vmatprep.subr.mxu0 0.0
    %3532 = vmatpush1.xpose.msra.mxu0 0.0
    %3533 = vmatprep.subr.mxu0 0.0
    %3534 = vmatpush1.xpose.msra.mxu0 0.0
    %3535 = vmatprep.subr.mxu0 0.0
    %3536 = vmatpush1.xpose.msra.mxu0 0.0
    %3537 = vmatprep.subr.mxu0 0.0
    %3538 = vmatpush1.xpose.msra.mxu0 0.0
    %3539 = vmatprep.subr.mxu0 0.0
    %3540 = vmatpush1.xpose.msra.mxu0 0.0
    %3541 = vmatprep.subr.mxu0 0.0
    %3542 = vmatpush1.xpose.msra.mxu0 0.0
    %3543 = vmatprep.subr.mxu0 0.0
    %3544 = vmatpush1.xpose.msra.mxu0 0.0
    %3545 = vmatprep.subr.mxu0 0.0
    %3546 = vmatpush1.xpose.msra.mxu0 0.0
    %3547 = vmatprep.subr.mxu0 0.0
    %3548 = vmatpush1.xpose.msra.mxu0 0.0
    %3549 = vmatprep.subr.mxu0 0.0
    %3550 = vmatpush1.xpose.msra.mxu0 0.0
    %3551 = vmatprep.mubr.f32.mxu0 0.0
    %3552 = vmatmul.mubr.f32.gmra.mrb[0].mxu0 %v3479
    %v3553 = vpop.f32.mrb[0].mxu0
    %v3554 = vadd.f32 0.0, %v3553
    %v3555 = vpop.f32.mrb[0].mxu0
    %3556 = vmatprep.mubr.f32.mxu0 0.0
    %3557 = vmatmul.mubr.f32.gmra.mrb[0].mxu0 %v3481
    %v3558 = vpop.f32.mrb[0].mxu0
    %v3559 = vadd.f32 0.0, %v3558
    %v3560 = vpop.f32.mrb[0].mxu0
    %3561 = vdwg.mxu0
    %v3562 = vmul.f32 %v3554, 0.25
    %v3563 = vmul.f32 %v3559, 0.25
    %v3564 = vsel %vm3266, -1e+09, %v3562
    %v3565 = vsel %vm3266, -1e+09, %v3563
    %v3566 = vsel %vm916, %v3564, -inf
    %3567 = vmax.xlane.f32.xlu0 %v3566
    %v3568 = vpop.xlane.xlu0 %3567
    %v3569 = vsel %vm920, %v3565, -inf
    %3570 = vmax.xlane.f32.xlu0 %v3569
    %v3571 = vpop.xlane.xlu0 %3570
    %v3572 = vsub.f32 %v3564, %v3568
    %v3573 = vsub.f32 %v3565, %v3571
    %v3574 = vmul.f32 %v3572, 1.442695
    %v3575 = vpow.pop %v3574
    %v3576 = vmul.f32 %v3573, 1.442695
    %v3577 = vpow.pop %v3576
    %v3578 = vsel %vm916, %v3575, 0.0
    %3579 = vadd.xlane.f32.xlu0 %v3578
    %v3580 = vpop.xlane.xlu0 %3579
    %v3581 = vsel %vm920, %v3577, 0.0
    %3582 = vadd.xlane.f32.xlu0 %v3581
    %v3583 = vpop.xlane.xlu0 %3582
    %v3584 = vrcp.pop %v3580
    %v3585 = vrcp.pop %v3583
    %v3586 = vmul.f32 %v3575, %v3584
    %v3587 = vmul.f32 %v3577, %v3585
    %3588 = vrot.lane.b32.xlu0 %v3153, 48
    %v3589 = vpop.permute.xlu0 %3588
    %3590 = vrot.lane.b32.xlu0 %v3158, 48
    %v3591 = vpop.permute.xlu0 %3590
    %v3594 = vsel %vm916, %v3586, 0
    %v3597 = vsel %vm916, %v3587, 0
    %v3599 = vsel %vm951, %v3591, 0
    %3601 = vmatprep.subr.mxu0 0.0
    %3602 = vmatpush1.msra.mxu0 %v3589
    %3603 = vmatprep.subr.mxu0 0.0
    %3604 = vmatpush1.msra.mxu0 %v3599
    %3605 = vmatprep.subr.mxu0 0.0
    %3606 = vmatpush1.msra.mxu0 0.0
    %3607 = vmatprep.subr.mxu0 0.0
    %3608 = vmatpush1.msra.mxu0 0.0
    %3609 = vmatprep.subr.mxu0 0.0
    %3610 = vmatpush1.msra.mxu0 0.0
    %3611 = vmatprep.subr.mxu0 0.0
    %3612 = vmatpush1.msra.mxu0 0.0
    %3613 = vmatprep.subr.mxu0 0.0
    %3614 = vmatpush1.msra.mxu0 0.0
    %3615 = vmatprep.subr.mxu0 0.0
    %3616 = vmatpush1.msra.mxu0 0.0
    %3617 = vmatprep.subr.mxu0 0.0
    %3618 = vmatpush1.msra.mxu0 0.0
    %3619 = vmatprep.subr.mxu0 0.0
    %3620 = vmatpush1.msra.mxu0 0.0
    %3621 = vmatprep.subr.mxu0 0.0
    %3622 = vmatpush1.msra.mxu0 0.0
    %3623 = vmatprep.subr.mxu0 0.0
    %3624 = vmatpush1.msra.mxu0 0.0
    %3625 = vmatprep.subr.mxu0 0.0
    %3626 = vmatpush1.msra.mxu0 0.0
    %3627 = vmatprep.subr.mxu0 0.0
    %3628 = vmatpush1.msra.mxu0 0.0
    %3629 = vmatprep.subr.mxu0 0.0
    %3630 = vmatpush1.msra.mxu0 0.0
    %3631 = vmatprep.subr.mxu0 0.0
    %3632 = vmatpush1.msra.mxu0 0.0
    %3633 = vmatprep.subr.mxu0 0.0
    %3634 = vmatpush1.msra.mxu0 0.0
    %3635 = vmatprep.subr.mxu0 0.0
    %3636 = vmatpush1.msra.mxu0 0.0
    %3637 = vmatprep.subr.mxu0 0.0
    %3638 = vmatpush1.msra.mxu0 0.0
    %3639 = vmatprep.subr.mxu0 0.0
    %3640 = vmatpush1.msra.mxu0 0.0
    %3641 = vmatprep.subr.mxu0 0.0
    %3642 = vmatpush1.msra.mxu0 0.0
    %3643 = vmatprep.subr.mxu0 0.0
    %3644 = vmatpush1.msra.mxu0 0.0
    %3645 = vmatprep.subr.mxu0 0.0
    %3646 = vmatpush1.msra.mxu0 0.0
    %3647 = vmatprep.subr.mxu0 0.0
    %3648 = vmatpush1.msra.mxu0 0.0
    %3649 = vmatprep.subr.mxu0 0.0
    %3650 = vmatpush1.msra.mxu0 0.0
    %3651 = vmatprep.subr.mxu0 0.0
    %3652 = vmatpush1.msra.mxu0 0.0
    %3653 = vmatprep.subr.mxu0 0.0
    %3654 = vmatpush1.msra.mxu0 0.0
    %3655 = vmatprep.subr.mxu0 0.0
    %3656 = vmatpush1.msra.mxu0 0.0
    %3657 = vmatprep.subr.mxu0 0.0
    %3658 = vmatpush1.msra.mxu0 0.0
    %3659 = vmatprep.subr.mxu0 0.0
    %3660 = vmatpush1.msra.mxu0 0.0
    %3661 = vmatprep.subr.mxu0 0.0
    %3662 = vmatpush1.msra.mxu0 0.0
    %3663 = vmatprep.subr.mxu0 0.0
    %3664 = vmatpush1.msra.mxu0 0.0
    %3665 = vmatprep.mubr.f32.mxu0 0.0
    %3666 = vmatmul.mubr.f32.gmra.mrb[0].mxu0 %v3594
    %v3667 = vpop.f32.mrb[0].mxu0
    %v3668 = vadd.f32 0.0, %v3667
    %v3669 = vpop.f32.mrb[0].mxu0
    %3670 = vmatprep.mubr.f32.mxu0 0.0
    %3671 = vmatmul.mubr.f32.gmra.mrb[0].mxu0 %v3597
    %v3672 = vpop.f32.mrb[0].mxu0
    %v3673 = vadd.f32 0.0, %v3672
    %v3674 = vpop.f32.mrb[0].mxu0
    %3675 = vdwg.mxu0
    %v3676 = vld [vmem:[%s1319] sm:$0xff]
    %v3677 = vld [vmem:[%s1319 + $0x8] sm:$0xff]
    %v3679 = vsel %vm345, %v3668, 0
    %v3682 = vsel %vm345, %v3673, 0
    %3684 = vmatprep.subr.mxu0 0.0
    %3685 = vmatpush1.msra.mxu0 %v3676
    %3686 = vmatprep.subr.mxu0 0.0
    %3687 = vmatpush1.msra.mxu0 %v3677
    %3688 = vmatprep.subr.mxu0 0.0
    %3689 = vmatpush1.msra.mxu0 0.0
    %3690 = vmatprep.subr.mxu0 0.0
    %3691 = vmatpush1.msra.mxu0 0.0
    %3692 = vmatprep.subr.mxu0 0.0
    %3693 = vmatpush1.msra.mxu0 0.0
    %3694 = vmatprep.subr.mxu0 0.0
    %3695 = vmatpush1.msra.mxu0 0.0
    %3696 = vmatprep.subr.mxu0 0.0
    %3697 = vmatpush1.msra.mxu0 0.0
    %3698 = vmatprep.subr.mxu0 0.0
    %3699 = vmatpush1.msra.mxu0 0.0
    %3700 = vmatprep.subr.mxu0 0.0
    %3701 = vmatpush1.msra.mxu0 0.0
    %3702 = vmatprep.subr.mxu0 0.0
    %3703 = vmatpush1.msra.mxu0 0.0
    %3704 = vmatprep.subr.mxu0 0.0
    %3705 = vmatpush1.msra.mxu0 0.0
    %3706 = vmatprep.subr.mxu0 0.0
    %3707 = vmatpush1.msra.mxu0 0.0
    %3708 = vmatprep.subr.mxu0 0.0
    %3709 = vmatpush1.msra.mxu0 0.0
    %3710 = vmatprep.subr.mxu0 0.0
    %3711 = vmatpush1.msra.mxu0 0.0
    %3712 = vmatprep.subr.mxu0 0.0
    %3713 = vmatpush1.msra.mxu0 0.0
    %3714 = vmatprep.subr.mxu0 0.0
    %3715 = vmatpush1.msra.mxu0 0.0
    %3716 = vmatprep.subr.mxu0 0.0
    %3717 = vmatpush1.msra.mxu0 0.0
    %3718 = vmatprep.subr.mxu0 0.0
    %3719 = vmatpush1.msra.mxu0 0.0
    %3720 = vmatprep.subr.mxu0 0.0
    %3721 = vmatpush1.msra.mxu0 0.0
    %3722 = vmatprep.subr.mxu0 0.0
    %3723 = vmatpush1.msra.mxu0 0.0
    %3724 = vmatprep.subr.mxu0 0.0
    %3725 = vmatpush1.msra.mxu0 0.0
    %3726 = vmatprep.subr.mxu0 0.0
    %3727 = vmatpush1.msra.mxu0 0.0
    %3728 = vmatprep.subr.mxu0 0.0
    %3729 = vmatpush1.msra.mxu0 0.0
    %3730 = vmatprep.subr.mxu0 0.0
    %3731 = vmatpush1.msra.mxu0 0.0
    %3732 = vmatprep.subr.mxu0 0.0
    %3733 = vmatpush1.msra.mxu0 0.0
    %3734 = vmatprep.subr.mxu0 0.0
    %3735 = vmatpush1.msra.mxu0 0.0
    %3736 = vmatprep.subr.mxu0 0.0
    %3737 = vmatpush1.msra.mxu0 0.0
    %3738 = vmatprep.subr.mxu0 0.0
    %3739 = vmatpush1.msra.mxu0 0.0
    %3740 = vmatprep.subr.mxu0 0.0
    %3741 = vmatpush1.msra.mxu0 0.0
    %3742 = vmatprep.subr.mxu0 0.0
    %3743 = vmatpush1.msra.mxu0 0.0
    %3744 = vmatprep.subr.mxu0 0.0
    %3745 = vmatpush1.msra.mxu0 0.0
    %3746 = vmatprep.subr.mxu0 0.0
    %3747 = vmatpush1.msra.mxu0 0.0
    %3748 = vmatprep.mubr.f32.mxu0 0.0
    %3749 = vmatmul.mubr.f32.gmra.mrb[0].mxu0 %v3679
    %v3750 = vpop.f32.mrb[0].mxu0
    %v3751 = vadd.f32 0.0, %v3750
    %v3752 = vpop.f32.mrb[0].mxu0
    %3753 = vmatprep.mubr.f32.mxu0 0.0
    %3754 = vmatmul.mubr.f32.gmra.mrb[0].mxu0 %v3682
    %v3755 = vpop.f32.mrb[0].mxu0
    %v3756 = vadd.f32 0.0, %v3755
    %v3757 = vpop.f32.mrb[0].mxu0
    %3758 = vdwg.mxu0
    %v3761 = vrot.slane %v3751, 2
    %v3762 = vrot.slane %v3756, 2
    %v3763 = vsel %vm659, %v3761, %v3762
    %v3766 = vadd.f32 %v3469, %v3761
    %v3767 = vadd.f32 %v3470, %v3763
    %vm3768 = vcmask 261126
    %v3769 = vsel %vm3768, %v3766, 0.0
    %3770 = vadd.xlane.f32.xlu0 %v3769
    %v3771 = vpop.xlane.xlu0 %3770
    %v3772 = vsel %vm103, %v3767, 0.0
    %3773 = vadd.xlane.f32.xlu0 %v3772
    %v3774 = vpop.xlane.xlu0 %3773
    %v3775 = vmul.f32 %v3771, %v1412
    %v3776 = vmul.f32 %v3774, %v1412
    %v3777 = vsub.f32 %v3766, %v3775
    %v3778 = vsub.f32 %v3767, %v3776
    %v3779 = vmul.f32 %v3777, %v3777
    %v3780 = vmul.f32 %v3778, %v3778
    %v3781 = vsel %vm3768, %v3779, 0.0
    %3782 = vadd.xlane.f32.xlu0 %v3781
    %v3783 = vpop.xlane.xlu0 %3782
    %v3784 = vsel %vm103, %v3780, 0.0
    %3785 = vadd.xlane.f32.xlu0 %v3784
    %v3786 = vpop.xlane.xlu0 %3785
    %v3787 = vmul.f32 %v3783, %v1412
    %v3788 = vmul.f32 %v3786, %v1412
    %v3789 = vadd.f32 %v3787, 1e-05
    %v3790 = vadd.f32 %v3788, 1e-05
    %v3791 = vrsqrt.pop %v3789
    %v3792 = vrsqrt.pop %v3790
    %v3793 = vmul.f32 %v3777, %v3791
    %v3794 = vmul.f32 %v3778, %v3792
    %v3795 = vld [vmem:[%s12] sm:$0x1]
    %v3797 = vlaneseq
    %v3798 = vshrl.u32 %v3797, 7
    %v3799 = vsub.s32 0, %v3798
    %v3800 = vrot.slane %v3795, %v3799
    %v3802 = vmul.f32 %v3793, %v3800
    %v3803 = vmul.f32 %v3794, %v3800
    %v3804 = vld [vmem:[%s13] sm:$0x1]
    %v3806 = vlaneseq
    %v3807 = vshrl.u32 %v3806, 7
    %v3808 = vsub.s32 0, %v3807
    %v3809 = vrot.slane %v3804, %v3808
    %v3811 = vadd.f32 %v3802, %v3809
    %v3812 = vadd.f32 %v3803, %v3809
    %v3813 = vld [vmem:[%s14] sm:$0xff]
    %v3814 = vld [vmem:[%s14 + $0x8] sm:$0x3]
    %v3815 = vld [vmem:[%s15] sm:$0xff]
    %v3816 = vld [vmem:[%s15 + $0x8] sm:$0x3]
    %3818 = vset.pattern.permute.xlu0 0
    %3819 = vperm.xlu0 %3818, %v3815
    %v3820 = vpop.permute.xlu0 %3819
    %3823 = vset.pattern.permute.xlu0 0
    %3824 = vperm.xlu0 %3823, %v3816
    %v3825 = vpop.permute.xlu0 %3824
    %v3829 = vrot.slane %v3811, 6
    %v3830 = vrot.slane %v3812, 6
    %v3831 = vsel %vm951, %v3829, %v3830
    %v3834 = vsel %vm916, %v3813, 0
    %v3837 = vsel %vm916, %v3814, 0
    %v3839 = vsel %vm951, %v3830, 0
    %3841 = vmatprep.subr.mxu0 0.0
    %3842 = vmatpush1.msra.mxu0 %v3831
    %3843 = vmatprep.subr.mxu0 0.0
    %3844 = vmatpush1.msra.mxu0 %v3839
    %3845 = vmatprep.subr.mxu0 0.0
    %3846 = vmatpush1.msra.mxu0 0.0
    %3847 = vmatprep.subr.mxu0 0.0
    %3848 = vmatpush1.msra.mxu0 0.0
    %3849 = vmatprep.subr.mxu0 0.0
    %3850 = vmatpush1.msra.mxu0 0.0
    %3851 = vmatprep.subr.mxu0 0.0
    %3852 = vmatpush1.msra.mxu0 0.0
    %3853 = vmatprep.subr.mxu0 0.0
    %3854 = vmatpush1.msra.mxu0 0.0
    %3855 = vmatprep.subr.mxu0 0.0
    %3856 = vmatpush1.msra.mxu0 0.0
    %3857 = vmatprep.subr.mxu0 0.0
    %3858 = vmatpush1.msra.mxu0 0.0
    %3859 = vmatprep.subr.mxu0 0.0
    %3860 = vmatpush1.msra.mxu0 0.0
    %3861 = vmatprep.subr.mxu0 0.0
    %3862 = vmatpush1.msra.mxu0 0.0
    %3863 = vmatprep.subr.mxu0 0.0
    %3864 = vmatpush1.msra.mxu0 0.0
    %3865 = vmatprep.subr.mxu0 0.0
    %3866 = vmatpush1.msra.mxu0 0.0
    %3867 = vmatprep.subr.mxu0 0.0
    %3868 = vmatpush1.msra.mxu0 0.0
    %3869 = vmatprep.subr.mxu0 0.0
    %3870 = vmatpush1.msra.mxu0 0.0
    %3871 = vmatprep.subr.mxu0 0.0
    %3872 = vmatpush1.msra.mxu0 0.0
    %3873 = vmatprep.subr.mxu0 0.0
    %3874 = vmatpush1.msra.mxu0 0.0
    %3875 = vmatprep.subr.mxu0 0.0
    %3876 = vmatpush1.msra.mxu0 0.0
    %3877 = vmatprep.subr.mxu0 0.0
    %3878 = vmatpush1.msra.mxu0 0.0
    %3879 = vmatprep.subr.mxu0 0.0
    %3880 = vmatpush1.msra.mxu0 0.0
    %3881 = vmatprep.subr.mxu0 0.0
    %3882 = vmatpush1.msra.mxu0 0.0
    %3883 = vmatprep.subr.mxu0 0.0
    %3884 = vmatpush1.msra.mxu0 0.0
    %3885 = vmatprep.subr.mxu0 0.0
    %3886 = vmatpush1.msra.mxu0 0.0
    %3887 = vmatprep.subr.mxu0 0.0
    %3888 = vmatpush1.msra.mxu0 0.0
    %3889 = vmatprep.subr.mxu0 0.0
    %3890 = vmatpush1.msra.mxu0 0.0
    %3891 = vmatprep.subr.mxu0 0.0
    %3892 = vmatpush1.msra.mxu0 0.0
    %3893 = vmatprep.subr.mxu0 0.0
    %3894 = vmatpush1.msra.mxu0 0.0
    %3895 = vmatprep.subr.mxu0 0.0
    %3896 = vmatpush1.msra.mxu0 0.0
    %3897 = vmatprep.subr.mxu0 0.0
    %3898 = vmatpush1.msra.mxu0 0.0
    %3899 = vmatprep.subr.mxu0 0.0
    %3900 = vmatpush1.msra.mxu0 0.0
    %3901 = vmatprep.subr.mxu0 0.0
    %3902 = vmatpush1.msra.mxu0 0.0
    %3903 = vmatprep.subr.mxu0 0.0
    %3904 = vmatpush1.msra.mxu0 0.0
    %3905 = vmatprep.mubr.f32.mxu0 0.0
    %3906 = vmatmul.mubr.f32.gmra.mrb[0].mxu0 %v3834
    %v3907 = vpop.f32.mrb[0].mxu0
    %v3908 = vadd.f32 %v3820, %v3907
    %v3909 = vpop.f32.mrb[0].mxu0
    %3910 = vmatprep.mubr.f32.mxu0 0.0
    %3911 = vmatmul.mubr.f32.gmra.mrb[0].mxu0 %v3837
    %v3912 = vpop.f32.mrb[0].mxu0
    %v3913 = vadd.f32 %v3825, %v3912
    %v3914 = vpop.f32.mrb[0].mxu0
    %3915 = vdwg.mxu0
    %v3916 = vmax.f32 %v3908, 0.0
    %v3917 = vmax.f32 %v3913, 0.0
    %v3918 = vld [vmem:[%s16] sm:$0xff]
    %v3919 = vld [vmem:[%s16 + $0x8] sm:$0xff]
    %v3920 = vld [vmem:[%s16 + $0x10] sm:$0xff]
    %v3921 = vld [vmem:[%s16 + $0x18] sm:$0xff]
    %v3922 = vld [vmem:[%s17] sm:$0x1]
    %v3924 = vlaneseq
    %v3925 = vshrl.u32 %v3924, 7
    %v3926 = vsub.s32 0, %v3925
    %v3927 = vrot.slane %v3922, %v3926
    %v3930 = vsel %vm103, %v3916, 0
    %v3933 = vsel %vm103, %v3917, 0
    %3935 = vmatprep.subr.mxu0 0.0
    %3936 = vmatpush1.msra.mxu0 %v3918
    %3937 = vmatprep.subr.mxu0 0.0
    %3938 = vmatpush1.msra.mxu0 %v3919
    %3939 = vmatprep.subr.mxu0 0.0
    %3940 = vmatpush1.msra.mxu0 %v3920
    %3941 = vmatprep.subr.mxu0 0.0
    %3942 = vmatpush1.msra.mxu0 %v3921
    %3943 = vmatprep.subr.mxu0 0.0
    %3944 = vmatpush1.msra.mxu0 0.0
    %3945 = vmatprep.subr.mxu0 0.0
    %3946 = vmatpush1.msra.mxu0 0.0
    %3947 = vmatprep.subr.mxu0 0.0
    %3948 = vmatpush1.msra.mxu0 0.0
    %3949 = vmatprep.subr.mxu0 0.0
    %3950 = vmatpush1.msra.mxu0 0.0
    %3951 = vmatprep.subr.mxu0 0.0
    %3952 = vmatpush1.msra.mxu0 0.0
    %3953 = vmatprep.subr.mxu0 0.0
    %3954 = vmatpush1.msra.mxu0 0.0
    %3955 = vmatprep.subr.mxu0 0.0
    %3956 = vmatpush1.msra.mxu0 0.0
    %3957 = vmatprep.subr.mxu0 0.0
    %3958 = vmatpush1.msra.mxu0 0.0
    %3959 = vmatprep.subr.mxu0 0.0
    %3960 = vmatpush1.msra.mxu0 0.0
    %3961 = vmatprep.subr.mxu0 0.0
    %3962 = vmatpush1.msra.mxu0 0.0
    %3963 = vmatprep.subr.mxu0 0.0
    %3964 = vmatpush1.msra.mxu0 0.0
    %3965 = vmatprep.subr.mxu0 0.0
    %3966 = vmatpush1.msra.mxu0 0.0
    %3967 = vmatprep.subr.mxu0 0.0
    %3968 = vmatpush1.msra.mxu0 0.0
    %3969 = vmatprep.subr.mxu0 0.0
    %3970 = vmatpush1.msra.mxu0 0.0
    %3971 = vmatprep.subr.mxu0 0.0
    %3972 = vmatpush1.msra.mxu0 0.0
    %3973 = vmatprep.subr.mxu0 0.0
    %3974 = vmatpush1.msra.mxu0 0.0
    %3975 = vmatprep.subr.mxu0 0.0
    %3976 = vmatpush1.msra.mxu0 0.0
    %3977 = vmatprep.subr.mxu0 0.0
    %3978 = vmatpush1.msra.mxu0 0.0
    %3979 = vmatprep.subr.mxu0 0.0
    %3980 = vmatpush1.msra.mxu0 0.0
    %3981 = vmatprep.subr.mxu0 0.0
    %3982 = vmatpush1.msra.mxu0 0.0
    %3983 = vmatprep.subr.mxu0 0.0
    %3984 = vmatpush1.msra.mxu0 0.0
    %3985 = vmatprep.subr.mxu0 0.0
    %3986 = vmatpush1.msra.mxu0 0.0
    %3987 = vmatprep.subr.mxu0 0.0
    %3988 = vmatpush1.msra.mxu0 0.0
    %3989 = vmatprep.subr.mxu0 0.0
    %3990 = vmatpush1.msra.mxu0 0.0
    %3991 = vmatprep.subr.mxu0 0.0
    %3992 = vmatpush1.msra.mxu0 0.0
    %3993 = vmatprep.subr.mxu0 0.0
    %3994 = vmatpush1.msra.mxu0 0.0
    %3995 = vmatprep.subr.mxu0 0.0
    %3996 = vmatpush1.msra.mxu0 0.0
    %3997 = vmatprep.subr.mxu0 0.0
    %3998 = vmatpush1.msra.mxu0 0.0
    %3999 = vmatprep.mubr.f32.mxu0 0.0
    %4000 = vmatmul.mubr.f32.gmra.mrb[0].mxu0 %v3930
    %v4001 = vpop.f32.mrb[0].mxu0
    %v4002 = vadd.f32 %v3927, %v4001
    %v4003 = vpop.f32.mrb[0].mxu0
    %4004 = vmatprep.mubr.f32.mxu0 0.0
    %4005 = vmatmul.mubr.f32.gmra.mrb[0].mxu0 %v3933
    %v4006 = vpop.f32.mrb[0].mxu0
    %v4007 = vadd.f32 %v3927, %v4006
    %v4008 = vpop.f32.mrb[0].mxu0
    %4009 = vdwg.mxu0
    %v4010 = vmax.f32 %v4002, 0.0
    %v4011 = vmax.f32 %v4007, 0.0
    %v4012 = vld [vmem:[%s18] sm:$0xff]
    %v4013 = vld [vmem:[%s18 + $0x8] sm:$0xff]
    %v4014 = vld [vmem:[%s18 + $0x10] sm:$0xff]
    %v4015 = vld [vmem:[%s18 + $0x18] sm:$0xff]
    %v4016 = vld [vmem:[%s18 + $0x20] sm:$0xff]
    %v4017 = vld [vmem:[%s18 + $0x28] sm:$0xff]
    %v4018 = vld [vmem:[%s18 + $0x30] sm:$0xff]
    %v4019 = vld [vmem:[%s18 + $0x38] sm:$0xff]
    %v4020 = vld [vmem:[%s19] sm:$0x1]
    %v4022 = vlaneseq
    %v4023 = vshrl.u32 %v4022, 7
    %v4024 = vsub.s32 0, %v4023
    %v4025 = vrot.slane %v4020, %v4024
    %v4028 = vsel %vm1660, %v4010, 0
    %v4031 = vsel %vm1660, %v4011, 0
    %4033 = vmatprep.subr.mxu0 0.0
    %4034 = vmatpush1.msra.mxu0 %v4012
    %4035 = vmatprep.subr.mxu0 0.0
    %4036 = vmatpush1.msra.mxu0 %v4013
    %4037 = vmatprep.subr.mxu0 0.0
    %4038 = vmatpush1.msra.mxu0 %v4014
    %4039 = vmatprep.subr.mxu0 0.0
    %4040 = vmatpush1.msra.mxu0 %v4015
    %4041 = vmatprep.subr.mxu0 0.0
    %4042 = vmatpush1.msra.mxu0 %v4016
    %4043 = vmatprep.subr.mxu0 0.0
    %4044 = vmatpush1.msra.mxu0 %v4017
    %4045 = vmatprep.subr.mxu0 0.0
    %4046 = vmatpush1.msra.mxu0 %v4018
    %4047 = vmatprep.subr.mxu0 0.0
    %4048 = vmatpush1.msra.mxu0 %v4019
    %4049 = vmatprep.subr.mxu0 0.0
    %4050 = vmatpush1.msra.mxu0 0.0
    %4051 = vmatprep.subr.mxu0 0.0
    %4052 = vmatpush1.msra.mxu0 0.0
    %4053 = vmatprep.subr.mxu0 0.0
    %4054 = vmatpush1.msra.mxu0 0.0
    %4055 = vmatprep.subr.mxu0 0.0
    %4056 = vmatpush1.msra.mxu0 0.0
    %4057 = vmatprep.subr.mxu0 0.0
    %4058 = vmatpush1.msra.mxu0 0.0
    %4059 = vmatprep.subr.mxu0 0.0
    %4060 = vmatpush1.msra.mxu0 0.0
    %4061 = vmatprep.subr.mxu0 0.0
    %4062 = vmatpush1.msra.mxu0 0.0
    %4063 = vmatprep.subr.mxu0 0.0
    %4064 = vmatpush1.msra.mxu0 0.0
    %4065 = vmatprep.subr.mxu0 0.0
    %4066 = vmatpush1.msra.mxu0 0.0
    %4067 = vmatprep.subr.mxu0 0.0
    %4068 = vmatpush1.msra.mxu0 0.0
    %4069 = vmatprep.subr.mxu0 0.0
    %4070 = vmatpush1.msra.mxu0 0.0
    %4071 = vmatprep.subr.mxu0 0.0
    %4072 = vmatpush1.msra.mxu0 0.0
    %4073 = vmatprep.subr.mxu0 0.0
    %4074 = vmatpush1.msra.mxu0 0.0
    %4075 = vmatprep.subr.mxu0 0.0
    %4076 = vmatpush1.msra.mxu0 0.0
    %4077 = vmatprep.subr.mxu0 0.0
    %4078 = vmatpush1.msra.mxu0 0.0
    %4079 = vmatprep.subr.mxu0 0.0
    %4080 = vmatpush1.msra.mxu0 0.0
    %4081 = vmatprep.subr.mxu0 0.0
    %4082 = vmatpush1.msra.mxu0 0.0
    %4083 = vmatprep.subr.mxu0 0.0
    %4084 = vmatpush1.msra.mxu0 0.0
    %4085 = vmatprep.subr.mxu0 0.0
    %4086 = vmatpush1.msra.mxu0 0.0
    %4087 = vmatprep.subr.mxu0 0.0
    %4088 = vmatpush1.msra.mxu0 0.0
    %4089 = vmatprep.subr.mxu0 0.0
    %4090 = vmatpush1.msra.mxu0 0.0
    %4091 = vmatprep.subr.mxu0 0.0
    %4092 = vmatpush1.msra.mxu0 0.0
    %4093 = vmatprep.subr.mxu0 0.0
    %4094 = vmatpush1.msra.mxu0 0.0
    %4095 = vmatprep.subr.mxu0 0.0
    %4096 = vmatpush1.msra.mxu0 0.0
    %4097 = vmatprep.mubr.f32.mxu0 0.0
    %4098 = vmatmul.mubr.f32.gmra.mrb[0].mxu0 %v4028
    %v4099 = vpop.f32.mrb[0].mxu0
    %v4100 = vadd.f32 %v4025, %v4099
    %v4101 = vpop.f32.mrb[0].mxu0
    %4102 = vmatprep.mubr.f32.mxu0 0.0
    %4103 = vmatmul.mubr.f32.gmra.mrb[0].mxu0 %v4031
    %v4104 = vpop.f32.mrb[0].mxu0
    %v4105 = vadd.f32 %v4025, %v4104
    %v4106 = vpop.f32.mrb[0].mxu0
    %4107 = vdwg.mxu0
    %v4108 = vld [vmem:[%s1742] sm:$0xff]
    %v4109 = vld [vmem:[%s1742 + $0x8] sm:$0xff]
    %v4110 = vld [vmem:[%s1742 + $0x10] sm:$0xff]
    %v4111 = vld [vmem:[%s1742 + $0x18] sm:$0xff]
    %v4112 = vld [vmem:[%s1747] sm:$0x1]
    %v4114 = vlaneseq
    %v4115 = vshrl.u32 %v4114, 7
    %v4116 = vsub.s32 0, %v4115
    %v4117 = vrot.slane %v4112, %v4116
    %v4120 = vsel %vm103, %v4100, 0
    %v4123 = vsel %vm103, %v4105, 0
    %4125 = vmatprep.subr.mxu0 0.0
    %4126 = vmatpush1.msra.mxu0 %v4108
    %4127 = vmatprep.subr.mxu0 0.0
    %4128 = vmatpush1.msra.mxu0 %v4109
    %4129 = vmatprep.subr.mxu0 0.0
    %4130 = vmatpush1.msra.mxu0 %v4110
    %4131 = vmatprep.subr.mxu0 0.0
    %4132 = vmatpush1.msra.mxu0 %v4111
    %4133 = vmatprep.subr.mxu0 0.0
    %4134 = vmatpush1.msra.mxu0 0.0
    %4135 = vmatprep.subr.mxu0 0.0
    %4136 = vmatpush1.msra.mxu0 0.0
    %4137 = vmatprep.subr.mxu0 0.0
    %4138 = vmatpush1.msra.mxu0 0.0
    %4139 = vmatprep.subr.mxu0 0.0
    %4140 = vmatpush1.msra.mxu0 0.0
    %4141 = vmatprep.subr.mxu0 0.0
    %4142 = vmatpush1.msra.mxu0 0.0
    %4143 = vmatprep.subr.mxu0 0.0
    %4144 = vmatpush1.msra.mxu0 0.0
    %4145 = vmatprep.subr.mxu0 0.0
    %4146 = vmatpush1.msra.mxu0 0.0
    %4147 = vmatprep.subr.mxu0 0.0
    %4148 = vmatpush1.msra.mxu0 0.0
    %4149 = vmatprep.subr.mxu0 0.0
    %4150 = vmatpush1.msra.mxu0 0.0
    %4151 = vmatprep.subr.mxu0 0.0
    %4152 = vmatpush1.msra.mxu0 0.0
    %4153 = vmatprep.subr.mxu0 0.0
    %4154 = vmatpush1.msra.mxu0 0.0
    %4155 = vmatprep.subr.mxu0 0.0
    %4156 = vmatpush1.msra.mxu0 0.0
    %4157 = vmatprep.subr.mxu0 0.0
    %4158 = vmatpush1.msra.mxu0 0.0
    %4159 = vmatprep.subr.mxu0 0.0
    %4160 = vmatpush1.msra.mxu0 0.0
    %4161 = vmatprep.subr.mxu0 0.0
    %4162 = vmatpush1.msra.mxu0 0.0
    %4163 = vmatprep.subr.mxu0 0.0
    %4164 = vmatpush1.msra.mxu0 0.0
    %4165 = vmatprep.subr.mxu0 0.0
    %4166 = vmatpush1.msra.mxu0 0.0
    %4167 = vmatprep.subr.mxu0 0.0
    %4168 = vmatpush1.msra.mxu0 0.0
    %4169 = vmatprep.subr.mxu0 0.0
    %4170 = vmatpush1.msra.mxu0 0.0
    %4171 = vmatprep.subr.mxu0 0.0
    %4172 = vmatpush1.msra.mxu0 0.0
    %4173 = vmatprep.subr.mxu0 0.0
    %4174 = vmatpush1.msra.mxu0 0.0
    %4175 = vmatprep.subr.mxu0 0.0
    %4176 = vmatpush1.msra.mxu0 0.0
    %4177 = vmatprep.subr.mxu0 0.0
    %4178 = vmatpush1.msra.mxu0 0.0
    %4179 = vmatprep.subr.mxu0 0.0
    %4180 = vmatpush1.msra.mxu0 0.0
    %4181 = vmatprep.subr.mxu0 0.0
    %4182 = vmatpush1.msra.mxu0 0.0
    %4183 = vmatprep.subr.mxu0 0.0
    %4184 = vmatpush1.msra.mxu0 0.0
    %4185 = vmatprep.subr.mxu0 0.0
    %4186 = vmatpush1.msra.mxu0 0.0
    %4187 = vmatprep.subr.mxu0 0.0
    %4188 = vmatpush1.msra.mxu0 0.0
    %4189 = vmatprep.mubr.f32.mxu0 0.0
    %4190 = vmatmul.mubr.f32.gmra.mrb[0].mxu0 %v4120
    %v4191 = vpop.f32.mrb[0].mxu0
    %v4192 = vadd.f32 %v4117, %v4191
    %v4193 = vpop.f32.mrb[0].mxu0
    %4194 = vmatprep.mubr.f32.mxu0 0.0
    %4195 = vmatmul.mubr.f32.gmra.mrb[0].mxu0 %v4123
    %v4196 = vpop.f32.mrb[0].mxu0
    %v4197 = vadd.f32 %v4117, %v4196
    %v4198 = vpop.f32.mrb[0].mxu0
    %4199 = vdwg.mxu0
    %v4200 = vld [vmem:[%s1836] sm:$0x1]
    %v4202 = vlaneseq
    %v4203 = vshrl.u32 %v4202, 7
    %v4204 = vsub.s32 0, %v4203
    %v4205 = vrot.slane %v4200, %v4204
    %v4207 = vadd.f32 %v4205, %v4100
    %v4208 = vadd.f32 %v4205, %v4105
    %4211 = vrot.lane.b32.xlu0 %v4192, 96
    %v4212 = vpop.permute.xlu0 %4211
    %4213 = vrot.lane.b32.xlu0 %v4197, 96
    %v4214 = vpop.permute.xlu0 %4213
    %v4215 = vsel %vm345, %v4192, 0
    %v4217 = vsel %vm345, %v4197, 0
    %v4219 = vsel %vm345, %v4212, 0
    %v4221 = vsel %vm345, %v4214, 0
    %4223 = vmatprep.subr.mxu0 0.0
    %4224 = vmatpush1.xpose.msra.mxu0 %v4219
    %4225 = vmatprep.subr.mxu0 0.0
    %4226 = vmatpush1.xpose.msra.mxu0 %v4221
    %4227 = vmatprep.subr.mxu0 0.0
    %4228 = vmatpush1.xpose.msra.mxu0 0.0
    %4229 = vmatprep.subr.mxu0 0.0
    %4230 = vmatpush1.xpose.msra.mxu0 0.0
    %4231 = vmatprep.subr.mxu0 0.0
    %4232 = vmatpush1.xpose.msra.mxu0 0.0
    %4233 = vmatprep.subr.mxu0 0.0
    %4234 = vmatpush1.xpose.msra.mxu0 0.0
    %4235 = vmatprep.subr.mxu0 0.0
    %4236 = vmatpush1.xpose.msra.mxu0 0.0
    %4237 = vmatprep.subr.mxu0 0.0
    %4238 = vmatpush1.xpose.msra.mxu0 0.0
    %4239 = vmatprep.subr.mxu0 0.0
    %4240 = vmatpush1.xpose.msra.mxu0 0.0
    %4241 = vmatprep.subr.mxu0 0.0
    %4242 = vmatpush1.xpose.msra.mxu0 0.0
    %4243 = vmatprep.subr.mxu0 0.0
    %4244 = vmatpush1.xpose.msra.mxu0 0.0
    %4245 = vmatprep.subr.mxu0 0.0
    %4246 = vmatpush1.xpose.msra.mxu0 0.0
    %4247 = vmatprep.subr.mxu0 0.0
    %4248 = vmatpush1.xpose.msra.mxu0 0.0
    %4249 = vmatprep.subr.mxu0 0.0
    %4250 = vmatpush1.xpose.msra.mxu0 0.0
    %4251 = vmatprep.subr.mxu0 0.0
    %4252 = vmatpush1.xpose.msra.mxu0 0.0
    %4253 = vmatprep.subr.mxu0 0.0
    %4254 = vmatpush1.xpose.msra.mxu0 0.0
    %4255 = vmatprep.subr.mxu0 0.0
    %4256 = vmatpush1.xpose.msra.mxu0 0.0
    %4257 = vmatprep.subr.mxu0 0.0
    %4258 = vmatpush1.xpose.msra.mxu0 0.0
    %4259 = vmatprep.subr.mxu0 0.0
    %4260 = vmatpush1.xpose.msra.mxu0 0.0
    %4261 = vmatprep.subr.mxu0 0.0
    %4262 = vmatpush1.xpose.msra.mxu0 0.0
    %4263 = vmatprep.subr.mxu0 0.0
    %4264 = vmatpush1.xpose.msra.mxu0 0.0
    %4265 = vmatprep.subr.mxu0 0.0
    %4266 = vmatpush1.xpose.msra.mxu0 0.0
    %4267 = vmatprep.subr.mxu0 0.0
    %4268 = vmatpush1.xpose.msra.mxu0 0.0
    %4269 = vmatprep.subr.mxu0 0.0
    %4270 = vmatpush1.xpose.msra.mxu0 0.0
    %4271 = vmatprep.subr.mxu0 0.0
    %4272 = vmatpush1.xpose.msra.mxu0 0.0
    %4273 = vmatprep.subr.mxu0 0.0
    %4274 = vmatpush1.xpose.msra.mxu0 0.0
    %4275 = vmatprep.subr.mxu0 0.0
    %4276 = vmatpush1.xpose.msra.mxu0 0.0
    %4277 = vmatprep.subr.mxu0 0.0
    %4278 = vmatpush1.xpose.msra.mxu0 0.0
    %4279 = vmatprep.subr.mxu0 0.0
    %4280 = vmatpush1.xpose.msra.mxu0 0.0
    %4281 = vmatprep.subr.mxu0 0.0
    %4282 = vmatpush1.xpose.msra.mxu0 0.0
    %4283 = vmatprep.subr.mxu0 0.0
    %4284 = vmatpush1.xpose.msra.mxu0 0.0
    %4285 = vmatprep.subr.mxu0 0.0
    %4286 = vmatpush1.xpose.msra.mxu0 0.0
    %4287 = vmatprep.mubr.f32.mxu0 0.0
    %4288 = vmatmul.mubr.f32.gmra.mrb[0].mxu0 %v4215
    %v4289 = vpop.f32.mrb[0].mxu0
    %v4290 = vadd.f32 0.0, %v4289
    %v4291 = vpop.f32.mrb[0].mxu0
    %4292 = vmatprep.mubr.f32.mxu0 0.0
    %4293 = vmatmul.mubr.f32.gmra.mrb[0].mxu0 %v4217
    %v4294 = vpop.f32.mrb[0].mxu0
    %v4295 = vadd.f32 0.0, %v4294
    %v4296 = vpop.f32.mrb[0].mxu0
    %4297 = vdwg.mxu0
    %v4298 = vmul.f32 %v4290, 0.25
    %v4299 = vmul.f32 %v4295, 0.25
    %v4300 = vsel %vm3266, -1e+09, %v4298
    %v4301 = vsel %vm3266, -1e+09, %v4299
    %v4302 = vsel %vm916, %v4300, -inf
    %4303 = vmax.xlane.f32.xlu0 %v4302
    %v4304 = vpop.xlane.xlu0 %4303
    %v4305 = vsel %vm920, %v4301, -inf
    %4306 = vmax.xlane.f32.xlu0 %v4305
    %v4307 = vpop.xlane.xlu0 %4306
    %v4308 = vsub.f32 %v4300, %v4304
    %v4309 = vsub.f32 %v4301, %v4307
    %v4310 = vmul.f32 %v4308, 1.442695
    %v4311 = vpow.pop %v4310
    %v4312 = vmul.f32 %v4309, 1.442695
    %v4313 = vpow.pop %v4312
    %v4314 = vsel %vm916, %v4311, 0.0
    %4315 = vadd.xlane.f32.xlu0 %v4314
    %v4316 = vpop.xlane.xlu0 %4315
    %v4317 = vsel %vm920, %v4313, 0.0
    %4318 = vadd.xlane.f32.xlu0 %v4317
    %v4319 = vpop.xlane.xlu0 %4318
    %v4320 = vrcp.pop %v4316
    %v4321 = vrcp.pop %v4319
    %v4322 = vmul.f32 %v4311, %v4320
    %v4323 = vmul.f32 %v4313, %v4321
    %4324 = vrot.lane.b32.xlu0 %v4192, 64
    %v4325 = vpop.permute.xlu0 %4324
    %4326 = vrot.lane.b32.xlu0 %v4197, 64
    %v4327 = vpop.permute.xlu0 %4326
    %v4330 = vsel %vm916, %v4322, 0
    %v4333 = vsel %vm916, %v4323, 0
    %v4335 = vsel %vm951, %v4327, 0
    %4337 = vmatprep.subr.mxu0 0.0
    %4338 = vmatpush1.msra.mxu0 %v4325
    %4339 = vmatprep.subr.mxu0 0.0
    %4340 = vmatpush1.msra.mxu0 %v4335
    %4341 = vmatprep.subr.mxu0 0.0
    %4342 = vmatpush1.msra.mxu0 0.0
    %4343 = vmatprep.subr.mxu0 0.0
    %4344 = vmatpush1.msra.mxu0 0.0
    %4345 = vmatprep.subr.mxu0 0.0
    %4346 = vmatpush1.msra.mxu0 0.0
    %4347 = vmatprep.subr.mxu0 0.0
    %4348 = vmatpush1.msra.mxu0 0.0
    %4349 = vmatprep.subr.mxu0 0.0
    %4350 = vmatpush1.msra.mxu0 0.0
    %4351 = vmatprep.subr.mxu0 0.0
    %4352 = vmatpush1.msra.mxu0 0.0
    %4353 = vmatprep.subr.mxu0 0.0
    %4354 = vmatpush1.msra.mxu0 0.0
    %4355 = vmatprep.subr.mxu0 0.0
    %4356 = vmatpush1.msra.mxu0 0.0
    %4357 = vmatprep.subr.mxu0 0.0
    %4358 = vmatpush1.msra.mxu0 0.0
    %4359 = vmatprep.subr.mxu0 0.0
    %4360 = vmatpush1.msra.mxu0 0.0
    %4361 = vmatprep.subr.mxu0 0.0
    %4362 = vmatpush1.msra.mxu0 0.0
    %4363 = vmatprep.subr.mxu0 0.0
    %4364 = vmatpush1.msra.mxu0 0.0
    %4365 = vmatprep.subr.mxu0 0.0
    %4366 = vmatpush1.msra.mxu0 0.0
    %4367 = vmatprep.subr.mxu0 0.0
    %4368 = vmatpush1.msra.mxu0 0.0
    %4369 = vmatprep.subr.mxu0 0.0
    %4370 = vmatpush1.msra.mxu0 0.0
    %4371 = vmatprep.subr.mxu0 0.0
    %4372 = vmatpush1.msra.mxu0 0.0
    %4373 = vmatprep.subr.mxu0 0.0
    %4374 = vmatpush1.msra.mxu0 0.0
    %4375 = vmatprep.subr.mxu0 0.0
    %4376 = vmatpush1.msra.mxu0 0.0
    %4377 = vmatprep.subr.mxu0 0.0
    %4378 = vmatpush1.msra.mxu0 0.0
    %4379 = vmatprep.subr.mxu0 0.0
    %4380 = vmatpush1.msra.mxu0 0.0
    %4381 = vmatprep.subr.mxu0 0.0
    %4382 = vmatpush1.msra.mxu0 0.0
    %4383 = vmatprep.subr.mxu0 0.0
    %4384 = vmatpush1.msra.mxu0 0.0
    %4385 = vmatprep.subr.mxu0 0.0
    %4386 = vmatpush1.msra.mxu0 0.0
    %4387 = vmatprep.subr.mxu0 0.0
    %4388 = vmatpush1.msra.mxu0 0.0
    %4389 = vmatprep.subr.mxu0 0.0
    %4390 = vmatpush1.msra.mxu0 0.0
    %4391 = vmatprep.subr.mxu0 0.0
    %4392 = vmatpush1.msra.mxu0 0.0
    %4393 = vmatprep.subr.mxu0 0.0
    %4394 = vmatpush1.msra.mxu0 0.0
    %4395 = vmatprep.subr.mxu0 0.0
    %4396 = vmatpush1.msra.mxu0 0.0
    %4397 = vmatprep.subr.mxu0 0.0
    %4398 = vmatpush1.msra.mxu0 0.0
    %4399 = vmatprep.subr.mxu0 0.0
    %4400 = vmatpush1.msra.mxu0 0.0
    %4401 = vmatprep.mubr.f32.mxu0 0.0
    %4402 = vmatmul.mubr.f32.gmra.mrb[0].mxu0 %v4330
    %v4403 = vpop.f32.mrb[0].mxu0
    %v4404 = vadd.f32 0.0, %v4403
    %v4405 = vpop.f32.mrb[0].mxu0
    %4406 = vmatprep.mubr.f32.mxu0 0.0
    %4407 = vmatmul.mubr.f32.gmra.mrb[0].mxu0 %v4333
    %v4408 = vpop.f32.mrb[0].mxu0
    %v4409 = vadd.f32 0.0, %v4408
    %v4410 = vpop.f32.mrb[0].mxu0
    %4411 = vdwg.mxu0
    %v4412 = vld [vmem:[%s2049] sm:$0xff]
    %v4413 = vld [vmem:[%s2049 + $0x8] sm:$0xff]
    %v4415 = vsel %vm345, %v4404, 0
    %v4418 = vsel %vm345, %v4409, 0
    %4420 = vmatprep.subr.mxu0 0.0
    %4421 = vmatpush1.msra.mxu0 %v4412
    %4422 = vmatprep.subr.mxu0 0.0
    %4423 = vmatpush1.msra.mxu0 %v4413
    %4424 = vmatprep.subr.mxu0 0.0
    %4425 = vmatpush1.msra.mxu0 0.0
    %4426 = vmatprep.subr.mxu0 0.0
    %4427 = vmatpush1.msra.mxu0 0.0
    %4428 = vmatprep.subr.mxu0 0.0
    %4429 = vmatpush1.msra.mxu0 0.0
    %4430 = vmatprep.subr.mxu0 0.0
    %4431 = vmatpush1.msra.mxu0 0.0
    %4432 = vmatprep.subr.mxu0 0.0
    %4433 = vmatpush1.msra.mxu0 0.0
    %4434 = vmatprep.subr.mxu0 0.0
    %4435 = vmatpush1.msra.mxu0 0.0
    %4436 = vmatprep.subr.mxu0 0.0
    %4437 = vmatpush1.msra.mxu0 0.0
    %4438 = vmatprep.subr.mxu0 0.0
    %4439 = vmatpush1.msra.mxu0 0.0
    %4440 = vmatprep.subr.mxu0 0.0
    %4441 = vmatpush1.msra.mxu0 0.0
    %4442 = vmatprep.subr.mxu0 0.0
    %4443 = vmatpush1.msra.mxu0 0.0
    %4444 = vmatprep.subr.mxu0 0.0
    %4445 = vmatpush1.msra.mxu0 0.0
    %4446 = vmatprep.subr.mxu0 0.0
    %4447 = vmatpush1.msra.mxu0 0.0
    %4448 = vmatprep.subr.mxu0 0.0
    %4449 = vmatpush1.msra.mxu0 0.0
    %4450 = vmatprep.subr.mxu0 0.0
    %4451 = vmatpush1.msra.mxu0 0.0
    %4452 = vmatprep.subr.mxu0 0.0
    %4453 = vmatpush1.msra.mxu0 0.0
    %4454 = vmatprep.subr.mxu0 0.0
    %4455 = vmatpush1.msra.mxu0 0.0
    %4456 = vmatprep.subr.mxu0 0.0
    %4457 = vmatpush1.msra.mxu0 0.0
    %4458 = vmatprep.subr.mxu0 0.0
    %4459 = vmatpush1.msra.mxu0 0.0
    %4460 = vmatprep.subr.mxu0 0.0
    %4461 = vmatpush1.msra.mxu0 0.0
    %4462 = vmatprep.subr.mxu0 0.0
    %4463 = vmatpush1.msra.mxu0 0.0
    %4464 = vmatprep.subr.mxu0 0.0
    %4465 = vmatpush1.msra.mxu0 0.0
    %4466 = vmatprep.subr.mxu0 0.0
    %4467 = vmatpush1.msra.mxu0 0.0
    %4468 = vmatprep.subr.mxu0 0.0
    %4469 = vmatpush1.msra.mxu0 0.0
    %4470 = vmatprep.subr.mxu0 0.0
    %4471 = vmatpush1.msra.mxu0 0.0
    %4472 = vmatprep.subr.mxu0 0.0
    %4473 = vmatpush1.msra.mxu0 0.0
    %4474 = vmatprep.subr.mxu0 0.0
    %4475 = vmatpush1.msra.mxu0 0.0
    %4476 = vmatprep.subr.mxu0 0.0
    %4477 = vmatpush1.msra.mxu0 0.0
    %4478 = vmatprep.subr.mxu0 0.0
    %4479 = vmatpush1.msra.mxu0 0.0
    %4480 = vmatprep.subr.mxu0 0.0
    %4481 = vmatpush1.msra.mxu0 0.0
    %4482 = vmatprep.subr.mxu0 0.0
    %4483 = vmatpush1.msra.mxu0 0.0
    %4484 = vmatprep.mubr.f32.mxu0 0.0
    %4485 = vmatmul.mubr.f32.gmra.mrb[0].mxu0 %v4415
    %v4486 = vpop.f32.mrb[0].mxu0
    %v4487 = vadd.f32 0.0, %v4486
    %v4488 = vpop.f32.mrb[0].mxu0
    %4489 = vmatprep.mubr.f32.mxu0 0.0
    %4490 = vmatmul.mubr.f32.gmra.mrb[0].mxu0 %v4418
    %v4491 = vpop.f32.mrb[0].mxu0
    %v4492 = vadd.f32 0.0, %v4491
    %v4493 = vpop.f32.mrb[0].mxu0
    %4494 = vdwg.mxu0
    %v4495 = vadd.f32 %v4207, %v4487
    %v4496 = vadd.f32 %v4208, %v4492
    %4497 = vrot.lane.b32.xlu0 %v4192, 112
    %v4498 = vpop.permute.xlu0 %4497
    %4499 = vrot.lane.b32.xlu0 %v4197, 112
    %v4500 = vpop.permute.xlu0 %4499
    %4501 = vrot.lane.b32.xlu0 %v4192, 80
    %v4502 = vpop.permute.xlu0 %4501
    %4503 = vrot.lane.b32.xlu0 %v4197, 80
    %v4504 = vpop.permute.xlu0 %4503
    %v4505 = vsel %vm345, %v4498, 0
    %v4507 = vsel %vm345, %v4500, 0
    %v4509 = vsel %vm345, %v4502, 0
    %v4511 = vsel %vm345, %v4504, 0
    %4513 = vmatprep.subr.mxu0 0.0
    %4514 = vmatpush1.xpose.msra.mxu0 %v4509
    %4515 = vmatprep.subr.mxu0 0.0
    %4516 = vmatpush1.xpose.msra.mxu0 %v4511
    %4517 = vmatprep.subr.mxu0 0.0
    %4518 = vmatpush1.xpose.msra.mxu0 0.0
    %4519 = vmatprep.subr.mxu0 0.0
    %4520 = vmatpush1.xpose.msra.mxu0 0.0
    %4521 = vmatprep.subr.mxu0 0.0
    %4522 = vmatpush1.xpose.msra.mxu0 0.0
    %4523 = vmatprep.subr.mxu0 0.0
    %4524 = vmatpush1.xpose.msra.mxu0 0.0
    %4525 = vmatprep.subr.mxu0 0.0
    %4526 = vmatpush1.xpose.msra.mxu0 0.0
    %4527 = vmatprep.subr.mxu0 0.0
    %4528 = vmatpush1.xpose.msra.mxu0 0.0
    %4529 = vmatprep.subr.mxu0 0.0
    %4530 = vmatpush1.xpose.msra.mxu0 0.0
    %4531 = vmatprep.subr.mxu0 0.0
    %4532 = vmatpush1.xpose.msra.mxu0 0.0
    %4533 = vmatprep.subr.mxu0 0.0
    %4534 = vmatpush1.xpose.msra.mxu0 0.0
    %4535 = vmatprep.subr.mxu0 0.0
    %4536 = vmatpush1.xpose.msra.mxu0 0.0
    %4537 = vmatprep.subr.mxu0 0.0
    %4538 = vmatpush1.xpose.msra.mxu0 0.0
    %4539 = vmatprep.subr.mxu0 0.0
    %4540 = vmatpush1.xpose.msra.mxu0 0.0
    %4541 = vmatprep.subr.mxu0 0.0
    %4542 = vmatpush1.xpose.msra.mxu0 0.0
    %4543 = vmatprep.subr.mxu0 0.0
    %4544 = vmatpush1.xpose.msra.mxu0 0.0
    %4545 = vmatprep.subr.mxu0 0.0
    %4546 = vmatpush1.xpose.msra.mxu0 0.0
    %4547 = vmatprep.subr.mxu0 0.0
    %4548 = vmatpush1.xpose.msra.mxu0 0.0
    %4549 = vmatprep.subr.mxu0 0.0
    %4550 = vmatpush1.xpose.msra.mxu0 0.0
    %4551 = vmatprep.subr.mxu0 0.0
    %4552 = vmatpush1.xpose.msra.mxu0 0.0
    %4553 = vmatprep.subr.mxu0 0.0
    %4554 = vmatpush1.xpose.msra.mxu0 0.0
    %4555 = vmatprep.subr.mxu0 0.0
    %4556 = vmatpush1.xpose.msra.mxu0 0.0
    %4557 = vmatprep.subr.mxu0 0.0
    %4558 = vmatpush1.xpose.msra.mxu0 0.0
    %4559 = vmatprep.subr.mxu0 0.0
    %4560 = vmatpush1.xpose.msra.mxu0 0.0
    %4561 = vmatprep.subr.mxu0 0.0
    %4562 = vmatpush1.xpose.msra.mxu0 0.0
    %4563 = vmatprep.subr.mxu0 0.0
    %4564 = vmatpush1.xpose.msra.mxu0 0.0
    %4565 = vmatprep.subr.mxu0 0.0
    %4566 = vmatpush1.xpose.msra.mxu0 0.0
    %4567 = vmatprep.subr.mxu0 0.0
    %4568 = vmatpush1.xpose.msra.mxu0 0.0
    %4569 = vmatprep.subr.mxu0 0.0
    %4570 = vmatpush1.xpose.msra.mxu0 0.0
    %4571 = vmatprep.subr.mxu0 0.0
    %4572 = vmatpush1.xpose.msra.mxu0 0.0
    %4573 = vmatprep.subr.mxu0 0.0
    %4574 = vmatpush1.xpose.msra.mxu0 0.0
    %4575 = vmatprep.subr.mxu0 0.0
    %4576 = vmatpush1.xpose.msra.mxu0 0.0
    %4577 = vmatprep.mubr.f32.mxu0 0.0
    %4578 = vmatmul.mubr.f32.gmra.mrb[0].mxu0 %v4505
    %v4579 = vpop.f32.mrb[0].mxu0
    %v4580 = vadd.f32 0.0, %v4579
    %v4581 = vpop.f32.mrb[0].mxu0
    %4582 = vmatprep.mubr.f32.mxu0 0.0
    %4583 = vmatmul.mubr.f32.gmra.mrb[0].mxu0 %v4507
    %v4584 = vpop.f32.mrb[0].mxu0
    %v4585 = vadd.f32 0.0, %v4584
    %v4586 = vpop.f32.mrb[0].mxu0
    %4587 = vdwg.mxu0
    %v4588 = vmul.f32 %v4580, 0.25
    %v4589 = vmul.f32 %v4585, 0.25
    %v4590 = vsel %vm3266, -1e+09, %v4588
    %v4591 = vsel %vm3266, -1e+09, %v4589
    %v4592 = vsel %vm916, %v4590, -inf
    %4593 = vmax.xlane.f32.xlu0 %v4592
    %v4594 = vpop.xlane.xlu0 %4593
    %v4595 = vsel %vm920, %v4591, -inf
    %4596 = vmax.xlane.f32.xlu0 %v4595
    %v4597 = vpop.xlane.xlu0 %4596
    %v4598 = vsub.f32 %v4590, %v4594
    %v4599 = vsub.f32 %v4591, %v4597
    %v4600 = vmul.f32 %v4598, 1.442695
    %v4601 = vpow.pop %v4600
    %v4602 = vmul.f32 %v4599, 1.442695
    %v4603 = vpow.pop %v4602
    %v4604 = vsel %vm916, %v4601, 0.0
    %4605 = vadd.xlane.f32.xlu0 %v4604
    %v4606 = vpop.xlane.xlu0 %4605
    %v4607 = vsel %vm920, %v4603, 0.0
    %4608 = vadd.xlane.f32.xlu0 %v4607
    %v4609 = vpop.xlane.xlu0 %4608
    %v4610 = vrcp.pop %v4606
    %v4611 = vrcp.pop %v4609
    %v4612 = vmul.f32 %v4601, %v4610
    %v4613 = vmul.f32 %v4603, %v4611
    %4614 = vrot.lane.b32.xlu0 %v4192, 48
    %v4615 = vpop.permute.xlu0 %4614
    %4616 = vrot.lane.b32.xlu0 %v4197, 48
    %v4617 = vpop.permute.xlu0 %4616
    %v4620 = vsel %vm916, %v4612, 0
    %v4623 = vsel %vm916, %v4613, 0
    %v4625 = vsel %vm951, %v4617, 0
    %4627 = vmatprep.subr.mxu0 0.0
    %4628 = vmatpush1.msra.mxu0 %v4615
    %4629 = vmatprep.subr.mxu0 0.0
    %4630 = vmatpush1.msra.mxu0 %v4625
    %4631 = vmatprep.subr.mxu0 0.0
    %4632 = vmatpush1.msra.mxu0 0.0
    %4633 = vmatprep.subr.mxu0 0.0
    %4634 = vmatpush1.msra.mxu0 0.0
    %4635 = vmatprep.subr.mxu0 0.0
    %4636 = vmatpush1.msra.mxu0 0.0
    %4637 = vmatprep.subr.mxu0 0.0
    %4638 = vmatpush1.msra.mxu0 0.0
    %4639 = vmatprep.subr.mxu0 0.0
    %4640 = vmatpush1.msra.mxu0 0.0
    %4641 = vmatprep.subr.mxu0 0.0
    %4642 = vmatpush1.msra.mxu0 0.0
    %4643 = vmatprep.subr.mxu0 0.0
    %4644 = vmatpush1.msra.mxu0 0.0
    %4645 = vmatprep.subr.mxu0 0.0
    %4646 = vmatpush1.msra.mxu0 0.0
    %4647 = vmatprep.subr.mxu0 0.0
    %4648 = vmatpush1.msra.mxu0 0.0
    %4649 = vmatprep.subr.mxu0 0.0
    %4650 = vmatpush1.msra.mxu0 0.0
    %4651 = vmatprep.subr.mxu0 0.0
    %4652 = vmatpush1.msra.mxu0 0.0
    %4653 = vmatprep.subr.mxu0 0.0
    %4654 = vmatpush1.msra.mxu0 0.0
    %4655 = vmatprep.subr.mxu0 0.0
    %4656 = vmatpush1.msra.mxu0 0.0
    %4657 = vmatprep.subr.mxu0 0.0
    %4658 = vmatpush1.msra.mxu0 0.0
    %4659 = vmatprep.subr.mxu0 0.0
    %4660 = vmatpush1.msra.mxu0 0.0
    %4661 = vmatprep.subr.mxu0 0.0
    %4662 = vmatpush1.msra.mxu0 0.0
    %4663 = vmatprep.subr.mxu0 0.0
    %4664 = vmatpush1.msra.mxu0 0.0
    %4665 = vmatprep.subr.mxu0 0.0
    %4666 = vmatpush1.msra.mxu0 0.0
    %4667 = vmatprep.subr.mxu0 0.0
    %4668 = vmatpush1.msra.mxu0 0.0
    %4669 = vmatprep.subr.mxu0 0.0
    %4670 = vmatpush1.msra.mxu0 0.0
    %4671 = vmatprep.subr.mxu0 0.0
    %4672 = vmatpush1.msra.mxu0 0.0
    %4673 = vmatprep.subr.mxu0 0.0
    %4674 = vmatpush1.msra.mxu0 0.0
    %4675 = vmatprep.subr.mxu0 0.0
    %4676 = vmatpush1.msra.mxu0 0.0
    %4677 = vmatprep.subr.mxu0 0.0
    %4678 = vmatpush1.msra.mxu0 0.0
    %4679 = vmatprep.subr.mxu0 0.0
    %4680 = vmatpush1.msra.mxu0 0.0
    %4681 = vmatprep.subr.mxu0 0.0
    %4682 = vmatpush1.msra.mxu0 0.0
    %4683 = vmatprep.subr.mxu0 0.0
    %4684 = vmatpush1.msra.mxu0 0.0
    %4685 = vmatprep.subr.mxu0 0.0
    %4686 = vmatpush1.msra.mxu0 0.0
    %4687 = vmatprep.subr.mxu0 0.0
    %4688 = vmatpush1.msra.mxu0 0.0
    %4689 = vmatprep.subr.mxu0 0.0
    %4690 = vmatpush1.msra.mxu0 0.0
    %4691 = vmatprep.mubr.f32.mxu0 0.0
    %4692 = vmatmul.mubr.f32.gmra.mrb[0].mxu0 %v4620
    %v4693 = vpop.f32.mrb[0].mxu0
    %v4694 = vadd.f32 0.0, %v4693
    %v4695 = vpop.f32.mrb[0].mxu0
    %4696 = vmatprep.mubr.f32.mxu0 0.0
    %4697 = vmatmul.mubr.f32.gmra.mrb[0].mxu0 %v4623
    %v4698 = vpop.f32.mrb[0].mxu0
    %v4699 = vadd.f32 0.0, %v4698
    %v4700 = vpop.f32.mrb[0].mxu0
    %4701 = vdwg.mxu0
    %v4702 = vld [vmem:[%s2340] sm:$0xff]
    %v4703 = vld [vmem:[%s2340 + $0x8] sm:$0xff]
    %v4705 = vsel %vm345, %v4694, 0
    %v4708 = vsel %vm345, %v4699, 0
    %4710 = vmatprep.subr.mxu0 0.0
    %4711 = vmatpush1.msra.mxu0 %v4702
    %4712 = vmatprep.subr.mxu0 0.0
    %4713 = vmatpush1.msra.mxu0 %v4703
    %4714 = vmatprep.subr.mxu0 0.0
    %4715 = vmatpush1.msra.mxu0 0.0
    %4716 = vmatprep.subr.mxu0 0.0
    %4717 = vmatpush1.msra.mxu0 0.0
    %4718 = vmatprep.subr.mxu0 0.0
    %4719 = vmatpush1.msra.mxu0 0.0
    %4720 = vmatprep.subr.mxu0 0.0
    %4721 = vmatpush1.msra.mxu0 0.0
    %4722 = vmatprep.subr.mxu0 0.0
    %4723 = vmatpush1.msra.mxu0 0.0
    %4724 = vmatprep.subr.mxu0 0.0
    %4725 = vmatpush1.msra.mxu0 0.0
    %4726 = vmatprep.subr.mxu0 0.0
    %4727 = vmatpush1.msra.mxu0 0.0
    %4728 = vmatprep.subr.mxu0 0.0
    %4729 = vmatpush1.msra.mxu0 0.0
    %4730 = vmatprep.subr.mxu0 0.0
    %4731 = vmatpush1.msra.mxu0 0.0
    %4732 = vmatprep.subr.mxu0 0.0
    %4733 = vmatpush1.msra.mxu0 0.0
    %4734 = vmatprep.subr.mxu0 0.0
    %4735 = vmatpush1.msra.mxu0 0.0
    %4736 = vmatprep.subr.mxu0 0.0
    %4737 = vmatpush1.msra.mxu0 0.0
    %4738 = vmatprep.subr.mxu0 0.0
    %4739 = vmatpush1.msra.mxu0 0.0
    %4740 = vmatprep.subr.mxu0 0.0
    %4741 = vmatpush1.msra.mxu0 0.0
    %4742 = vmatprep.subr.mxu0 0.0
    %4743 = vmatpush1.msra.mxu0 0.0
    %4744 = vmatprep.subr.mxu0 0.0
    %4745 = vmatpush1.msra.mxu0 0.0
    %4746 = vmatprep.subr.mxu0 0.0
    %4747 = vmatpush1.msra.mxu0 0.0
    %4748 = vmatprep.subr.mxu0 0.0
    %4749 = vmatpush1.msra.mxu0 0.0
    %4750 = vmatprep.subr.mxu0 0.0
    %4751 = vmatpush1.msra.mxu0 0.0
    %4752 = vmatprep.subr.mxu0 0.0
    %4753 = vmatpush1.msra.mxu0 0.0
    %4754 = vmatprep.subr.mxu0 0.0
    %4755 = vmatpush1.msra.mxu0 0.0
    %4756 = vmatprep.subr.mxu0 0.0
    %4757 = vmatpush1.msra.mxu0 0.0
    %4758 = vmatprep.subr.mxu0 0.0
    %4759 = vmatpush1.msra.mxu0 0.0
    %4760 = vmatprep.subr.mxu0 0.0
    %4761 = vmatpush1.msra.mxu0 0.0
    %4762 = vmatprep.subr.mxu0 0.0
    %4763 = vmatpush1.msra.mxu0 0.0
    %4764 = vmatprep.subr.mxu0 0.0
    %4765 = vmatpush1.msra.mxu0 0.0
    %4766 = vmatprep.subr.mxu0 0.0
    %4767 = vmatpush1.msra.mxu0 0.0
    %4768 = vmatprep.subr.mxu0 0.0
    %4769 = vmatpush1.msra.mxu0 0.0
    %4770 = vmatprep.subr.mxu0 0.0
    %4771 = vmatpush1.msra.mxu0 0.0
    %4772 = vmatprep.subr.mxu0 0.0
    %4773 = vmatpush1.msra.mxu0 0.0
    %4774 = vmatprep.mubr.f32.mxu0 0.0
    %4775 = vmatmul.mubr.f32.gmra.mrb[0].mxu0 %v4705
    %v4776 = vpop.f32.mrb[0].mxu0
    %v4777 = vadd.f32 0.0, %v4776
    %v4778 = vpop.f32.mrb[0].mxu0
    %4779 = vmatprep.mubr.f32.mxu0 0.0
    %4780 = vmatmul.mubr.f32.gmra.mrb[0].mxu0 %v4708
    %v4781 = vpop.f32.mrb[0].mxu0
    %v4782 = vadd.f32 0.0, %v4781
    %v4783 = vpop.f32.mrb[0].mxu0
    %4784 = vdwg.mxu0
    %v4785 = vadd.f32 %v4495, %v4777
    %v4786 = vadd.f32 %v4496, %v4782
    %v4787 = vsel %vm103, %v4785, 0.0
    %4788 = vadd.xlane.f32.xlu0 %v4787
    %v4789 = vpop.xlane.xlu0 %4788
    %v4790 = vsel %vm1408, %v4786, 0.0
    %4791 = vadd.xlane.f32.xlu0 %v4790
    %v4792 = vpop.xlane.xlu0 %4791
    %v4793 = vmul.f32 %v4789, %v1412
    %v4794 = vmul.f32 %v4792, %v1412
    %v4795 = vsub.f32 %v4785, %v4793
    %v4796 = vsub.f32 %v4786, %v4794
    %v4797 = vmul.f32 %v4795, %v4795
    %v4798 = vmul.f32 %v4796, %v4796
    %v4799 = vsel %vm103, %v4797, 0.0
    %4800 = vadd.xlane.f32.xlu0 %v4799
    %v4801 = vpop.xlane.xlu0 %4800
    %v4802 = vsel %vm1408, %v4798, 0.0
    %4803 = vadd.xlane.f32.xlu0 %v4802
    %v4804 = vpop.xlane.xlu0 %4803
    %v4805 = vmul.f32 %v4801, %v1412
    %v4806 = vmul.f32 %v4804, %v1412
    %v4807 = vadd.f32 %v4805, 1e-05
    %v4808 = vadd.f32 %v4806, 1e-05
    %v4809 = vrsqrt.pop %v4807
    %v4810 = vrsqrt.pop %v4808
    %v4811 = vmul.f32 %v4795, %v4809
    %v4812 = vmul.f32 %v4796, %v4810
    %v4813 = vld [vmem:[%s2452] sm:$0x1]
    %v4815 = vlaneseq
    %v4816 = vshrl.u32 %v4815, 7
    %v4817 = vsub.s32 0, %v4816
    %v4818 = vrot.slane %v4813, %v4817
    %v4820 = vmul.f32 %v4811, %v4818
    %v4821 = vmul.f32 %v4812, %v4818
    %v4822 = vld [vmem:[%s2462] sm:$0x1]
    %v4824 = vlaneseq
    %v4825 = vshrl.u32 %v4824, 7
    %v4826 = vsub.s32 0, %v4825
    %v4827 = vrot.slane %v4822, %v4826
    %v4829 = vadd.f32 %v4820, %v4827
    %v4830 = vadd.f32 %v4821, %v4827
    %v4831 = vld [vmem:[%s2472] sm:$0xff]
    %v4832 = vld [vmem:[%s2472 + $0x8] sm:$0x3]
    %v4833 = vld [vmem:[%s2475] sm:$0xff]
    %v4834 = vld [vmem:[%s2475 + $0x8] sm:$0x3]
    %4836 = vset.pattern.permute.xlu0 0
    %4837 = vperm.xlu0 %4836, %v4833
    %v4838 = vpop.permute.xlu0 %4837
    %4841 = vset.pattern.permute.xlu0 0
    %4842 = vperm.xlu0 %4841, %v4834
    %v4843 = vpop.permute.xlu0 %4842
    %v4846 = vsel %vm916, %v4831, 0
    %v4849 = vsel %vm916, %v4832, 0
    %v4852 = vsel %vm951, %v4830, 0
    %4854 = vmatprep.subr.mxu0 0.0
    %4855 = vmatpush1.msra.mxu0 %v4829
    %4856 = vmatprep.subr.mxu0 0.0
    %4857 = vmatpush1.msra.mxu0 %v4852
    %4858 = vmatprep.subr.mxu0 0.0
    %4859 = vmatpush1.msra.mxu0 0.0
    %4860 = vmatprep.subr.mxu0 0.0
    %4861 = vmatpush1.msra.mxu0 0.0
    %4862 = vmatprep.subr.mxu0 0.0
    %4863 = vmatpush1.msra.mxu0 0.0
    %4864 = vmatprep.subr.mxu0 0.0
    %4865 = vmatpush1.msra.mxu0 0.0
    %4866 = vmatprep.subr.mxu0 0.0
    %4867 = vmatpush1.msra.mxu0 0.0
    %4868 = vmatprep.subr.mxu0 0.0
    %4869 = vmatpush1.msra.mxu0 0.0
    %4870 = vmatprep.subr.mxu0 0.0
    %4871 = vmatpush1.msra.mxu0 0.0
    %4872 = vmatprep.subr.mxu0 0.0
    %4873 = vmatpush1.msra.mxu0 0.0
    %4874 = vmatprep.subr.mxu0 0.0
    %4875 = vmatpush1.msra.mxu0 0.0
    %4876 = vmatprep.subr.mxu0 0.0
    %4877 = vmatpush1.msra.mxu0 0.0
    %4878 = vmatprep.subr.mxu0 0.0
    %4879 = vmatpush1.msra.mxu0 0.0
    %4880 = vmatprep.subr.mxu0 0.0
    %4881 = vmatpush1.msra.mxu0 0.0
    %4882 = vmatprep.subr.mxu0 0.0
    %4883 = vmatpush1.msra.mxu0 0.0
    %4884 = vmatprep.subr.mxu0 0.0
    %4885 = vmatpush1.msra.mxu0 0.0
    %4886 = vmatprep.subr.mxu0 0.0
    %4887 = vmatpush1.msra.mxu0 0.0
    %4888 = vmatprep.subr.mxu0 0.0
    %4889 = vmatpush1.msra.mxu0 0.0
    %4890 = vmatprep.subr.mxu0 0.0
    %4891 = vmatpush1.msra.mxu0 0.0
    %4892 = vmatprep.subr.mxu0 0.0
    %4893 = vmatpush1.msra.mxu0 0.0
    %4894 = vmatprep.subr.mxu0 0.0
    %4895 = vmatpush1.msra.mxu0 0.0
    %4896 = vmatprep.subr.mxu0 0.0
    %4897 = vmatpush1.msra.mxu0 0.0
    %4898 = vmatprep.subr.mxu0 0.0
    %4899 = vmatpush1.msra.mxu0 0.0
    %4900 = vmatprep.subr.mxu0 0.0
    %4901 = vmatpush1.msra.mxu0 0.0
    %4902 = vmatprep.subr.mxu0 0.0
    %4903 = vmatpush1.msra.mxu0 0.0
    %4904 = vmatprep.subr.mxu0 0.0
    %4905 = vmatpush1.msra.mxu0 0.0
    %4906 = vmatprep.subr.mxu0 0.0
    %4907 = vmatpush1.msra.mxu0 0.0
    %4908 = vmatprep.subr.mxu0 0.0
    %4909 = vmatpush1.msra.mxu0 0.0
    %4910 = vmatprep.subr.mxu0 0.0
    %4911 = vmatpush1.msra.mxu0 0.0
    %4912 = vmatprep.subr.mxu0 0.0
    %4913 = vmatpush1.msra.mxu0 0.0
    %4914 = vmatprep.subr.mxu0 0.0
    %4915 = vmatpush1.msra.mxu0 0.0
    %4916 = vmatprep.subr.mxu0 0.0
    %4917 = vmatpush1.msra.mxu0 0.0
    %4918 = vmatprep.mubr.f32.mxu0 0.0
    %4919 = vmatmul.mubr.f32.gmra.mrb[0].mxu0 %v4846
    %v4920 = vpop.f32.mrb[0].mxu0
    %v4921 = vadd.f32 %v4838, %v4920
    %v4922 = vpop.f32.mrb[0].mxu0
    %4923 = vmatprep.mubr.f32.mxu0 0.0
    %4924 = vmatmul.mubr.f32.gmra.mrb[0].mxu0 %v4849
    %v4925 = vpop.f32.mrb[0].mxu0
    %v4926 = vadd.f32 %v4843, %v4925
    %v4927 = vpop.f32.mrb[0].mxu0
    %4928 = vdwg.mxu0
    %v4929 = vmax.f32 %v4921, 0.0
    %v4930 = vmax.f32 %v4926, 0.0
    %v4931 = vld [vmem:[%s2574] sm:$0xff]
    %v4932 = vld [vmem:[%s2574 + $0x8] sm:$0xff]
    %v4933 = vld [vmem:[%s2574 + $0x10] sm:$0xff]
    %v4934 = vld [vmem:[%s2574 + $0x18] sm:$0xff]
    %v4935 = vld [vmem:[%s2579] sm:$0x1]
    %v4937 = vlaneseq
    %v4938 = vshrl.u32 %v4937, 7
    %v4939 = vsub.s32 0, %v4938
    %v4940 = vrot.slane %v4935, %v4939
    %v4943 = vsel %vm103, %v4929, 0
    %v4946 = vsel %vm103, %v4930, 0
    %4948 = vmatprep.subr.mxu0 0.0
    %4949 = vmatpush1.msra.mxu0 %v4931
    %4950 = vmatprep.subr.mxu0 0.0
    %4951 = vmatpush1.msra.mxu0 %v4932
    %4952 = vmatprep.subr.mxu0 0.0
    %4953 = vmatpush1.msra.mxu0 %v4933
    %4954 = vmatprep.subr.mxu0 0.0
    %4955 = vmatpush1.msra.mxu0 %v4934
    %4956 = vmatprep.subr.mxu0 0.0
    %4957 = vmatpush1.msra.mxu0 0.0
    %4958 = vmatprep.subr.mxu0 0.0
    %4959 = vmatpush1.msra.mxu0 0.0
    %4960 = vmatprep.subr.mxu0 0.0
    %4961 = vmatpush1.msra.mxu0 0.0
    %4962 = vmatprep.subr.mxu0 0.0
    %4963 = vmatpush1.msra.mxu0 0.0
    %4964 = vmatprep.subr.mxu0 0.0
    %4965 = vmatpush1.msra.mxu0 0.0
    %4966 = vmatprep.subr.mxu0 0.0
    %4967 = vmatpush1.msra.mxu0 0.0
    %4968 = vmatprep.subr.mxu0 0.0
    %4969 = vmatpush1.msra.mxu0 0.0
    %4970 = vmatprep.subr.mxu0 0.0
    %4971 = vmatpush1.msra.mxu0 0.0
    %4972 = vmatprep.subr.mxu0 0.0
    %4973 = vmatpush1.msra.mxu0 0.0
    %4974 = vmatprep.subr.mxu0 0.0
    %4975 = vmatpush1.msra.mxu0 0.0
    %4976 = vmatprep.subr.mxu0 0.0
    %4977 = vmatpush1.msra.mxu0 0.0
    %4978 = vmatprep.subr.mxu0 0.0
    %4979 = vmatpush1.msra.mxu0 0.0
    %4980 = vmatprep.subr.mxu0 0.0
    %4981 = vmatpush1.msra.mxu0 0.0
    %4982 = vmatprep.subr.mxu0 0.0
    %4983 = vmatpush1.msra.mxu0 0.0
    %4984 = vmatprep.subr.mxu0 0.0
    %4985 = vmatpush1.msra.mxu0 0.0
    %4986 = vmatprep.subr.mxu0 0.0
    %4987 = vmatpush1.msra.mxu0 0.0
    %4988 = vmatprep.subr.mxu0 0.0
    %4989 = vmatpush1.msra.mxu0 0.0
    %4990 = vmatprep.subr.mxu0 0.0
    %4991 = vmatpush1.msra.mxu0 0.0
    %4992 = vmatprep.subr.mxu0 0.0
    %4993 = vmatpush1.msra.mxu0 0.0
    %4994 = vmatprep.subr.mxu0 0.0
    %4995 = vmatpush1.msra.mxu0 0.0
    %4996 = vmatprep.subr.mxu0 0.0
    %4997 = vmatpush1.msra.mxu0 0.0
    %4998 = vmatprep.subr.mxu0 0.0
    %4999 = vmatpush1.msra.mxu0 0.0
    %5000 = vmatprep.subr.mxu0 0.0
    %5001 = vmatpush1.msra.mxu0 0.0
    %5002 = vmatprep.subr.mxu0 0.0
    %5003 = vmatpush1.msra.mxu0 0.0
    %5004 = vmatprep.subr.mxu0 0.0
    %5005 = vmatpush1.msra.mxu0 0.0
    %5006 = vmatprep.subr.mxu0 0.0
    %5007 = vmatpush1.msra.mxu0 0.0
    %5008 = vmatprep.subr.mxu0 0.0
    %5009 = vmatpush1.msra.mxu0 0.0
    %5010 = vmatprep.subr.mxu0 0.0
    %5011 = vmatpush1.msra.mxu0 0.0
    %5012 = vmatprep.mubr.f32.mxu0 0.0
    %5013 = vmatmul.mubr.f32.gmra.mrb[0].mxu0 %v4943
    %v5014 = vpop.f32.mrb[0].mxu0
    %v5015 = vadd.f32 %v4940, %v5014
    %v5016 = vpop.f32.mrb[0].mxu0
    %5017 = vmatprep.mubr.f32.mxu0 0.0
    %5018 = vmatmul.mubr.f32.gmra.mrb[0].mxu0 %v4946
    %v5019 = vpop.f32.mrb[0].mxu0
    %v5020 = vadd.f32 %v4940, %v5019
    %v5021 = vpop.f32.mrb[0].mxu0
    %5022 = vdwg.mxu0
    %v5023 = vmax.f32 %v5015, 0.0
    %v5024 = vmax.f32 %v5020, 0.0
    %v5025 = vld [vmem:[%s2670] sm:$0xff]
    %v5026 = vld [vmem:[%s2670 + $0x8] sm:$0xff]
    %v5027 = vld [vmem:[%s2670 + $0x10] sm:$0xff]
    %v5028 = vld [vmem:[%s2670 + $0x18] sm:$0xff]
    %v5029 = vld [vmem:[%s2670 + $0x20] sm:$0xff]
    %v5030 = vld [vmem:[%s2670 + $0x28] sm:$0xff]
    %v5031 = vld [vmem:[%s2670 + $0x30] sm:$0xff]
    %v5032 = vld [vmem:[%s2670 + $0x38] sm:$0xff]
    %v5033 = vld [vmem:[%s2679] sm:$0x1]
    %v5035 = vlaneseq
    %v5036 = vshrl.u32 %v5035, 7
    %v5037 = vsub.s32 0, %v5036
    %v5038 = vrot.slane %v5033, %v5037
    %v5041 = vsel %vm1660, %v5023, 0
    %v5044 = vsel %vm1660, %v5024, 0
    %5046 = vmatprep.subr.mxu0 0.0
    %5047 = vmatpush1.msra.mxu0 %v5025
    %5048 = vmatprep.subr.mxu0 0.0
    %5049 = vmatpush1.msra.mxu0 %v5026
    %5050 = vmatprep.subr.mxu0 0.0
    %5051 = vmatpush1.msra.mxu0 %v5027
    %5052 = vmatprep.subr.mxu0 0.0
    %5053 = vmatpush1.msra.mxu0 %v5028
    %5054 = vmatprep.subr.mxu0 0.0
    %5055 = vmatpush1.msra.mxu0 %v5029
    %5056 = vmatprep.subr.mxu0 0.0
    %5057 = vmatpush1.msra.mxu0 %v5030
    %5058 = vmatprep.subr.mxu0 0.0
    %5059 = vmatpush1.msra.mxu0 %v5031
    %5060 = vmatprep.subr.mxu0 0.0
    %5061 = vmatpush1.msra.mxu0 %v5032
    %5062 = vmatprep.subr.mxu0 0.0
    %5063 = vmatpush1.msra.mxu0 0.0
    %5064 = vmatprep.subr.mxu0 0.0
    %5065 = vmatpush1.msra.mxu0 0.0
    %5066 = vmatprep.subr.mxu0 0.0
    %5067 = vmatpush1.msra.mxu0 0.0
    %5068 = vmatprep.subr.mxu0 0.0
    %5069 = vmatpush1.msra.mxu0 0.0
    %5070 = vmatprep.subr.mxu0 0.0
    %5071 = vmatpush1.msra.mxu0 0.0
    %5072 = vmatprep.subr.mxu0 0.0
    %5073 = vmatpush1.msra.mxu0 0.0
    %5074 = vmatprep.subr.mxu0 0.0
    %5075 = vmatpush1.msra.mxu0 0.0
    %5076 = vmatprep.subr.mxu0 0.0
    %5077 = vmatpush1.msra.mxu0 0.0
    %5078 = vmatprep.subr.mxu0 0.0
    %5079 = vmatpush1.msra.mxu0 0.0
    %5080 = vmatprep.subr.mxu0 0.0
    %5081 = vmatpush1.msra.mxu0 0.0
    %5082 = vmatprep.subr.mxu0 0.0
    %5083 = vmatpush1.msra.mxu0 0.0
    %5084 = vmatprep.subr.mxu0 0.0
    %5085 = vmatpush1.msra.mxu0 0.0
    %5086 = vmatprep.subr.mxu0 0.0
    %5087 = vmatpush1.msra.mxu0 0.0
    %5088 = vmatprep.subr.mxu0 0.0
    %5089 = vmatpush1.msra.mxu0 0.0
    %5090 = vmatprep.subr.mxu0 0.0
    %5091 = vmatpush1.msra.mxu0 0.0
    %5092 = vmatprep.subr.mxu0 0.0
    %5093 = vmatpush1.msra.mxu0 0.0
    %5094 = vmatprep.subr.mxu0 0.0
    %5095 = vmatpush1.msra.mxu0 0.0
    %5096 = vmatprep.subr.mxu0 0.0
    %5097 = vmatpush1.msra.mxu0 0.0
    %5098 = vmatprep.subr.mxu0 0.0
    %5099 = vmatpush1.msra.mxu0 0.0
    %5100 = vmatprep.subr.mxu0 0.0
    %5101 = vmatpush1.msra.mxu0 0.0
    %5102 = vmatprep.subr.mxu0 0.0
    %5103 = vmatpush1.msra.mxu0 0.0
    %5104 = vmatprep.subr.mxu0 0.0
    %5105 = vmatpush1.msra.mxu0 0.0
    %5106 = vmatprep.subr.mxu0 0.0
    %5107 = vmatpush1.msra.mxu0 0.0
    %5108 = vmatprep.subr.mxu0 0.0
    %5109 = vmatpush1.msra.mxu0 0.0
    %5110 = vmatprep.mubr.f32.mxu0 0.0
    %5111 = vmatmul.mubr.f32.gmra.mrb[0].mxu0 %v5041
    %v5112 = vpop.f32.mrb[0].mxu0
    %v5113 = vadd.f32 %v5038, %v5112
    %v5114 = vpop.f32.mrb[0].mxu0
    %5115 = vmatprep.mubr.f32.mxu0 0.0
    %5116 = vmatmul.mubr.f32.gmra.mrb[0].mxu0 %v5044
    %v5117 = vpop.f32.mrb[0].mxu0
    %v5118 = vadd.f32 %v5038, %v5117
    %v5119 = vpop.f32.mrb[0].mxu0
    %5120 = vdwg.mxu0
    %v5122 = vsel %vm103, %v5113, 0
    %v5125 = vsel %vm103, %v5118, 0
    %5127 = vmatprep.subr.mxu0 0.0
    %5128 = vmatpush1.msra.mxu0 %v631
    %5129 = vmatprep.subr.mxu0 0.0
    %5130 = vmatpush1.msra.mxu0 %v632
    %5131 = vmatprep.subr.mxu0 0.0
    %5132 = vmatpush1.msra.mxu0 %v633
    %5133 = vmatprep.subr.mxu0 0.0
    %5134 = vmatpush1.msra.mxu0 %v634
    %5135 = vmatprep.subr.mxu0 0.0
    %5136 = vmatpush1.msra.mxu0 0.0
    %5137 = vmatprep.subr.mxu0 0.0
    %5138 = vmatpush1.msra.mxu0 0.0
    %5139 = vmatprep.subr.mxu0 0.0
    %5140 = vmatpush1.msra.mxu0 0.0
    %5141 = vmatprep.subr.mxu0 0.0
    %5142 = vmatpush1.msra.mxu0 0.0
    %5143 = vmatprep.subr.mxu0 0.0
    %5144 = vmatpush1.msra.mxu0 0.0
    %5145 = vmatprep.subr.mxu0 0.0
    %5146 = vmatpush1.msra.mxu0 0.0
    %5147 = vmatprep.subr.mxu0 0.0
    %5148 = vmatpush1.msra.mxu0 0.0
    %5149 = vmatprep.subr.mxu0 0.0
    %5150 = vmatpush1.msra.mxu0 0.0
    %5151 = vmatprep.subr.mxu0 0.0
    %5152 = vmatpush1.msra.mxu0 0.0
    %5153 = vmatprep.subr.mxu0 0.0
    %5154 = vmatpush1.msra.mxu0 0.0
    %5155 = vmatprep.subr.mxu0 0.0
    %5156 = vmatpush1.msra.mxu0 0.0
    %5157 = vmatprep.subr.mxu0 0.0
    %5158 = vmatpush1.msra.mxu0 0.0
    %5159 = vmatprep.subr.mxu0 0.0
    %5160 = vmatpush1.msra.mxu0 0.0
    %5161 = vmatprep.subr.mxu0 0.0
    %5162 = vmatpush1.msra.mxu0 0.0
    %5163 = vmatprep.subr.mxu0 0.0
    %5164 = vmatpush1.msra.mxu0 0.0
    %5165 = vmatprep.subr.mxu0 0.0
    %5166 = vmatpush1.msra.mxu0 0.0
    %5167 = vmatprep.subr.mxu0 0.0
    %5168 = vmatpush1.msra.mxu0 0.0
    %5169 = vmatprep.subr.mxu0 0.0
    %5170 = vmatpush1.msra.mxu0 0.0
    %5171 = vmatprep.subr.mxu0 0.0
    %5172 = vmatpush1.msra.mxu0 0.0
    %5173 = vmatprep.subr.mxu0 0.0
    %5174 = vmatpush1.msra.mxu0 0.0
    %5175 = vmatprep.subr.mxu0 0.0
    %5176 = vmatpush1.msra.mxu0 0.0
    %5177 = vmatprep.subr.mxu0 0.0
    %5178 = vmatpush1.msra.mxu0 0.0
    %5179 = vmatprep.subr.mxu0 0.0
    %5180 = vmatpush1.msra.mxu0 0.0
    %5181 = vmatprep.subr.mxu0 0.0
    %5182 = vmatpush1.msra.mxu0 0.0
    %5183 = vmatprep.subr.mxu0 0.0
    %5184 = vmatpush1.msra.mxu0 0.0
    %5185 = vmatprep.subr.mxu0 0.0
    %5186 = vmatpush1.msra.mxu0 0.0
    %5187 = vmatprep.subr.mxu0 0.0
    %5188 = vmatpush1.msra.mxu0 0.0
    %5189 = vmatprep.subr.mxu0 0.0
    %5190 = vmatpush1.msra.mxu0 0.0
    %5191 = vmatprep.mubr.f32.mxu0 0.0
    %5192 = vmatmul.mubr.f32.gmra.mrb[0].mxu0 %v5122
    %v5193 = vpop.f32.mrb[0].mxu0
    %v5194 = vadd.f32 %v2772, %v5193
    %v5195 = vpop.f32.mrb[0].mxu0
    %5196 = vmatprep.mubr.f32.mxu0 0.0
    %5197 = vmatmul.mubr.f32.gmra.mrb[0].mxu0 %v5125
    %v5198 = vpop.f32.mrb[0].mxu0
    %v5199 = vadd.f32 %v2772, %v5198
    %v5200 = vpop.f32.mrb[0].mxu0
    %5201 = vdwg.mxu0
    %v5202 = vmax.f32 %v5194, 0.0
    %v5203 = vmax.f32 %v5199, 0.0
    %v5205 = vsel %vm345, %v5202, 0
    %v5208 = vsel %vm345, %v5203, 0
    %5210 = vmatprep.subr.mxu0 0.0
    %5211 = vmatpush1.msra.mxu0 %v636
    %5212 = vmatprep.subr.mxu0 0.0
    %5213 = vmatpush1.msra.mxu0 %v637
    %5214 = vmatprep.subr.mxu0 0.0
    %5215 = vmatpush1.msra.mxu0 0.0
    %5216 = vmatprep.subr.mxu0 0.0
    %5217 = vmatpush1.msra.mxu0 0.0
    %5218 = vmatprep.subr.mxu0 0.0
    %5219 = vmatpush1.msra.mxu0 0.0
    %5220 = vmatprep.subr.mxu0 0.0
    %5221 = vmatpush1.msra.mxu0 0.0
    %5222 = vmatprep.subr.mxu0 0.0
    %5223 = vmatpush1.msra.mxu0 0.0
    %5224 = vmatprep.subr.mxu0 0.0
    %5225 = vmatpush1.msra.mxu0 0.0
    %5226 = vmatprep.subr.mxu0 0.0
    %5227 = vmatpush1.msra.mxu0 0.0
    %5228 = vmatprep.subr.mxu0 0.0
    %5229 = vmatpush1.msra.mxu0 0.0
    %5230 = vmatprep.subr.mxu0 0.0
    %5231 = vmatpush1.msra.mxu0 0.0
    %5232 = vmatprep.subr.mxu0 0.0
    %5233 = vmatpush1.msra.mxu0 0.0
    %5234 = vmatprep.subr.mxu0 0.0
    %5235 = vmatpush1.msra.mxu0 0.0
    %5236 = vmatprep.subr.mxu0 0.0
    %5237 = vmatpush1.msra.mxu0 0.0
    %5238 = vmatprep.subr.mxu0 0.0
    %5239 = vmatpush1.msra.mxu0 0.0
    %5240 = vmatprep.subr.mxu0 0.0
    %5241 = vmatpush1.msra.mxu0 0.0
    %5242 = vmatprep.subr.mxu0 0.0
    %5243 = vmatpush1.msra.mxu0 0.0
    %5244 = vmatprep.subr.mxu0 0.0
    %5245 = vmatpush1.msra.mxu0 0.0
    %5246 = vmatprep.subr.mxu0 0.0
    %5247 = vmatpush1.msra.mxu0 0.0
    %5248 = vmatprep.subr.mxu0 0.0
    %5249 = vmatpush1.msra.mxu0 0.0
    %5250 = vmatprep.subr.mxu0 0.0
    %5251 = vmatpush1.msra.mxu0 0.0
    %5252 = vmatprep.subr.mxu0 0.0
    %5253 = vmatpush1.msra.mxu0 0.0
    %5254 = vmatprep.subr.mxu0 0.0
    %5255 = vmatpush1.msra.mxu0 0.0
    %5256 = vmatprep.subr.mxu0 0.0
    %5257 = vmatpush1.msra.mxu0 0.0
    %5258 = vmatprep.subr.mxu0 0.0
    %5259 = vmatpush1.msra.mxu0 0.0
    %5260 = vmatprep.subr.mxu0 0.0
    %5261 = vmatpush1.msra.mxu0 0.0
    %5262 = vmatprep.subr.mxu0 0.0
    %5263 = vmatpush1.msra.mxu0 0.0
    %5264 = vmatprep.subr.mxu0 0.0
    %5265 = vmatpush1.msra.mxu0 0.0
    %5266 = vmatprep.subr.mxu0 0.0
    %5267 = vmatpush1.msra.mxu0 0.0
    %5268 = vmatprep.subr.mxu0 0.0
    %5269 = vmatpush1.msra.mxu0 0.0
    %5270 = vmatprep.subr.mxu0 0.0
    %5271 = vmatpush1.msra.mxu0 0.0
    %5272 = vmatprep.subr.mxu0 0.0
    %5273 = vmatpush1.msra.mxu0 0.0
    %5274 = vmatprep.mubr.f32.mxu0 0.0
    %5275 = vmatmul.mubr.f32.gmra.mrb[0].mxu0 %v5205
    %v5276 = vpop.f32.mrb[0].mxu0
    %v5277 = vadd.f32 %v2861, %v5276
    %v5278 = vpop.f32.mrb[0].mxu0
    %5279 = vmatprep.mubr.f32.mxu0 0.0
    %5280 = vmatmul.mubr.f32.gmra.mrb[0].mxu0 %v5208
    %v5281 = vpop.f32.mrb[0].mxu0
    %v5282 = vadd.f32 %v2861, %v5281
    %v5283 = vpop.f32.mrb[0].mxu0
    %5284 = vdwg.mxu0
    %v5285 = vsel %vm2944, %v5277, -inf
    %5286 = vmax.xlane.f32.xlu0 %v5285
    %v5287 = vpop.xlane.xlu0 %5286
    %v5288 = vsel %vm2948, %v5282, -inf
    %5289 = vmax.xlane.f32.xlu0 %v5288
    %v5290 = vpop.xlane.xlu0 %5289
    %v5291 = vsub.f32 %v5277, %v5287
    %v5292 = vsub.f32 %v5282, %v5290
    %v5293 = vmul.f32 %v5291, 1.442695
    %v5294 = vpow.pop %v5293
    %v5295 = vmul.f32 %v5292, 1.442695
    %v5296 = vpow.pop %v5295
    %v5297 = vsel %vm2944, %v5294, 0.0
    %5298 = vadd.xlane.f32.xlu0 %v5297
    %v5299 = vpop.xlane.xlu0 %5298
    %v5300 = vsel %vm2948, %v5296, 0.0
    %5301 = vadd.xlane.f32.xlu0 %v5300
    %v5302 = vpop.xlane.xlu0 %5301
    %v5303 = vrcp.pop %v5299
    %v5304 = vrcp.pop %v5302
    %v5305 = vmul.f32 %v5294, %v5303
    %v5306 = vmul.f32 %v5296, %v5304
    %s5307 = scalar_lea.vmem [#allocation4], 1
    %5308 = vst.msk [vmem:[%s5307] sm:$0x1] %vm2968, %v5277
    %s5309 = scalar_lea.vmem [#allocation6], 1
    %5310 = vst.msk [vmem:[%s5309] sm:$0x1] %vm2970, %v5113
    %v5311 = vsel %vm2944, %v5305, -inf
    %5312 = vmax.xlane.f32.xlu0 %v5311
    %v5313 = vpop.xlane.xlu0 %5312
    %v5314 = vsel %vm2948, %v5306, -inf
    %5315 = vmax.xlane.f32.xlu0 %v5314
    %v5316 = vpop.xlane.xlu0 %5315
    %s5317 = scalar_lea.vmem %s26, 16
    %5318 = vst.msk [vmem:[%s5317] sm:$0xff] %vm2978, %v5313
    %5319 = vst.msk [vmem:[%s5317 + $0x8] sm:$0x3] %vm2980, %v5316
    // Predicated region
    $region98: #{tmsc_m7g_forward.1} parent=1 // pred_check
      _
    $region99: #{tmsc_m7g_forward.1} parent=1 // pred_check_branch
      %5321 = sbr.rel (0) target = $region101
    $region100: #{tmsc_m7g_forward.1} parent=1 // pred_region
      %s5323 = ssub.s32 32, 32
      %5324 = vsyncadd [#allocation5], %s5323
      %s5325 = sshll.u32 [#allocation4], 4
      %s5326 = int_to_ptr.vmem [resolvable:$true] %s5325
      %5331 = dma.vmem_to_hbm [thread:$0]  %s5326, 32, %s24, [#allocation5], 16, 16, 1
    $region101: #{tmsc_m7g_forward.1} parent=1 // pred_fallthru
      _
    // Predicated region
    $region102: #{tmsc_m7g_forward.1} parent=1 // pred_check
      _
    $region103: #{tmsc_m7g_forward.1} parent=1 // pred_check_branch
      %5333 = sbr.rel (0) target = $region105
    $region104: #{tmsc_m7g_forward.1} parent=1 // pred_region
      %s5335 = ssub.s32 32, 32
      %5336 = vsyncadd [#allocation7], %s5335
      %s5337 = sshll.u32 [#allocation6], 4
      %s5338 = int_to_ptr.vmem [resolvable:$true] %s5337
      %5343 = dma.vmem_to_hbm [thread:$0]  %s5338, 32, %s25, [#allocation7], 16, 16, 1
    $region105: #{tmsc_m7g_forward.1} parent=1 // pred_fallthru
      _
    // Predicated region
    $region106: #{tmsc_m7g_forward.1} parent=1 // pred_check
      _
    $region107: #{tmsc_m7g_forward.1} parent=1 // pred_check_branch
      %5345 = sbr.rel (0) target = $region109
    $region108: #{tmsc_m7g_forward.1} parent=1 // pred_region
      _
    $region109: #{tmsc_m7g_forward.1} parent=1 // pred_fallthru
      _
    // Predicated region
    $region110: #{tmsc_m7g_forward.1} parent=1 // pred_check
      _
    $region111: #{tmsc_m7g_forward.1} parent=1 // pred_check_branch
      %5347 = sbr.rel (0) target = $region113
    $region112: #{tmsc_m7g_forward.1} parent=1 // pred_region
      %5348 = dma.done [#allocation5], 32
    $region113: #{tmsc_m7g_forward.1} parent=1 // pred_fallthru
      _
    // Predicated region
    $region114: #{tmsc_m7g_forward.1} parent=1 // pred_check
      _
    $region115: #{tmsc_m7g_forward.1} parent=1 // pred_check_branch
      %5350 = sbr.rel (0) target = $region117
    $region116: #{tmsc_m7g_forward.1} parent=1 // pred_region
      %5351 = dma.done [#allocation7], 32
    $region117: #{tmsc_m7g_forward.1} parent=1 // pred_fallthru
      _
    // Predicated region
    $region118: #{tmsc_m7g_forward.1} parent=1 // pred_check
      _
    $region119: #{tmsc_m7g_forward.1} parent=1 // pred_check_branch
      %5353 = sbr.rel (0) target = $region121
    $region120: #{tmsc_m7g_forward.1} parent=1 // pred_region
      _
    $region121: #{tmsc_m7g_forward.1} parent=1 // pred_fallthru
      _
    %5354 = vsyncpa [#allocation5], 1
    %5355 = vsyncpa [#allocation7], 1

</llo_original>
